<compile_context>
chip_gen: v6e
topology: v6e:2x2x1
jax: 0.10.0
libtpu: 0.0.40
codegen_flags: <defaults>
</compile_context>

<pallas_src>
import math

import numpy as np

import jax
import jax.numpy as jnp
from jax.experimental import pallas as pl
from jax.experimental.pallas import tpu as pltpu


_COMPUTE_DTYPE = jnp.bfloat16   # MXU operands / activation storage
_BN_EPS = 1e-5


# ============================================================================
# Host-side (one-time) preparation of structure matrices.
# Layout for every activation inside the kernel:
#     2-D slab of shape (N*H, W*C) -- rows = (image, row), lanes = (col, ch).
# With features=(8,16,32,64) and spatial=16, W*C == 128 at every level.
# ============================================================================
def _band_full(k, width):
    """(3,3,Cin,Cout) folded HWIO kernel -> (3*W*Cin, W*Cout).

    Row blocks are ordered dy=-1,0,+1; each block is block tri-diagonal and
    implements the dx taps + channel mixing of the 3x3 conv (zero padding at
    the w edges is encoded by the truncated band)."""
    _, _, cin, cout = k.shape
    out = np.zeros((3, width * cin, width * cout), np.float32)
    for t in range(3):                                   # t = dy + 1
        for w in range(width):
            for dx in (-1, 0, 1):
                wp = w + dx
                if 0 <= wp < width:
                    out[t, wp * cin:(wp + 1) * cin,
                        w * cout:(w + 1) * cout] = k[t, dx + 1]
    return out.reshape(3 * width * cin, width * cout)


def _shift_cat(nb, height):
    """Stacked 0/1 row-shift matrices [D(dy=-1); D(dy=+1)], each (nb*H, nb*H).

    (D(dy) @ X)[(n,h), :] == X[(n, h+dy), :] with zero rows at image edges."""
    nh = nb * height
    d = np.zeros((2, nh, nh), np.float32)
    for k, dy in enumerate((-1, 1)):
        for n in range(nb):
            for h in range(height):
                hs = h + dy
                if 0 <= hs < height:
                    d[k, n * height + h, n * height + hs] = 1.0
    return d.reshape(2 * nh, nh)


def _pool_row_mats(nb, height):
    """Even/odd row selection matrices for MaxPool2d(2,2): (nb*H/2, nb*H)."""
    ho = height // 2
    pe = np.zeros((nb * ho, nb * height), np.float32)
    po = np.zeros((nb * ho, nb * height), np.float32)
    for n in range(nb):
        for h in range(ho):
            pe[n * ho + h, n * height + 2 * h] = 1.0
            po[n * ho + h, n * height + 2 * h + 1] = 1.0
    return pe, po


def _pool_lane_mats(width, c):
    """Even/odd column selection matrices for MaxPool2d(2,2): (W*C, W/2*C)."""
    wo = width // 2
    se = np.zeros((width * c, wo * c), np.float32)
    so = np.zeros((width * c, wo * c), np.float32)
    for w in range(wo):
        for ch in range(c):
            se[(2 * w) * c + ch, w * c + ch] = 1.0
            so[(2 * w + 1) * c + ch, w * c + ch] = 1.0
    return se, so


def _upconv_mat(wt, width):
    """ConvTranspose2d(k=2,s=2) weight (Cin,Cout,2,2) -> (W*Cin, 2*(2W*Cout)).

    Column halves hold the dy=0 / dy=1 output rows; within a half, columns are
    ordered ((2w+dx), cout) so results are already lane-dense 2W-wide rows."""
    cin, cout = wt.shape[0], wt.shape[1]
    wc2 = 2 * width * cout
    b = np.zeros((2, width * cin, wc2), np.float32)
    for dy in range(2):
        for w in range(width):
            for dx in range(2):
                b[dy, w * cin:(w + 1) * cin,
                  (2 * w + dx) * cout:(2 * w + dx + 1) * cout] = wt[:, :, dy, dx]
    return np.concatenate([b[0], b[1]], axis=1)


def _expand_row_mats(nb, height):
    """Row-expansion matrices (nb*2H, nb*H) scattering dy=0 / dy=1 rows."""
    e = np.zeros((2, nb * 2 * height, nb * height), np.float32)
    for dy in range(2):
        for n in range(nb):
            for h in range(height):
                e[dy, n * 2 * height + 2 * h + dy, n * height + h] = 1.0
    return e[0], e[1]


def _bias_row(b, width):
    """Per-channel bias -> (1, W*C) lane row (tiled over the W positions)."""
    b = np.asarray(b, np.float32)
    return np.tile(b, width)[None, :]


def _final_mat(wf, width):
    """1x1 conv weight (C, Cout) -> block-diagonal (W*C, W*Cout)."""
    c, cout = wf.shape
    out = np.zeros((width * c, width * cout), np.float32)
    for w in range(width):
        out[w * c:(w + 1) * c, w * cout:(w + 1) * cout] = wf
    return out


def prepare_params(params, cfg):
    """Fold eval-BN into the conv weights and build every structure matrix the
    fused kernel needs.  Runs once on the host, OUTSIDE the jitted forward."""
    feats = list(cfg["features"])
    nlev = len(feats)
    batch = cfg["batch"]
    spatial = cfg["spatial"]

    items = []

    def add(name, arr, dtype):
        items.append((name, jnp.asarray(np.asarray(arr, np.float32), dtype)))

    # ---- Encoder (both siamese branches batched on rows -> nb = 2*batch).
    nb = 2 * batch
    h = spatial
    for l, blk in enumerate(params["encoder"]):
        k1 = np.asarray(blk["w1"]) * np.asarray(blk["s1"])[None, None, None, :]
        k2 = np.asarray(blk["w2"]) * np.asarray(blk["s2"])[None, None, None, :]
        add(f"enc{l}_B1", _band_full(k1, h), _COMPUTE_DTYPE)
        add(f"enc{l}_b1", _bias_row(blk["b1"], h), jnp.float32)
        add(f"enc{l}_B2", _band_full(k2, h), _COMPUTE_DTYPE)
        add(f"enc{l}_b2", _bias_row(blk["b2"], h), jnp.float32)
        add(f"enc{l}_D", _shift_cat(nb, h), _COMPUTE_DTYPE)
        if l < nlev - 1:
            pe, po = _pool_row_mats(nb, h)
            se, so = _pool_lane_mats(h, feats[l])
            add(f"pool{l}_Pe", pe, _COMPUTE_DTYPE)
            add(f"pool{l}_Po", po, _COMPUTE_DTYPE)
            add(f"pool{l}_Se", se, _COMPUTE_DTYPE)
            add(f"pool{l}_So", so, _COMPUTE_DTYPE)
            h //= 2

    # ---- Decoder (single-branch rows -> nb = batch).
    h = spatial // (2 ** (nlev - 1))                     # bottleneck spatial
    for i in range(nlev - 1):
        up_w, up_b = params["up"][i]
        add(f"up{i}_B", _upconv_mat(np.asarray(up_w), h), _COMPUTE_DTYPE)
        add(f"up{i}_b", _bias_row(up_b, 2 * h), jnp.float32)
        e0, e1 = _expand_row_mats(batch, h)
        add(f"up{i}_E0", e0, jnp.float32)
        add(f"up{i}_E1", e1, jnp.float32)
        h *= 2

        blk = params["decoder"][i]
        cout = feats[nlev - 2 - i]
        k1 = np.asarray(blk["w1"]) * np.asarray(blk["s1"])[None, None, None, :]
        k2 = np.asarray(blk["w2"]) * np.asarray(blk["s2"])[None, None, None, :]
        # K-split of conv(concat(skip_diff, x)): first `cout` input channels act
        # on the skip diff, the remaining `cout` on the up-conv output.
        add(f"dec{i}_Bs", _band_full(k1[:, :, :cout, :], h), _COMPUTE_DTYPE)
        add(f"dec{i}_Bx", _band_full(k1[:, :, cout:, :], h), _COMPUTE_DTYPE)
        add(f"dec{i}_b1", _bias_row(blk["b1"], h), jnp.float32)
        add(f"dec{i}_B2", _band_full(k2, h), _COMPUTE_DTYPE)
        add(f"dec{i}_b2", _bias_row(blk["b2"], h), jnp.float32)
        add(f"dec{i}_D", _shift_cat(batch, h), _COMPUTE_DTYPE)

    w_f, b_f = params["final"]
    add("final_B", _final_mat(np.asarray(w_f), spatial), _COMPUTE_DTYPE)
    add("final_b", _bias_row(b_f, spatial), jnp.float32)

    names = tuple(n for n, _ in items)
    arrays = [a for _, a in items]
    return names, arrays


# ============================================================================
# The fused forward kernel (single pallas_call, single grid step).
# ============================================================================
def _make_forward_kernel(names, nlev):
    bf16 = _COMPUTE_DTYPE
    f32 = jnp.float32

    def kernel(*refs):
        assert len(refs) == len(names) + 2
        x_ref, out_ref = refs[0], refs[-1]
        wd = dict(zip(names, refs[1:-1]))

        def g(name):
            return wd[name][...]

        def shift_cat(x, dcat):
            """[x(dy=-1) | x(dy=0) | x(dy=+1)] along lanes (exact 0/1 matmul)."""
            nh = x.shape[0]
            sh = jnp.dot(dcat, x, preferred_element_type=f32).astype(x.dtype)
            return jnp.concatenate([sh[:nh], x, sh[nh:]], axis=1)

        def conv3x3(x, dcat, bfull, bias_row, relu=True):
            y = jnp.dot(shift_cat(x, dcat), bfull,
                        preferred_element_type=f32) + bias_row
            return jnp.maximum(y, 0.0) if relu else y

        def maxpool(x, l):
            rows = jnp.maximum(
                jnp.dot(g(f"pool{l}_Pe"), x, preferred_element_type=f32),
                jnp.dot(g(f"pool{l}_Po"), x, preferred_element_type=f32),
            ).astype(x.dtype)
            return jnp.maximum(
                jnp.dot(rows, g(f"pool{l}_Se"), preferred_element_type=f32),
                jnp.dot(rows, g(f"pool{l}_So"), preferred_element_type=f32),
            ).astype(x.dtype)

        def abs_diff_halves(a):
            half = a.shape[0] // 2
            return jnp.abs(a[:half].astype(f32) - a[half:].astype(f32)).astype(bf16)

        # --- Siamese encoder: shared weights -> both branches batched on rows.
        x = x_ref[...]
        skips = []
        for l in range(nlev):
            d = g(f"enc{l}_D")
            y = conv3x3(x, d, g(f"enc{l}_B1"), g(f"enc{l}_b1")).astype(bf16)
            y = conv3x3(y, d, g(f"enc{l}_B2"), g(f"enc{l}_b2")).astype(bf16)
            skips.append(y)
            x = maxpool(y, l) if l < nlev - 1 else y

        # --- Decoder.
        xd = abs_diff_halves(x)                          # |features1 - features2|
        for i in range(nlev - 1):
            # ConvTranspose2d(kernel=2, stride=2) + bias; row interleave in-kernel.
            u = jnp.dot(xd, g(f"up{i}_B"), preferred_element_type=f32)
            half_lanes = u.shape[1] // 2
            y = (jnp.dot(g(f"up{i}_E0"), u[:, :half_lanes],
                         preferred_element_type=f32)
                 + jnp.dot(g(f"up{i}_E1"), u[:, half_lanes:],
                           preferred_element_type=f32)
                 + g(f"up{i}_b"))
            xup = y.astype(bf16)

            # |skip1 - skip2| on raw C channels, then fused concat+conv via a
            # K-split (two accumulating matmuls): neither the diff nor the
            # concatenated tensor ever leaves VMEM/vregs.
            sd = abs_diff_halves(skips[nlev - 2 - i])
            d = g(f"dec{i}_D")
            y = (jnp.dot(shift_cat(sd, d), g(f"dec{i}_Bs"),
                         preferred_element_type=f32)
                 + jnp.dot(shift_cat(xup, d), g(f"dec{i}_Bx"),
                           preferred_element_type=f32)
                 + g(f"dec{i}_b1"))
            y = jnp.maximum(y, 0.0).astype(bf16)
            xd = conv3x3(y, d, g(f"dec{i}_B2"), g(f"dec{i}_b2")).astype(bf16)

        # --- Final 1x1 conv (block-diagonal matmul) + bias, f32 output.
        out = jnp.dot(xd, g("final_B"), preferred_element_type=f32) + g("final_b")
        out_ref[...] = out.astype(out_ref.dtype)

    return kernel


def siamese_unet_forward(names, cfg, weight_arrays, x1_nchw, x2_nchw):
    batch, cin, height, width = x1_nchw.shape
    outc = cfg["out_channels"]
    nlev = len(cfg["features"])

    def to2d(x):  # NCHW -> lane-dense (N*H, W*C) slab (channels minor on lanes)
        return jnp.transpose(x, (0, 2, 3, 1)).reshape(batch * height, width * cin)

    x = jnp.concatenate([to2d(x1_nchw), to2d(x2_nchw)], axis=0).astype(_COMPUTE_DTYPE)

    out2d = pl.pallas_call(
        _make_forward_kernel(names, nlev),
        out_shape=jax.ShapeDtypeStruct((batch * height, width * outc), jnp.float32),
        compiler_params=pltpu.CompilerParams(vmem_limit_bytes=32 * 1024 * 1024),
    )(x, *weight_arrays)

    out = out2d.reshape(batch, height, width, outc)
    return jnp.transpose(out, (0, 3, 1, 2))             # NHWC -> NCHW


# ============================================================================
# Deterministic parameter construction (matches the PyTorch module structure).
# ============================================================================
def _init_conv_block(key, in_c, out_c):
    ks = jax.random.split(key, 6)
    w1 = jax.random.normal(ks[0], (3, 3, in_c, out_c), jnp.float32) / math.sqrt(9 * in_c)
    w2 = jax.random.normal(ks[1], (3, 3, out_c, out_c), jnp.float32) / math.sqrt(9 * out_c)
    g1 = 1.0 + 0.1 * jax.random.normal(ks[2], (out_c,), jnp.float32)
    b1 = 0.1 * jax.random.normal(ks[3], (out_c,), jnp.float32)
    g2 = 1.0 + 0.1 * jax.random.normal(ks[4], (out_c,), jnp.float32)
    b2 = 0.1 * jax.random.normal(ks[5], (out_c,), jnp.float32)
    inv = 1.0 / math.sqrt(1.0 + _BN_EPS)   # eval-BN: running_mean=0, running_var=1
    return {"w1": w1, "s1": g1 * inv, "b1": b1,
            "w2": w2, "s2": g2 * inv, "b2": b2}


def init_params(key, in_channels=4, out_channels=2, features=(8, 16, 32, 64)):
    keys = jax.random.split(key, 16)
    ki = iter(keys)
    enc = [_init_conv_block(next(ki), in_channels, features[0])]
    for i in range(len(features) - 1):
        enc.append(_init_conv_block(next(ki), features[i], features[i + 1]))

    ups, dec = [], []
    for i in range(len(features) - 1, 0, -1):
        cin, cout = features[i], features[i - 1]
        k_w, k_b = jax.random.split(next(ki))
        up_w = jax.random.normal(k_w, (cin, cout, 2, 2), jnp.float32) / math.sqrt(4 * cin)
        up_b = 0.1 * jax.random.normal(k_b, (cout,), jnp.float32)
        ups.append((up_w, up_b))
        dec.append(_init_conv_block(next(ki), cout * 2, cout))

    k_w, k_b = jax.random.split(next(ki))
    fin_w = jax.random.normal(k_w, (features[0], out_channels), jnp.float32) / math.sqrt(features[0])
    fin_b = 0.1 * jax.random.normal(k_b, (out_channels,), jnp.float32)
    return {"encoder": enc, "up": ups, "decoder": dec, "final": (fin_w, fin_b)}


# ============================================================================
# Pure-JAX (XLA) reference with the SAME bf16 rounding points as the kernel,
# used only as an in-script sanity check of the fused-kernel math.
# ============================================================================
def reference_forward(params, x1_nchw, x2_nchw):
    f32 = jnp.float32

    def bf(a):
        return a.astype(_COMPUTE_DTYPE).astype(f32)

    def conv3(x, w, s, b):
        k = bf(w * s[None, None, None, :])
        y = jax.lax.conv_general_dilated(
            x, k, window_strides=(1, 1), padding="SAME",
            dimension_numbers=("NHWC", "HWIO", "NHWC"))
        return bf(jnp.maximum(y + b, 0.0))

    def pool(x):
        n, h, w, c = x.shape
        return x.reshape(n, h // 2, 2, w // 2, 2, c).max(axis=(2, 4))

    def upconv(x, wt, b):
        y = jnp.einsum("nhwc,coij->nhiwjo", x, bf(wt))
        n, h, _, w, _, co = y.shape
        return bf(y.reshape(n, 2 * h, 2 * w, co) + b)

    def encoder(x):
        skips = []
        for l, blk in enumerate(params["encoder"]):
            x = conv3(x, blk["w1"], blk["s1"], blk["b1"])
            x = conv3(x, blk["w2"], blk["s2"], blk["b2"])
            skips.append(x)
            if l < len(params["encoder"]) - 1:
                x = pool(x)
        return x, skips[::-1][1:]

    x1 = bf(jnp.transpose(x1_nchw, (0, 2, 3, 1)))
    x2 = bf(jnp.transpose(x2_nchw, (0, 2, 3, 1)))
    f1, s1 = encoder(x1)
    f2, s2 = encoder(x2)

    x = bf(jnp.abs(f1 - f2))
    for i, blk in enumerate(params["decoder"]):
        up_w, up_b = params["up"][i]
        x = upconv(x, up_w, up_b)
        sd = bf(jnp.abs(s1[i] - s2[i]))
        x = jnp.concatenate([sd, x], axis=-1)
        x = conv3(x, blk["w1"], blk["s1"], blk["b1"])
        x = conv3(x, blk["w2"], blk["s2"], blk["b2"])

    w_f, b_f = params["final"]
    out = jnp.einsum("nhwc,co->nhwo", x, bf(w_f)) + b_f
    return jnp.transpose(out, (0, 3, 1, 2))


# ============================================================================
if __name__ == "__main__":
    key = jax.random.PRNGKey(0)
    k_p, k_x1, k_x2 = jax.random.split(key, 3)

    batch, in_channels, out_channels, spatial = 2, 4, 2, 16
    features = (8, 16, 32, 64)
    cfg = dict(batch=batch, in_channels=in_channels, out_channels=out_channels,
               features=features, spatial=spatial)

    params = init_params(k_p, in_channels, out_channels, features)
    x1 = jax.random.normal(k_x1, (batch, in_channels, spatial, spatial), jnp.float32)
    x2 = jax.random.normal(k_x2, (batch, in_channels, spatial, spatial), jnp.float32)

    # One-time host-side weight preparation (outside jit).
    names, weight_arrays = prepare_params(params, cfg)

    fwd = jax.jit(lambda w, a, b: siamese_unet_forward(names, cfg, w, a, b))
    out = jax.block_until_ready(fwd(weight_arrays, x1, x2))

    assert out.shape == (batch, out_channels, spatial, spatial), out.shape
    assert bool(jnp.all(jnp.isfinite(out)))

    # Matched-precision XLA reference check (same bf16 rounding points).
    ref = jax.block_until_ready(reference_forward(params, x1, x2))
    err = float(jnp.max(jnp.abs(out - ref)))
    assert err < 2e-2, f"kernel vs reference mismatch: max abs err = {err}"

    print("KERNEL_OK")
</pallas_src>

<mosaic_0001>
module attributes {stable_mosaic.version = 11 : i64} {
  func.func @kernel(%arg0: memref<64x64xbf16, #tpu.memory_space<vmem>>, %arg1: memref<192x128xbf16, #tpu.memory_space<vmem>>, %arg2: memref<1x128xf32, #tpu.memory_space<vmem>>, %arg3: memref<384x128xbf16, #tpu.memory_space<vmem>>, %arg4: memref<1x128xf32, #tpu.memory_space<vmem>>, %arg5: memref<128x64xbf16, #tpu.memory_space<vmem>>, %arg6: memref<32x64xbf16, #tpu.memory_space<vmem>>, %arg7: memref<32x64xbf16, #tpu.memory_space<vmem>>, %arg8: memref<128x64xbf16, #tpu.memory_space<vmem>>, %arg9: memref<128x64xbf16, #tpu.memory_space<vmem>>, %arg10: memref<192x128xbf16, #tpu.memory_space<vmem>>, %arg11: memref<1x128xf32, #tpu.memory_space<vmem>>, %arg12: memref<384x128xbf16, #tpu.memory_space<vmem>>, %arg13: memref<1x128xf32, #tpu.memory_space<vmem>>, %arg14: memref<64x32xbf16, #tpu.memory_space<vmem>>, %arg15: memref<16x32xbf16, #tpu.memory_space<vmem>>, %arg16: memref<16x32xbf16, #tpu.memory_space<vmem>>, %arg17: memref<128x64xbf16, #tpu.memory_space<vmem>>, %arg18: memref<128x64xbf16, #tpu.memory_space<vmem>>, %arg19: memref<192x128xbf16, #tpu.memory_space<vmem>>, %arg20: memref<1x128xf32, #tpu.memory_space<vmem>>, %arg21: memref<384x128xbf16, #tpu.memory_space<vmem>>, %arg22: memref<1x128xf32, #tpu.memory_space<vmem>>, %arg23: memref<32x16xbf16, #tpu.memory_space<vmem>>, %arg24: memref<8x16xbf16, #tpu.memory_space<vmem>>, %arg25: memref<8x16xbf16, #tpu.memory_space<vmem>>, %arg26: memref<128x64xbf16, #tpu.memory_space<vmem>>, %arg27: memref<128x64xbf16, #tpu.memory_space<vmem>>, %arg28: memref<192x128xbf16, #tpu.memory_space<vmem>>, %arg29: memref<1x128xf32, #tpu.memory_space<vmem>>, %arg30: memref<384x128xbf16, #tpu.memory_space<vmem>>, %arg31: memref<1x128xf32, #tpu.memory_space<vmem>>, %arg32: memref<16x8xbf16, #tpu.memory_space<vmem>>, %arg33: memref<128x256xbf16, #tpu.memory_space<vmem>>, %arg34: memref<1x128xf32, #tpu.memory_space<vmem>>, %arg35: memref<8x4xf32, #tpu.memory_space<vmem>>, %arg36: memref<8x4xf32, #tpu.memory_space<vmem>>, %arg37: memref<384x128xbf16, #tpu.memory_space<vmem>>, %arg38: memref<384x128xbf16, #tpu.memory_space<vmem>>, %arg39: memref<1x128xf32, #tpu.memory_space<vmem>>, %arg40: memref<384x128xbf16, #tpu.memory_space<vmem>>, %arg41: memref<1x128xf32, #tpu.memory_space<vmem>>, %arg42: memref<16x8xbf16, #tpu.memory_space<vmem>>, %arg43: memref<128x256xbf16, #tpu.memory_space<vmem>>, %arg44: memref<1x128xf32, #tpu.memory_space<vmem>>, %arg45: memref<16x8xf32, #tpu.memory_space<vmem>>, %arg46: memref<16x8xf32, #tpu.memory_space<vmem>>, %arg47: memref<384x128xbf16, #tpu.memory_space<vmem>>, %arg48: memref<384x128xbf16, #tpu.memory_space<vmem>>, %arg49: memref<1x128xf32, #tpu.memory_space<vmem>>, %arg50: memref<384x128xbf16, #tpu.memory_space<vmem>>, %arg51: memref<1x128xf32, #tpu.memory_space<vmem>>, %arg52: memref<32x16xbf16, #tpu.memory_space<vmem>>, %arg53: memref<128x256xbf16, #tpu.memory_space<vmem>>, %arg54: memref<1x128xf32, #tpu.memory_space<vmem>>, %arg55: memref<32x16xf32, #tpu.memory_space<vmem>>, %arg56: memref<32x16xf32, #tpu.memory_space<vmem>>, %arg57: memref<384x128xbf16, #tpu.memory_space<vmem>>, %arg58: memref<384x128xbf16, #tpu.memory_space<vmem>>, %arg59: memref<1x128xf32, #tpu.memory_space<vmem>>, %arg60: memref<384x128xbf16, #tpu.memory_space<vmem>>, %arg61: memref<1x128xf32, #tpu.memory_space<vmem>>, %arg62: memref<64x32xbf16, #tpu.memory_space<vmem>>, %arg63: memref<128x32xbf16, #tpu.memory_space<vmem>>, %arg64: memref<1x32xf32, #tpu.memory_space<vmem>>, %arg65: memref<32x32xf32, #tpu.memory_space<vmem>>) attributes {dimension_semantics = [], scalar_prefetch = 0 : i64, scratch_operands = 0 : i64, tpu.core_type = #tpu.core_type<tc>} {
    %c0 = arith.constant 0 : index
    %c0_0 = arith.constant 0 : index
    %0 = vector.load %arg0[%c0, %c0_0] : memref<64x64xbf16, #tpu.memory_space<vmem>>, vector<64x64xbf16>
    %c0_1 = arith.constant 0 : index
    %c0_2 = arith.constant 0 : index
    %1 = vector.load %arg5[%c0_1, %c0_2] : memref<128x64xbf16, #tpu.memory_space<vmem>>, vector<128x64xbf16>
    %c0_3 = arith.constant 0 : index
    %c0_4 = arith.constant 0 : index
    %2 = vector.load %arg1[%c0_3, %c0_4] : memref<192x128xbf16, #tpu.memory_space<vmem>>, vector<192x128xbf16>
    %c0_5 = arith.constant 0 : index
    %c0_6 = arith.constant 0 : index
    %3 = vector.load %arg2[%c0_5, %c0_6] : memref<1x128xf32, #tpu.memory_space<vmem>>, vector<1x128xf32>
    %cst = arith.constant dense<0.000000e+00> : vector<128x64xf32>
    %4 = tpu.matmul %1, %0, %cst {dimension_numbers = #tpu.dot_dimension_numbers<[1], [0], [0], [1], [0, 0, 1, 1], [], []>} : vector<128x64xbf16>, vector<64x64xbf16>, vector<128x64xf32> -> vector<128x64xf32>
    %5 = arith.truncf %4 : vector<128x64xf32> to vector<128x64xbf16>
    %6 = vector.extract_strided_slice %5 {offsets = [0, 0], sizes = [64, 64], strides = [1, 1]} : vector<128x64xbf16> to vector<64x64xbf16>
    %7 = vector.extract_strided_slice %5 {offsets = [64, 0], sizes = [64, 64], strides = [1, 1]} : vector<128x64xbf16> to vector<64x64xbf16>
    %8 = tpu.concatenate %6, %0, %7 in 1 : vector<64x64xbf16>, vector<64x64xbf16>, vector<64x64xbf16> -> vector<64x192xbf16>
    %cst_7 = arith.constant dense<0.000000e+00> : vector<64x128xf32>
    %9 = tpu.matmul %8, %2, %cst_7 {dimension_numbers = #tpu.dot_dimension_numbers<[1], [0], [0], [1], [0, 0, 1, 1], [], []>} : vector<64x192xbf16>, vector<192x128xbf16>, vector<64x128xf32> -> vector<64x128xf32>
    %10 = vector.broadcast %3 : vector<1x128xf32> to vector<64x128xf32>
    %11 = arith.addf %9, %10 : vector<64x128xf32>
    %cst_8 = arith.constant 0.000000e+00 : f32
    %12 = vector.broadcast %cst_8 : f32 to vector<64x128xf32>
    %13 = arith.maximumf %11, %12 : vector<64x128xf32>
    %14 = arith.truncf %13 : vector<64x128xf32> to vector<64x128xbf16>
    %c0_9 = arith.constant 0 : index
    %c0_10 = arith.constant 0 : index
    %15 = vector.load %arg3[%c0_9, %c0_10] : memref<384x128xbf16, #tpu.memory_space<vmem>>, vector<384x128xbf16>
    %c0_11 = arith.constant 0 : index
    %c0_12 = arith.constant 0 : index
    %16 = vector.load %arg4[%c0_11, %c0_12] : memref<1x128xf32, #tpu.memory_space<vmem>>, vector<1x128xf32>
    %cst_13 = arith.constant dense<0.000000e+00> : vector<128x128xf32>
    %17 = tpu.matmul %1, %14, %cst_13 {dimension_numbers = #tpu.dot_dimension_numbers<[1], [0], [0], [1], [0, 0, 1, 1], [], []>} : vector<128x64xbf16>, vector<64x128xbf16>, vector<128x128xf32> -> vector<128x128xf32>
    %18 = arith.truncf %17 : vector<128x128xf32> to vector<128x128xbf16>
    %19 = vector.extract_strided_slice %18 {offsets = [0, 0], sizes = [64, 128], strides = [1, 1]} : vector<128x128xbf16> to vector<64x128xbf16>
    %20 = vector.extract_strided_slice %18 {offsets = [64, 0], sizes = [64, 128], strides = [1, 1]} : vector<128x128xbf16> to vector<64x128xbf16>
    %21 = tpu.concatenate %19, %14, %20 in 1 : vector<64x128xbf16>, vector<64x128xbf16>, vector<64x128xbf16> -> vector<64x384xbf16>
    %cst_14 = arith.constant dense<0.000000e+00> : vector<64x128xf32>
    %22 = tpu.matmul %21, %15, %cst_14 {dimension_numbers = #tpu.dot_dimension_numbers<[1], [0], [0], [1], [0, 0, 1, 1], [], []>} : vector<64x384xbf16>, vector<384x128xbf16>, vector<64x128xf32> -> vector<64x128xf32>
    %23 = vector.broadcast %16 : vector<1x128xf32> to vector<64x128xf32>
    %24 = arith.addf %22, %23 : vector<64x128xf32>
    %cst_15 = arith.constant 0.000000e+00 : f32
    %25 = vector.broadcast %cst_15 : f32 to vector<64x128xf32>
    %26 = arith.maximumf %24, %25 : vector<64x128xf32>
    %27 = arith.truncf %26 : vector<64x128xf32> to vector<64x128xbf16>
    %c0_16 = arith.constant 0 : index
    %c0_17 = arith.constant 0 : index
    %28 = vector.load %arg6[%c0_16, %c0_17] : memref<32x64xbf16, #tpu.memory_space<vmem>>, vector<32x64xbf16>
    %cst_18 = arith.constant dense<0.000000e+00> : vector<32x128xf32>
    %29 = tpu.matmul %28, %27, %cst_18 {dimension_numbers = #tpu.dot_dimension_numbers<[1], [0], [0], [1], [0, 0, 1, 1], [], []>} : vector<32x64xbf16>, vector<64x128xbf16>, vector<32x128xf32> -> vector<32x128xf32>
    %c0_19 = arith.constant 0 : index
    %c0_20 = arith.constant 0 : index
    %30 = vector.load %arg7[%c0_19, %c0_20] : memref<32x64xbf16, #tpu.memory_space<vmem>>, vector<32x64xbf16>
    %cst_21 = arith.constant dense<0.000000e+00> : vector<32x128xf32>
    %31 = tpu.matmul %30, %27, %cst_21 {dimension_numbers = #tpu.dot_dimension_numbers<[1], [0], [0], [1], [0, 0, 1, 1], [], []>} : vector<32x64xbf16>, vector<64x128xbf16>, vector<32x128xf32> -> vector<32x128xf32>
    %32 = arith.maximumf %29, %31 : vector<32x128xf32>
    %33 = arith.truncf %32 : vector<32x128xf32> to vector<32x128xbf16>
    %c0_22 = arith.constant 0 : index
    %c0_23 = arith.constant 0 : index
    %34 = vector.load %arg8[%c0_22, %c0_23] : memref<128x64xbf16, #tpu.memory_space<vmem>>, vector<128x64xbf16>
    %cst_24 = arith.constant dense<0.000000e+00> : vector<32x64xf32>
    %35 = tpu.matmul %33, %34, %cst_24 {dimension_numbers = #tpu.dot_dimension_numbers<[1], [0], [0], [1], [0, 0, 1, 1], [], []>} : vector<32x128xbf16>, vector<128x64xbf16>, vector<32x64xf32> -> vector<32x64xf32>
    %c0_25 = arith.constant 0 : index
    %c0_26 = arith.constant 0 : index
    %36 = vector.load %arg9[%c0_25, %c0_26] : memref<128x64xbf16, #tpu.memory_space<vmem>>, vector<128x64xbf16>
    %cst_27 = arith.constant dense<0.000000e+00> : vector<32x64xf32>
    %37 = tpu.matmul %33, %36, %cst_27 {dimension_numbers = #tpu.dot_dimension_numbers<[1], [0], [0], [1], [0, 0, 1, 1], [], []>} : vector<32x128xbf16>, vector<128x64xbf16>, vector<32x64xf32> -> vector<32x64xf32>
    %38 = arith.maximumf %35, %37 : vector<32x64xf32>
    %39 = arith.truncf %38 : vector<32x64xf32> to vector<32x64xbf16>
    %c0_28 = arith.constant 0 : index
    %c0_29 = arith.constant 0 : index
    %40 = vector.load %arg14[%c0_28, %c0_29] : memref<64x32xbf16, #tpu.memory_space<vmem>>, vector<64x32xbf16>
    %c0_30 = arith.constant 0 : index
    %c0_31 = arith.constant 0 : index
    %41 = vector.load %arg10[%c0_30, %c0_31] : memref<192x128xbf16, #tpu.memory_space<vmem>>, vector<192x128xbf16>
    %c0_32 = arith.constant 0 : index
    %c0_33 = arith.constant 0 : index
    %42 = vector.load %arg11[%c0_32, %c0_33] : memref<1x128xf32, #tpu.memory_space<vmem>>, vector<1x128xf32>
    %cst_34 = arith.constant dense<0.000000e+00> : vector<64x64xf32>
    %43 = tpu.matmul %40, %39, %cst_34 {dimension_numbers = #tpu.dot_dimension_numbers<[1], [0], [0], [1], [0, 0, 1, 1], [], []>} : vector<64x32xbf16>, vector<32x64xbf16>, vector<64x64xf32> -> vector<64x64xf32>
    %44 = arith.truncf %43 : vector<64x64xf32> to vector<64x64xbf16>
    %45 = vector.extract_strided_slice %44 {offsets = [0, 0], sizes = [32, 64], strides = [1, 1]} : vector<64x64xbf16> to vector<32x64xbf16>
    %46 = vector.extract_strided_slice %44 {offsets = [32, 0], sizes = [32, 64], strides = [1, 1]} : vector<64x64xbf16> to vector<32x64xbf16>
    %47 = tpu.concatenate %45, %39, %46 in 1 : vector<32x64xbf16>, vector<32x64xbf16>, vector<32x64xbf16> -> vector<32x192xbf16>
    %cst_35 = arith.constant dense<0.000000e+00> : vector<32x128xf32>
    %48 = tpu.matmul %47, %41, %cst_35 {dimension_numbers = #tpu.dot_dimension_numbers<[1], [0], [0], [1], [0, 0, 1, 1], [], []>} : vector<32x192xbf16>, vector<192x128xbf16>, vector<32x128xf32> -> vector<32x128xf32>
    %49 = vector.broadcast %42 : vector<1x128xf32> to vector<32x128xf32>
    %50 = arith.addf %48, %49 : vector<32x128xf32>
    %cst_36 = arith.constant 0.000000e+00 : f32
    %51 = vector.broadcast %cst_36 : f32 to vector<32x128xf32>
    %52 = arith.maximumf %50, %51 : vector<32x128xf32>
    %53 = arith.truncf %52 : vector<32x128xf32> to vector<32x128xbf16>
    %c0_37 = arith.constant 0 : index
    %c0_38 = arith.constant 0 : index
    %54 = vector.load %arg12[%c0_37, %c0_38] : memref<384x128xbf16, #tpu.memory_space<vmem>>, vector<384x128xbf16>
    %c0_39 = arith.constant 0 : index
    %c0_40 = arith.constant 0 : index
    %55 = vector.load %arg13[%c0_39, %c0_40] : memref<1x128xf32, #tpu.memory_space<vmem>>, vector<1x128xf32>
    %cst_41 = arith.constant dense<0.000000e+00> : vector<64x128xf32>
    %56 = tpu.matmul %40, %53, %cst_41 {dimension_numbers = #tpu.dot_dimension_numbers<[1], [0], [0], [1], [0, 0, 1, 1], [], []>} : vector<64x32xbf16>, vector<32x128xbf16>, vector<64x128xf32> -> vector<64x128xf32>
    %57 = arith.truncf %56 : vector<64x128xf32> to vector<64x128xbf16>
    %58 = vector.extract_strided_slice %57 {offsets = [0, 0], sizes = [32, 128], strides = [1, 1]} : vector<64x128xbf16> to vector<32x128xbf16>
    %59 = vector.extract_strided_slice %57 {offsets = [32, 0], sizes = [32, 128], strides = [1, 1]} : vector<64x128xbf16> to vector<32x128xbf16>
    %60 = tpu.concatenate %58, %53, %59 in 1 : vector<32x128xbf16>, vector<32x128xbf16>, vector<32x128xbf16> -> vector<32x384xbf16>
    %cst_42 = arith.constant dense<0.000000e+00> : vector<32x128xf32>
    %61 = tpu.matmul %60, %54, %cst_42 {dimension_numbers = #tpu.dot_dimension_numbers<[1], [0], [0], [1], [0, 0, 1, 1], [], []>} : vector<32x384xbf16>, vector<384x128xbf16>, vector<32x128xf32> -> vector<32x128xf32>
    %62 = vector.broadcast %55 : vector<1x128xf32> to vector<32x128xf32>
    %63 = arith.addf %61, %62 : vector<32x128xf32>
    %cst_43 = arith.constant 0.000000e+00 : f32
    %64 = vector.broadcast %cst_43 : f32 to vector<32x128xf32>
    %65 = arith.maximumf %63, %64 : vector<32x128xf32>
    %66 = arith.truncf %65 : vector<32x128xf32> to vector<32x128xbf16>
    %c0_44 = arith.constant 0 : index
    %c0_45 = arith.constant 0 : index
    %67 = vector.load %arg15[%c0_44, %c0_45] : memref<16x32xbf16, #tpu.memory_space<vmem>>, vector<16x32xbf16>
    %cst_46 = arith.constant dense<0.000000e+00> : vector<16x128xf32>
    %68 = tpu.matmul %67, %66, %cst_46 {dimension_numbers = #tpu.dot_dimension_numbers<[1], [0], [0], [1], [0, 0, 1, 1], [], []>} : vector<16x32xbf16>, vector<32x128xbf16>, vector<16x128xf32> -> vector<16x128xf32>
    %c0_47 = arith.constant 0 : index
    %c0_48 = arith.constant 0 : index
    %69 = vector.load %arg16[%c0_47, %c0_48] : memref<16x32xbf16, #tpu.memory_space<vmem>>, vector<16x32xbf16>
    %cst_49 = arith.constant dense<0.000000e+00> : vector<16x128xf32>
    %70 = tpu.matmul %69, %66, %cst_49 {dimension_numbers = #tpu.dot_dimension_numbers<[1], [0], [0], [1], [0, 0, 1, 1], [], []>} : vector<16x32xbf16>, vector<32x128xbf16>, vector<16x128xf32> -> vector<16x128xf32>
    %71 = arith.maximumf %68, %70 : vector<16x128xf32>
    %72 = arith.truncf %71 : vector<16x128xf32> to vector<16x128xbf16>
    %c0_50 = arith.constant 0 : index
    %c0_51 = arith.constant 0 : index
    %73 = vector.load %arg17[%c0_50, %c0_51] : memref<128x64xbf16, #tpu.memory_space<vmem>>, vector<128x64xbf16>
    %cst_52 = arith.constant dense<0.000000e+00> : vector<16x64xf32>
    %74 = tpu.matmul %72, %73, %cst_52 {dimension_numbers = #tpu.dot_dimension_numbers<[1], [0], [0], [1], [0, 0, 1, 1], [], []>} : vector<16x128xbf16>, vector<128x64xbf16>, vector<16x64xf32> -> vector<16x64xf32>
    %c0_53 = arith.constant 0 : index
    %c0_54 = arith.constant 0 : index
    %75 = vector.load %arg18[%c0_53, %c0_54] : memref<128x64xbf16, #tpu.memory_space<vmem>>, vector<128x64xbf16>
    %cst_55 = arith.constant dense<0.000000e+00> : vector<16x64xf32>
    %76 = tpu.matmul %72, %75, %cst_55 {dimension_numbers = #tpu.dot_dimension_numbers<[1], [0], [0], [1], [0, 0, 1, 1], [], []>} : vector<16x128xbf16>, vector<128x64xbf16>, vector<16x64xf32> -> vector<16x64xf32>
    %77 = arith.maximumf %74, %76 : vector<16x64xf32>
    %78 = arith.truncf %77 : vector<16x64xf32> to vector<16x64xbf16>
    %c0_56 = arith.constant 0 : index
    %c0_57 = arith.constant 0 : index
    %79 = vector.load %arg23[%c0_56, %c0_57] : memref<32x16xbf16, #tpu.memory_space<vmem>>, vector<32x16xbf16>
    %c0_58 = arith.constant 0 : index
    %c0_59 = arith.constant 0 : index
    %80 = vector.load %arg19[%c0_58, %c0_59] : memref<192x128xbf16, #tpu.memory_space<vmem>>, vector<192x128xbf16>
    %c0_60 = arith.constant 0 : index
    %c0_61 = arith.constant 0 : index
    %81 = vector.load %arg20[%c0_60, %c0_61] : memref<1x128xf32, #tpu.memory_space<vmem>>, vector<1x128xf32>
    %cst_62 = arith.constant dense<0.000000e+00> : vector<32x64xf32>
    %82 = tpu.matmul %79, %78, %cst_62 {dimension_numbers = #tpu.dot_dimension_numbers<[1], [0], [0], [1], [0, 0, 1, 1], [], []>} : vector<32x16xbf16>, vector<16x64xbf16>, vector<32x64xf32> -> vector<32x64xf32>
    %83 = arith.truncf %82 : vector<32x64xf32> to vector<32x64xbf16>
    %84 = vector.extract_strided_slice %83 {offsets = [0, 0], sizes = [16, 64], strides = [1, 1]} : vector<32x64xbf16> to vector<16x64xbf16>
    %85 = vector.extract_strided_slice %83 {offsets = [16, 0], sizes = [16, 64], strides = [1, 1]} : vector<32x64xbf16> to vector<16x64xbf16>
    %86 = tpu.concatenate %84, %78, %85 in 1 : vector<16x64xbf16>, vector<16x64xbf16>, vector<16x64xbf16> -> vector<16x192xbf16>
    %cst_63 = arith.constant dense<0.000000e+00> : vector<16x128xf32>
    %87 = tpu.matmul %86, %80, %cst_63 {dimension_numbers = #tpu.dot_dimension_numbers<[1], [0], [0], [1], [0, 0, 1, 1], [], []>} : vector<16x192xbf16>, vector<192x128xbf16>, vector<16x128xf32> -> vector<16x128xf32>
    %88 = vector.broadcast %81 : vector<1x128xf32> to vector<16x128xf32>
    %89 = arith.addf %87, %88 : vector<16x128xf32>
    %cst_64 = arith.constant 0.000000e+00 : f32
    %90 = vector.broadcast %cst_64 : f32 to vector<16x128xf32>
    %91 = arith.maximumf %89, %90 : vector<16x128xf32>
    %92 = arith.truncf %91 : vector<16x128xf32> to vector<16x128xbf16>
    %c0_65 = arith.constant 0 : index
    %c0_66 = arith.constant 0 : index
    %93 = vector.load %arg21[%c0_65, %c0_66] : memref<384x128xbf16, #tpu.memory_space<vmem>>, vector<384x128xbf16>
    %c0_67 = arith.constant 0 : index
    %c0_68 = arith.constant 0 : index
    %94 = vector.load %arg22[%c0_67, %c0_68] : memref<1x128xf32, #tpu.memory_space<vmem>>, vector<1x128xf32>
    %cst_69 = arith.constant dense<0.000000e+00> : vector<32x128xf32>
    %95 = tpu.matmul %79, %92, %cst_69 {dimension_numbers = #tpu.dot_dimension_numbers<[1], [0], [0], [1], [0, 0, 1, 1], [], []>} : vector<32x16xbf16>, vector<16x128xbf16>, vector<32x128xf32> -> vector<32x128xf32>
    %96 = arith.truncf %95 : vector<32x128xf32> to vector<32x128xbf16>
    %97 = vector.extract_strided_slice %96 {offsets = [0, 0], sizes = [16, 128], strides = [1, 1]} : vector<32x128xbf16> to vector<16x128xbf16>
    %98 = vector.extract_strided_slice %96 {offsets = [16, 0], sizes = [16, 128], strides = [1, 1]} : vector<32x128xbf16> to vector<16x128xbf16>
    %99 = tpu.concatenate %97, %92, %98 in 1 : vector<16x128xbf16>, vector<16x128xbf16>, vector<16x128xbf16> -> vector<16x384xbf16>
    %cst_70 = arith.constant dense<0.000000e+00> : vector<16x128xf32>
    %100 = tpu.matmul %99, %93, %cst_70 {dimension_numbers = #tpu.dot_dimension_numbers<[1], [0], [0], [1], [0, 0, 1, 1], [], []>} : vector<16x384xbf16>, vector<384x128xbf16>, vector<16x128xf32> -> vector<16x128xf32>
    %101 = vector.broadcast %94 : vector<1x128xf32> to vector<16x128xf32>
    %102 = arith.addf %100, %101 : vector<16x128xf32>
    %cst_71 = arith.constant 0.000000e+00 : f32
    %103 = vector.broadcast %cst_71 : f32 to vector<16x128xf32>
    %104 = arith.maximumf %102, %103 : vector<16x128xf32>
    %105 = arith.truncf %104 : vector<16x128xf32> to vector<16x128xbf16>
    %c0_72 = arith.constant 0 : index
    %c0_73 = arith.constant 0 : index
    %106 = vector.load %arg24[%c0_72, %c0_73] : memref<8x16xbf16, #tpu.memory_space<vmem>>, vector<8x16xbf16>
    %cst_74 = arith.constant dense<0.000000e+00> : vector<8x128xf32>
    %107 = tpu.matmul %106, %105, %cst_74 {dimension_numbers = #tpu.dot_dimension_numbers<[1], [0], [0], [1], [0, 0, 1, 1], [], []>} : vector<8x16xbf16>, vector<16x128xbf16>, vector<8x128xf32> -> vector<8x128xf32>
    %c0_75 = arith.constant 0 : index
    %c0_76 = arith.constant 0 : index
    %108 = vector.load %arg25[%c0_75, %c0_76] : memref<8x16xbf16, #tpu.memory_space<vmem>>, vector<8x16xbf16>
    %cst_77 = arith.constant dense<0.000000e+00> : vector<8x128xf32>
    %109 = tpu.matmul %108, %105, %cst_77 {dimension_numbers = #tpu.dot_dimension_numbers<[1], [0], [0], [1], [0, 0, 1, 1], [], []>} : vector<8x16xbf16>, vector<16x128xbf16>, vector<8x128xf32> -> vector<8x128xf32>
    %110 = arith.maximumf %107, %109 : vector<8x128xf32>
    %111 = arith.truncf %110 : vector<8x128xf32> to vector<8x128xbf16>
    %c0_78 = arith.constant 0 : index
    %c0_79 = arith.constant 0 : index
    %112 = vector.load %arg26[%c0_78, %c0_79] : memref<128x64xbf16, #tpu.memory_space<vmem>>, vector<128x64xbf16>
    %cst_80 = arith.constant dense<0.000000e+00> : vector<8x64xf32>
    %113 = tpu.matmul %111, %112, %cst_80 {dimension_numbers = #tpu.dot_dimension_numbers<[1], [0], [0], [1], [0, 0, 1, 1], [], []>} : vector<8x128xbf16>, vector<128x64xbf16>, vector<8x64xf32> -> vector<8x64xf32>
    %c0_81 = arith.constant 0 : index
    %c0_82 = arith.constant 0 : index
    %114 = vector.load %arg27[%c0_81, %c0_82] : memref<128x64xbf16, #tpu.memory_space<vmem>>, vector<128x64xbf16>
    %cst_83 = arith.constant dense<0.000000e+00> : vector<8x64xf32>
    %115 = tpu.matmul %111, %114, %cst_83 {dimension_numbers = #tpu.dot_dimension_numbers<[1], [0], [0], [1], [0, 0, 1, 1], [], []>} : vector<8x128xbf16>, vector<128x64xbf16>, vector<8x64xf32> -> vector<8x64xf32>
    %116 = arith.maximumf %113, %115 : vector<8x64xf32>
    %117 = arith.truncf %116 : vector<8x64xf32> to vector<8x64xbf16>
    %c0_84 = arith.constant 0 : index
    %c0_85 = arith.constant 0 : index
    %118 = vector.load %arg32[%c0_84, %c0_85] : memref<16x8xbf16, #tpu.memory_space<vmem>>, vector<16x8xbf16>
    %c0_86 = arith.constant 0 : index
    %c0_87 = arith.constant 0 : index
    %119 = vector.load %arg28[%c0_86, %c0_87] : memref<192x128xbf16, #tpu.memory_space<vmem>>, vector<192x128xbf16>
    %c0_88 = arith.constant 0 : index
    %c0_89 = arith.constant 0 : index
    %120 = vector.load %arg29[%c0_88, %c0_89] : memref<1x128xf32, #tpu.memory_space<vmem>>, vector<1x128xf32>
    %cst_90 = arith.constant dense<0.000000e+00> : vector<16x64xf32>
    %121 = tpu.matmul %118, %117, %cst_90 {dimension_numbers = #tpu.dot_dimension_numbers<[1], [0], [0], [1], [0, 0, 1, 1], [], []>} : vector<16x8xbf16>, vector<8x64xbf16>, vector<16x64xf32> -> vector<16x64xf32>
    %122 = arith.truncf %121 : vector<16x64xf32> to vector<16x64xbf16>
    %123 = vector.extract_strided_slice %122 {offsets = [0, 0], sizes = [8, 64], strides = [1, 1]} : vector<16x64xbf16> to vector<8x64xbf16>
    %124 = vector.extract_strided_slice %122 {offsets = [8, 0], sizes = [8, 64], strides = [1, 1]} : vector<16x64xbf16> to vector<8x64xbf16>
    %125 = tpu.concatenate %123, %117, %124 in 1 : vector<8x64xbf16>, vector<8x64xbf16>, vector<8x64xbf16> -> vector<8x192xbf16>
    %cst_91 = arith.constant dense<0.000000e+00> : vector<8x128xf32>
    %126 = tpu.matmul %125, %119, %cst_91 {dimension_numbers = #tpu.dot_dimension_numbers<[1], [0], [0], [1], [0, 0, 1, 1], [], []>} : vector<8x192xbf16>, vector<192x128xbf16>, vector<8x128xf32> -> vector<8x128xf32>
    %127 = vector.broadcast %120 : vector<1x128xf32> to vector<8x128xf32>
    %128 = arith.addf %126, %127 : vector<8x128xf32>
    %cst_92 = arith.constant 0.000000e+00 : f32
    %129 = vector.broadcast %cst_92 : f32 to vector<8x128xf32>
    %130 = arith.maximumf %128, %129 : vector<8x128xf32>
    %131 = arith.truncf %130 : vector<8x128xf32> to vector<8x128xbf16>
    %c0_93 = arith.constant 0 : index
    %c0_94 = arith.constant 0 : index
    %132 = vector.load %arg30[%c0_93, %c0_94] : memref<384x128xbf16, #tpu.memory_space<vmem>>, vector<384x128xbf16>
    %c0_95 = arith.constant 0 : index
    %c0_96 = arith.constant 0 : index
    %133 = vector.load %arg31[%c0_95, %c0_96] : memref<1x128xf32, #tpu.memory_space<vmem>>, vector<1x128xf32>
    %cst_97 = arith.constant dense<0.000000e+00> : vector<16x128xf32>
    %134 = tpu.matmul %118, %131, %cst_97 {dimension_numbers = #tpu.dot_dimension_numbers<[1], [0], [0], [1], [0, 0, 1, 1], [], []>} : vector<16x8xbf16>, vector<8x128xbf16>, vector<16x128xf32> -> vector<16x128xf32>
    %135 = arith.truncf %134 : vector<16x128xf32> to vector<16x128xbf16>
    %136 = vector.extract_strided_slice %135 {offsets = [0, 0], sizes = [8, 128], strides = [1, 1]} : vector<16x128xbf16> to vector<8x128xbf16>
    %137 = vector.extract_strided_slice %135 {offsets = [8, 0], sizes = [8, 128], strides = [1, 1]} : vector<16x128xbf16> to vector<8x128xbf16>
    %138 = tpu.concatenate %136, %131, %137 in 1 : vector<8x128xbf16>, vector<8x128xbf16>, vector<8x128xbf16> -> vector<8x384xbf16>
    %cst_98 = arith.constant dense<0.000000e+00> : vector<8x128xf32>
    %139 = tpu.matmul %138, %132, %cst_98 {dimension_numbers = #tpu.dot_dimension_numbers<[1], [0], [0], [1], [0, 0, 1, 1], [], []>} : vector<8x384xbf16>, vector<384x128xbf16>, vector<8x128xf32> -> vector<8x128xf32>
    %140 = vector.broadcast %133 : vector<1x128xf32> to vector<8x128xf32>
    %141 = arith.addf %139, %140 : vector<8x128xf32>
    %cst_99 = arith.constant 0.000000e+00 : f32
    %142 = vector.broadcast %cst_99 : f32 to vector<8x128xf32>
    %143 = arith.maximumf %141, %142 : vector<8x128xf32>
    %144 = arith.truncf %143 : vector<8x128xf32> to vector<8x128xbf16>
    %145 = vector.extract_strided_slice %144 {offsets = [0, 0], sizes = [4, 128], strides = [1, 1]} : vector<8x128xbf16> to vector<4x128xbf16>
    %146 = arith.extf %145 : vector<4x128xbf16> to vector<4x128xf32>
    %147 = vector.extract_strided_slice %144 {offsets = [4, 0], sizes = [4, 128], strides = [1, 1]} : vector<8x128xbf16> to vector<4x128xbf16>
    %148 = arith.extf %147 : vector<4x128xbf16> to vector<4x128xf32>
    %149 = arith.subf %146, %148 : vector<4x128xf32>
    %150 = math.absf %149 : vector<4x128xf32>
    %151 = arith.truncf %150 : vector<4x128xf32> to vector<4x128xbf16>
    %c0_100 = arith.constant 0 : index
    %c0_101 = arith.constant 0 : index
    %152 = vector.load %arg33[%c0_100, %c0_101] : memref<128x256xbf16, #tpu.memory_space<vmem>>, vector<128x256xbf16>
    %cst_102 = arith.constant dense<0.000000e+00> : vector<4x256xf32>
    %153 = tpu.matmul %151, %152, %cst_102 {dimension_numbers = #tpu.dot_dimension_numbers<[1], [0], [0], [1], [0, 0, 1, 1], [], []>} : vector<4x128xbf16>, vector<128x256xbf16>, vector<4x256xf32> -> vector<4x256xf32>
    %c0_103 = arith.constant 0 : index
    %c0_104 = arith.constant 0 : index
    %154 = vector.load %arg35[%c0_103, %c0_104] : memref<8x4xf32, #tpu.memory_space<vmem>>, vector<8x4xf32>
    %155 = vector.extract_strided_slice %153 {offsets = [0, 0], sizes = [4, 128], strides = [1, 1]} : vector<4x256xf32> to vector<4x128xf32>
    %cst_105 = arith.constant dense<0.000000e+00> : vector<8x128xf32>
    %156 = tpu.matmul %154, %155, %cst_105 {dimension_numbers = #tpu.dot_dimension_numbers<[1], [0], [0], [1], [0, 0, 1, 1], [], []>} : vector<8x4xf32>, vector<4x128xf32>, vector<8x128xf32> -> vector<8x128xf32>
    %c0_106 = arith.constant 0 : index
    %c0_107 = arith.constant 0 : index
    %157 = vector.load %arg36[%c0_106, %c0_107] : memref<8x4xf32, #tpu.memory_space<vmem>>, vector<8x4xf32>
    %158 = vector.extract_strided_slice %153 {offsets = [0, 128], sizes = [4, 128], strides = [1, 1]} : vector<4x256xf32> to vector<4x128xf32>
    %cst_108 = arith.constant dense<0.000000e+00> : vector<8x128xf32>
    %159 = tpu.matmul %157, %158, %cst_108 {dimension_numbers = #tpu.dot_dimension_numbers<[1], [0], [0], [1], [0, 0, 1, 1], [], []>} : vector<8x4xf32>, vector<4x128xf32>, vector<8x128xf32> -> vector<8x128xf32>
    %160 = arith.addf %156, %159 : vector<8x128xf32>
    %c0_109 = arith.constant 0 : index
    %c0_110 = arith.constant 0 : index
    %161 = vector.load %arg34[%c0_109, %c0_110] : memref<1x128xf32, #tpu.memory_space<vmem>>, vector<1x128xf32>
    %162 = vector.broadcast %161 : vector<1x128xf32> to vector<8x128xf32>
    %163 = arith.addf %160, %162 : vector<8x128xf32>
    %164 = arith.truncf %163 : vector<8x128xf32> to vector<8x128xbf16>
    %165 = vector.extract_strided_slice %105 {offsets = [0, 0], sizes = [8, 128], strides = [1, 1]} : vector<16x128xbf16> to vector<8x128xbf16>
    %166 = arith.extf %165 : vector<8x128xbf16> to vector<8x128xf32>
    %167 = vector.extract_strided_slice %105 {offsets = [8, 0], sizes = [8, 128], strides = [1, 1]} : vector<16x128xbf16> to vector<8x128xbf16>
    %168 = arith.extf %167 : vector<8x128xbf16> to vector<8x128xf32>
    %169 = arith.subf %166, %168 : vector<8x128xf32>
    %170 = math.absf %169 : vector<8x128xf32>
    %171 = arith.truncf %170 : vector<8x128xf32> to vector<8x128xbf16>
    %c0_111 = arith.constant 0 : index
    %c0_112 = arith.constant 0 : index
    %172 = vector.load %arg42[%c0_111, %c0_112] : memref<16x8xbf16, #tpu.memory_space<vmem>>, vector<16x8xbf16>
    %cst_113 = arith.constant dense<0.000000e+00> : vector<16x128xf32>
    %173 = tpu.matmul %172, %171, %cst_113 {dimension_numbers = #tpu.dot_dimension_numbers<[1], [0], [0], [1], [0, 0, 1, 1], [], []>} : vector<16x8xbf16>, vector<8x128xbf16>, vector<16x128xf32> -> vector<16x128xf32>
    %174 = arith.truncf %173 : vector<16x128xf32> to vector<16x128xbf16>
    %175 = vector.extract_strided_slice %174 {offsets = [0, 0], sizes = [8, 128], strides = [1, 1]} : vector<16x128xbf16> to vector<8x128xbf16>
    %176 = vector.extract_strided_slice %174 {offsets = [8, 0], sizes = [8, 128], strides = [1, 1]} : vector<16x128xbf16> to vector<8x128xbf16>
    %177 = tpu.concatenate %175, %171, %176 in 1 : vector<8x128xbf16>, vector<8x128xbf16>, vector<8x128xbf16> -> vector<8x384xbf16>
    %c0_114 = arith.constant 0 : index
    %c0_115 = arith.constant 0 : index
    %178 = vector.load %arg37[%c0_114, %c0_115] : memref<384x128xbf16, #tpu.memory_space<vmem>>, vector<384x128xbf16>
    %cst_116 = arith.constant dense<0.000000e+00> : vector<8x128xf32>
    %179 = tpu.matmul %177, %178, %cst_116 {dimension_numbers = #tpu.dot_dimension_numbers<[1], [0], [0], [1], [0, 0, 1, 1], [], []>} : vector<8x384xbf16>, vector<384x128xbf16>, vector<8x128xf32> -> vector<8x128xf32>
    %cst_117 = arith.constant dense<0.000000e+00> : vector<16x128xf32>
    %180 = tpu.matmul %172, %164, %cst_117 {dimension_numbers = #tpu.dot_dimension_numbers<[1], [0], [0], [1], [0, 0, 1, 1], [], []>} : vector<16x8xbf16>, vector<8x128xbf16>, vector<16x128xf32> -> vector<16x128xf32>
    %181 = arith.truncf %180 : vector<16x128xf32> to vector<16x128xbf16>
    %182 = vector.extract_strided_slice %181 {offsets = [0, 0], sizes = [8, 128], strides = [1, 1]} : vector<16x128xbf16> to vector<8x128xbf16>
    %183 = vector.extract_strided_slice %181 {offsets = [8, 0], sizes = [8, 128], strides = [1, 1]} : vector<16x128xbf16> to vector<8x128xbf16>
    %184 = tpu.concatenate %182, %164, %183 in 1 : vector<8x128xbf16>, vector<8x128xbf16>, vector<8x128xbf16> -> vector<8x384xbf16>
    %c0_118 = arith.constant 0 : index
    %c0_119 = arith.constant 0 : index
    %185 = vector.load %arg38[%c0_118, %c0_119] : memref<384x128xbf16, #tpu.memory_space<vmem>>, vector<384x128xbf16>
    %cst_120 = arith.constant dense<0.000000e+00> : vector<8x128xf32>
    %186 = tpu.matmul %184, %185, %cst_120 {dimension_numbers = #tpu.dot_dimension_numbers<[1], [0], [0], [1], [0, 0, 1, 1], [], []>} : vector<8x384xbf16>, vector<384x128xbf16>, vector<8x128xf32> -> vector<8x128xf32>
    %187 = arith.addf %179, %186 : vector<8x128xf32>
    %c0_121 = arith.constant 0 : index
    %c0_122 = arith.constant 0 : index
    %188 = vector.load %arg39[%c0_121, %c0_122] : memref<1x128xf32, #tpu.memory_space<vmem>>, vector<1x128xf32>
    %189 = vector.broadcast %188 : vector<1x128xf32> to vector<8x128xf32>
    %190 = arith.addf %187, %189 : vector<8x128xf32>
    %cst_123 = arith.constant 0.000000e+00 : f32
    %191 = vector.broadcast %cst_123 : f32 to vector<8x128xf32>
    %192 = arith.maximumf %190, %191 : vector<8x128xf32>
    %193 = arith.truncf %192 : vector<8x128xf32> to vector<8x128xbf16>
    %c0_124 = arith.constant 0 : index
    %c0_125 = arith.constant 0 : index
    %194 = vector.load %arg40[%c0_124, %c0_125] : memref<384x128xbf16, #tpu.memory_space<vmem>>, vector<384x128xbf16>
    %c0_126 = arith.constant 0 : index
    %c0_127 = arith.constant 0 : index
    %195 = vector.load %arg41[%c0_126, %c0_127] : memref<1x128xf32, #tpu.memory_space<vmem>>, vector<1x128xf32>
    %cst_128 = arith.constant dense<0.000000e+00> : vector<16x128xf32>
    %196 = tpu.matmul %172, %193, %cst_128 {dimension_numbers = #tpu.dot_dimension_numbers<[1], [0], [0], [1], [0, 0, 1, 1], [], []>} : vector<16x8xbf16>, vector<8x128xbf16>, vector<16x128xf32> -> vector<16x128xf32>
    %197 = arith.truncf %196 : vector<16x128xf32> to vector<16x128xbf16>
    %198 = vector.extract_strided_slice %197 {offsets = [0, 0], sizes = [8, 128], strides = [1, 1]} : vector<16x128xbf16> to vector<8x128xbf16>
    %199 = vector.extract_strided_slice %197 {offsets = [8, 0], sizes = [8, 128], strides = [1, 1]} : vector<16x128xbf16> to vector<8x128xbf16>
    %200 = tpu.concatenate %198, %193, %199 in 1 : vector<8x128xbf16>, vector<8x128xbf16>, vector<8x128xbf16> -> vector<8x384xbf16>
    %cst_129 = arith.constant dense<0.000000e+00> : vector<8x128xf32>
    %201 = tpu.matmul %200, %194, %cst_129 {dimension_numbers = #tpu.dot_dimension_numbers<[1], [0], [0], [1], [0, 0, 1, 1], [], []>} : vector<8x384xbf16>, vector<384x128xbf16>, vector<8x128xf32> -> vector<8x128xf32>
    %202 = vector.broadcast %195 : vector<1x128xf32> to vector<8x128xf32>
    %203 = arith.addf %201, %202 : vector<8x128xf32>
    %cst_130 = arith.constant 0.000000e+00 : f32
    %204 = vector.broadcast %cst_130 : f32 to vector<8x128xf32>
    %205 = arith.maximumf %203, %204 : vector<8x128xf32>
    %206 = arith.truncf %205 : vector<8x128xf32> to vector<8x128xbf16>
    %c0_131 = arith.constant 0 : index
    %c0_132 = arith.constant 0 : index
    %207 = vector.load %arg43[%c0_131, %c0_132] : memref<128x256xbf16, #tpu.memory_space<vmem>>, vector<128x256xbf16>
    %cst_133 = arith.constant dense<0.000000e+00> : vector<8x256xf32>
    %208 = tpu.matmul %206, %207, %cst_133 {dimension_numbers = #tpu.dot_dimension_numbers<[1], [0], [0], [1], [0, 0, 1, 1], [], []>} : vector<8x128xbf16>, vector<128x256xbf16>, vector<8x256xf32> -> vector<8x256xf32>
    %c0_134 = arith.constant 0 : index
    %c0_135 = arith.constant 0 : index
    %209 = vector.load %arg45[%c0_134, %c0_135] : memref<16x8xf32, #tpu.memory_space<vmem>>, vector<16x8xf32>
    %210 = vector.extract_strided_slice %208 {offsets = [0, 0], sizes = [8, 128], strides = [1, 1]} : vector<8x256xf32> to vector<8x128xf32>
    %cst_136 = arith.constant dense<0.000000e+00> : vector<16x128xf32>
    %211 = tpu.matmul %209, %210, %cst_136 {dimension_numbers = #tpu.dot_dimension_numbers<[1], [0], [0], [1], [0, 0, 1, 1], [], []>} : vector<16x8xf32>, vector<8x128xf32>, vector<16x128xf32> -> vector<16x128xf32>
    %c0_137 = arith.constant 0 : index
    %c0_138 = arith.constant 0 : index
    %212 = vector.load %arg46[%c0_137, %c0_138] : memref<16x8xf32, #tpu.memory_space<vmem>>, vector<16x8xf32>
    %213 = vector.extract_strided_slice %208 {offsets = [0, 128], sizes = [8, 128], strides = [1, 1]} : vector<8x256xf32> to vector<8x128xf32>
    %cst_139 = arith.constant dense<0.000000e+00> : vector<16x128xf32>
    %214 = tpu.matmul %212, %213, %cst_139 {dimension_numbers = #tpu.dot_dimension_numbers<[1], [0], [0], [1], [0, 0, 1, 1], [], []>} : vector<16x8xf32>, vector<8x128xf32>, vector<16x128xf32> -> vector<16x128xf32>
    %215 = arith.addf %211, %214 : vector<16x128xf32>
    %c0_140 = arith.constant 0 : index
    %c0_141 = arith.constant 0 : index
    %216 = vector.load %arg44[%c0_140, %c0_141] : memref<1x128xf32, #tpu.memory_space<vmem>>, vector<1x128xf32>
    %217 = vector.broadcast %216 : vector<1x128xf32> to vector<16x128xf32>
    %218 = arith.addf %215, %217 : vector<16x128xf32>
    %219 = arith.truncf %218 : vector<16x128xf32> to vector<16x128xbf16>
    %220 = vector.extract_strided_slice %66 {offsets = [0, 0], sizes = [16, 128], strides = [1, 1]} : vector<32x128xbf16> to vector<16x128xbf16>
    %221 = arith.extf %220 : vector<16x128xbf16> to vector<16x128xf32>
    %222 = vector.extract_strided_slice %66 {offsets = [16, 0], sizes = [16, 128], strides = [1, 1]} : vector<32x128xbf16> to vector<16x128xbf16>
    %223 = arith.extf %222 : vector<16x128xbf16> to vector<16x128xf32>
    %224 = arith.subf %221, %223 : vector<16x128xf32>
    %225 = math.absf %224 : vector<16x128xf32>
    %226 = arith.truncf %225 : vector<16x128xf32> to vector<16x128xbf16>
    %c0_142 = arith.constant 0 : index
    %c0_143 = arith.constant 0 : index
    %227 = vector.load %arg52[%c0_142, %c0_143] : memref<32x16xbf16, #tpu.memory_space<vmem>>, vector<32x16xbf16>
    %cst_144 = arith.constant dense<0.000000e+00> : vector<32x128xf32>
    %228 = tpu.matmul %227, %226, %cst_144 {dimension_numbers = #tpu.dot_dimension_numbers<[1], [0], [0], [1], [0, 0, 1, 1], [], []>} : vector<32x16xbf16>, vector<16x128xbf16>, vector<32x128xf32> -> vector<32x128xf32>
    %229 = arith.truncf %228 : vector<32x128xf32> to vector<32x128xbf16>
    %230 = vector.extract_strided_slice %229 {offsets = [0, 0], sizes = [16, 128], strides = [1, 1]} : vector<32x128xbf16> to vector<16x128xbf16>
    %231 = vector.extract_strided_slice %229 {offsets = [16, 0], sizes = [16, 128], strides = [1, 1]} : vector<32x128xbf16> to vector<16x128xbf16>
    %232 = tpu.concatenate %230, %226, %231 in 1 : vector<16x128xbf16>, vector<16x128xbf16>, vector<16x128xbf16> -> vector<16x384xbf16>
    %c0_145 = arith.constant 0 : index
    %c0_146 = arith.constant 0 : index
    %233 = vector.load %arg47[%c0_145, %c0_146] : memref<384x128xbf16, #tpu.memory_space<vmem>>, vector<384x128xbf16>
    %cst_147 = arith.constant dense<0.000000e+00> : vector<16x128xf32>
    %234 = tpu.matmul %232, %233, %cst_147 {dimension_numbers = #tpu.dot_dimension_numbers<[1], [0], [0], [1], [0, 0, 1, 1], [], []>} : vector<16x384xbf16>, vector<384x128xbf16>, vector<16x128xf32> -> vector<16x128xf32>
    %cst_148 = arith.constant dense<0.000000e+00> : vector<32x128xf32>
    %235 = tpu.matmul %227, %219, %cst_148 {dimension_numbers = #tpu.dot_dimension_numbers<[1], [0], [0], [1], [0, 0, 1, 1], [], []>} : vector<32x16xbf16>, vector<16x128xbf16>, vector<32x128xf32> -> vector<32x128xf32>
    %236 = arith.truncf %235 : vector<32x128xf32> to vector<32x128xbf16>
    %237 = vector.extract_strided_slice %236 {offsets = [0, 0], sizes = [16, 128], strides = [1, 1]} : vector<32x128xbf16> to vector<16x128xbf16>
    %238 = vector.extract_strided_slice %236 {offsets = [16, 0], sizes = [16, 128], strides = [1, 1]} : vector<32x128xbf16> to vector<16x128xbf16>
    %239 = tpu.concatenate %237, %219, %238 in 1 : vector<16x128xbf16>, vector<16x128xbf16>, vector<16x128xbf16> -> vector<16x384xbf16>
    %c0_149 = arith.constant 0 : index
    %c0_150 = arith.constant 0 : index
    %240 = vector.load %arg48[%c0_149, %c0_150] : memref<384x128xbf16, #tpu.memory_space<vmem>>, vector<384x128xbf16>
    %cst_151 = arith.constant dense<0.000000e+00> : vector<16x128xf32>
    %241 = tpu.matmul %239, %240, %cst_151 {dimension_numbers = #tpu.dot_dimension_numbers<[1], [0], [0], [1], [0, 0, 1, 1], [], []>} : vector<16x384xbf16>, vector<384x128xbf16>, vector<16x128xf32> -> vector<16x128xf32>
    %242 = arith.addf %234, %241 : vector<16x128xf32>
    %c0_152 = arith.constant 0 : index
    %c0_153 = arith.constant 0 : index
    %243 = vector.load %arg49[%c0_152, %c0_153] : memref<1x128xf32, #tpu.memory_space<vmem>>, vector<1x128xf32>
    %244 = vector.broadcast %243 : vector<1x128xf32> to vector<16x128xf32>
    %245 = arith.addf %242, %244 : vector<16x128xf32>
    %cst_154 = arith.constant 0.000000e+00 : f32
    %246 = vector.broadcast %cst_154 : f32 to vector<16x128xf32>
    %247 = arith.maximumf %245, %246 : vector<16x128xf32>
    %248 = arith.truncf %247 : vector<16x128xf32> to vector<16x128xbf16>
    %c0_155 = arith.constant 0 : index
    %c0_156 = arith.constant 0 : index
    %249 = vector.load %arg50[%c0_155, %c0_156] : memref<384x128xbf16, #tpu.memory_space<vmem>>, vector<384x128xbf16>
    %c0_157 = arith.constant 0 : index
    %c0_158 = arith.constant 0 : index
    %250 = vector.load %arg51[%c0_157, %c0_158] : memref<1x128xf32, #tpu.memory_space<vmem>>, vector<1x128xf32>
    %cst_159 = arith.constant dense<0.000000e+00> : vector<32x128xf32>
    %251 = tpu.matmul %227, %248, %cst_159 {dimension_numbers = #tpu.dot_dimension_numbers<[1], [0], [0], [1], [0, 0, 1, 1], [], []>} : vector<32x16xbf16>, vector<16x128xbf16>, vector<32x128xf32> -> vector<32x128xf32>
    %252 = arith.truncf %251 : vector<32x128xf32> to vector<32x128xbf16>
    %253 = vector.extract_strided_slice %252 {offsets = [0, 0], sizes = [16, 128], strides = [1, 1]} : vector<32x128xbf16> to vector<16x128xbf16>
    %254 = vector.extract_strided_slice %252 {offsets = [16, 0], sizes = [16, 128], strides = [1, 1]} : vector<32x128xbf16> to vector<16x128xbf16>
    %255 = tpu.concatenate %253, %248, %254 in 1 : vector<16x128xbf16>, vector<16x128xbf16>, vector<16x128xbf16> -> vector<16x384xbf16>
    %cst_160 = arith.constant dense<0.000000e+00> : vector<16x128xf32>
    %256 = tpu.matmul %255, %249, %cst_160 {dimension_numbers = #tpu.dot_dimension_numbers<[1], [0], [0], [1], [0, 0, 1, 1], [], []>} : vector<16x384xbf16>, vector<384x128xbf16>, vector<16x128xf32> -> vector<16x128xf32>
    %257 = vector.broadcast %250 : vector<1x128xf32> to vector<16x128xf32>
    %258 = arith.addf %256, %257 : vector<16x128xf32>
    %cst_161 = arith.constant 0.000000e+00 : f32
    %259 = vector.broadcast %cst_161 : f32 to vector<16x128xf32>
    %260 = arith.maximumf %258, %259 : vector<16x128xf32>
    %261 = arith.truncf %260 : vector<16x128xf32> to vector<16x128xbf16>
    %c0_162 = arith.constant 0 : index
    %c0_163 = arith.constant 0 : index
    %262 = vector.load %arg53[%c0_162, %c0_163] : memref<128x256xbf16, #tpu.memory_space<vmem>>, vector<128x256xbf16>
    %cst_164 = arith.constant dense<0.000000e+00> : vector<16x256xf32>
    %263 = tpu.matmul %261, %262, %cst_164 {dimension_numbers = #tpu.dot_dimension_numbers<[1], [0], [0], [1], [0, 0, 1, 1], [], []>} : vector<16x128xbf16>, vector<128x256xbf16>, vector<16x256xf32> -> vector<16x256xf32>
    %c0_165 = arith.constant 0 : index
    %c0_166 = arith.constant 0 : index
    %264 = vector.load %arg55[%c0_165, %c0_166] : memref<32x16xf32, #tpu.memory_space<vmem>>, vector<32x16xf32>
    %265 = vector.extract_strided_slice %263 {offsets = [0, 0], sizes = [16, 128], strides = [1, 1]} : vector<16x256xf32> to vector<16x128xf32>
    %cst_167 = arith.constant dense<0.000000e+00> : vector<32x128xf32>
    %266 = tpu.matmul %264, %265, %cst_167 {dimension_numbers = #tpu.dot_dimension_numbers<[1], [0], [0], [1], [0, 0, 1, 1], [], []>} : vector<32x16xf32>, vector<16x128xf32>, vector<32x128xf32> -> vector<32x128xf32>
    %c0_168 = arith.constant 0 : index
    %c0_169 = arith.constant 0 : index
    %267 = vector.load %arg56[%c0_168, %c0_169] : memref<32x16xf32, #tpu.memory_space<vmem>>, vector<32x16xf32>
    %268 = vector.extract_strided_slice %263 {offsets = [0, 128], sizes = [16, 128], strides = [1, 1]} : vector<16x256xf32> to vector<16x128xf32>
    %cst_170 = arith.constant dense<0.000000e+00> : vector<32x128xf32>
    %269 = tpu.matmul %267, %268, %cst_170 {dimension_numbers = #tpu.dot_dimension_numbers<[1], [0], [0], [1], [0, 0, 1, 1], [], []>} : vector<32x16xf32>, vector<16x128xf32>, vector<32x128xf32> -> vector<32x128xf32>
    %270 = arith.addf %266, %269 : vector<32x128xf32>
    %c0_171 = arith.constant 0 : index
    %c0_172 = arith.constant 0 : index
    %271 = vector.load %arg54[%c0_171, %c0_172] : memref<1x128xf32, #tpu.memory_space<vmem>>, vector<1x128xf32>
    %272 = vector.broadcast %271 : vector<1x128xf32> to vector<32x128xf32>
    %273 = arith.addf %270, %272 : vector<32x128xf32>
    %274 = arith.truncf %273 : vector<32x128xf32> to vector<32x128xbf16>
    %275 = vector.extract_strided_slice %27 {offsets = [0, 0], sizes = [32, 128], strides = [1, 1]} : vector<64x128xbf16> to vector<32x128xbf16>
    %276 = arith.extf %275 : vector<32x128xbf16> to vector<32x128xf32>
    %277 = vector.extract_strided_slice %27 {offsets = [32, 0], sizes = [32, 128], strides = [1, 1]} : vector<64x128xbf16> to vector<32x128xbf16>
    %278 = arith.extf %277 : vector<32x128xbf16> to vector<32x128xf32>
    %279 = arith.subf %276, %278 : vector<32x128xf32>
    %280 = math.absf %279 : vector<32x128xf32>
    %281 = arith.truncf %280 : vector<32x128xf32> to vector<32x128xbf16>
    %c0_173 = arith.constant 0 : index
    %c0_174 = arith.constant 0 : index
    %282 = vector.load %arg62[%c0_173, %c0_174] : memref<64x32xbf16, #tpu.memory_space<vmem>>, vector<64x32xbf16>
    %cst_175 = arith.constant dense<0.000000e+00> : vector<64x128xf32>
    %283 = tpu.matmul %282, %281, %cst_175 {dimension_numbers = #tpu.dot_dimension_numbers<[1], [0], [0], [1], [0, 0, 1, 1], [], []>} : vector<64x32xbf16>, vector<32x128xbf16>, vector<64x128xf32> -> vector<64x128xf32>
    %284 = arith.truncf %283 : vector<64x128xf32> to vector<64x128xbf16>
    %285 = vector.extract_strided_slice %284 {offsets = [0, 0], sizes = [32, 128], strides = [1, 1]} : vector<64x128xbf16> to vector<32x128xbf16>
    %286 = vector.extract_strided_slice %284 {offsets = [32, 0], sizes = [32, 128], strides = [1, 1]} : vector<64x128xbf16> to vector<32x128xbf16>
    %287 = tpu.concatenate %285, %281, %286 in 1 : vector<32x128xbf16>, vector<32x128xbf16>, vector<32x128xbf16> -> vector<32x384xbf16>
    %c0_176 = arith.constant 0 : index
    %c0_177 = arith.constant 0 : index
    %288 = vector.load %arg57[%c0_176, %c0_177] : memref<384x128xbf16, #tpu.memory_space<vmem>>, vector<384x128xbf16>
    %cst_178 = arith.constant dense<0.000000e+00> : vector<32x128xf32>
    %289 = tpu.matmul %287, %288, %cst_178 {dimension_numbers = #tpu.dot_dimension_numbers<[1], [0], [0], [1], [0, 0, 1, 1], [], []>} : vector<32x384xbf16>, vector<384x128xbf16>, vector<32x128xf32> -> vector<32x128xf32>
    %cst_179 = arith.constant dense<0.000000e+00> : vector<64x128xf32>
    %290 = tpu.matmul %282, %274, %cst_179 {dimension_numbers = #tpu.dot_dimension_numbers<[1], [0], [0], [1], [0, 0, 1, 1], [], []>} : vector<64x32xbf16>, vector<32x128xbf16>, vector<64x128xf32> -> vector<64x128xf32>
    %291 = arith.truncf %290 : vector<64x128xf32> to vector<64x128xbf16>
    %292 = vector.extract_strided_slice %291 {offsets = [0, 0], sizes = [32, 128], strides = [1, 1]} : vector<64x128xbf16> to vector<32x128xbf16>
    %293 = vector.extract_strided_slice %291 {offsets = [32, 0], sizes = [32, 128], strides = [1, 1]} : vector<64x128xbf16> to vector<32x128xbf16>
    %294 = tpu.concatenate %292, %274, %293 in 1 : vector<32x128xbf16>, vector<32x128xbf16>, vector<32x128xbf16> -> vector<32x384xbf16>
    %c0_180 = arith.constant 0 : index
    %c0_181 = arith.constant 0 : index
    %295 = vector.load %arg58[%c0_180, %c0_181] : memref<384x128xbf16, #tpu.memory_space<vmem>>, vector<384x128xbf16>
    %cst_182 = arith.constant dense<0.000000e+00> : vector<32x128xf32>
    %296 = tpu.matmul %294, %295, %cst_182 {dimension_numbers = #tpu.dot_dimension_numbers<[1], [0], [0], [1], [0, 0, 1, 1], [], []>} : vector<32x384xbf16>, vector<384x128xbf16>, vector<32x128xf32> -> vector<32x128xf32>
    %297 = arith.addf %289, %296 : vector<32x128xf32>
    %c0_183 = arith.constant 0 : index
    %c0_184 = arith.constant 0 : index
    %298 = vector.load %arg59[%c0_183, %c0_184] : memref<1x128xf32, #tpu.memory_space<vmem>>, vector<1x128xf32>
    %299 = vector.broadcast %298 : vector<1x128xf32> to vector<32x128xf32>
    %300 = arith.addf %297, %299 : vector<32x128xf32>
    %cst_185 = arith.constant 0.000000e+00 : f32
    %301 = vector.broadcast %cst_185 : f32 to vector<32x128xf32>
    %302 = arith.maximumf %300, %301 : vector<32x128xf32>
    %303 = arith.truncf %302 : vector<32x128xf32> to vector<32x128xbf16>
    %c0_186 = arith.constant 0 : index
    %c0_187 = arith.constant 0 : index
    %304 = vector.load %arg60[%c0_186, %c0_187] : memref<384x128xbf16, #tpu.memory_space<vmem>>, vector<384x128xbf16>
    %c0_188 = arith.constant 0 : index
    %c0_189 = arith.constant 0 : index
    %305 = vector.load %arg61[%c0_188, %c0_189] : memref<1x128xf32, #tpu.memory_space<vmem>>, vector<1x128xf32>
    %cst_190 = arith.constant dense<0.000000e+00> : vector<64x128xf32>
    %306 = tpu.matmul %282, %303, %cst_190 {dimension_numbers = #tpu.dot_dimension_numbers<[1], [0], [0], [1], [0, 0, 1, 1], [], []>} : vector<64x32xbf16>, vector<32x128xbf16>, vector<64x128xf32> -> vector<64x128xf32>
    %307 = arith.truncf %306 : vector<64x128xf32> to vector<64x128xbf16>
    %308 = vector.extract_strided_slice %307 {offsets = [0, 0], sizes = [32, 128], strides = [1, 1]} : vector<64x128xbf16> to vector<32x128xbf16>
    %309 = vector.extract_strided_slice %307 {offsets = [32, 0], sizes = [32, 128], strides = [1, 1]} : vector<64x128xbf16> to vector<32x128xbf16>
    %310 = tpu.concatenate %308, %303, %309 in 1 : vector<32x128xbf16>, vector<32x128xbf16>, vector<32x128xbf16> -> vector<32x384xbf16>
    %cst_191 = arith.constant dense<0.000000e+00> : vector<32x128xf32>
    %311 = tpu.matmul %310, %304, %cst_191 {dimension_numbers = #tpu.dot_dimension_numbers<[1], [0], [0], [1], [0, 0, 1, 1], [], []>} : vector<32x384xbf16>, vector<384x128xbf16>, vector<32x128xf32> -> vector<32x128xf32>
    %312 = vector.broadcast %305 : vector<1x128xf32> to vector<32x128xf32>
    %313 = arith.addf %311, %312 : vector<32x128xf32>
    %cst_192 = arith.constant 0.000000e+00 : f32
    %314 = vector.broadcast %cst_192 : f32 to vector<32x128xf32>
    %315 = arith.maximumf %313, %314 : vector<32x128xf32>
    %316 = arith.truncf %315 : vector<32x128xf32> to vector<32x128xbf16>
    %c0_193 = arith.constant 0 : index
    %c0_194 = arith.constant 0 : index
    %317 = vector.load %arg63[%c0_193, %c0_194] : memref<128x32xbf16, #tpu.memory_space<vmem>>, vector<128x32xbf16>
    %cst_195 = arith.constant dense<0.000000e+00> : vector<32x32xf32>
    %318 = tpu.matmul %316, %317, %cst_195 {dimension_numbers = #tpu.dot_dimension_numbers<[1], [0], [0], [1], [0, 0, 1, 1], [], []>} : vector<32x128xbf16>, vector<128x32xbf16>, vector<32x32xf32> -> vector<32x32xf32>
    %c0_196 = arith.constant 0 : index
    %c0_197 = arith.constant 0 : index
    %319 = vector.load %arg64[%c0_196, %c0_197] : memref<1x32xf32, #tpu.memory_space<vmem>>, vector<1x32xf32>
    %320 = vector.broadcast %319 : vector<1x32xf32> to vector<32x32xf32>
    %321 = arith.addf %318, %320 : vector<32x32xf32>
    %c0_198 = arith.constant 0 : index
    %c0_199 = arith.constant 0 : index
    %322 = vector.load %arg65[%c0_198, %c0_199] : memref<32x32xf32, #tpu.memory_space<vmem>>, vector<32x32xf32>
    tpu.vector_store %arg65[%c0_198, %c0_199], %321 {strides = array<i32>} : memref<32x32xf32, #tpu.memory_space<vmem>>, vector<32x32xf32>,
    return
  }
}

</mosaic_0001>

<llo_original>
// kernel: _lambda_.1
$region0: #{_lambda_.1}
  #allocation0 [shape = 'u32[]', space=smem, size = 0x4, offset = 0x4, fixed_abs, tag = 'smem constant byte address 0x4 - core index']
  #allocation1 [shape = 'u32[144,128]{1,0:T(1,128)}', space=vmem, size = 0x12000, scoped, tag = 'internal scratch']
  %s0 = inlined_call_operand.smem [shape: u32[66], index: -1, kind: input, shape index: {}]
  %s1 = sld [smem:[%s0]]
  %s2 = scalar_lea.smem %s0, 1
  %s3 = sld [smem:[%s2]]
  %s4 = scalar_lea.smem %s0, 2
  %s5 = sld [smem:[%s4]]
  %s6 = scalar_lea.smem %s0, 3
  %s7 = sld [smem:[%s6]]
  %s8 = scalar_lea.smem %s0, 4
  %s9 = sld [smem:[%s8]]
  %s10 = scalar_lea.smem %s0, 5
  %s11 = sld [smem:[%s10]]
  %s12 = scalar_lea.smem %s0, 6
  %s13 = sld [smem:[%s12]]
  %s14 = scalar_lea.smem %s0, 7
  %s15 = sld [smem:[%s14]]
  %s16 = scalar_lea.smem %s0, 8
  %s17 = sld [smem:[%s16]]
  %s18 = scalar_lea.smem %s0, 9
  %s19 = sld [smem:[%s18]]
  %s20 = scalar_lea.smem %s0, 10
  %s21 = sld [smem:[%s20]]
  %s22 = scalar_lea.smem %s0, 11
  %s23 = sld [smem:[%s22]]
  %s24 = scalar_lea.smem %s0, 12
  %s25 = sld [smem:[%s24]]
  %s26 = scalar_lea.smem %s0, 13
  %s27 = sld [smem:[%s26]]
  %s28 = scalar_lea.smem %s0, 14
  %s29 = sld [smem:[%s28]]
  %s30 = scalar_lea.smem %s0, 15
  %s31 = sld [smem:[%s30]]
  %s32 = scalar_lea.smem %s0, 16
  %s33 = sld [smem:[%s32]]
  %s34 = scalar_lea.smem %s0, 17
  %s35 = sld [smem:[%s34]]
  %s36 = scalar_lea.smem %s0, 18
  %s37 = sld [smem:[%s36]]
  %s38 = scalar_lea.smem %s0, 19
  %s39 = sld [smem:[%s38]]
  %s40 = scalar_lea.smem %s0, 20
  %s41 = sld [smem:[%s40]]
  %s42 = scalar_lea.smem %s0, 21
  %s43 = sld [smem:[%s42]]
  %s44 = scalar_lea.smem %s0, 22
  %s45 = sld [smem:[%s44]]
  %s46 = scalar_lea.smem %s0, 23
  %s47 = sld [smem:[%s46]]
  %s48 = scalar_lea.smem %s0, 24
  %s49 = sld [smem:[%s48]]
  %s50 = scalar_lea.smem %s0, 25
  %s51 = sld [smem:[%s50]]
  %s52 = scalar_lea.smem %s0, 26
  %s53 = sld [smem:[%s52]]
  %s54 = scalar_lea.smem %s0, 27
  %s55 = sld [smem:[%s54]]
  %s56 = scalar_lea.smem %s0, 28
  %s57 = sld [smem:[%s56]]
  %s58 = scalar_lea.smem %s0, 29
  %s59 = sld [smem:[%s58]]
  %s60 = scalar_lea.smem %s0, 30
  %s61 = sld [smem:[%s60]]
  %s62 = scalar_lea.smem %s0, 31
  %s63 = sld [smem:[%s62]]
  %s64 = scalar_lea.smem %s0, 32
  %s65 = sld [smem:[%s64]]
  %s66 = scalar_lea.smem %s0, 33
  %s67 = sld [smem:[%s66]]
  %s68 = scalar_lea.smem %s0, 34
  %s69 = sld [smem:[%s68]]
  %s70 = scalar_lea.smem %s0, 35
  %s71 = sld [smem:[%s70]]
  %s72 = scalar_lea.smem %s0, 36
  %s73 = sld [smem:[%s72]]
  %s74 = scalar_lea.smem %s0, 37
  %s75 = sld [smem:[%s74]]
  %s76 = scalar_lea.smem %s0, 38
  %s77 = sld [smem:[%s76]]
  %s78 = scalar_lea.smem %s0, 39
  %s79 = sld [smem:[%s78]]
  %s80 = scalar_lea.smem %s0, 40
  %s81 = sld [smem:[%s80]]
  %s82 = scalar_lea.smem %s0, 41
  %s83 = sld [smem:[%s82]]
  %s84 = scalar_lea.smem %s0, 42
  %s85 = sld [smem:[%s84]]
  %s86 = scalar_lea.smem %s0, 43
  %s87 = sld [smem:[%s86]]
  %s88 = scalar_lea.smem %s0, 44
  %s89 = sld [smem:[%s88]]
  %s90 = scalar_lea.smem %s0, 45
  %s91 = sld [smem:[%s90]]
  %s92 = scalar_lea.smem %s0, 46
  %s93 = sld [smem:[%s92]]
  %s94 = scalar_lea.smem %s0, 47
  %s95 = sld [smem:[%s94]]
  %s96 = scalar_lea.smem %s0, 48
  %s97 = sld [smem:[%s96]]
  %s98 = scalar_lea.smem %s0, 49
  %s99 = sld [smem:[%s98]]
  %s100 = scalar_lea.smem %s0, 50
  %s101 = sld [smem:[%s100]]
  %s102 = scalar_lea.smem %s0, 51
  %s103 = sld [smem:[%s102]]
  %s104 = scalar_lea.smem %s0, 52
  %s105 = sld [smem:[%s104]]
  %s106 = scalar_lea.smem %s0, 53
  %s107 = sld [smem:[%s106]]
  %s108 = scalar_lea.smem %s0, 54
  %s109 = sld [smem:[%s108]]
  %s110 = scalar_lea.smem %s0, 55
  %s111 = sld [smem:[%s110]]
  %s112 = scalar_lea.smem %s0, 56
  %s113 = sld [smem:[%s112]]
  %s114 = scalar_lea.smem %s0, 57
  %s115 = sld [smem:[%s114]]
  %s116 = scalar_lea.smem %s0, 58
  %s117 = sld [smem:[%s116]]
  %s118 = scalar_lea.smem %s0, 59
  %s119 = sld [smem:[%s118]]
  %s120 = scalar_lea.smem %s0, 60
  %s121 = sld [smem:[%s120]]
  %s122 = scalar_lea.smem %s0, 61
  %s123 = sld [smem:[%s122]]
  %s124 = scalar_lea.smem %s0, 62
  %s125 = sld [smem:[%s124]]
  %s126 = scalar_lea.smem %s0, 63
  %s127 = sld [smem:[%s126]]
  %s128 = scalar_lea.smem %s0, 64
  %s129 = sld [smem:[%s128]]
  %s130 = scalar_lea.smem %s0, 65
  %s131 = sld [smem:[%s130]]
  %s132 = sld [smem:[#allocation0]]
  $region398: #{_lambda_.1} parent=0
    _
  %s134 = ssub.s32 1, %s132
  %s135 = scalar_select 0, %s134, %s132
  $region1: #{_lambda_.1} parent=0
    #allocation2 [shape = 'u8[512]{0}', space=vmem, size = 0x400, scoped, tag = 'input window, operand 4, single buffered']
    #allocation3 [shape = 's32[1]{0}', space=sflag, size = 0x4, scoped, tag = 'scoped memory for _lambda_.1']
    #allocation4 [shape = 'u8[8192]{0}', space=vmem, size = 0x2000, scoped, tag = 'input window, operand 6, single buffered']
    #allocation5 [shape = 's32[1]{0}', space=sflag, size = 0x4, scoped, tag = 'scoped memory for _lambda_.1']
    #allocation6 [shape = 'u8[8192]{0}', space=vmem, size = 0x2000, scoped, tag = 'input window, operand 7, single buffered']
    #allocation7 [shape = 'u8[49152]{0}', space=vmem, size = 0xc000, scoped, tag = 'input window, operand 10, single buffered']
    #allocation8 [shape = 's32[1]{0}', space=sflag, size = 0x4, scoped, tag = 'scoped memory for _lambda_.1']
    #allocation9 [shape = 'u8[512]{0}', space=vmem, size = 0x400, scoped, tag = 'input window, operand 11, single buffered']
    #allocation10 [shape = 'u8[512]{0}', space=vmem, size = 0x400, scoped, tag = 'input window, operand 13, single buffered']
    #allocation11 [shape = 's32[1]{0}', space=sflag, size = 0x4, scoped, tag = 'scoped memory for _lambda_.1']
    #allocation12 [shape = 'u8[4096]{0}', space=vmem, size = 0x1000, scoped, tag = 'input window, operand 15, single buffered']
    #allocation13 [shape = 'u8[4096]{0}', space=vmem, size = 0x1000, scoped, tag = 'input window, operand 16, single buffered']
    #allocation14 [shape = 's32[1]{0}', space=sflag, size = 0x4, scoped, tag = 'scoped memory for _lambda_.1']
    #allocation15 [shape = 'u8[49152]{0}', space=vmem, size = 0xc000, scoped, tag = 'input window, operand 19, single buffered']
    #allocation16 [shape = 'u8[512]{0}', space=vmem, size = 0x400, scoped, tag = 'input window, operand 20, single buffered']
    #allocation17 [shape = 's32[1]{0}', space=sflag, size = 0x4, scoped, tag = 'scoped memory for _lambda_.1']
    #allocation18 [shape = 'u8[512]{0}', space=vmem, size = 0x400, scoped, tag = 'input window, operand 22, single buffered']
    #allocation19 [shape = 'u8[2048]{0}', space=vmem, size = 0x800, scoped, tag = 'input window, operand 24, single buffered']
    #allocation20 [shape = 's32[1]{0}', space=sflag, size = 0x4, scoped, tag = 'scoped memory for _lambda_.1']
    #allocation21 [shape = 'u8[2048]{0}', space=vmem, size = 0x800, scoped, tag = 'input window, operand 25, single buffered']
    #allocation22 [shape = 'u8[49152]{0}', space=vmem, size = 0xc000, scoped, tag = 'input window, operand 28, single buffered']
    #allocation23 [shape = 's32[1]{0}', space=sflag, size = 0x4, scoped, tag = 'scoped memory for _lambda_.1']
    #allocation24 [shape = 'u8[512]{0}', space=vmem, size = 0x400, scoped, tag = 'input window, operand 29, single buffered']
    #allocation25 [shape = 'u8[512]{0}', space=vmem, size = 0x400, scoped, tag = 'input window, operand 31, single buffered']
    #allocation26 [shape = 's32[1]{0}', space=sflag, size = 0x4, scoped, tag = 'scoped memory for _lambda_.1']
    #allocation27 [shape = 'u8[65536]{0}', space=vmem, size = 0x10000, scoped, tag = 'input window, operand 33, single buffered']
    #allocation28 [shape = 'u8[512]{0}', space=vmem, size = 0x400, scoped, tag = 'input window, operand 34, single buffered']
    #allocation29 [shape = 's32[1]{0}', space=sflag, size = 0x4, scoped, tag = 'scoped memory for _lambda_.1']
    #allocation30 [shape = 'u8[512]{0}', space=vmem, size = 0x400, scoped, tag = 'input window, operand 39, single buffered']
    #allocation31 [shape = 'u8[512]{0}', space=vmem, size = 0x400, scoped, tag = 'input window, operand 41, single buffered']
    #allocation32 [shape = 's32[1]{0}', space=sflag, size = 0x4, scoped, tag = 'scoped memory for _lambda_.1']
    #allocation33 [shape = 'u8[65536]{0}', space=vmem, size = 0x10000, scoped, tag = 'input window, operand 43, single buffered']
    #allocation34 [shape = 'u8[512]{0}', space=vmem, size = 0x400, scoped, tag = 'input window, operand 44, single buffered']
    #allocation35 [shape = 's32[1]{0}', space=sflag, size = 0x4, scoped, tag = 'scoped memory for _lambda_.1']
    #allocation36 [shape = 'u8[512]{0}', space=vmem, size = 0x400, scoped, tag = 'input window, operand 49, single buffered']
    #allocation37 [shape = 'u8[512]{0}', space=vmem, size = 0x400, scoped, tag = 'input window, operand 51, single buffered']
    #allocation38 [shape = 's32[1]{0}', space=sflag, size = 0x4, scoped, tag = 'scoped memory for _lambda_.1']
    #allocation39 [shape = 'u8[65536]{0}', space=vmem, size = 0x10000, scoped, tag = 'input window, operand 53, single buffered']
    #allocation40 [shape = 'u8[512]{0}', space=vmem, size = 0x400, scoped, tag = 'input window, operand 54, single buffered']
    #allocation41 [shape = 's32[1]{0}', space=sflag, size = 0x4, scoped, tag = 'scoped memory for _lambda_.1']
    #allocation42 [shape = 'u8[98304]{0}', space=vmem, size = 0x18000, scoped, tag = 'input window, operand 57, single buffered']
    #allocation43 [shape = 'u8[98304]{0}', space=vmem, size = 0x18000, scoped, tag = 'input window, operand 58, single buffered']
    #allocation44 [shape = 's32[1]{0}', space=sflag, size = 0x4, scoped, tag = 'scoped memory for _lambda_.1']
    #allocation45 [shape = 'u8[512]{0}', space=vmem, size = 0x400, scoped, tag = 'input window, operand 59, single buffered']
    #allocation46 [shape = 'u8[98304]{0}', space=vmem, size = 0x18000, scoped, tag = 'input window, operand 60, single buffered']
    #allocation47 [shape = 's32[1]{0}', space=sflag, size = 0x4, scoped, tag = 'scoped memory for _lambda_.1']
    #allocation48 [shape = 'u8[512]{0}', space=vmem, size = 0x400, scoped, tag = 'input window, operand 61, single buffered']
    #allocation49 [shape = 'u8[512]{0}', space=vmem, size = 0x400, scoped, tag = 'input window, operand 64, single buffered']
    #allocation50 [shape = 's32[1]{0}', space=sflag, size = 0x4, scoped, tag = 'scoped memory for _lambda_.1']
    %136 = vsyncpa [#allocation3], 0
    %137 = vsyncpa [#allocation5], 0
    %138 = vsyncpa [#allocation8], 0
    %139 = vsyncpa [#allocation11], 0
    %140 = vsyncpa [#allocation14], 0
    %141 = vsyncpa [#allocation17], 0
    %142 = vsyncpa [#allocation20], 0
    %143 = vsyncpa [#allocation23], 0
    %144 = vsyncpa [#allocation26], 0
    %145 = vsyncpa [#allocation29], 0
    %146 = vsyncpa [#allocation32], 0
    %147 = vsyncpa [#allocation35], 0
    %148 = vsyncpa [#allocation38], 0
    %149 = vsyncpa [#allocation41], 0
    %150 = vsyncpa [#allocation44], 0
    %151 = vsyncpa [#allocation47], 0
    %152 = vsyncpa [#allocation50], 0
    // Predicated region
    $region2: #{_lambda_.1} parent=1 // pred_check
      _
    $region3: #{_lambda_.1} parent=1 // pred_check_branch
      %154 = sbr.rel (0) target = $region5
    $region4: #{_lambda_.1} parent=1 // pred_region
      _
    $region5: #{_lambda_.1} parent=1 // pred_fallthru
      _
    // Predicated region
    $region6: #{_lambda_.1} parent=1 // pred_check
      _
    $region7: #{_lambda_.1} parent=1 // pred_check_branch
      %156 = sbr.rel (0) target = $region9
    $region8: #{_lambda_.1} parent=1 // pred_region
      _
    $region9: #{_lambda_.1} parent=1 // pred_fallthru
      _
    // Predicated region
    $region10: #{_lambda_.1} parent=1 // pred_check
      _
    $region11: #{_lambda_.1} parent=1 // pred_check_branch
      %158 = sbr.rel (0) target = $region13
    $region12: #{_lambda_.1} parent=1 // pred_region
      _
    $region13: #{_lambda_.1} parent=1 // pred_fallthru
      _
    // Predicated region
    $region14: #{_lambda_.1} parent=1 // pred_check
      _
    $region15: #{_lambda_.1} parent=1 // pred_check_branch
      %160 = sbr.rel (0) target = $region17
    $region16: #{_lambda_.1} parent=1 // pred_region
      _
    $region17: #{_lambda_.1} parent=1 // pred_fallthru
      _
    // Predicated region
    $region18: #{_lambda_.1} parent=1 // pred_check
      _
    $region19: #{_lambda_.1} parent=1 // pred_check_branch
      %162 = sbr.rel (0) target = $region21
    $region20: #{_lambda_.1} parent=1 // pred_region
      %s164 = ssub.s32 16, 16
      %165 = vsyncadd [#allocation3], %s164
      %s167 = sshll.u32 [#allocation2], 4
      %s168 = int_to_ptr.vmem [resolvable:$true] %s167
      %170 = dma.hbm_to_vmem [thread:$0]  %s9, 16, %s168, [#allocation3]
    $region21: #{_lambda_.1} parent=1 // pred_fallthru
      _
    // Predicated region
    $region22: #{_lambda_.1} parent=1 // pred_check
      _
    $region23: #{_lambda_.1} parent=1 // pred_check_branch
      %172 = sbr.rel (0) target = $region25
    $region24: #{_lambda_.1} parent=1 // pred_region
      _
    $region25: #{_lambda_.1} parent=1 // pred_fallthru
      _
    // Predicated region
    $region26: #{_lambda_.1} parent=1 // pred_check
      _
    $region27: #{_lambda_.1} parent=1 // pred_check_branch
      %174 = sbr.rel (0) target = $region29
    $region28: #{_lambda_.1} parent=1 // pred_region
      %s176 = ssub.s32 256, 256
      %177 = vsyncadd [#allocation5], %s176
      %s178 = sshll.u32 [#allocation4], 4
      %s179 = int_to_ptr.vmem [resolvable:$true] %s178
      %184 = dma.hbm_to_vmem [thread:$0]  %s13, 256, %s179, [#allocation5], 64, 64, 4
    $region29: #{_lambda_.1} parent=1 // pred_fallthru
      _
    // Predicated region
    $region30: #{_lambda_.1} parent=1 // pred_check
      _
    $region31: #{_lambda_.1} parent=1 // pred_check_branch
      %186 = sbr.rel (0) target = $region33
    $region32: #{_lambda_.1} parent=1 // pred_region
      %s188 = ssub.s32 256, 256
      %189 = vsyncadd [#allocation5], %s188
      %s190 = sshll.u32 [#allocation6], 4
      %s191 = int_to_ptr.vmem [resolvable:$true] %s190
      %196 = dma.hbm_to_vmem [thread:$0]  %s15, 256, %s191, [#allocation5], 64, 64, 4
    $region33: #{_lambda_.1} parent=1 // pred_fallthru
      _
    // Predicated region
    $region34: #{_lambda_.1} parent=1 // pred_check
      _
    $region35: #{_lambda_.1} parent=1 // pred_check_branch
      %198 = sbr.rel (0) target = $region37
    $region36: #{_lambda_.1} parent=1 // pred_region
      _
    $region37: #{_lambda_.1} parent=1 // pred_fallthru
      _
    // Predicated region
    $region38: #{_lambda_.1} parent=1 // pred_check
      _
    $region39: #{_lambda_.1} parent=1 // pred_check_branch
      %200 = sbr.rel (0) target = $region41
    $region40: #{_lambda_.1} parent=1 // pred_region
      _
    $region41: #{_lambda_.1} parent=1 // pred_fallthru
      _
    // Predicated region
    $region42: #{_lambda_.1} parent=1 // pred_check
      _
    $region43: #{_lambda_.1} parent=1 // pred_check_branch
      %202 = sbr.rel (0) target = $region45
    $region44: #{_lambda_.1} parent=1 // pred_region
      %s204 = ssub.s32 1536, 1536
      %205 = vsyncadd [#allocation8], %s204
      %s206 = sshll.u32 [#allocation7], 4
      %s207 = int_to_ptr.vmem [resolvable:$true] %s206
      %212 = dma.hbm_to_vmem [thread:$0]  %s21, 1536, %s207, [#allocation8], 64, 64, 4
    $region45: #{_lambda_.1} parent=1 // pred_fallthru
      _
    // Predicated region
    $region46: #{_lambda_.1} parent=1 // pred_check
      _
    $region47: #{_lambda_.1} parent=1 // pred_check_branch
      %214 = sbr.rel (0) target = $region49
    $region48: #{_lambda_.1} parent=1 // pred_region
      %s216 = ssub.s32 16, 16
      %217 = vsyncadd [#allocation8], %s216
      %s219 = sshll.u32 [#allocation9], 4
      %s220 = int_to_ptr.vmem [resolvable:$true] %s219
      %222 = dma.hbm_to_vmem [thread:$0]  %s23, 16, %s220, [#allocation8]
    $region49: #{_lambda_.1} parent=1 // pred_fallthru
      _
    // Predicated region
    $region50: #{_lambda_.1} parent=1 // pred_check
      _
    $region51: #{_lambda_.1} parent=1 // pred_check_branch
      %224 = sbr.rel (0) target = $region53
    $region52: #{_lambda_.1} parent=1 // pred_region
      _
    $region53: #{_lambda_.1} parent=1 // pred_fallthru
      _
    // Predicated region
    $region54: #{_lambda_.1} parent=1 // pred_check
      _
    $region55: #{_lambda_.1} parent=1 // pred_check_branch
      %226 = sbr.rel (0) target = $region57
    $region56: #{_lambda_.1} parent=1 // pred_region
      %s228 = ssub.s32 16, 16
      %229 = vsyncadd [#allocation11], %s228
      %s231 = sshll.u32 [#allocation10], 4
      %s232 = int_to_ptr.vmem [resolvable:$true] %s231
      %234 = dma.hbm_to_vmem [thread:$0]  %s27, 16, %s232, [#allocation11]
    $region57: #{_lambda_.1} parent=1 // pred_fallthru
      _
    // Predicated region
    $region58: #{_lambda_.1} parent=1 // pred_check
      _
    $region59: #{_lambda_.1} parent=1 // pred_check_branch
      %236 = sbr.rel (0) target = $region61
    $region60: #{_lambda_.1} parent=1 // pred_region
      _
    $region61: #{_lambda_.1} parent=1 // pred_fallthru
      _
    // Predicated region
    $region62: #{_lambda_.1} parent=1 // pred_check
      _
    $region63: #{_lambda_.1} parent=1 // pred_check_branch
      %238 = sbr.rel (0) target = $region65
    $region64: #{_lambda_.1} parent=1 // pred_region
      %s240 = ssub.s32 128, 128
      %241 = vsyncadd [#allocation11], %s240
      %s242 = sshll.u32 [#allocation12], 4
      %s243 = int_to_ptr.vmem [resolvable:$true] %s242
      %248 = dma.hbm_to_vmem [thread:$0]  %s31, 128, %s243, [#allocation11], 64, 64, 4
    $region65: #{_lambda_.1} parent=1 // pred_fallthru
      _
    // Predicated region
    $region66: #{_lambda_.1} parent=1 // pred_check
      _
    $region67: #{_lambda_.1} parent=1 // pred_check_branch
      %250 = sbr.rel (0) target = $region69
    $region68: #{_lambda_.1} parent=1 // pred_region
      %s252 = ssub.s32 128, 128
      %253 = vsyncadd [#allocation14], %s252
      %s254 = sshll.u32 [#allocation13], 4
      %s255 = int_to_ptr.vmem [resolvable:$true] %s254
      %260 = dma.hbm_to_vmem [thread:$0]  %s33, 128, %s255, [#allocation14], 64, 64, 4
    $region69: #{_lambda_.1} parent=1 // pred_fallthru
      _
    // Predicated region
    $region70: #{_lambda_.1} parent=1 // pred_check
      _
    $region71: #{_lambda_.1} parent=1 // pred_check_branch
      %262 = sbr.rel (0) target = $region73
    $region72: #{_lambda_.1} parent=1 // pred_region
      _
    $region73: #{_lambda_.1} parent=1 // pred_fallthru
      _
    // Predicated region
    $region74: #{_lambda_.1} parent=1 // pred_check
      _
    $region75: #{_lambda_.1} parent=1 // pred_check_branch
      %264 = sbr.rel (0) target = $region77
    $region76: #{_lambda_.1} parent=1 // pred_region
      _
    $region77: #{_lambda_.1} parent=1 // pred_fallthru
      _
    // Predicated region
    $region78: #{_lambda_.1} parent=1 // pred_check
      _
    $region79: #{_lambda_.1} parent=1 // pred_check_branch
      %266 = sbr.rel (0) target = $region81
    $region80: #{_lambda_.1} parent=1 // pred_region
      %s268 = ssub.s32 1536, 1536
      %269 = vsyncadd [#allocation14], %s268
      %s270 = sshll.u32 [#allocation15], 4
      %s271 = int_to_ptr.vmem [resolvable:$true] %s270
      %276 = dma.hbm_to_vmem [thread:$0]  %s39, 1536, %s271, [#allocation14], 64, 64, 4
    $region81: #{_lambda_.1} parent=1 // pred_fallthru
      _
    // Predicated region
    $region82: #{_lambda_.1} parent=1 // pred_check
      _
    $region83: #{_lambda_.1} parent=1 // pred_check_branch
      %278 = sbr.rel (0) target = $region85
    $region84: #{_lambda_.1} parent=1 // pred_region
      %s280 = ssub.s32 16, 16
      %281 = vsyncadd [#allocation17], %s280
      %s283 = sshll.u32 [#allocation16], 4
      %s284 = int_to_ptr.vmem [resolvable:$true] %s283
      %286 = dma.hbm_to_vmem [thread:$0]  %s41, 16, %s284, [#allocation17]
    $region85: #{_lambda_.1} parent=1 // pred_fallthru
      _
    // Predicated region
    $region86: #{_lambda_.1} parent=1 // pred_check
      _
    $region87: #{_lambda_.1} parent=1 // pred_check_branch
      %288 = sbr.rel (0) target = $region89
    $region88: #{_lambda_.1} parent=1 // pred_region
      _
    $region89: #{_lambda_.1} parent=1 // pred_fallthru
      _
    // Predicated region
    $region90: #{_lambda_.1} parent=1 // pred_check
      _
    $region91: #{_lambda_.1} parent=1 // pred_check_branch
      %290 = sbr.rel (0) target = $region93
    $region92: #{_lambda_.1} parent=1 // pred_region
      %s292 = ssub.s32 16, 16
      %293 = vsyncadd [#allocation17], %s292
      %s295 = sshll.u32 [#allocation18], 4
      %s296 = int_to_ptr.vmem [resolvable:$true] %s295
      %298 = dma.hbm_to_vmem [thread:$0]  %s45, 16, %s296, [#allocation17]
    $region93: #{_lambda_.1} parent=1 // pred_fallthru
      _
    // Predicated region
    $region94: #{_lambda_.1} parent=1 // pred_check
      _
    $region95: #{_lambda_.1} parent=1 // pred_check_branch
      %300 = sbr.rel (0) target = $region97
    $region96: #{_lambda_.1} parent=1 // pred_region
      _
    $region97: #{_lambda_.1} parent=1 // pred_fallthru
      _
    // Predicated region
    $region98: #{_lambda_.1} parent=1 // pred_check
      _
    $region99: #{_lambda_.1} parent=1 // pred_check_branch
      %302 = sbr.rel (0) target = $region101
    $region100: #{_lambda_.1} parent=1 // pred_region
      %s304 = ssub.s32 64, 64
      %305 = vsyncadd [#allocation20], %s304
      %s307 = sshll.u32 [#allocation19], 4
      %s308 = int_to_ptr.vmem [resolvable:$true] %s307
      %310 = dma.hbm_to_vmem [thread:$0]  %s49, 64, %s308, [#allocation20]
    $region101: #{_lambda_.1} parent=1 // pred_fallthru
      _
    // Predicated region
    $region102: #{_lambda_.1} parent=1 // pred_check
      _
    $region103: #{_lambda_.1} parent=1 // pred_check_branch
      %312 = sbr.rel (0) target = $region105
    $region104: #{_lambda_.1} parent=1 // pred_region
      %s314 = ssub.s32 64, 64
      %315 = vsyncadd [#allocation20], %s314
      %s317 = sshll.u32 [#allocation21], 4
      %s318 = int_to_ptr.vmem [resolvable:$true] %s317
      %320 = dma.hbm_to_vmem [thread:$0]  %s51, 64, %s318, [#allocation20]
    $region105: #{_lambda_.1} parent=1 // pred_fallthru
      _
    // Predicated region
    $region106: #{_lambda_.1} parent=1 // pred_check
      _
    $region107: #{_lambda_.1} parent=1 // pred_check_branch
      %322 = sbr.rel (0) target = $region109
    $region108: #{_lambda_.1} parent=1 // pred_region
      _
    $region109: #{_lambda_.1} parent=1 // pred_fallthru
      _
    // Predicated region
    $region110: #{_lambda_.1} parent=1 // pred_check
      _
    $region111: #{_lambda_.1} parent=1 // pred_check_branch
      %324 = sbr.rel (0) target = $region113
    $region112: #{_lambda_.1} parent=1 // pred_region
      _
    $region113: #{_lambda_.1} parent=1 // pred_fallthru
      _
    // Predicated region
    $region114: #{_lambda_.1} parent=1 // pred_check
      _
    $region115: #{_lambda_.1} parent=1 // pred_check_branch
      %326 = sbr.rel (0) target = $region117
    $region116: #{_lambda_.1} parent=1 // pred_region
      %s328 = ssub.s32 1536, 1536
      %329 = vsyncadd [#allocation23], %s328
      %s330 = sshll.u32 [#allocation22], 4
      %s331 = int_to_ptr.vmem [resolvable:$true] %s330
      %336 = dma.hbm_to_vmem [thread:$0]  %s57, 1536, %s331, [#allocation23], 64, 64, 4
    $region117: #{_lambda_.1} parent=1 // pred_fallthru
      _
    // Predicated region
    $region118: #{_lambda_.1} parent=1 // pred_check
      _
    $region119: #{_lambda_.1} parent=1 // pred_check_branch
      %338 = sbr.rel (0) target = $region121
    $region120: #{_lambda_.1} parent=1 // pred_region
      %s340 = ssub.s32 16, 16
      %341 = vsyncadd [#allocation23], %s340
      %s343 = sshll.u32 [#allocation24], 4
      %s344 = int_to_ptr.vmem [resolvable:$true] %s343
      %346 = dma.hbm_to_vmem [thread:$0]  %s59, 16, %s344, [#allocation23]
    $region121: #{_lambda_.1} parent=1 // pred_fallthru
      _
    // Predicated region
    $region122: #{_lambda_.1} parent=1 // pred_check
      _
    $region123: #{_lambda_.1} parent=1 // pred_check_branch
      %348 = sbr.rel (0) target = $region125
    $region124: #{_lambda_.1} parent=1 // pred_region
      _
    $region125: #{_lambda_.1} parent=1 // pred_fallthru
      _
    // Predicated region
    $region126: #{_lambda_.1} parent=1 // pred_check
      _
    $region127: #{_lambda_.1} parent=1 // pred_check_branch
      %350 = sbr.rel (0) target = $region129
    $region128: #{_lambda_.1} parent=1 // pred_region
      %s352 = ssub.s32 16, 16
      %353 = vsyncadd [#allocation26], %s352
      %s355 = sshll.u32 [#allocation25], 4
      %s356 = int_to_ptr.vmem [resolvable:$true] %s355
      %358 = dma.hbm_to_vmem [thread:$0]  %s63, 16, %s356, [#allocation26]
    $region129: #{_lambda_.1} parent=1 // pred_fallthru
      _
    // Predicated region
    $region130: #{_lambda_.1} parent=1 // pred_check
      _
    $region131: #{_lambda_.1} parent=1 // pred_check_branch
      %360 = sbr.rel (0) target = $region133
    $region132: #{_lambda_.1} parent=1 // pred_region
      _
    $region133: #{_lambda_.1} parent=1 // pred_fallthru
      _
    // Predicated region
    $region134: #{_lambda_.1} parent=1 // pred_check
      _
    $region135: #{_lambda_.1} parent=1 // pred_check_branch
      %362 = sbr.rel (0) target = $region137
    $region136: #{_lambda_.1} parent=1 // pred_region
      %s364 = ssub.s32 2048, 2048
      %365 = vsyncadd [#allocation26], %s364
      %s366 = sshll.u32 [#allocation27], 4
      %s367 = int_to_ptr.vmem [resolvable:$true] %s366
      %372 = dma.hbm_to_vmem [thread:$0]  %s67, 2048, %s367, [#allocation26], 128, 128, 8
    $region137: #{_lambda_.1} parent=1 // pred_fallthru
      _
    // Predicated region
    $region138: #{_lambda_.1} parent=1 // pred_check
      _
    $region139: #{_lambda_.1} parent=1 // pred_check_branch
      %374 = sbr.rel (0) target = $region141
    $region140: #{_lambda_.1} parent=1 // pred_region
      %s376 = ssub.s32 16, 16
      %377 = vsyncadd [#allocation29], %s376
      %s379 = sshll.u32 [#allocation28], 4
      %s380 = int_to_ptr.vmem [resolvable:$true] %s379
      %382 = dma.hbm_to_vmem [thread:$0]  %s69, 16, %s380, [#allocation29]
    $region141: #{_lambda_.1} parent=1 // pred_fallthru
      _
    // Predicated region
    $region142: #{_lambda_.1} parent=1 // pred_check
      _
    $region143: #{_lambda_.1} parent=1 // pred_check_branch
      %384 = sbr.rel (0) target = $region145
    $region144: #{_lambda_.1} parent=1 // pred_region
      _
    $region145: #{_lambda_.1} parent=1 // pred_fallthru
      _
    // Predicated region
    $region146: #{_lambda_.1} parent=1 // pred_check
      _
    $region147: #{_lambda_.1} parent=1 // pred_check_branch
      %386 = sbr.rel (0) target = $region149
    $region148: #{_lambda_.1} parent=1 // pred_region
      _
    $region149: #{_lambda_.1} parent=1 // pred_fallthru
      _
    // Predicated region
    $region150: #{_lambda_.1} parent=1 // pred_check
      _
    $region151: #{_lambda_.1} parent=1 // pred_check_branch
      %388 = sbr.rel (0) target = $region153
    $region152: #{_lambda_.1} parent=1 // pred_region
      _
    $region153: #{_lambda_.1} parent=1 // pred_fallthru
      _
    // Predicated region
    $region154: #{_lambda_.1} parent=1 // pred_check
      _
    $region155: #{_lambda_.1} parent=1 // pred_check_branch
      %390 = sbr.rel (0) target = $region157
    $region156: #{_lambda_.1} parent=1 // pred_region
      _
    $region157: #{_lambda_.1} parent=1 // pred_fallthru
      _
    // Predicated region
    $region158: #{_lambda_.1} parent=1 // pred_check
      _
    $region159: #{_lambda_.1} parent=1 // pred_check_branch
      %392 = sbr.rel (0) target = $region161
    $region160: #{_lambda_.1} parent=1 // pred_region
      %s394 = ssub.s32 16, 16
      %395 = vsyncadd [#allocation29], %s394
      %s397 = sshll.u32 [#allocation30], 4
      %s398 = int_to_ptr.vmem [resolvable:$true] %s397
      %400 = dma.hbm_to_vmem [thread:$0]  %s79, 16, %s398, [#allocation29]
    $region161: #{_lambda_.1} parent=1 // pred_fallthru
      _
    // Predicated region
    $region162: #{_lambda_.1} parent=1 // pred_check
      _
    $region163: #{_lambda_.1} parent=1 // pred_check_branch
      %402 = sbr.rel (0) target = $region165
    $region164: #{_lambda_.1} parent=1 // pred_region
      _
    $region165: #{_lambda_.1} parent=1 // pred_fallthru
      _
    // Predicated region
    $region166: #{_lambda_.1} parent=1 // pred_check
      _
    $region167: #{_lambda_.1} parent=1 // pred_check_branch
      %404 = sbr.rel (0) target = $region169
    $region168: #{_lambda_.1} parent=1 // pred_region
      %s406 = ssub.s32 16, 16
      %407 = vsyncadd [#allocation32], %s406
      %s409 = sshll.u32 [#allocation31], 4
      %s410 = int_to_ptr.vmem [resolvable:$true] %s409
      %412 = dma.hbm_to_vmem [thread:$0]  %s83, 16, %s410, [#allocation32]
    $region169: #{_lambda_.1} parent=1 // pred_fallthru
      _
    // Predicated region
    $region170: #{_lambda_.1} parent=1 // pred_check
      _
    $region171: #{_lambda_.1} parent=1 // pred_check_branch
      %414 = sbr.rel (0) target = $region173
    $region172: #{_lambda_.1} parent=1 // pred_region
      _
    $region173: #{_lambda_.1} parent=1 // pred_fallthru
      _
    // Predicated region
    $region174: #{_lambda_.1} parent=1 // pred_check
      _
    $region175: #{_lambda_.1} parent=1 // pred_check_branch
      %416 = sbr.rel (0) target = $region177
    $region176: #{_lambda_.1} parent=1 // pred_region
      %s418 = ssub.s32 2048, 2048
      %419 = vsyncadd [#allocation32], %s418
      %s420 = sshll.u32 [#allocation33], 4
      %s421 = int_to_ptr.vmem [resolvable:$true] %s420
      %426 = dma.hbm_to_vmem [thread:$0]  %s87, 2048, %s421, [#allocation32], 128, 128, 8
    $region177: #{_lambda_.1} parent=1 // pred_fallthru
      _
    // Predicated region
    $region178: #{_lambda_.1} parent=1 // pred_check
      _
    $region179: #{_lambda_.1} parent=1 // pred_check_branch
      %428 = sbr.rel (0) target = $region181
    $region180: #{_lambda_.1} parent=1 // pred_region
      %s430 = ssub.s32 16, 16
      %431 = vsyncadd [#allocation35], %s430
      %s433 = sshll.u32 [#allocation34], 4
      %s434 = int_to_ptr.vmem [resolvable:$true] %s433
      %436 = dma.hbm_to_vmem [thread:$0]  %s89, 16, %s434, [#allocation35]
    $region181: #{_lambda_.1} parent=1 // pred_fallthru
      _
    // Predicated region
    $region182: #{_lambda_.1} parent=1 // pred_check
      _
    $region183: #{_lambda_.1} parent=1 // pred_check_branch
      %438 = sbr.rel (0) target = $region185
    $region184: #{_lambda_.1} parent=1 // pred_region
      _
    $region185: #{_lambda_.1} parent=1 // pred_fallthru
      _
    // Predicated region
    $region186: #{_lambda_.1} parent=1 // pred_check
      _
    $region187: #{_lambda_.1} parent=1 // pred_check_branch
      %440 = sbr.rel (0) target = $region189
    $region188: #{_lambda_.1} parent=1 // pred_region
      _
    $region189: #{_lambda_.1} parent=1 // pred_fallthru
      _
    // Predicated region
    $region190: #{_lambda_.1} parent=1 // pred_check
      _
    $region191: #{_lambda_.1} parent=1 // pred_check_branch
      %442 = sbr.rel (0) target = $region193
    $region192: #{_lambda_.1} parent=1 // pred_region
      _
    $region193: #{_lambda_.1} parent=1 // pred_fallthru
      _
    // Predicated region
    $region194: #{_lambda_.1} parent=1 // pred_check
      _
    $region195: #{_lambda_.1} parent=1 // pred_check_branch
      %444 = sbr.rel (0) target = $region197
    $region196: #{_lambda_.1} parent=1 // pred_region
      _
    $region197: #{_lambda_.1} parent=1 // pred_fallthru
      _
    // Predicated region
    $region198: #{_lambda_.1} parent=1 // pred_check
      _
    $region199: #{_lambda_.1} parent=1 // pred_check_branch
      %446 = sbr.rel (0) target = $region201
    $region200: #{_lambda_.1} parent=1 // pred_region
      %s448 = ssub.s32 16, 16
      %449 = vsyncadd [#allocation35], %s448
      %s451 = sshll.u32 [#allocation36], 4
      %s452 = int_to_ptr.vmem [resolvable:$true] %s451
      %454 = dma.hbm_to_vmem [thread:$0]  %s99, 16, %s452, [#allocation35]
    $region201: #{_lambda_.1} parent=1 // pred_fallthru
      _
    // Predicated region
    $region202: #{_lambda_.1} parent=1 // pred_check
      _
    $region203: #{_lambda_.1} parent=1 // pred_check_branch
      %456 = sbr.rel (0) target = $region205
    $region204: #{_lambda_.1} parent=1 // pred_region
      _
    $region205: #{_lambda_.1} parent=1 // pred_fallthru
      _
    // Predicated region
    $region206: #{_lambda_.1} parent=1 // pred_check
      _
    $region207: #{_lambda_.1} parent=1 // pred_check_branch
      %458 = sbr.rel (0) target = $region209
    $region208: #{_lambda_.1} parent=1 // pred_region
      %s460 = ssub.s32 16, 16
      %461 = vsyncadd [#allocation38], %s460
      %s463 = sshll.u32 [#allocation37], 4
      %s464 = int_to_ptr.vmem [resolvable:$true] %s463
      %466 = dma.hbm_to_vmem [thread:$0]  %s103, 16, %s464, [#allocation38]
    $region209: #{_lambda_.1} parent=1 // pred_fallthru
      _
    // Predicated region
    $region210: #{_lambda_.1} parent=1 // pred_check
      _
    $region211: #{_lambda_.1} parent=1 // pred_check_branch
      %468 = sbr.rel (0) target = $region213
    $region212: #{_lambda_.1} parent=1 // pred_region
      _
    $region213: #{_lambda_.1} parent=1 // pred_fallthru
      _
    // Predicated region
    $region214: #{_lambda_.1} parent=1 // pred_check
      _
    $region215: #{_lambda_.1} parent=1 // pred_check_branch
      %470 = sbr.rel (0) target = $region217
    $region216: #{_lambda_.1} parent=1 // pred_region
      %s472 = ssub.s32 2048, 2048
      %473 = vsyncadd [#allocation38], %s472
      %s474 = sshll.u32 [#allocation39], 4
      %s475 = int_to_ptr.vmem [resolvable:$true] %s474
      %480 = dma.hbm_to_vmem [thread:$0]  %s107, 2048, %s475, [#allocation38], 128, 128, 8
    $region217: #{_lambda_.1} parent=1 // pred_fallthru
      _
    // Predicated region
    $region218: #{_lambda_.1} parent=1 // pred_check
      _
    $region219: #{_lambda_.1} parent=1 // pred_check_branch
      %482 = sbr.rel (0) target = $region221
    $region220: #{_lambda_.1} parent=1 // pred_region
      %s484 = ssub.s32 16, 16
      %485 = vsyncadd [#allocation41], %s484
      %s487 = sshll.u32 [#allocation40], 4
      %s488 = int_to_ptr.vmem [resolvable:$true] %s487
      %490 = dma.hbm_to_vmem [thread:$0]  %s109, 16, %s488, [#allocation41]
    $region221: #{_lambda_.1} parent=1 // pred_fallthru
      _
    // Predicated region
    $region222: #{_lambda_.1} parent=1 // pred_check
      _
    $region223: #{_lambda_.1} parent=1 // pred_check_branch
      %492 = sbr.rel (0) target = $region225
    $region224: #{_lambda_.1} parent=1 // pred_region
      _
    $region225: #{_lambda_.1} parent=1 // pred_fallthru
      _
    // Predicated region
    $region226: #{_lambda_.1} parent=1 // pred_check
      _
    $region227: #{_lambda_.1} parent=1 // pred_check_branch
      %494 = sbr.rel (0) target = $region229
    $region228: #{_lambda_.1} parent=1 // pred_region
      _
    $region229: #{_lambda_.1} parent=1 // pred_fallthru
      _
    // Predicated region
    $region230: #{_lambda_.1} parent=1 // pred_check
      _
    $region231: #{_lambda_.1} parent=1 // pred_check_branch
      %496 = sbr.rel (0) target = $region233
    $region232: #{_lambda_.1} parent=1 // pred_region
      %s498 = ssub.s32 3072, 3072
      %499 = vsyncadd [#allocation41], %s498
      %s500 = sshll.u32 [#allocation42], 4
      %s501 = int_to_ptr.vmem [resolvable:$true] %s500
      %506 = dma.hbm_to_vmem [thread:$0]  %s115, 3072, %s501, [#allocation41], 64, 64, 4
    $region233: #{_lambda_.1} parent=1 // pred_fallthru
      _
    // Predicated region
    $region234: #{_lambda_.1} parent=1 // pred_check
      _
    $region235: #{_lambda_.1} parent=1 // pred_check_branch
      %508 = sbr.rel (0) target = $region237
    $region236: #{_lambda_.1} parent=1 // pred_region
      %s510 = ssub.s32 3072, 3072
      %511 = vsyncadd [#allocation44], %s510
      %s512 = sshll.u32 [#allocation43], 4
      %s513 = int_to_ptr.vmem [resolvable:$true] %s512
      %518 = dma.hbm_to_vmem [thread:$0]  %s117, 3072, %s513, [#allocation44], 64, 64, 4
    $region237: #{_lambda_.1} parent=1 // pred_fallthru
      _
    // Predicated region
    $region238: #{_lambda_.1} parent=1 // pred_check
      _
    $region239: #{_lambda_.1} parent=1 // pred_check_branch
      %520 = sbr.rel (0) target = $region241
    $region240: #{_lambda_.1} parent=1 // pred_region
      %s522 = ssub.s32 16, 16
      %523 = vsyncadd [#allocation44], %s522
      %s525 = sshll.u32 [#allocation45], 4
      %s526 = int_to_ptr.vmem [resolvable:$true] %s525
      %528 = dma.hbm_to_vmem [thread:$0]  %s119, 16, %s526, [#allocation44]
    $region241: #{_lambda_.1} parent=1 // pred_fallthru
      _
    // Predicated region
    $region242: #{_lambda_.1} parent=1 // pred_check
      _
    $region243: #{_lambda_.1} parent=1 // pred_check_branch
      %530 = sbr.rel (0) target = $region245
    $region244: #{_lambda_.1} parent=1 // pred_region
      %s532 = ssub.s32 3072, 3072
      %533 = vsyncadd [#allocation47], %s532
      %s534 = sshll.u32 [#allocation46], 4
      %s535 = int_to_ptr.vmem [resolvable:$true] %s534
      %540 = dma.hbm_to_vmem [thread:$0]  %s121, 3072, %s535, [#allocation47], 64, 64, 4
    $region245: #{_lambda_.1} parent=1 // pred_fallthru
      _
    // Predicated region
    $region246: #{_lambda_.1} parent=1 // pred_check
      _
    $region247: #{_lambda_.1} parent=1 // pred_check_branch
      %542 = sbr.rel (0) target = $region249
    $region248: #{_lambda_.1} parent=1 // pred_region
      %s544 = ssub.s32 16, 16
      %545 = vsyncadd [#allocation47], %s544
      %s547 = sshll.u32 [#allocation48], 4
      %s548 = int_to_ptr.vmem [resolvable:$true] %s547
      %550 = dma.hbm_to_vmem [thread:$0]  %s123, 16, %s548, [#allocation47]
    $region249: #{_lambda_.1} parent=1 // pred_fallthru
      _
    // Predicated region
    $region250: #{_lambda_.1} parent=1 // pred_check
      _
    $region251: #{_lambda_.1} parent=1 // pred_check_branch
      %552 = sbr.rel (0) target = $region253
    $region252: #{_lambda_.1} parent=1 // pred_region
      _
    $region253: #{_lambda_.1} parent=1 // pred_fallthru
      _
    // Predicated region
    $region254: #{_lambda_.1} parent=1 // pred_check
      _
    $region255: #{_lambda_.1} parent=1 // pred_check_branch
      %554 = sbr.rel (0) target = $region257
    $region256: #{_lambda_.1} parent=1 // pred_region
      _
    $region257: #{_lambda_.1} parent=1 // pred_fallthru
      _
    // Predicated region
    $region258: #{_lambda_.1} parent=1 // pred_check
      _
    $region259: #{_lambda_.1} parent=1 // pred_check_branch
      %556 = sbr.rel (0) target = $region261
    $region260: #{_lambda_.1} parent=1 // pred_region
      %s558 = ssub.s32 16, 16
      %559 = vsyncadd [#allocation50], %s558
      %s561 = sshll.u32 [#allocation49], 4
      %s562 = int_to_ptr.vmem [resolvable:$true] %s561
      %564 = dma.hbm_to_vmem [thread:$0]  %s129, 16, %s562, [#allocation50]
    $region261: #{_lambda_.1} parent=1 // pred_fallthru
      _
    // Predicated region
    $region262: #{_lambda_.1} parent=1 // pred_check
      _
    $region263: #{_lambda_.1} parent=1 // pred_check_branch
      %566 = sbr.rel (0) target = $region265
    $region264: #{_lambda_.1} parent=1 // pred_region
      %567 = dma.done [#allocation3], 16
    $region265: #{_lambda_.1} parent=1 // pred_fallthru
      _
    // Predicated region
    $region266: #{_lambda_.1} parent=1 // pred_check
      _
    $region267: #{_lambda_.1} parent=1 // pred_check_branch
      %569 = sbr.rel (0) target = $region269
    $region268: #{_lambda_.1} parent=1 // pred_region
      %570 = dma.done [#allocation5], 256
    $region269: #{_lambda_.1} parent=1 // pred_fallthru
      _
    // Predicated region
    $region270: #{_lambda_.1} parent=1 // pred_check
      _
    $region271: #{_lambda_.1} parent=1 // pred_check_branch
      %572 = sbr.rel (0) target = $region273
    $region272: #{_lambda_.1} parent=1 // pred_region
      %573 = dma.done [#allocation5], 256
    $region273: #{_lambda_.1} parent=1 // pred_fallthru
      _
    // Predicated region
    $region274: #{_lambda_.1} parent=1 // pred_check
      _
    $region275: #{_lambda_.1} parent=1 // pred_check_branch
      %575 = sbr.rel (0) target = $region277
    $region276: #{_lambda_.1} parent=1 // pred_region
      %576 = dma.done [#allocation8], 1536
    $region277: #{_lambda_.1} parent=1 // pred_fallthru
      _
    // Predicated region
    $region278: #{_lambda_.1} parent=1 // pred_check
      _
    $region279: #{_lambda_.1} parent=1 // pred_check_branch
      %578 = sbr.rel (0) target = $region281
    $region280: #{_lambda_.1} parent=1 // pred_region
      %579 = dma.done [#allocation8], 16
    $region281: #{_lambda_.1} parent=1 // pred_fallthru
      _
    // Predicated region
    $region282: #{_lambda_.1} parent=1 // pred_check
      _
    $region283: #{_lambda_.1} parent=1 // pred_check_branch
      %581 = sbr.rel (0) target = $region285
    $region284: #{_lambda_.1} parent=1 // pred_region
      %582 = dma.done [#allocation11], 16
    $region285: #{_lambda_.1} parent=1 // pred_fallthru
      _
    // Predicated region
    $region286: #{_lambda_.1} parent=1 // pred_check
      _
    $region287: #{_lambda_.1} parent=1 // pred_check_branch
      %584 = sbr.rel (0) target = $region289
    $region288: #{_lambda_.1} parent=1 // pred_region
      %585 = dma.done [#allocation11], 128
    $region289: #{_lambda_.1} parent=1 // pred_fallthru
      _
    // Predicated region
    $region290: #{_lambda_.1} parent=1 // pred_check
      _
    $region291: #{_lambda_.1} parent=1 // pred_check_branch
      %587 = sbr.rel (0) target = $region293
    $region292: #{_lambda_.1} parent=1 // pred_region
      %588 = dma.done [#allocation14], 128
    $region293: #{_lambda_.1} parent=1 // pred_fallthru
      _
    // Predicated region
    $region294: #{_lambda_.1} parent=1 // pred_check
      _
    $region295: #{_lambda_.1} parent=1 // pred_check_branch
      %590 = sbr.rel (0) target = $region297
    $region296: #{_lambda_.1} parent=1 // pred_region
      %591 = dma.done [#allocation14], 1536
    $region297: #{_lambda_.1} parent=1 // pred_fallthru
      _
    // Predicated region
    $region298: #{_lambda_.1} parent=1 // pred_check
      _
    $region299: #{_lambda_.1} parent=1 // pred_check_branch
      %593 = sbr.rel (0) target = $region301
    $region300: #{_lambda_.1} parent=1 // pred_region
      %594 = dma.done [#allocation17], 16
    $region301: #{_lambda_.1} parent=1 // pred_fallthru
      _
    // Predicated region
    $region302: #{_lambda_.1} parent=1 // pred_check
      _
    $region303: #{_lambda_.1} parent=1 // pred_check_branch
      %596 = sbr.rel (0) target = $region305
    $region304: #{_lambda_.1} parent=1 // pred_region
      %597 = dma.done [#allocation17], 16
    $region305: #{_lambda_.1} parent=1 // pred_fallthru
      _
    // Predicated region
    $region306: #{_lambda_.1} parent=1 // pred_check
      _
    $region307: #{_lambda_.1} parent=1 // pred_check_branch
      %599 = sbr.rel (0) target = $region309
    $region308: #{_lambda_.1} parent=1 // pred_region
      %600 = dma.done [#allocation20], 64
    $region309: #{_lambda_.1} parent=1 // pred_fallthru
      _
    // Predicated region
    $region310: #{_lambda_.1} parent=1 // pred_check
      _
    $region311: #{_lambda_.1} parent=1 // pred_check_branch
      %602 = sbr.rel (0) target = $region313
    $region312: #{_lambda_.1} parent=1 // pred_region
      %603 = dma.done [#allocation20], 64
    $region313: #{_lambda_.1} parent=1 // pred_fallthru
      _
    // Predicated region
    $region314: #{_lambda_.1} parent=1 // pred_check
      _
    $region315: #{_lambda_.1} parent=1 // pred_check_branch
      %605 = sbr.rel (0) target = $region317
    $region316: #{_lambda_.1} parent=1 // pred_region
      %606 = dma.done [#allocation23], 1536
    $region317: #{_lambda_.1} parent=1 // pred_fallthru
      _
    // Predicated region
    $region318: #{_lambda_.1} parent=1 // pred_check
      _
    $region319: #{_lambda_.1} parent=1 // pred_check_branch
      %608 = sbr.rel (0) target = $region321
    $region320: #{_lambda_.1} parent=1 // pred_region
      %609 = dma.done [#allocation23], 16
    $region321: #{_lambda_.1} parent=1 // pred_fallthru
      _
    // Predicated region
    $region322: #{_lambda_.1} parent=1 // pred_check
      _
    $region323: #{_lambda_.1} parent=1 // pred_check_branch
      %611 = sbr.rel (0) target = $region325
    $region324: #{_lambda_.1} parent=1 // pred_region
      %612 = dma.done [#allocation26], 16
    $region325: #{_lambda_.1} parent=1 // pred_fallthru
      _
    // Predicated region
    $region326: #{_lambda_.1} parent=1 // pred_check
      _
    $region327: #{_lambda_.1} parent=1 // pred_check_branch
      %614 = sbr.rel (0) target = $region329
    $region328: #{_lambda_.1} parent=1 // pred_region
      %615 = dma.done [#allocation26], 2048
    $region329: #{_lambda_.1} parent=1 // pred_fallthru
      _
    // Predicated region
    $region330: #{_lambda_.1} parent=1 // pred_check
      _
    $region331: #{_lambda_.1} parent=1 // pred_check_branch
      %617 = sbr.rel (0) target = $region333
    $region332: #{_lambda_.1} parent=1 // pred_region
      %618 = dma.done [#allocation29], 16
    $region333: #{_lambda_.1} parent=1 // pred_fallthru
      _
    // Predicated region
    $region334: #{_lambda_.1} parent=1 // pred_check
      _
    $region335: #{_lambda_.1} parent=1 // pred_check_branch
      %620 = sbr.rel (0) target = $region337
    $region336: #{_lambda_.1} parent=1 // pred_region
      %621 = dma.done [#allocation29], 16
    $region337: #{_lambda_.1} parent=1 // pred_fallthru
      _
    // Predicated region
    $region338: #{_lambda_.1} parent=1 // pred_check
      _
    $region339: #{_lambda_.1} parent=1 // pred_check_branch
      %623 = sbr.rel (0) target = $region341
    $region340: #{_lambda_.1} parent=1 // pred_region
      %624 = dma.done [#allocation32], 16
    $region341: #{_lambda_.1} parent=1 // pred_fallthru
      _
    // Predicated region
    $region342: #{_lambda_.1} parent=1 // pred_check
      _
    $region343: #{_lambda_.1} parent=1 // pred_check_branch
      %626 = sbr.rel (0) target = $region345
    $region344: #{_lambda_.1} parent=1 // pred_region
      %627 = dma.done [#allocation32], 2048
    $region345: #{_lambda_.1} parent=1 // pred_fallthru
      _
    // Predicated region
    $region346: #{_lambda_.1} parent=1 // pred_check
      _
    $region347: #{_lambda_.1} parent=1 // pred_check_branch
      %629 = sbr.rel (0) target = $region349
    $region348: #{_lambda_.1} parent=1 // pred_region
      %630 = dma.done [#allocation35], 16
    $region349: #{_lambda_.1} parent=1 // pred_fallthru
      _
    // Predicated region
    $region350: #{_lambda_.1} parent=1 // pred_check
      _
    $region351: #{_lambda_.1} parent=1 // pred_check_branch
      %632 = sbr.rel (0) target = $region353
    $region352: #{_lambda_.1} parent=1 // pred_region
      %633 = dma.done [#allocation35], 16
    $region353: #{_lambda_.1} parent=1 // pred_fallthru
      _
    // Predicated region
    $region354: #{_lambda_.1} parent=1 // pred_check
      _
    $region355: #{_lambda_.1} parent=1 // pred_check_branch
      %635 = sbr.rel (0) target = $region357
    $region356: #{_lambda_.1} parent=1 // pred_region
      %636 = dma.done [#allocation38], 16
    $region357: #{_lambda_.1} parent=1 // pred_fallthru
      _
    // Predicated region
    $region358: #{_lambda_.1} parent=1 // pred_check
      _
    $region359: #{_lambda_.1} parent=1 // pred_check_branch
      %638 = sbr.rel (0) target = $region361
    $region360: #{_lambda_.1} parent=1 // pred_region
      %639 = dma.done [#allocation38], 2048
    $region361: #{_lambda_.1} parent=1 // pred_fallthru
      _
    // Predicated region
    $region362: #{_lambda_.1} parent=1 // pred_check
      _
    $region363: #{_lambda_.1} parent=1 // pred_check_branch
      %641 = sbr.rel (0) target = $region365
    $region364: #{_lambda_.1} parent=1 // pred_region
      %642 = dma.done [#allocation41], 16
    $region365: #{_lambda_.1} parent=1 // pred_fallthru
      _
    // Predicated region
    $region366: #{_lambda_.1} parent=1 // pred_check
      _
    $region367: #{_lambda_.1} parent=1 // pred_check_branch
      %644 = sbr.rel (0) target = $region369
    $region368: #{_lambda_.1} parent=1 // pred_region
      %645 = dma.done [#allocation41], 3072
    $region369: #{_lambda_.1} parent=1 // pred_fallthru
      _
    // Predicated region
    $region370: #{_lambda_.1} parent=1 // pred_check
      _
    $region371: #{_lambda_.1} parent=1 // pred_check_branch
      %647 = sbr.rel (0) target = $region373
    $region372: #{_lambda_.1} parent=1 // pred_region
      %648 = dma.done [#allocation44], 3072
    $region373: #{_lambda_.1} parent=1 // pred_fallthru
      _
    // Predicated region
    $region374: #{_lambda_.1} parent=1 // pred_check
      _
    $region375: #{_lambda_.1} parent=1 // pred_check_branch
      %650 = sbr.rel (0) target = $region377
    $region376: #{_lambda_.1} parent=1 // pred_region
      %651 = dma.done [#allocation44], 16
    $region377: #{_lambda_.1} parent=1 // pred_fallthru
      _
    // Predicated region
    $region378: #{_lambda_.1} parent=1 // pred_check
      _
    $region379: #{_lambda_.1} parent=1 // pred_check_branch
      %653 = sbr.rel (0) target = $region381
    $region380: #{_lambda_.1} parent=1 // pred_region
      %654 = dma.done [#allocation47], 3072
    $region381: #{_lambda_.1} parent=1 // pred_fallthru
      _
    // Predicated region
    $region382: #{_lambda_.1} parent=1 // pred_check
      _
    $region383: #{_lambda_.1} parent=1 // pred_check_branch
      %656 = sbr.rel (0) target = $region385
    $region384: #{_lambda_.1} parent=1 // pred_region
      %657 = dma.done [#allocation47], 16
    $region385: #{_lambda_.1} parent=1 // pred_fallthru
      _
    // Predicated region
    $region386: #{_lambda_.1} parent=1 // pred_check
      _
    $region387: #{_lambda_.1} parent=1 // pred_check_branch
      %659 = sbr.rel (0) target = $region389
    $region388: #{_lambda_.1} parent=1 // pred_region
      %660 = dma.done [#allocation50], 16
    $region389: #{_lambda_.1} parent=1 // pred_fallthru
      _
    %v662 = vld [vmem:[%s1] sm:$0xf]
    %v663 = vld [vmem:[%s1 + $0x4] sm:$0xf]
    %v664 = vld [vmem:[%s1 + $0x8] sm:$0xf]
    %v665 = vld [vmem:[%s1 + $0xc] sm:$0xf]
    %v666 = vld [vmem:[%s1 + $0x10] sm:$0xf]
    %v667 = vld [vmem:[%s1 + $0x14] sm:$0xf]
    %v668 = vld [vmem:[%s1 + $0x18] sm:$0xf]
    %v669 = vld [vmem:[%s1 + $0x1c] sm:$0xf]
    %v670 = vld [vmem:[%s11] sm:$0xf]
    %v671 = vld [vmem:[%s11 + $0x4] sm:$0xf]
    %v672 = vld [vmem:[%s11 + $0x8] sm:$0xf]
    %v673 = vld [vmem:[%s11 + $0xc] sm:$0xf]
    %v674 = vld [vmem:[%s11 + $0x10] sm:$0xf]
    %v675 = vld [vmem:[%s11 + $0x14] sm:$0xf]
    %v676 = vld [vmem:[%s11 + $0x18] sm:$0xf]
    %v677 = vld [vmem:[%s11 + $0x1c] sm:$0xf]
    %v678 = vld [vmem:[%s11 + $0x20] sm:$0xf]
    %v679 = vld [vmem:[%s11 + $0x24] sm:$0xf]
    %v680 = vld [vmem:[%s11 + $0x28] sm:$0xf]
    %v681 = vld [vmem:[%s11 + $0x2c] sm:$0xf]
    %v682 = vld [vmem:[%s11 + $0x30] sm:$0xf]
    %v683 = vld [vmem:[%s11 + $0x34] sm:$0xf]
    %v684 = vld [vmem:[%s11 + $0x38] sm:$0xf]
    %v685 = vld [vmem:[%s11 + $0x3c] sm:$0xf]
    %v686 = vld [vmem:[%s3] sm:$0xf]
    %v687 = vld [vmem:[%s3 + $0x4] sm:$0xf]
    %v688 = vld [vmem:[%s3 + $0x8] sm:$0xf]
    %v689 = vld [vmem:[%s3 + $0xc] sm:$0xf]
    %v690 = vld [vmem:[%s3 + $0x10] sm:$0xf]
    %v691 = vld [vmem:[%s3 + $0x14] sm:$0xf]
    %v692 = vld [vmem:[%s3 + $0x18] sm:$0xf]
    %v693 = vld [vmem:[%s3 + $0x1c] sm:$0xf]
    %v694 = vld [vmem:[%s3 + $0x20] sm:$0xf]
    %v695 = vld [vmem:[%s3 + $0x24] sm:$0xf]
    %v696 = vld [vmem:[%s3 + $0x28] sm:$0xf]
    %v697 = vld [vmem:[%s3 + $0x2c] sm:$0xf]
    %v698 = vld [vmem:[%s3 + $0x30] sm:$0xf]
    %v699 = vld [vmem:[%s3 + $0x34] sm:$0xf]
    %v700 = vld [vmem:[%s3 + $0x38] sm:$0xf]
    %v701 = vld [vmem:[%s3 + $0x3c] sm:$0xf]
    %v702 = vld [vmem:[%s3 + $0x40] sm:$0xf]
    %v703 = vld [vmem:[%s3 + $0x44] sm:$0xf]
    %v704 = vld [vmem:[%s3 + $0x48] sm:$0xf]
    %v705 = vld [vmem:[%s3 + $0x4c] sm:$0xf]
    %v706 = vld [vmem:[%s3 + $0x50] sm:$0xf]
    %v707 = vld [vmem:[%s3 + $0x54] sm:$0xf]
    %v708 = vld [vmem:[%s3 + $0x58] sm:$0xf]
    %v709 = vld [vmem:[%s3 + $0x5c] sm:$0xf]
    %v710 = vld [vmem:[%s5] sm:$0x1]
    %v727 = vunpack.c.l.b16 %v670
    %v728 = vunpack.c.l.b16 %v671
    %v729 = vunpack.c.l.b16 %v672
    %v730 = vunpack.c.l.b16 %v673
    %v731 = vunpack.c.l.b16 %v674
    %v732 = vunpack.c.l.b16 %v675
    %v733 = vunpack.c.l.b16 %v676
    %v734 = vunpack.c.l.b16 %v677
    %v735 = vunpack.c.l.b16 %v678
    %v736 = vunpack.c.l.b16 %v679
    %v737 = vunpack.c.l.b16 %v680
    %v738 = vunpack.c.l.b16 %v681
    %v739 = vunpack.c.l.b16 %v682
    %v740 = vunpack.c.l.b16 %v683
    %v741 = vunpack.c.l.b16 %v684
    %v742 = vunpack.c.l.b16 %v685
    %v743 = vpack.c.b16 %v728, %v727
    %v744 = vpack.c.b16 %v730, %v729
    %v745 = vpack.c.b16 %v732, %v731
    %v746 = vpack.c.b16 %v734, %v733
    %v747 = vpack.c.b16 %v736, %v735
    %v748 = vpack.c.b16 %v738, %v737
    %v749 = vpack.c.b16 %v740, %v739
    %v750 = vpack.c.b16 %v742, %v741
    %v759 = vunpack.c.l.b16 %v662
    %v760 = vunpack.c.l.b16 %v663
    %v761 = vunpack.c.l.b16 %v664
    %v762 = vunpack.c.l.b16 %v665
    %v763 = vunpack.c.l.b16 %v666
    %v764 = vunpack.c.l.b16 %v667
    %v765 = vunpack.c.l.b16 %v668
    %v766 = vunpack.c.l.b16 %v669
    %v767 = vpack.c.b16 %v760, %v759
    %v768 = vpack.c.b16 %v762, %v761
    %v769 = vpack.c.b16 %v764, %v763
    %v770 = vpack.c.b16 %v766, %v765
    %vm775 = vcmask 523264
    %v777 = vsel %vm775, %v743, 0
    %v780 = vsel %vm775, %v744, 0
    %v783 = vsel %vm775, %v745, 0
    %v786 = vsel %vm775, %v746, 0
    %v789 = vsel %vm775, %v747, 0
    %v792 = vsel %vm775, %v748, 0
    %v795 = vsel %vm775, %v749, 0
    %v798 = vsel %vm775, %v750, 0
    %800 = vmatprep.subr.bf16.mxu0 0
    %801 = vmatpush1.bf16.msra.mxu0 0
    %802 = vmatprep.subr.bf16.mxu0 0
    %803 = vmatpush1.bf16.msra.mxu0 0
    %804 = vmatprep.subr.bf16.mxu0 0
    %805 = vmatpush1.bf16.msra.mxu0 0
    %806 = vmatprep.subr.bf16.mxu0 0
    %807 = vmatpush1.bf16.msra.mxu0 0
    %808 = vmatprep.subr.bf16.mxu0 0
    %809 = vmatpush1.bf16.msra.mxu0 %v770
    %810 = vmatprep.subr.bf16.mxu0 0
    %811 = vmatpush1.bf16.msra.mxu0 %v769
    %812 = vmatprep.subr.bf16.mxu0 0
    %813 = vmatpush1.bf16.msra.mxu0 %v768
    %814 = vmatprep.subr.bf16.mxu0 0
    %815 = vmatpush1.bf16.msra.mxu0 %v767
    %816 = vmatprep.subr.bf16.mxu0 0
    %817 = vmatpush2.bf16.msra.mxu0 0
    %818 = vmatprep.subr.bf16.mxu0 0
    %819 = vmatpush2.bf16.msra.mxu0 0
    %820 = vmatprep.subr.bf16.mxu0 0
    %821 = vmatpush2.bf16.msra.mxu0 0
    %822 = vmatprep.subr.bf16.mxu0 0
    %823 = vmatpush2.bf16.msra.mxu0 0
    %824 = vmatprep.subr.bf16.mxu0 0
    %825 = vmatpush2.bf16.msra.mxu0 0
    %826 = vmatprep.subr.bf16.mxu0 0
    %827 = vmatpush2.bf16.msra.mxu0 0
    %828 = vmatprep.subr.bf16.mxu0 0
    %829 = vmatpush2.bf16.msra.mxu0 0
    %830 = vmatprep.subr.bf16.mxu0 0
    %831 = vmatpush2.bf16.msra.mxu0 0
    %832 = vmatprep.mubr.bf16.mxu0 0
    %833 = vmatmul.mubr.bf16.gmra.mxu0 %v777
    %v834 = vpop.f32.mrf.mxu0
    %v835 = vadd.f32 0.0, %v834
    %v836 = vpop.f32.mrf.mxu0
    %v837 = vpop.f32.mrf.mxu0
    %v838 = vadd.f32 0.0, %v837
    %v839 = vpop.f32.mrf.mxu0
    %840 = vmatprep.mubr.bf16.mxu0 0
    %841 = vmatmul.mubr.bf16.gmra.mxu0 %v780
    %v842 = vpop.f32.mrf.mxu0
    %v843 = vadd.f32 0.0, %v842
    %v844 = vpop.f32.mrf.mxu0
    %v845 = vpop.f32.mrf.mxu0
    %v846 = vadd.f32 0.0, %v845
    %v847 = vpop.f32.mrf.mxu0
    %848 = vmatprep.mubr.bf16.mxu0 0
    %849 = vmatmul.mubr.bf16.gmra.mxu0 %v783
    %v850 = vpop.f32.mrf.mxu0
    %v851 = vadd.f32 0.0, %v850
    %v852 = vpop.f32.mrf.mxu0
    %v853 = vpop.f32.mrf.mxu0
    %v854 = vadd.f32 0.0, %v853
    %v855 = vpop.f32.mrf.mxu0
    %856 = vmatprep.mubr.bf16.mxu0 0
    %857 = vmatmul.mubr.bf16.gmra.mxu0 %v786
    %v858 = vpop.f32.mrf.mxu0
    %v859 = vadd.f32 0.0, %v858
    %v860 = vpop.f32.mrf.mxu0
    %v861 = vpop.f32.mrf.mxu0
    %v862 = vadd.f32 0.0, %v861
    %v863 = vpop.f32.mrf.mxu0
    %864 = vmatprep.mubr.bf16.mxu0 0
    %865 = vmatmul.mubr.bf16.gmra.mxu0 %v789
    %v866 = vpop.f32.mrf.mxu0
    %v867 = vadd.f32 0.0, %v866
    %v868 = vpop.f32.mrf.mxu0
    %v869 = vpop.f32.mrf.mxu0
    %v870 = vadd.f32 0.0, %v869
    %v871 = vpop.f32.mrf.mxu0
    %872 = vmatprep.mubr.bf16.mxu0 0
    %873 = vmatmul.mubr.bf16.gmra.mxu0 %v792
    %v874 = vpop.f32.mrf.mxu0
    %v875 = vadd.f32 0.0, %v874
    %v876 = vpop.f32.mrf.mxu0
    %v877 = vpop.f32.mrf.mxu0
    %v878 = vadd.f32 0.0, %v877
    %v879 = vpop.f32.mrf.mxu0
    %880 = vmatprep.mubr.bf16.mxu0 0
    %881 = vmatmul.mubr.bf16.gmra.mxu0 %v795
    %v882 = vpop.f32.mrf.mxu0
    %v883 = vadd.f32 0.0, %v882
    %v884 = vpop.f32.mrf.mxu0
    %v885 = vpop.f32.mrf.mxu0
    %v886 = vadd.f32 0.0, %v885
    %v887 = vpop.f32.mrf.mxu0
    %888 = vmatprep.mubr.bf16.mxu0 0
    %889 = vmatmul.mubr.bf16.gmra.mxu0 %v798
    %v890 = vpop.f32.mrf.mxu0
    %v891 = vadd.f32 0.0, %v890
    %v892 = vpop.f32.mrf.mxu0
    %v893 = vpop.f32.mrf.mxu0
    %v894 = vadd.f32 0.0, %v893
    %v895 = vpop.f32.mrf.mxu0
    %896 = vdwg.mxu0
    %v897 = vpack.c.bf16 %v838, %v835
    %v898 = vpack.c.bf16 %v846, %v843
    %v899 = vpack.c.bf16 %v854, %v851
    %v900 = vpack.c.bf16 %v862, %v859
    %v901 = vpack.c.bf16 %v870, %v867
    %v902 = vpack.c.bf16 %v878, %v875
    %v903 = vpack.c.bf16 %v886, %v883
    %v904 = vpack.c.bf16 %v894, %v891
    %905 = vrot.lane.b32.xlu0 %v767, 64
    %v906 = vpop.permute.xlu0 %905
    %907 = vrot.lane.b32.xlu0 %v768, 64
    %v908 = vpop.permute.xlu0 %907
    %909 = vrot.lane.b32.xlu0 %v769, 64
    %v910 = vpop.permute.xlu0 %909
    %911 = vrot.lane.b32.xlu0 %v770, 64
    %v912 = vpop.permute.xlu0 %911
    %v915 = vsel %vm775, %v897, %v906
    %v919 = vsel %vm775, %v898, %v908
    %v923 = vsel %vm775, %v899, %v910
    %v927 = vsel %vm775, %v900, %v912
    %v930 = vlaneseq
    %v931 = vshrl.u32 %v930, 7
    %v932 = vsub.s32 0, %v931
    %v933 = vrot.slane %v710, %v932
    %v959 = vunpack.c.l.b16 %v686
    %v960 = vunpack.c.l.b16 %v687
    %v961 = vunpack.c.l.b16 %v688
    %v962 = vunpack.c.l.b16 %v689
    %v963 = vunpack.c.l.b16 %v690
    %v964 = vunpack.c.l.b16 %v691
    %v965 = vunpack.c.l.b16 %v692
    %v966 = vunpack.c.l.b16 %v693
    %v967 = vunpack.c.l.b16 %v694
    %v968 = vunpack.c.l.b16 %v695
    %v969 = vunpack.c.l.b16 %v696
    %v970 = vunpack.c.l.b16 %v697
    %v971 = vunpack.c.l.b16 %v698
    %v972 = vunpack.c.l.b16 %v699
    %v973 = vunpack.c.l.b16 %v700
    %v974 = vunpack.c.l.b16 %v701
    %v975 = vunpack.c.l.b16 %v702
    %v976 = vunpack.c.l.b16 %v703
    %v977 = vunpack.c.l.b16 %v704
    %v978 = vunpack.c.l.b16 %v705
    %v979 = vunpack.c.l.b16 %v706
    %v980 = vunpack.c.l.b16 %v707
    %v981 = vunpack.c.l.b16 %v708
    %v982 = vunpack.c.l.b16 %v709
    %v983 = vpack.c.b16 %v960, %v959
    %v984 = vpack.c.b16 %v962, %v961
    %v985 = vpack.c.b16 %v964, %v963
    %v986 = vpack.c.b16 %v966, %v965
    %v987 = vpack.c.b16 %v968, %v967
    %v988 = vpack.c.b16 %v970, %v969
    %v989 = vpack.c.b16 %v972, %v971
    %v990 = vpack.c.b16 %v974, %v973
    %v991 = vpack.c.b16 %v976, %v975
    %v992 = vpack.c.b16 %v978, %v977
    %v993 = vpack.c.b16 %v980, %v979
    %v994 = vpack.c.b16 %v982, %v981
    %v1008 = vsel %vm775, %v901, 0
    %v1011 = vsel %vm775, %v902, 0
    %v1014 = vsel %vm775, %v903, 0
    %v1017 = vsel %vm775, %v904, 0
    %1019 = vmatprep.subr.bf16.mxu0 0
    %1020 = vmatpush1.bf16.msra.mxu0 %v990
    %1021 = vmatprep.subr.bf16.mxu0 0
    %1022 = vmatpush1.bf16.msra.mxu0 %v989
    %1023 = vmatprep.subr.bf16.mxu0 0
    %1024 = vmatpush1.bf16.msra.mxu0 %v988
    %1025 = vmatprep.subr.bf16.mxu0 0
    %1026 = vmatpush1.bf16.msra.mxu0 %v987
    %1027 = vmatprep.subr.bf16.mxu0 0
    %1028 = vmatpush1.bf16.msra.mxu0 %v986
    %1029 = vmatprep.subr.bf16.mxu0 0
    %1030 = vmatpush1.bf16.msra.mxu0 %v985
    %1031 = vmatprep.subr.bf16.mxu0 0
    %1032 = vmatpush1.bf16.msra.mxu0 %v984
    %1033 = vmatprep.subr.bf16.mxu0 0
    %1034 = vmatpush1.bf16.msra.mxu0 %v983
    %1035 = vmatprep.subr.bf16.mxu0 0
    %1036 = vmatpush2.bf16.msra.mxu0 0
    %1037 = vmatprep.subr.bf16.mxu0 0
    %1038 = vmatpush2.bf16.msra.mxu0 0
    %1039 = vmatprep.subr.bf16.mxu0 0
    %1040 = vmatpush2.bf16.msra.mxu0 0
    %1041 = vmatprep.subr.bf16.mxu0 0
    %1042 = vmatpush2.bf16.msra.mxu0 0
    %1043 = vmatprep.subr.bf16.mxu0 0
    %1044 = vmatpush2.bf16.msra.mxu0 %v994
    %1045 = vmatprep.subr.bf16.mxu0 0
    %1046 = vmatpush2.bf16.msra.mxu0 %v993
    %1047 = vmatprep.subr.bf16.mxu0 0
    %1048 = vmatpush2.bf16.msra.mxu0 %v992
    %1049 = vmatprep.subr.bf16.mxu0 0
    %1050 = vmatpush2.bf16.msra.mxu0 %v991
    %1051 = vmatprep.mubr.bf16.mxu0 %v1008
    %1052 = vmatmul.mubr.bf16.gmra.mxu0 %v915
    %v1053 = vpop.f32.mrf.mxu0
    %v1054 = vadd.f32 %v933, %v1053
    %v1055 = vpop.f32.mrf.mxu0
    %v1056 = vpop.f32.mrf.mxu0
    %v1057 = vadd.f32 %v933, %v1056
    %v1058 = vpop.f32.mrf.mxu0
    %1059 = vmatprep.mubr.bf16.mxu0 %v1011
    %1060 = vmatmul.mubr.bf16.gmra.mxu0 %v919
    %v1061 = vpop.f32.mrf.mxu0
    %v1062 = vadd.f32 %v933, %v1061
    %v1063 = vpop.f32.mrf.mxu0
    %v1064 = vpop.f32.mrf.mxu0
    %v1065 = vadd.f32 %v933, %v1064
    %v1066 = vpop.f32.mrf.mxu0
    %1067 = vmatprep.mubr.bf16.mxu0 %v1014
    %1068 = vmatmul.mubr.bf16.gmra.mxu0 %v923
    %v1069 = vpop.f32.mrf.mxu0
    %v1070 = vadd.f32 %v933, %v1069
    %v1071 = vpop.f32.mrf.mxu0
    %v1072 = vpop.f32.mrf.mxu0
    %v1073 = vadd.f32 %v933, %v1072
    %v1074 = vpop.f32.mrf.mxu0
    %1075 = vmatprep.mubr.bf16.mxu0 %v1017
    %1076 = vmatmul.mubr.bf16.gmra.mxu0 %v927
    %v1077 = vpop.f32.mrf.mxu0
    %v1078 = vadd.f32 %v933, %v1077
    %v1079 = vpop.f32.mrf.mxu0
    %v1080 = vpop.f32.mrf.mxu0
    %v1081 = vadd.f32 %v933, %v1080
    %v1082 = vpop.f32.mrf.mxu0
    %1083 = vdwg.mxu0
    %v1084 = vmax.f32 %v1054, 0.0
    %v1085 = vmax.f32 %v1057, 0.0
    %v1086 = vmax.f32 %v1062, 0.0
    %v1087 = vmax.f32 %v1065, 0.0
    %v1088 = vmax.f32 %v1070, 0.0
    %v1089 = vmax.f32 %v1073, 0.0
    %v1090 = vmax.f32 %v1078, 0.0
    %v1091 = vmax.f32 %v1081, 0.0
    %v1092 = vpack.c.bf16 %v1085, %v1084
    %v1093 = vpack.c.bf16 %v1087, %v1086
    %v1094 = vpack.c.bf16 %v1089, %v1088
    %v1095 = vpack.c.bf16 %v1091, %v1090
    %v1096 = vld [vmem:[%s7] sm:$0xf]
    %v1097 = vld [vmem:[%s7 + $0x4] sm:$0xf]
    %v1098 = vld [vmem:[%s7 + $0x8] sm:$0xf]
    %v1099 = vld [vmem:[%s7 + $0xc] sm:$0xf]
    %v1100 = vld [vmem:[%s7 + $0x10] sm:$0xf]
    %v1101 = vld [vmem:[%s7 + $0x14] sm:$0xf]
    %v1102 = vld [vmem:[%s7 + $0x18] sm:$0xf]
    %v1103 = vld [vmem:[%s7 + $0x1c] sm:$0xf]
    %v1104 = vld [vmem:[%s7 + $0x20] sm:$0xf]
    %v1105 = vld [vmem:[%s7 + $0x24] sm:$0xf]
    %v1106 = vld [vmem:[%s7 + $0x28] sm:$0xf]
    %v1107 = vld [vmem:[%s7 + $0x2c] sm:$0xf]
    %v1108 = vld [vmem:[%s7 + $0x30] sm:$0xf]
    %v1109 = vld [vmem:[%s7 + $0x34] sm:$0xf]
    %v1110 = vld [vmem:[%s7 + $0x38] sm:$0xf]
    %v1111 = vld [vmem:[%s7 + $0x3c] sm:$0xf]
    %v1112 = vld [vmem:[%s7 + $0x40] sm:$0xf]
    %v1113 = vld [vmem:[%s7 + $0x44] sm:$0xf]
    %v1114 = vld [vmem:[%s7 + $0x48] sm:$0xf]
    %v1115 = vld [vmem:[%s7 + $0x4c] sm:$0xf]
    %v1116 = vld [vmem:[%s7 + $0x50] sm:$0xf]
    %v1117 = vld [vmem:[%s7 + $0x54] sm:$0xf]
    %v1118 = vld [vmem:[%s7 + $0x58] sm:$0xf]
    %v1119 = vld [vmem:[%s7 + $0x5c] sm:$0xf]
    %v1120 = vld [vmem:[%s7 + $0x60] sm:$0xf]
    %v1121 = vld [vmem:[%s7 + $0x64] sm:$0xf]
    %v1122 = vld [vmem:[%s7 + $0x68] sm:$0xf]
    %v1123 = vld [vmem:[%s7 + $0x6c] sm:$0xf]
    %v1124 = vld [vmem:[%s7 + $0x70] sm:$0xf]
    %v1125 = vld [vmem:[%s7 + $0x74] sm:$0xf]
    %v1126 = vld [vmem:[%s7 + $0x78] sm:$0xf]
    %v1127 = vld [vmem:[%s7 + $0x7c] sm:$0xf]
    %v1128 = vld [vmem:[%s7 + $0x80] sm:$0xf]
    %v1129 = vld [vmem:[%s7 + $0x84] sm:$0xf]
    %v1130 = vld [vmem:[%s7 + $0x88] sm:$0xf]
    %v1131 = vld [vmem:[%s7 + $0x8c] sm:$0xf]
    %v1132 = vld [vmem:[%s7 + $0x90] sm:$0xf]
    %v1133 = vld [vmem:[%s7 + $0x94] sm:$0xf]
    %v1134 = vld [vmem:[%s7 + $0x98] sm:$0xf]
    %v1135 = vld [vmem:[%s7 + $0x9c] sm:$0xf]
    %v1136 = vld [vmem:[%s7 + $0xa0] sm:$0xf]
    %v1137 = vld [vmem:[%s7 + $0xa4] sm:$0xf]
    %v1138 = vld [vmem:[%s7 + $0xa8] sm:$0xf]
    %v1139 = vld [vmem:[%s7 + $0xac] sm:$0xf]
    %v1140 = vld [vmem:[%s7 + $0xb0] sm:$0xf]
    %v1141 = vld [vmem:[%s7 + $0xb4] sm:$0xf]
    %v1142 = vld [vmem:[%s7 + $0xb8] sm:$0xf]
    %v1143 = vld [vmem:[%s7 + $0xbc] sm:$0xf]
    %v1144 = vld [vmem:[#allocation2] sm:$0x1]
    %1145 = vmatprep.subr.bf16.mxu0 0
    %1146 = vmatpush1.bf16.msra.mxu0 0
    %1147 = vmatprep.subr.bf16.mxu0 0
    %1148 = vmatpush1.bf16.msra.mxu0 0
    %1149 = vmatprep.subr.bf16.mxu0 0
    %1150 = vmatpush1.bf16.msra.mxu0 0
    %1151 = vmatprep.subr.bf16.mxu0 0
    %1152 = vmatpush1.bf16.msra.mxu0 0
    %1153 = vmatprep.subr.bf16.mxu0 0
    %1154 = vmatpush1.bf16.msra.mxu0 %v1095
    %1155 = vmatprep.subr.bf16.mxu0 0
    %1156 = vmatpush1.bf16.msra.mxu0 %v1094
    %1157 = vmatprep.subr.bf16.mxu0 0
    %1158 = vmatpush1.bf16.msra.mxu0 %v1093
    %1159 = vmatprep.subr.bf16.mxu0 0
    %1160 = vmatpush1.bf16.msra.mxu0 %v1092
    %1161 = vmatprep.subr.bf16.mxu0 0
    %1162 = vmatpush2.bf16.msra.mxu0 0
    %1163 = vmatprep.subr.bf16.mxu0 0
    %1164 = vmatpush2.bf16.msra.mxu0 0
    %1165 = vmatprep.subr.bf16.mxu0 0
    %1166 = vmatpush2.bf16.msra.mxu0 0
    %1167 = vmatprep.subr.bf16.mxu0 0
    %1168 = vmatpush2.bf16.msra.mxu0 0
    %1169 = vmatprep.subr.bf16.mxu0 0
    %1170 = vmatpush2.bf16.msra.mxu0 0
    %1171 = vmatprep.subr.bf16.mxu0 0
    %1172 = vmatpush2.bf16.msra.mxu0 0
    %1173 = vmatprep.subr.bf16.mxu0 0
    %1174 = vmatpush2.bf16.msra.mxu0 0
    %1175 = vmatprep.subr.bf16.mxu0 0
    %1176 = vmatpush2.bf16.msra.mxu0 0
    %1177 = vmatprep.mubr.bf16.mxu0 0
    %1178 = vmatmul.mubr.bf16.gmra.mxu0 %v777
    %v1179 = vpop.f32.mrf.mxu0
    %v1180 = vadd.f32 0.0, %v1179
    %v1181 = vpop.f32.mrf.mxu0
    %v1182 = vpop.f32.mrf.mxu0
    %v1183 = vadd.f32 0.0, %v1182
    %v1184 = vpop.f32.mrf.mxu0
    %1185 = vmatprep.mubr.bf16.mxu0 0
    %1186 = vmatmul.mubr.bf16.gmra.mxu0 %v780
    %v1187 = vpop.f32.mrf.mxu0
    %v1188 = vadd.f32 0.0, %v1187
    %v1189 = vpop.f32.mrf.mxu0
    %v1190 = vpop.f32.mrf.mxu0
    %v1191 = vadd.f32 0.0, %v1190
    %v1192 = vpop.f32.mrf.mxu0
    %1193 = vmatprep.mubr.bf16.mxu0 0
    %1194 = vmatmul.mubr.bf16.gmra.mxu0 %v783
    %v1195 = vpop.f32.mrf.mxu0
    %v1196 = vadd.f32 0.0, %v1195
    %v1197 = vpop.f32.mrf.mxu0
    %v1198 = vpop.f32.mrf.mxu0
    %v1199 = vadd.f32 0.0, %v1198
    %v1200 = vpop.f32.mrf.mxu0
    %1201 = vmatprep.mubr.bf16.mxu0 0
    %1202 = vmatmul.mubr.bf16.gmra.mxu0 %v786
    %v1203 = vpop.f32.mrf.mxu0
    %v1204 = vadd.f32 0.0, %v1203
    %v1205 = vpop.f32.mrf.mxu0
    %v1206 = vpop.f32.mrf.mxu0
    %v1207 = vadd.f32 0.0, %v1206
    %v1208 = vpop.f32.mrf.mxu0
    %1209 = vmatprep.mubr.bf16.mxu0 0
    %1210 = vmatmul.mubr.bf16.gmra.mxu0 %v789
    %v1211 = vpop.f32.mrf.mxu0
    %v1212 = vadd.f32 0.0, %v1211
    %v1213 = vpop.f32.mrf.mxu0
    %v1214 = vpop.f32.mrf.mxu0
    %v1215 = vadd.f32 0.0, %v1214
    %v1216 = vpop.f32.mrf.mxu0
    %1217 = vmatprep.mubr.bf16.mxu0 0
    %1218 = vmatmul.mubr.bf16.gmra.mxu0 %v792
    %v1219 = vpop.f32.mrf.mxu0
    %v1220 = vadd.f32 0.0, %v1219
    %v1221 = vpop.f32.mrf.mxu0
    %v1222 = vpop.f32.mrf.mxu0
    %v1223 = vadd.f32 0.0, %v1222
    %v1224 = vpop.f32.mrf.mxu0
    %1225 = vmatprep.mubr.bf16.mxu0 0
    %1226 = vmatmul.mubr.bf16.gmra.mxu0 %v795
    %v1227 = vpop.f32.mrf.mxu0
    %v1228 = vadd.f32 0.0, %v1227
    %v1229 = vpop.f32.mrf.mxu0
    %v1230 = vpop.f32.mrf.mxu0
    %v1231 = vadd.f32 0.0, %v1230
    %v1232 = vpop.f32.mrf.mxu0
    %1233 = vmatprep.mubr.bf16.mxu0 0
    %1234 = vmatmul.mubr.bf16.gmra.mxu0 %v798
    %v1235 = vpop.f32.mrf.mxu0
    %v1236 = vadd.f32 0.0, %v1235
    %v1237 = vpop.f32.mrf.mxu0
    %v1238 = vpop.f32.mrf.mxu0
    %v1239 = vadd.f32 0.0, %v1238
    %v1240 = vpop.f32.mrf.mxu0
    %1241 = vdwg.mxu0
    %v1242 = vpack.c.bf16 %v1183, %v1180
    %v1243 = vpack.c.bf16 %v1191, %v1188
    %v1244 = vpack.c.bf16 %v1199, %v1196
    %v1245 = vpack.c.bf16 %v1207, %v1204
    %v1246 = vpack.c.bf16 %v1215, %v1212
    %v1247 = vpack.c.bf16 %v1223, %v1220
    %v1248 = vpack.c.bf16 %v1231, %v1228
    %v1249 = vpack.c.bf16 %v1239, %v1236
    %v1251 = vlaneseq
    %v1252 = vshrl.u32 %v1251, 7
    %v1253 = vsub.s32 0, %v1252
    %v1254 = vrot.slane %v1144, %v1253
    %v1304 = vunpack.c.l.b16 %v1096
    %v1305 = vunpack.c.l.b16 %v1097
    %v1306 = vunpack.c.l.b16 %v1098
    %v1307 = vunpack.c.l.b16 %v1099
    %v1308 = vunpack.c.l.b16 %v1100
    %v1309 = vunpack.c.l.b16 %v1101
    %v1310 = vunpack.c.l.b16 %v1102
    %v1311 = vunpack.c.l.b16 %v1103
    %v1312 = vunpack.c.l.b16 %v1104
    %v1313 = vunpack.c.l.b16 %v1105
    %v1314 = vunpack.c.l.b16 %v1106
    %v1315 = vunpack.c.l.b16 %v1107
    %v1316 = vunpack.c.l.b16 %v1108
    %v1317 = vunpack.c.l.b16 %v1109
    %v1318 = vunpack.c.l.b16 %v1110
    %v1319 = vunpack.c.l.b16 %v1111
    %v1320 = vunpack.c.l.b16 %v1112
    %v1321 = vunpack.c.l.b16 %v1113
    %v1322 = vunpack.c.l.b16 %v1114
    %v1323 = vunpack.c.l.b16 %v1115
    %v1324 = vunpack.c.l.b16 %v1116
    %v1325 = vunpack.c.l.b16 %v1117
    %v1326 = vunpack.c.l.b16 %v1118
    %v1327 = vunpack.c.l.b16 %v1119
    %v1328 = vunpack.c.l.b16 %v1120
    %v1329 = vunpack.c.l.b16 %v1121
    %v1330 = vunpack.c.l.b16 %v1122
    %v1331 = vunpack.c.l.b16 %v1123
    %v1332 = vunpack.c.l.b16 %v1124
    %v1333 = vunpack.c.l.b16 %v1125
    %v1334 = vunpack.c.l.b16 %v1126
    %v1335 = vunpack.c.l.b16 %v1127
    %v1336 = vunpack.c.l.b16 %v1128
    %v1337 = vunpack.c.l.b16 %v1129
    %v1338 = vunpack.c.l.b16 %v1130
    %v1339 = vunpack.c.l.b16 %v1131
    %v1340 = vunpack.c.l.b16 %v1132
    %v1341 = vunpack.c.l.b16 %v1133
    %v1342 = vunpack.c.l.b16 %v1134
    %v1343 = vunpack.c.l.b16 %v1135
    %v1344 = vunpack.c.l.b16 %v1136
    %v1345 = vunpack.c.l.b16 %v1137
    %v1346 = vunpack.c.l.b16 %v1138
    %v1347 = vunpack.c.l.b16 %v1139
    %v1348 = vunpack.c.l.b16 %v1140
    %v1349 = vunpack.c.l.b16 %v1141
    %v1350 = vunpack.c.l.b16 %v1142
    %v1351 = vunpack.c.l.b16 %v1143
    %v1352 = vpack.c.b16 %v1305, %v1304
    %v1353 = vpack.c.b16 %v1307, %v1306
    %v1354 = vpack.c.b16 %v1309, %v1308
    %v1355 = vpack.c.b16 %v1311, %v1310
    %v1356 = vpack.c.b16 %v1313, %v1312
    %v1357 = vpack.c.b16 %v1315, %v1314
    %v1358 = vpack.c.b16 %v1317, %v1316
    %v1359 = vpack.c.b16 %v1319, %v1318
    %v1360 = vpack.c.b16 %v1321, %v1320
    %v1361 = vpack.c.b16 %v1323, %v1322
    %v1362 = vpack.c.b16 %v1325, %v1324
    %v1363 = vpack.c.b16 %v1327, %v1326
    %v1364 = vpack.c.b16 %v1329, %v1328
    %v1365 = vpack.c.b16 %v1331, %v1330
    %v1366 = vpack.c.b16 %v1333, %v1332
    %v1367 = vpack.c.b16 %v1335, %v1334
    %v1368 = vpack.c.b16 %v1337, %v1336
    %v1369 = vpack.c.b16 %v1339, %v1338
    %v1370 = vpack.c.b16 %v1341, %v1340
    %v1371 = vpack.c.b16 %v1343, %v1342
    %v1372 = vpack.c.b16 %v1345, %v1344
    %v1373 = vpack.c.b16 %v1347, %v1346
    %v1374 = vpack.c.b16 %v1349, %v1348
    %v1375 = vpack.c.b16 %v1351, %v1350
    %1400 = vmatprep.subr.bf16.mxu0 0
    %1401 = vmatpush1.bf16.msra.mxu0 %v1359
    %1402 = vmatprep.subr.bf16.mxu0 0
    %1403 = vmatpush1.bf16.msra.mxu0 %v1358
    %1404 = vmatprep.subr.bf16.mxu0 0
    %1405 = vmatpush1.bf16.msra.mxu0 %v1357
    %1406 = vmatprep.subr.bf16.mxu0 0
    %1407 = vmatpush1.bf16.msra.mxu0 %v1356
    %1408 = vmatprep.subr.bf16.mxu0 0
    %1409 = vmatpush1.bf16.msra.mxu0 %v1355
    %1410 = vmatprep.subr.bf16.mxu0 0
    %1411 = vmatpush1.bf16.msra.mxu0 %v1354
    %1412 = vmatprep.subr.bf16.mxu0 0
    %1413 = vmatpush1.bf16.msra.mxu0 %v1353
    %1414 = vmatprep.subr.bf16.mxu0 0
    %1415 = vmatpush1.bf16.msra.mxu0 %v1352
    %1416 = vmatprep.subr.bf16.mxu0 0
    %1417 = vmatpush2.bf16.msra.mxu0 %v1367
    %1418 = vmatprep.subr.bf16.mxu0 0
    %1419 = vmatpush2.bf16.msra.mxu0 %v1366
    %1420 = vmatprep.subr.bf16.mxu0 0
    %1421 = vmatpush2.bf16.msra.mxu0 %v1365
    %1422 = vmatprep.subr.bf16.mxu0 0
    %1423 = vmatpush2.bf16.msra.mxu0 %v1364
    %1424 = vmatprep.subr.bf16.mxu0 0
    %1425 = vmatpush2.bf16.msra.mxu0 %v1363
    %1426 = vmatprep.subr.bf16.mxu0 0
    %1427 = vmatpush2.bf16.msra.mxu0 %v1362
    %1428 = vmatprep.subr.bf16.mxu0 0
    %1429 = vmatpush2.bf16.msra.mxu0 %v1361
    %1430 = vmatprep.subr.bf16.mxu0 0
    %1431 = vmatpush2.bf16.msra.mxu0 %v1360
    %1432 = vmatprep.mubr.bf16.mxu0 %v1092
    %1433 = vmatmul.mubr.bf16.gmra.mxu0 %v1242
    %v1434 = vpop.f32.mrf.mxu0
    %v1435 = vadd.f32 %v1254, %v1434
    %v1436 = vpop.f32.mrf.mxu0
    %v1437 = vpop.f32.mrf.mxu0
    %v1438 = vadd.f32 %v1254, %v1437
    %v1439 = vpop.f32.mrf.mxu0
    %1440 = vmatprep.mubr.bf16.mxu0 %v1093
    %1441 = vmatmul.mubr.bf16.gmra.mxu0 %v1243
    %v1442 = vpop.f32.mrf.mxu0
    %v1443 = vadd.f32 %v1254, %v1442
    %v1444 = vpop.f32.mrf.mxu0
    %v1445 = vpop.f32.mrf.mxu0
    %v1446 = vadd.f32 %v1254, %v1445
    %v1447 = vpop.f32.mrf.mxu0
    %1448 = vmatprep.mubr.bf16.mxu0 %v1094
    %1449 = vmatmul.mubr.bf16.gmra.mxu0 %v1244
    %v1450 = vpop.f32.mrf.mxu0
    %v1451 = vadd.f32 %v1254, %v1450
    %v1452 = vpop.f32.mrf.mxu0
    %v1453 = vpop.f32.mrf.mxu0
    %v1454 = vadd.f32 %v1254, %v1453
    %v1455 = vpop.f32.mrf.mxu0
    %1456 = vmatprep.mubr.bf16.mxu0 %v1095
    %1457 = vmatmul.mubr.bf16.gmra.mxu0 %v1245
    %v1458 = vpop.f32.mrf.mxu0
    %v1459 = vadd.f32 %v1254, %v1458
    %v1460 = vpop.f32.mrf.mxu0
    %v1461 = vpop.f32.mrf.mxu0
    %v1462 = vadd.f32 %v1254, %v1461
    %v1463 = vpop.f32.mrf.mxu0
    %1464 = vdwg.mxu0
    %1465 = vmatprep.subr.bf16.mxu0 0
    %1466 = vmatpush1.bf16.msra.mxu0 %v1375
    %1467 = vmatprep.subr.bf16.mxu0 0
    %1468 = vmatpush1.bf16.msra.mxu0 %v1374
    %1469 = vmatprep.subr.bf16.mxu0 0
    %1470 = vmatpush1.bf16.msra.mxu0 %v1373
    %1471 = vmatprep.subr.bf16.mxu0 0
    %1472 = vmatpush1.bf16.msra.mxu0 %v1372
    %1473 = vmatprep.subr.bf16.mxu0 0
    %1474 = vmatpush1.bf16.msra.mxu0 %v1371
    %1475 = vmatprep.subr.bf16.mxu0 0
    %1476 = vmatpush1.bf16.msra.mxu0 %v1370
    %1477 = vmatprep.subr.bf16.mxu0 0
    %1478 = vmatpush1.bf16.msra.mxu0 %v1369
    %1479 = vmatprep.subr.bf16.mxu0 0
    %1480 = vmatpush1.bf16.msra.mxu0 %v1368
    %1481 = vmatprep.subr.bf16.mxu0 0
    %1482 = vmatpush2.bf16.msra.mxu0 0
    %1483 = vmatprep.subr.bf16.mxu0 0
    %1484 = vmatpush2.bf16.msra.mxu0 0
    %1485 = vmatprep.subr.bf16.mxu0 0
    %1486 = vmatpush2.bf16.msra.mxu0 0
    %1487 = vmatprep.subr.bf16.mxu0 0
    %1488 = vmatpush2.bf16.msra.mxu0 0
    %1489 = vmatprep.subr.bf16.mxu0 0
    %1490 = vmatpush2.bf16.msra.mxu0 0
    %1491 = vmatprep.subr.bf16.mxu0 0
    %1492 = vmatpush2.bf16.msra.mxu0 0
    %1493 = vmatprep.subr.bf16.mxu0 0
    %1494 = vmatpush2.bf16.msra.mxu0 0
    %1495 = vmatprep.subr.bf16.mxu0 0
    %1496 = vmatpush2.bf16.msra.mxu0 0
    %1497 = vmatprep.mubr.bf16.mxu0 0
    %1498 = vmatmul.mubr.bf16.gmra.mxu0 %v1246
    %v1499 = vpop.f32.mrf.mxu0
    %v1500 = vadd.f32 %v1435, %v1499
    %v1501 = vpop.f32.mrf.mxu0
    %v1502 = vpop.f32.mrf.mxu0
    %v1503 = vadd.f32 %v1438, %v1502
    %v1504 = vpop.f32.mrf.mxu0
    %1505 = vmatprep.mubr.bf16.mxu0 0
    %1506 = vmatmul.mubr.bf16.gmra.mxu0 %v1247
    %v1507 = vpop.f32.mrf.mxu0
    %v1508 = vadd.f32 %v1443, %v1507
    %v1509 = vpop.f32.mrf.mxu0
    %v1510 = vpop.f32.mrf.mxu0
    %v1511 = vadd.f32 %v1446, %v1510
    %v1512 = vpop.f32.mrf.mxu0
    %1513 = vmatprep.mubr.bf16.mxu0 0
    %1514 = vmatmul.mubr.bf16.gmra.mxu0 %v1248
    %v1515 = vpop.f32.mrf.mxu0
    %v1516 = vadd.f32 %v1451, %v1515
    %v1517 = vpop.f32.mrf.mxu0
    %v1518 = vpop.f32.mrf.mxu0
    %v1519 = vadd.f32 %v1454, %v1518
    %v1520 = vpop.f32.mrf.mxu0
    %1521 = vmatprep.mubr.bf16.mxu0 0
    %1522 = vmatmul.mubr.bf16.gmra.mxu0 %v1249
    %v1523 = vpop.f32.mrf.mxu0
    %v1524 = vadd.f32 %v1459, %v1523
    %v1525 = vpop.f32.mrf.mxu0
    %v1526 = vpop.f32.mrf.mxu0
    %v1527 = vadd.f32 %v1462, %v1526
    %v1528 = vpop.f32.mrf.mxu0
    %1529 = vdwg.mxu0
    %v1530 = vmax.f32 %v1500, 0.0
    %v1531 = vmax.f32 %v1503, 0.0
    %v1532 = vmax.f32 %v1508, 0.0
    %v1533 = vmax.f32 %v1511, 0.0
    %v1534 = vmax.f32 %v1516, 0.0
    %v1535 = vmax.f32 %v1519, 0.0
    %v1536 = vmax.f32 %v1524, 0.0
    %v1537 = vmax.f32 %v1527, 0.0
    %v1538 = vpack.c.bf16 %v1531, %v1530
    %v1539 = vpack.c.bf16 %v1533, %v1532
    %v1540 = vpack.c.bf16 %v1535, %v1534
    %v1541 = vpack.c.bf16 %v1537, %v1536
    %v1542 = vld [vmem:[#allocation4] sm:$0xf]
    %v1543 = vld [vmem:[#allocation4 + $0x4] sm:$0xf]
    %v1544 = vld [vmem:[#allocation4 + $0x8] sm:$0xf]
    %v1545 = vld [vmem:[#allocation4 + $0xc] sm:$0xf]
    %v1550 = vunpack.c.l.b16 %v1542
    %v1551 = vunpack.c.l.b16 %v1543
    %v1552 = vunpack.c.l.b16 %v1544
    %v1553 = vunpack.c.l.b16 %v1545
    %v1554 = vpack.c.b16 %v1551, %v1550
    %v1555 = vpack.c.b16 %v1553, %v1552
    %v1557 = vsel %vm775, %v1554, 0
    %v1560 = vsel %vm775, %v1555, 0
    %1562 = vmatprep.subr.bf16.mxu0 0
    %1563 = vmatpush1.bf16.msra.mxu0 0
    %1564 = vmatprep.subr.bf16.mxu0 0
    %1565 = vmatpush1.bf16.msra.mxu0 0
    %1566 = vmatprep.subr.bf16.mxu0 0
    %1567 = vmatpush1.bf16.msra.mxu0 0
    %1568 = vmatprep.subr.bf16.mxu0 0
    %1569 = vmatpush1.bf16.msra.mxu0 0
    %1570 = vmatprep.subr.bf16.mxu0 0
    %1571 = vmatpush1.bf16.msra.mxu0 %v1541
    %1572 = vmatprep.subr.bf16.mxu0 0
    %1573 = vmatpush1.bf16.msra.mxu0 %v1540
    %1574 = vmatprep.subr.bf16.mxu0 0
    %1575 = vmatpush1.bf16.msra.mxu0 %v1539
    %1576 = vmatprep.subr.bf16.mxu0 0
    %1577 = vmatpush1.bf16.msra.mxu0 %v1538
    %1578 = vmatprep.subr.bf16.mxu0 0
    %1579 = vmatpush2.bf16.msra.mxu0 0
    %1580 = vmatprep.subr.bf16.mxu0 0
    %1581 = vmatpush2.bf16.msra.mxu0 0
    %1582 = vmatprep.subr.bf16.mxu0 0
    %1583 = vmatpush2.bf16.msra.mxu0 0
    %1584 = vmatprep.subr.bf16.mxu0 0
    %1585 = vmatpush2.bf16.msra.mxu0 0
    %1586 = vmatprep.subr.bf16.mxu0 0
    %1587 = vmatpush2.bf16.msra.mxu0 0
    %1588 = vmatprep.subr.bf16.mxu0 0
    %1589 = vmatpush2.bf16.msra.mxu0 0
    %1590 = vmatprep.subr.bf16.mxu0 0
    %1591 = vmatpush2.bf16.msra.mxu0 0
    %1592 = vmatprep.subr.bf16.mxu0 0
    %1593 = vmatpush2.bf16.msra.mxu0 0
    %1594 = vmatprep.mubr.bf16.mxu0 0
    %1595 = vmatmul.mubr.bf16.gmra.mxu0 %v1557
    %v1596 = vpop.f32.mrf.mxu0
    %v1597 = vadd.f32 0.0, %v1596
    %v1598 = vpop.f32.mrf.mxu0
    %v1599 = vpop.f32.mrf.mxu0
    %v1600 = vadd.f32 0.0, %v1599
    %v1601 = vpop.f32.mrf.mxu0
    %1602 = vmatprep.mubr.bf16.mxu0 0
    %1603 = vmatmul.mubr.bf16.gmra.mxu0 %v1560
    %v1604 = vpop.f32.mrf.mxu0
    %v1605 = vadd.f32 0.0, %v1604
    %v1606 = vpop.f32.mrf.mxu0
    %v1607 = vpop.f32.mrf.mxu0
    %v1608 = vadd.f32 0.0, %v1607
    %v1609 = vpop.f32.mrf.mxu0
    %1610 = vdwg.mxu0
    %v1611 = vld [vmem:[#allocation6] sm:$0xf]
    %v1612 = vld [vmem:[#allocation6 + $0x4] sm:$0xf]
    %v1613 = vld [vmem:[#allocation6 + $0x8] sm:$0xf]
    %v1614 = vld [vmem:[#allocation6 + $0xc] sm:$0xf]
    %v1619 = vunpack.c.l.b16 %v1611
    %v1620 = vunpack.c.l.b16 %v1612
    %v1621 = vunpack.c.l.b16 %v1613
    %v1622 = vunpack.c.l.b16 %v1614
    %v1623 = vpack.c.b16 %v1620, %v1619
    %v1624 = vpack.c.b16 %v1622, %v1621
    %v1626 = vsel %vm775, %v1623, 0
    %v1629 = vsel %vm775, %v1624, 0
    %1631 = vmatprep.subr.bf16.mxu0 0
    %1632 = vmatpush1.bf16.msra.mxu0 0
    %1633 = vmatprep.subr.bf16.mxu0 0
    %1634 = vmatpush1.bf16.msra.mxu0 0
    %1635 = vmatprep.subr.bf16.mxu0 0
    %1636 = vmatpush1.bf16.msra.mxu0 0
    %1637 = vmatprep.subr.bf16.mxu0 0
    %1638 = vmatpush1.bf16.msra.mxu0 0
    %1639 = vmatprep.subr.bf16.mxu0 0
    %1640 = vmatpush1.bf16.msra.mxu0 %v1541
    %1641 = vmatprep.subr.bf16.mxu0 0
    %1642 = vmatpush1.bf16.msra.mxu0 %v1540
    %1643 = vmatprep.subr.bf16.mxu0 0
    %1644 = vmatpush1.bf16.msra.mxu0 %v1539
    %1645 = vmatprep.subr.bf16.mxu0 0
    %1646 = vmatpush1.bf16.msra.mxu0 %v1538
    %1647 = vmatprep.subr.bf16.mxu0 0
    %1648 = vmatpush2.bf16.msra.mxu0 0
    %1649 = vmatprep.subr.bf16.mxu0 0
    %1650 = vmatpush2.bf16.msra.mxu0 0
    %1651 = vmatprep.subr.bf16.mxu0 0
    %1652 = vmatpush2.bf16.msra.mxu0 0
    %1653 = vmatprep.subr.bf16.mxu0 0
    %1654 = vmatpush2.bf16.msra.mxu0 0
    %1655 = vmatprep.subr.bf16.mxu0 0
    %1656 = vmatpush2.bf16.msra.mxu0 0
    %1657 = vmatprep.subr.bf16.mxu0 0
    %1658 = vmatpush2.bf16.msra.mxu0 0
    %1659 = vmatprep.subr.bf16.mxu0 0
    %1660 = vmatpush2.bf16.msra.mxu0 0
    %1661 = vmatprep.subr.bf16.mxu0 0
    %1662 = vmatpush2.bf16.msra.mxu0 0
    %1663 = vmatprep.mubr.bf16.mxu0 0
    %1664 = vmatmul.mubr.bf16.gmra.mxu0 %v1626
    %v1665 = vpop.f32.mrf.mxu0
    %v1666 = vadd.f32 0.0, %v1665
    %v1667 = vpop.f32.mrf.mxu0
    %v1668 = vpop.f32.mrf.mxu0
    %v1669 = vadd.f32 0.0, %v1668
    %v1670 = vpop.f32.mrf.mxu0
    %1671 = vmatprep.mubr.bf16.mxu0 0
    %1672 = vmatmul.mubr.bf16.gmra.mxu0 %v1629
    %v1673 = vpop.f32.mrf.mxu0
    %v1674 = vadd.f32 0.0, %v1673
    %v1675 = vpop.f32.mrf.mxu0
    %v1676 = vpop.f32.mrf.mxu0
    %v1677 = vadd.f32 0.0, %v1676
    %v1678 = vpop.f32.mrf.mxu0
    %1679 = vdwg.mxu0
    %v1680 = vmax.f32 %v1597, %v1666
    %v1681 = vmax.f32 %v1600, %v1669
    %v1682 = vmax.f32 %v1605, %v1674
    %v1683 = vmax.f32 %v1608, %v1677
    %v1684 = vpack.c.bf16 %v1681, %v1680
    %v1685 = vpack.c.bf16 %v1683, %v1682
    %v1686 = vld [vmem:[%s17] sm:$0xf]
    %v1687 = vld [vmem:[%s17 + $0x4] sm:$0xf]
    %v1688 = vld [vmem:[%s17 + $0x8] sm:$0xf]
    %v1689 = vld [vmem:[%s17 + $0xc] sm:$0xf]
    %v1690 = vld [vmem:[%s17 + $0x10] sm:$0xf]
    %v1691 = vld [vmem:[%s17 + $0x14] sm:$0xf]
    %v1692 = vld [vmem:[%s17 + $0x18] sm:$0xf]
    %v1693 = vld [vmem:[%s17 + $0x1c] sm:$0xf]
    %v1694 = vld [vmem:[%s17 + $0x20] sm:$0xf]
    %v1695 = vld [vmem:[%s17 + $0x24] sm:$0xf]
    %v1696 = vld [vmem:[%s17 + $0x28] sm:$0xf]
    %v1697 = vld [vmem:[%s17 + $0x2c] sm:$0xf]
    %v1698 = vld [vmem:[%s17 + $0x30] sm:$0xf]
    %v1699 = vld [vmem:[%s17 + $0x34] sm:$0xf]
    %v1700 = vld [vmem:[%s17 + $0x38] sm:$0xf]
    %v1701 = vld [vmem:[%s17 + $0x3c] sm:$0xf]
    %v1718 = vunpack.c.l.b16 %v1686
    %v1719 = vunpack.c.l.b16 %v1687
    %v1720 = vunpack.c.l.b16 %v1688
    %v1721 = vunpack.c.l.b16 %v1689
    %v1722 = vunpack.c.l.b16 %v1690
    %v1723 = vunpack.c.l.b16 %v1691
    %v1724 = vunpack.c.l.b16 %v1692
    %v1725 = vunpack.c.l.b16 %v1693
    %v1726 = vunpack.c.l.b16 %v1694
    %v1727 = vunpack.c.l.b16 %v1695
    %v1728 = vunpack.c.l.b16 %v1696
    %v1729 = vunpack.c.l.b16 %v1697
    %v1730 = vunpack.c.l.b16 %v1698
    %v1731 = vunpack.c.l.b16 %v1699
    %v1732 = vunpack.c.l.b16 %v1700
    %v1733 = vunpack.c.l.b16 %v1701
    %v1734 = vpack.c.b16 %v1719, %v1718
    %v1735 = vpack.c.b16 %v1721, %v1720
    %v1736 = vpack.c.b16 %v1723, %v1722
    %v1737 = vpack.c.b16 %v1725, %v1724
    %v1738 = vpack.c.b16 %v1727, %v1726
    %v1739 = vpack.c.b16 %v1729, %v1728
    %v1740 = vpack.c.b16 %v1731, %v1730
    %v1741 = vpack.c.b16 %v1733, %v1732
    %1750 = vmatprep.subr.bf16.mxu0 0
    %1751 = vmatpush1.bf16.msra.mxu0 %v1741
    %1752 = vmatprep.subr.bf16.mxu0 0
    %1753 = vmatpush1.bf16.msra.mxu0 %v1740
    %1754 = vmatprep.subr.bf16.mxu0 0
    %1755 = vmatpush1.bf16.msra.mxu0 %v1739
    %1756 = vmatprep.subr.bf16.mxu0 0
    %1757 = vmatpush1.bf16.msra.mxu0 %v1738
    %1758 = vmatprep.subr.bf16.mxu0 0
    %1759 = vmatpush1.bf16.msra.mxu0 %v1737
    %1760 = vmatprep.subr.bf16.mxu0 0
    %1761 = vmatpush1.bf16.msra.mxu0 %v1736
    %1762 = vmatprep.subr.bf16.mxu0 0
    %1763 = vmatpush1.bf16.msra.mxu0 %v1735
    %1764 = vmatprep.subr.bf16.mxu0 0
    %1765 = vmatpush1.bf16.msra.mxu0 %v1734
    %1766 = vmatprep.subr.bf16.mxu0 0
    %1767 = vmatpush2.bf16.msra.mxu0 0
    %1768 = vmatprep.subr.bf16.mxu0 0
    %1769 = vmatpush2.bf16.msra.mxu0 0
    %1770 = vmatprep.subr.bf16.mxu0 0
    %1771 = vmatpush2.bf16.msra.mxu0 0
    %1772 = vmatprep.subr.bf16.mxu0 0
    %1773 = vmatpush2.bf16.msra.mxu0 0
    %1774 = vmatprep.subr.bf16.mxu0 0
    %1775 = vmatpush2.bf16.msra.mxu0 0
    %1776 = vmatprep.subr.bf16.mxu0 0
    %1777 = vmatpush2.bf16.msra.mxu0 0
    %1778 = vmatprep.subr.bf16.mxu0 0
    %1779 = vmatpush2.bf16.msra.mxu0 0
    %1780 = vmatprep.subr.bf16.mxu0 0
    %1781 = vmatpush2.bf16.msra.mxu0 0
    %1782 = vmatprep.mubr.bf16.mxu0 0
    %1783 = vmatmul.mubr.bf16.gmra.mxu0 %v1684
    %v1784 = vpop.f32.mrf.mxu0
    %v1785 = vadd.f32 0.0, %v1784
    %v1786 = vpop.f32.mrf.mxu0
    %v1787 = vpop.f32.mrf.mxu0
    %v1788 = vadd.f32 0.0, %v1787
    %v1789 = vpop.f32.mrf.mxu0
    %1790 = vmatprep.mubr.bf16.mxu0 0
    %1791 = vmatmul.mubr.bf16.gmra.mxu0 %v1685
    %v1792 = vpop.f32.mrf.mxu0
    %v1793 = vadd.f32 0.0, %v1792
    %v1794 = vpop.f32.mrf.mxu0
    %v1795 = vpop.f32.mrf.mxu0
    %v1796 = vadd.f32 0.0, %v1795
    %v1797 = vpop.f32.mrf.mxu0
    %1798 = vdwg.mxu0
    %v1799 = vld [vmem:[%s19] sm:$0xf]
    %v1800 = vld [vmem:[%s19 + $0x4] sm:$0xf]
    %v1801 = vld [vmem:[%s19 + $0x8] sm:$0xf]
    %v1802 = vld [vmem:[%s19 + $0xc] sm:$0xf]
    %v1803 = vld [vmem:[%s19 + $0x10] sm:$0xf]
    %v1804 = vld [vmem:[%s19 + $0x14] sm:$0xf]
    %v1805 = vld [vmem:[%s19 + $0x18] sm:$0xf]
    %v1806 = vld [vmem:[%s19 + $0x1c] sm:$0xf]
    %v1807 = vld [vmem:[%s19 + $0x20] sm:$0xf]
    %v1808 = vld [vmem:[%s19 + $0x24] sm:$0xf]
    %v1809 = vld [vmem:[%s19 + $0x28] sm:$0xf]
    %v1810 = vld [vmem:[%s19 + $0x2c] sm:$0xf]
    %v1811 = vld [vmem:[%s19 + $0x30] sm:$0xf]
    %v1812 = vld [vmem:[%s19 + $0x34] sm:$0xf]
    %v1813 = vld [vmem:[%s19 + $0x38] sm:$0xf]
    %v1814 = vld [vmem:[%s19 + $0x3c] sm:$0xf]
    %v1831 = vunpack.c.l.b16 %v1799
    %v1832 = vunpack.c.l.b16 %v1800
    %v1833 = vunpack.c.l.b16 %v1801
    %v1834 = vunpack.c.l.b16 %v1802
    %v1835 = vunpack.c.l.b16 %v1803
    %v1836 = vunpack.c.l.b16 %v1804
    %v1837 = vunpack.c.l.b16 %v1805
    %v1838 = vunpack.c.l.b16 %v1806
    %v1839 = vunpack.c.l.b16 %v1807
    %v1840 = vunpack.c.l.b16 %v1808
    %v1841 = vunpack.c.l.b16 %v1809
    %v1842 = vunpack.c.l.b16 %v1810
    %v1843 = vunpack.c.l.b16 %v1811
    %v1844 = vunpack.c.l.b16 %v1812
    %v1845 = vunpack.c.l.b16 %v1813
    %v1846 = vunpack.c.l.b16 %v1814
    %v1847 = vpack.c.b16 %v1832, %v1831
    %v1848 = vpack.c.b16 %v1834, %v1833
    %v1849 = vpack.c.b16 %v1836, %v1835
    %v1850 = vpack.c.b16 %v1838, %v1837
    %v1851 = vpack.c.b16 %v1840, %v1839
    %v1852 = vpack.c.b16 %v1842, %v1841
    %v1853 = vpack.c.b16 %v1844, %v1843
    %v1854 = vpack.c.b16 %v1846, %v1845
    %1863 = vmatprep.subr.bf16.mxu0 0
    %1864 = vmatpush1.bf16.msra.mxu0 %v1854
    %1865 = vmatprep.subr.bf16.mxu0 0
    %1866 = vmatpush1.bf16.msra.mxu0 %v1853
    %1867 = vmatprep.subr.bf16.mxu0 0
    %1868 = vmatpush1.bf16.msra.mxu0 %v1852
    %1869 = vmatprep.subr.bf16.mxu0 0
    %1870 = vmatpush1.bf16.msra.mxu0 %v1851
    %1871 = vmatprep.subr.bf16.mxu0 0
    %1872 = vmatpush1.bf16.msra.mxu0 %v1850
    %1873 = vmatprep.subr.bf16.mxu0 0
    %1874 = vmatpush1.bf16.msra.mxu0 %v1849
    %1875 = vmatprep.subr.bf16.mxu0 0
    %1876 = vmatpush1.bf16.msra.mxu0 %v1848
    %1877 = vmatprep.subr.bf16.mxu0 0
    %1878 = vmatpush1.bf16.msra.mxu0 %v1847
    %1879 = vmatprep.subr.bf16.mxu0 0
    %1880 = vmatpush2.bf16.msra.mxu0 0
    %1881 = vmatprep.subr.bf16.mxu0 0
    %1882 = vmatpush2.bf16.msra.mxu0 0
    %1883 = vmatprep.subr.bf16.mxu0 0
    %1884 = vmatpush2.bf16.msra.mxu0 0
    %1885 = vmatprep.subr.bf16.mxu0 0
    %1886 = vmatpush2.bf16.msra.mxu0 0
    %1887 = vmatprep.subr.bf16.mxu0 0
    %1888 = vmatpush2.bf16.msra.mxu0 0
    %1889 = vmatprep.subr.bf16.mxu0 0
    %1890 = vmatpush2.bf16.msra.mxu0 0
    %1891 = vmatprep.subr.bf16.mxu0 0
    %1892 = vmatpush2.bf16.msra.mxu0 0
    %1893 = vmatprep.subr.bf16.mxu0 0
    %1894 = vmatpush2.bf16.msra.mxu0 0
    %1895 = vmatprep.mubr.bf16.mxu0 0
    %1896 = vmatmul.mubr.bf16.gmra.mxu0 %v1684
    %v1897 = vpop.f32.mrf.mxu0
    %v1898 = vadd.f32 0.0, %v1897
    %v1899 = vpop.f32.mrf.mxu0
    %v1900 = vpop.f32.mrf.mxu0
    %v1901 = vadd.f32 0.0, %v1900
    %v1902 = vpop.f32.mrf.mxu0
    %1903 = vmatprep.mubr.bf16.mxu0 0
    %1904 = vmatmul.mubr.bf16.gmra.mxu0 %v1685
    %v1905 = vpop.f32.mrf.mxu0
    %v1906 = vadd.f32 0.0, %v1905
    %v1907 = vpop.f32.mrf.mxu0
    %v1908 = vpop.f32.mrf.mxu0
    %v1909 = vadd.f32 0.0, %v1908
    %v1910 = vpop.f32.mrf.mxu0
    %1911 = vdwg.mxu0
    %v1912 = vmax.f32 %v1785, %v1898
    %v1913 = vmax.f32 %v1788, %v1901
    %v1914 = vmax.f32 %v1793, %v1906
    %v1915 = vmax.f32 %v1796, %v1909
    %v1916 = vpack.c.bf16 %v1913, %v1912
    %v1917 = vpack.c.bf16 %v1915, %v1914
    %v1918 = vld [vmem:[%s29] sm:$0xf]
    %v1919 = vld [vmem:[%s29 + $0x4] sm:$0xf]
    %v1920 = vld [vmem:[%s29 + $0x8] sm:$0xf]
    %v1921 = vld [vmem:[%s29 + $0xc] sm:$0xf]
    %v1922 = vld [vmem:[%s29 + $0x10] sm:$0xf]
    %v1923 = vld [vmem:[%s29 + $0x14] sm:$0xf]
    %v1924 = vld [vmem:[%s29 + $0x18] sm:$0xf]
    %v1925 = vld [vmem:[%s29 + $0x1c] sm:$0xf]
    %v1926 = vld [vmem:[#allocation7] sm:$0xf]
    %v1927 = vld [vmem:[#allocation7 + $0x4] sm:$0xf]
    %v1928 = vld [vmem:[#allocation7 + $0x8] sm:$0xf]
    %v1929 = vld [vmem:[#allocation7 + $0xc] sm:$0xf]
    %v1930 = vld [vmem:[#allocation7 + $0x10] sm:$0xf]
    %v1931 = vld [vmem:[#allocation7 + $0x14] sm:$0xf]
    %v1932 = vld [vmem:[#allocation7 + $0x18] sm:$0xf]
    %v1933 = vld [vmem:[#allocation7 + $0x1c] sm:$0xf]
    %v1934 = vld [vmem:[#allocation7 + $0x20] sm:$0xf]
    %v1935 = vld [vmem:[#allocation7 + $0x24] sm:$0xf]
    %v1936 = vld [vmem:[#allocation7 + $0x28] sm:$0xf]
    %v1937 = vld [vmem:[#allocation7 + $0x2c] sm:$0xf]
    %v1938 = vld [vmem:[#allocation7 + $0x30] sm:$0xf]
    %v1939 = vld [vmem:[#allocation7 + $0x34] sm:$0xf]
    %v1940 = vld [vmem:[#allocation7 + $0x38] sm:$0xf]
    %v1941 = vld [vmem:[#allocation7 + $0x3c] sm:$0xf]
    %v1942 = vld [vmem:[#allocation7 + $0x40] sm:$0xf]
    %v1943 = vld [vmem:[#allocation7 + $0x44] sm:$0xf]
    %v1944 = vld [vmem:[#allocation7 + $0x48] sm:$0xf]
    %v1945 = vld [vmem:[#allocation7 + $0x4c] sm:$0xf]
    %v1946 = vld [vmem:[#allocation7 + $0x50] sm:$0xf]
    %v1947 = vld [vmem:[#allocation7 + $0x54] sm:$0xf]
    %v1948 = vld [vmem:[#allocation7 + $0x58] sm:$0xf]
    %v1949 = vld [vmem:[#allocation7 + $0x5c] sm:$0xf]
    %v1950 = vld [vmem:[#allocation9] sm:$0x1]
    %v1959 = vunpack.c.l.b16 %v1918
    %v1960 = vunpack.c.l.b16 %v1919
    %v1961 = vunpack.c.l.b16 %v1920
    %v1962 = vunpack.c.l.b16 %v1921
    %v1963 = vunpack.c.l.b16 %v1922
    %v1964 = vunpack.c.l.b16 %v1923
    %v1965 = vunpack.c.l.b16 %v1924
    %v1966 = vunpack.c.l.b16 %v1925
    %v1967 = vpack.c.b16 %v1960, %v1959
    %v1968 = vpack.c.b16 %v1962, %v1961
    %v1969 = vpack.c.b16 %v1964, %v1963
    %v1970 = vpack.c.b16 %v1966, %v1965
    %vm1971 = vcmask 261120
    %v1973 = vsel %vm1971, %v1967, 0
    %v1976 = vsel %vm1971, %v1968, 0
    %v1979 = vsel %vm1971, %v1969, 0
    %v1982 = vsel %vm1971, %v1970, 0
    %1984 = vmatprep.subr.bf16.mxu0 0
    %1985 = vmatpush1.bf16.msra.mxu0 0
    %1986 = vmatprep.subr.bf16.mxu0 0
    %1987 = vmatpush1.bf16.msra.mxu0 0
    %1988 = vmatprep.subr.bf16.mxu0 0
    %1989 = vmatpush1.bf16.msra.mxu0 0
    %1990 = vmatprep.subr.bf16.mxu0 0
    %1991 = vmatpush1.bf16.msra.mxu0 0
    %1992 = vmatprep.subr.bf16.mxu0 0
    %1993 = vmatpush1.bf16.msra.mxu0 0
    %1994 = vmatprep.subr.bf16.mxu0 0
    %1995 = vmatpush1.bf16.msra.mxu0 0
    %1996 = vmatprep.subr.bf16.mxu0 0
    %1997 = vmatpush1.bf16.msra.mxu0 %v1917
    %1998 = vmatprep.subr.bf16.mxu0 0
    %1999 = vmatpush1.bf16.msra.mxu0 %v1916
    %2000 = vmatprep.subr.bf16.mxu0 0
    %2001 = vmatpush2.bf16.msra.mxu0 0
    %2002 = vmatprep.subr.bf16.mxu0 0
    %2003 = vmatpush2.bf16.msra.mxu0 0
    %2004 = vmatprep.subr.bf16.mxu0 0
    %2005 = vmatpush2.bf16.msra.mxu0 0
    %2006 = vmatprep.subr.bf16.mxu0 0
    %2007 = vmatpush2.bf16.msra.mxu0 0
    %2008 = vmatprep.subr.bf16.mxu0 0
    %2009 = vmatpush2.bf16.msra.mxu0 0
    %2010 = vmatprep.subr.bf16.mxu0 0
    %2011 = vmatpush2.bf16.msra.mxu0 0
    %2012 = vmatprep.subr.bf16.mxu0 0
    %2013 = vmatpush2.bf16.msra.mxu0 0
    %2014 = vmatprep.subr.bf16.mxu0 0
    %2015 = vmatpush2.bf16.msra.mxu0 0
    %2016 = vmatprep.mubr.bf16.mxu0 0
    %2017 = vmatmul.mubr.bf16.gmra.mxu0 %v1973
    %v2018 = vpop.f32.mrf.mxu0
    %v2019 = vadd.f32 0.0, %v2018
    %v2020 = vpop.f32.mrf.mxu0
    %v2021 = vpop.f32.mrf.mxu0
    %v2022 = vadd.f32 0.0, %v2021
    %v2023 = vpop.f32.mrf.mxu0
    %2024 = vmatprep.mubr.bf16.mxu0 0
    %2025 = vmatmul.mubr.bf16.gmra.mxu0 %v1976
    %v2026 = vpop.f32.mrf.mxu0
    %v2027 = vadd.f32 0.0, %v2026
    %v2028 = vpop.f32.mrf.mxu0
    %v2029 = vpop.f32.mrf.mxu0
    %v2030 = vadd.f32 0.0, %v2029
    %v2031 = vpop.f32.mrf.mxu0
    %2032 = vmatprep.mubr.bf16.mxu0 0
    %2033 = vmatmul.mubr.bf16.gmra.mxu0 %v1979
    %v2034 = vpop.f32.mrf.mxu0
    %v2035 = vadd.f32 0.0, %v2034
    %v2036 = vpop.f32.mrf.mxu0
    %v2037 = vpop.f32.mrf.mxu0
    %v2038 = vadd.f32 0.0, %v2037
    %v2039 = vpop.f32.mrf.mxu0
    %2040 = vmatprep.mubr.bf16.mxu0 0
    %2041 = vmatmul.mubr.bf16.gmra.mxu0 %v1982
    %v2042 = vpop.f32.mrf.mxu0
    %v2043 = vadd.f32 0.0, %v2042
    %v2044 = vpop.f32.mrf.mxu0
    %v2045 = vpop.f32.mrf.mxu0
    %v2046 = vadd.f32 0.0, %v2045
    %v2047 = vpop.f32.mrf.mxu0
    %2048 = vdwg.mxu0
    %v2049 = vpack.c.bf16 %v2022, %v2019
    %v2050 = vpack.c.bf16 %v2030, %v2027
    %v2051 = vpack.c.bf16 %v2038, %v2035
    %v2052 = vpack.c.bf16 %v2046, %v2043
    %2055 = vrot.lane.b32.xlu0 %v1916, 64
    %v2056 = vpop.permute.xlu0 %2055
    %2057 = vrot.lane.b32.xlu0 %v1917, 64
    %v2058 = vpop.permute.xlu0 %2057
    %v2061 = vsel %vm775, %v2049, %v2056
    %v2065 = vsel %vm775, %v2050, %v2058
    %v2068 = vlaneseq
    %v2069 = vshrl.u32 %v2068, 7
    %v2070 = vsub.s32 0, %v2069
    %v2071 = vrot.slane %v1950, %v2070
    %v2097 = vunpack.c.l.b16 %v1926
    %v2098 = vunpack.c.l.b16 %v1927
    %v2099 = vunpack.c.l.b16 %v1928
    %v2100 = vunpack.c.l.b16 %v1929
    %v2101 = vunpack.c.l.b16 %v1930
    %v2102 = vunpack.c.l.b16 %v1931
    %v2103 = vunpack.c.l.b16 %v1932
    %v2104 = vunpack.c.l.b16 %v1933
    %v2105 = vunpack.c.l.b16 %v1934
    %v2106 = vunpack.c.l.b16 %v1935
    %v2107 = vunpack.c.l.b16 %v1936
    %v2108 = vunpack.c.l.b16 %v1937
    %v2109 = vunpack.c.l.b16 %v1938
    %v2110 = vunpack.c.l.b16 %v1939
    %v2111 = vunpack.c.l.b16 %v1940
    %v2112 = vunpack.c.l.b16 %v1941
    %v2113 = vunpack.c.l.b16 %v1942
    %v2114 = vunpack.c.l.b16 %v1943
    %v2115 = vunpack.c.l.b16 %v1944
    %v2116 = vunpack.c.l.b16 %v1945
    %v2117 = vunpack.c.l.b16 %v1946
    %v2118 = vunpack.c.l.b16 %v1947
    %v2119 = vunpack.c.l.b16 %v1948
    %v2120 = vunpack.c.l.b16 %v1949
    %v2121 = vpack.c.b16 %v2098, %v2097
    %v2122 = vpack.c.b16 %v2100, %v2099
    %v2123 = vpack.c.b16 %v2102, %v2101
    %v2124 = vpack.c.b16 %v2104, %v2103
    %v2125 = vpack.c.b16 %v2106, %v2105
    %v2126 = vpack.c.b16 %v2108, %v2107
    %v2127 = vpack.c.b16 %v2110, %v2109
    %v2128 = vpack.c.b16 %v2112, %v2111
    %v2129 = vpack.c.b16 %v2114, %v2113
    %v2130 = vpack.c.b16 %v2116, %v2115
    %v2131 = vpack.c.b16 %v2118, %v2117
    %v2132 = vpack.c.b16 %v2120, %v2119
    %v2146 = vsel %vm775, %v2051, 0
    %v2149 = vsel %vm775, %v2052, 0
    %2151 = vmatprep.subr.bf16.mxu0 0
    %2152 = vmatpush1.bf16.msra.mxu0 %v2128
    %2153 = vmatprep.subr.bf16.mxu0 0
    %2154 = vmatpush1.bf16.msra.mxu0 %v2127
    %2155 = vmatprep.subr.bf16.mxu0 0
    %2156 = vmatpush1.bf16.msra.mxu0 %v2126
    %2157 = vmatprep.subr.bf16.mxu0 0
    %2158 = vmatpush1.bf16.msra.mxu0 %v2125
    %2159 = vmatprep.subr.bf16.mxu0 0
    %2160 = vmatpush1.bf16.msra.mxu0 %v2124
    %2161 = vmatprep.subr.bf16.mxu0 0
    %2162 = vmatpush1.bf16.msra.mxu0 %v2123
    %2163 = vmatprep.subr.bf16.mxu0 0
    %2164 = vmatpush1.bf16.msra.mxu0 %v2122
    %2165 = vmatprep.subr.bf16.mxu0 0
    %2166 = vmatpush1.bf16.msra.mxu0 %v2121
    %2167 = vmatprep.subr.bf16.mxu0 0
    %2168 = vmatpush2.bf16.msra.mxu0 0
    %2169 = vmatprep.subr.bf16.mxu0 0
    %2170 = vmatpush2.bf16.msra.mxu0 0
    %2171 = vmatprep.subr.bf16.mxu0 0
    %2172 = vmatpush2.bf16.msra.mxu0 0
    %2173 = vmatprep.subr.bf16.mxu0 0
    %2174 = vmatpush2.bf16.msra.mxu0 0
    %2175 = vmatprep.subr.bf16.mxu0 0
    %2176 = vmatpush2.bf16.msra.mxu0 %v2132
    %2177 = vmatprep.subr.bf16.mxu0 0
    %2178 = vmatpush2.bf16.msra.mxu0 %v2131
    %2179 = vmatprep.subr.bf16.mxu0 0
    %2180 = vmatpush2.bf16.msra.mxu0 %v2130
    %2181 = vmatprep.subr.bf16.mxu0 0
    %2182 = vmatpush2.bf16.msra.mxu0 %v2129
    %2183 = vmatprep.mubr.bf16.mxu0 %v2146
    %2184 = vmatmul.mubr.bf16.gmra.mxu0 %v2061
    %v2185 = vpop.f32.mrf.mxu0
    %v2186 = vadd.f32 %v2071, %v2185
    %v2187 = vpop.f32.mrf.mxu0
    %v2188 = vpop.f32.mrf.mxu0
    %v2189 = vadd.f32 %v2071, %v2188
    %v2190 = vpop.f32.mrf.mxu0
    %2191 = vmatprep.mubr.bf16.mxu0 %v2149
    %2192 = vmatmul.mubr.bf16.gmra.mxu0 %v2065
    %v2193 = vpop.f32.mrf.mxu0
    %v2194 = vadd.f32 %v2071, %v2193
    %v2195 = vpop.f32.mrf.mxu0
    %v2196 = vpop.f32.mrf.mxu0
    %v2197 = vadd.f32 %v2071, %v2196
    %v2198 = vpop.f32.mrf.mxu0
    %2199 = vdwg.mxu0
    %v2200 = vmax.f32 %v2186, 0.0
    %v2201 = vmax.f32 %v2189, 0.0
    %v2202 = vmax.f32 %v2194, 0.0
    %v2203 = vmax.f32 %v2197, 0.0
    %v2204 = vpack.c.bf16 %v2201, %v2200
    %v2205 = vpack.c.bf16 %v2203, %v2202
    %v2206 = vld [vmem:[%s25] sm:$0xf]
    %v2207 = vld [vmem:[%s25 + $0x4] sm:$0xf]
    %v2208 = vld [vmem:[%s25 + $0x8] sm:$0xf]
    %v2209 = vld [vmem:[%s25 + $0xc] sm:$0xf]
    %v2210 = vld [vmem:[%s25 + $0x10] sm:$0xf]
    %v2211 = vld [vmem:[%s25 + $0x14] sm:$0xf]
    %v2212 = vld [vmem:[%s25 + $0x18] sm:$0xf]
    %v2213 = vld [vmem:[%s25 + $0x1c] sm:$0xf]
    %v2214 = vld [vmem:[%s25 + $0x20] sm:$0xf]
    %v2215 = vld [vmem:[%s25 + $0x24] sm:$0xf]
    %v2216 = vld [vmem:[%s25 + $0x28] sm:$0xf]
    %v2217 = vld [vmem:[%s25 + $0x2c] sm:$0xf]
    %v2218 = vld [vmem:[%s25 + $0x30] sm:$0xf]
    %v2219 = vld [vmem:[%s25 + $0x34] sm:$0xf]
    %v2220 = vld [vmem:[%s25 + $0x38] sm:$0xf]
    %v2221 = vld [vmem:[%s25 + $0x3c] sm:$0xf]
    %v2222 = vld [vmem:[%s25 + $0x40] sm:$0xf]
    %v2223 = vld [vmem:[%s25 + $0x44] sm:$0xf]
    %v2224 = vld [vmem:[%s25 + $0x48] sm:$0xf]
    %v2225 = vld [vmem:[%s25 + $0x4c] sm:$0xf]
    %v2226 = vld [vmem:[%s25 + $0x50] sm:$0xf]
    %v2227 = vld [vmem:[%s25 + $0x54] sm:$0xf]
    %v2228 = vld [vmem:[%s25 + $0x58] sm:$0xf]
    %v2229 = vld [vmem:[%s25 + $0x5c] sm:$0xf]
    %v2230 = vld [vmem:[%s25 + $0x60] sm:$0xf]
    %v2231 = vld [vmem:[%s25 + $0x64] sm:$0xf]
    %v2232 = vld [vmem:[%s25 + $0x68] sm:$0xf]
    %v2233 = vld [vmem:[%s25 + $0x6c] sm:$0xf]
    %v2234 = vld [vmem:[%s25 + $0x70] sm:$0xf]
    %v2235 = vld [vmem:[%s25 + $0x74] sm:$0xf]
    %v2236 = vld [vmem:[%s25 + $0x78] sm:$0xf]
    %v2237 = vld [vmem:[%s25 + $0x7c] sm:$0xf]
    %v2238 = vld [vmem:[%s25 + $0x80] sm:$0xf]
    %v2239 = vld [vmem:[%s25 + $0x84] sm:$0xf]
    %v2240 = vld [vmem:[%s25 + $0x88] sm:$0xf]
    %v2241 = vld [vmem:[%s25 + $0x8c] sm:$0xf]
    %v2242 = vld [vmem:[%s25 + $0x90] sm:$0xf]
    %v2243 = vld [vmem:[%s25 + $0x94] sm:$0xf]
    %v2244 = vld [vmem:[%s25 + $0x98] sm:$0xf]
    %v2245 = vld [vmem:[%s25 + $0x9c] sm:$0xf]
    %v2246 = vld [vmem:[%s25 + $0xa0] sm:$0xf]
    %v2247 = vld [vmem:[%s25 + $0xa4] sm:$0xf]
    %v2248 = vld [vmem:[%s25 + $0xa8] sm:$0xf]
    %v2249 = vld [vmem:[%s25 + $0xac] sm:$0xf]
    %v2250 = vld [vmem:[%s25 + $0xb0] sm:$0xf]
    %v2251 = vld [vmem:[%s25 + $0xb4] sm:$0xf]
    %v2252 = vld [vmem:[%s25 + $0xb8] sm:$0xf]
    %v2253 = vld [vmem:[%s25 + $0xbc] sm:$0xf]
    %v2254 = vld [vmem:[#allocation10] sm:$0x1]
    %2255 = vmatprep.subr.bf16.mxu0 0
    %2256 = vmatpush1.bf16.msra.mxu0 0
    %2257 = vmatprep.subr.bf16.mxu0 0
    %2258 = vmatpush1.bf16.msra.mxu0 0
    %2259 = vmatprep.subr.bf16.mxu0 0
    %2260 = vmatpush1.bf16.msra.mxu0 0
    %2261 = vmatprep.subr.bf16.mxu0 0
    %2262 = vmatpush1.bf16.msra.mxu0 0
    %2263 = vmatprep.subr.bf16.mxu0 0
    %2264 = vmatpush1.bf16.msra.mxu0 0
    %2265 = vmatprep.subr.bf16.mxu0 0
    %2266 = vmatpush1.bf16.msra.mxu0 0
    %2267 = vmatprep.subr.bf16.mxu0 0
    %2268 = vmatpush1.bf16.msra.mxu0 %v2205
    %2269 = vmatprep.subr.bf16.mxu0 0
    %2270 = vmatpush1.bf16.msra.mxu0 %v2204
    %2271 = vmatprep.subr.bf16.mxu0 0
    %2272 = vmatpush2.bf16.msra.mxu0 0
    %2273 = vmatprep.subr.bf16.mxu0 0
    %2274 = vmatpush2.bf16.msra.mxu0 0
    %2275 = vmatprep.subr.bf16.mxu0 0
    %2276 = vmatpush2.bf16.msra.mxu0 0
    %2277 = vmatprep.subr.bf16.mxu0 0
    %2278 = vmatpush2.bf16.msra.mxu0 0
    %2279 = vmatprep.subr.bf16.mxu0 0
    %2280 = vmatpush2.bf16.msra.mxu0 0
    %2281 = vmatprep.subr.bf16.mxu0 0
    %2282 = vmatpush2.bf16.msra.mxu0 0
    %2283 = vmatprep.subr.bf16.mxu0 0
    %2284 = vmatpush2.bf16.msra.mxu0 0
    %2285 = vmatprep.subr.bf16.mxu0 0
    %2286 = vmatpush2.bf16.msra.mxu0 0
    %2287 = vmatprep.mubr.bf16.mxu0 0
    %2288 = vmatmul.mubr.bf16.gmra.mxu0 %v1973
    %v2289 = vpop.f32.mrf.mxu0
    %v2290 = vadd.f32 0.0, %v2289
    %v2291 = vpop.f32.mrf.mxu0
    %v2292 = vpop.f32.mrf.mxu0
    %v2293 = vadd.f32 0.0, %v2292
    %v2294 = vpop.f32.mrf.mxu0
    %2295 = vmatprep.mubr.bf16.mxu0 0
    %2296 = vmatmul.mubr.bf16.gmra.mxu0 %v1976
    %v2297 = vpop.f32.mrf.mxu0
    %v2298 = vadd.f32 0.0, %v2297
    %v2299 = vpop.f32.mrf.mxu0
    %v2300 = vpop.f32.mrf.mxu0
    %v2301 = vadd.f32 0.0, %v2300
    %v2302 = vpop.f32.mrf.mxu0
    %2303 = vmatprep.mubr.bf16.mxu0 0
    %2304 = vmatmul.mubr.bf16.gmra.mxu0 %v1979
    %v2305 = vpop.f32.mrf.mxu0
    %v2306 = vadd.f32 0.0, %v2305
    %v2307 = vpop.f32.mrf.mxu0
    %v2308 = vpop.f32.mrf.mxu0
    %v2309 = vadd.f32 0.0, %v2308
    %v2310 = vpop.f32.mrf.mxu0
    %2311 = vmatprep.mubr.bf16.mxu0 0
    %2312 = vmatmul.mubr.bf16.gmra.mxu0 %v1982
    %v2313 = vpop.f32.mrf.mxu0
    %v2314 = vadd.f32 0.0, %v2313
    %v2315 = vpop.f32.mrf.mxu0
    %v2316 = vpop.f32.mrf.mxu0
    %v2317 = vadd.f32 0.0, %v2316
    %v2318 = vpop.f32.mrf.mxu0
    %2319 = vdwg.mxu0
    %v2320 = vpack.c.bf16 %v2293, %v2290
    %v2321 = vpack.c.bf16 %v2301, %v2298
    %v2322 = vpack.c.bf16 %v2309, %v2306
    %v2323 = vpack.c.bf16 %v2317, %v2314
    %v2325 = vlaneseq
    %v2326 = vshrl.u32 %v2325, 7
    %v2327 = vsub.s32 0, %v2326
    %v2328 = vrot.slane %v2254, %v2327
    %v2378 = vunpack.c.l.b16 %v2206
    %v2379 = vunpack.c.l.b16 %v2207
    %v2380 = vunpack.c.l.b16 %v2208
    %v2381 = vunpack.c.l.b16 %v2209
    %v2382 = vunpack.c.l.b16 %v2210
    %v2383 = vunpack.c.l.b16 %v2211
    %v2384 = vunpack.c.l.b16 %v2212
    %v2385 = vunpack.c.l.b16 %v2213
    %v2386 = vunpack.c.l.b16 %v2214
    %v2387 = vunpack.c.l.b16 %v2215
    %v2388 = vunpack.c.l.b16 %v2216
    %v2389 = vunpack.c.l.b16 %v2217
    %v2390 = vunpack.c.l.b16 %v2218
    %v2391 = vunpack.c.l.b16 %v2219
    %v2392 = vunpack.c.l.b16 %v2220
    %v2393 = vunpack.c.l.b16 %v2221
    %v2394 = vunpack.c.l.b16 %v2222
    %v2395 = vunpack.c.l.b16 %v2223
    %v2396 = vunpack.c.l.b16 %v2224
    %v2397 = vunpack.c.l.b16 %v2225
    %v2398 = vunpack.c.l.b16 %v2226
    %v2399 = vunpack.c.l.b16 %v2227
    %v2400 = vunpack.c.l.b16 %v2228
    %v2401 = vunpack.c.l.b16 %v2229
    %v2402 = vunpack.c.l.b16 %v2230
    %v2403 = vunpack.c.l.b16 %v2231
    %v2404 = vunpack.c.l.b16 %v2232
    %v2405 = vunpack.c.l.b16 %v2233
    %v2406 = vunpack.c.l.b16 %v2234
    %v2407 = vunpack.c.l.b16 %v2235
    %v2408 = vunpack.c.l.b16 %v2236
    %v2409 = vunpack.c.l.b16 %v2237
    %v2410 = vunpack.c.l.b16 %v2238
    %v2411 = vunpack.c.l.b16 %v2239
    %v2412 = vunpack.c.l.b16 %v2240
    %v2413 = vunpack.c.l.b16 %v2241
    %v2414 = vunpack.c.l.b16 %v2242
    %v2415 = vunpack.c.l.b16 %v2243
    %v2416 = vunpack.c.l.b16 %v2244
    %v2417 = vunpack.c.l.b16 %v2245
    %v2418 = vunpack.c.l.b16 %v2246
    %v2419 = vunpack.c.l.b16 %v2247
    %v2420 = vunpack.c.l.b16 %v2248
    %v2421 = vunpack.c.l.b16 %v2249
    %v2422 = vunpack.c.l.b16 %v2250
    %v2423 = vunpack.c.l.b16 %v2251
    %v2424 = vunpack.c.l.b16 %v2252
    %v2425 = vunpack.c.l.b16 %v2253
    %v2426 = vpack.c.b16 %v2379, %v2378
    %v2427 = vpack.c.b16 %v2381, %v2380
    %v2428 = vpack.c.b16 %v2383, %v2382
    %v2429 = vpack.c.b16 %v2385, %v2384
    %v2430 = vpack.c.b16 %v2387, %v2386
    %v2431 = vpack.c.b16 %v2389, %v2388
    %v2432 = vpack.c.b16 %v2391, %v2390
    %v2433 = vpack.c.b16 %v2393, %v2392
    %v2434 = vpack.c.b16 %v2395, %v2394
    %v2435 = vpack.c.b16 %v2397, %v2396
    %v2436 = vpack.c.b16 %v2399, %v2398
    %v2437 = vpack.c.b16 %v2401, %v2400
    %v2438 = vpack.c.b16 %v2403, %v2402
    %v2439 = vpack.c.b16 %v2405, %v2404
    %v2440 = vpack.c.b16 %v2407, %v2406
    %v2441 = vpack.c.b16 %v2409, %v2408
    %v2442 = vpack.c.b16 %v2411, %v2410
    %v2443 = vpack.c.b16 %v2413, %v2412
    %v2444 = vpack.c.b16 %v2415, %v2414
    %v2445 = vpack.c.b16 %v2417, %v2416
    %v2446 = vpack.c.b16 %v2419, %v2418
    %v2447 = vpack.c.b16 %v2421, %v2420
    %v2448 = vpack.c.b16 %v2423, %v2422
    %v2449 = vpack.c.b16 %v2425, %v2424
    %2474 = vmatprep.subr.bf16.mxu0 0
    %2475 = vmatpush1.bf16.msra.mxu0 %v2433
    %2476 = vmatprep.subr.bf16.mxu0 0
    %2477 = vmatpush1.bf16.msra.mxu0 %v2432
    %2478 = vmatprep.subr.bf16.mxu0 0
    %2479 = vmatpush1.bf16.msra.mxu0 %v2431
    %2480 = vmatprep.subr.bf16.mxu0 0
    %2481 = vmatpush1.bf16.msra.mxu0 %v2430
    %2482 = vmatprep.subr.bf16.mxu0 0
    %2483 = vmatpush1.bf16.msra.mxu0 %v2429
    %2484 = vmatprep.subr.bf16.mxu0 0
    %2485 = vmatpush1.bf16.msra.mxu0 %v2428
    %2486 = vmatprep.subr.bf16.mxu0 0
    %2487 = vmatpush1.bf16.msra.mxu0 %v2427
    %2488 = vmatprep.subr.bf16.mxu0 0
    %2489 = vmatpush1.bf16.msra.mxu0 %v2426
    %2490 = vmatprep.subr.bf16.mxu0 0
    %2491 = vmatpush2.bf16.msra.mxu0 %v2441
    %2492 = vmatprep.subr.bf16.mxu0 0
    %2493 = vmatpush2.bf16.msra.mxu0 %v2440
    %2494 = vmatprep.subr.bf16.mxu0 0
    %2495 = vmatpush2.bf16.msra.mxu0 %v2439
    %2496 = vmatprep.subr.bf16.mxu0 0
    %2497 = vmatpush2.bf16.msra.mxu0 %v2438
    %2498 = vmatprep.subr.bf16.mxu0 0
    %2499 = vmatpush2.bf16.msra.mxu0 %v2437
    %2500 = vmatprep.subr.bf16.mxu0 0
    %2501 = vmatpush2.bf16.msra.mxu0 %v2436
    %2502 = vmatprep.subr.bf16.mxu0 0
    %2503 = vmatpush2.bf16.msra.mxu0 %v2435
    %2504 = vmatprep.subr.bf16.mxu0 0
    %2505 = vmatpush2.bf16.msra.mxu0 %v2434
    %2506 = vmatprep.mubr.bf16.mxu0 %v2204
    %2507 = vmatmul.mubr.bf16.gmra.mxu0 %v2320
    %v2508 = vpop.f32.mrf.mxu0
    %v2509 = vadd.f32 %v2328, %v2508
    %v2510 = vpop.f32.mrf.mxu0
    %v2511 = vpop.f32.mrf.mxu0
    %v2512 = vadd.f32 %v2328, %v2511
    %v2513 = vpop.f32.mrf.mxu0
    %2514 = vmatprep.mubr.bf16.mxu0 %v2205
    %2515 = vmatmul.mubr.bf16.gmra.mxu0 %v2321
    %v2516 = vpop.f32.mrf.mxu0
    %v2517 = vadd.f32 %v2328, %v2516
    %v2518 = vpop.f32.mrf.mxu0
    %v2519 = vpop.f32.mrf.mxu0
    %v2520 = vadd.f32 %v2328, %v2519
    %v2521 = vpop.f32.mrf.mxu0
    %2522 = vdwg.mxu0
    %2523 = vmatprep.subr.bf16.mxu0 0
    %2524 = vmatpush1.bf16.msra.mxu0 %v2449
    %2525 = vmatprep.subr.bf16.mxu0 0
    %2526 = vmatpush1.bf16.msra.mxu0 %v2448
    %2527 = vmatprep.subr.bf16.mxu0 0
    %2528 = vmatpush1.bf16.msra.mxu0 %v2447
    %2529 = vmatprep.subr.bf16.mxu0 0
    %2530 = vmatpush1.bf16.msra.mxu0 %v2446
    %2531 = vmatprep.subr.bf16.mxu0 0
    %2532 = vmatpush1.bf16.msra.mxu0 %v2445
    %2533 = vmatprep.subr.bf16.mxu0 0
    %2534 = vmatpush1.bf16.msra.mxu0 %v2444
    %2535 = vmatprep.subr.bf16.mxu0 0
    %2536 = vmatpush1.bf16.msra.mxu0 %v2443
    %2537 = vmatprep.subr.bf16.mxu0 0
    %2538 = vmatpush1.bf16.msra.mxu0 %v2442
    %2539 = vmatprep.subr.bf16.mxu0 0
    %2540 = vmatpush2.bf16.msra.mxu0 0
    %2541 = vmatprep.subr.bf16.mxu0 0
    %2542 = vmatpush2.bf16.msra.mxu0 0
    %2543 = vmatprep.subr.bf16.mxu0 0
    %2544 = vmatpush2.bf16.msra.mxu0 0
    %2545 = vmatprep.subr.bf16.mxu0 0
    %2546 = vmatpush2.bf16.msra.mxu0 0
    %2547 = vmatprep.subr.bf16.mxu0 0
    %2548 = vmatpush2.bf16.msra.mxu0 0
    %2549 = vmatprep.subr.bf16.mxu0 0
    %2550 = vmatpush2.bf16.msra.mxu0 0
    %2551 = vmatprep.subr.bf16.mxu0 0
    %2552 = vmatpush2.bf16.msra.mxu0 0
    %2553 = vmatprep.subr.bf16.mxu0 0
    %2554 = vmatpush2.bf16.msra.mxu0 0
    %2555 = vmatprep.mubr.bf16.mxu0 0
    %2556 = vmatmul.mubr.bf16.gmra.mxu0 %v2322
    %v2557 = vpop.f32.mrf.mxu0
    %v2558 = vadd.f32 %v2509, %v2557
    %v2559 = vpop.f32.mrf.mxu0
    %v2560 = vpop.f32.mrf.mxu0
    %v2561 = vadd.f32 %v2512, %v2560
    %v2562 = vpop.f32.mrf.mxu0
    %2563 = vmatprep.mubr.bf16.mxu0 0
    %2564 = vmatmul.mubr.bf16.gmra.mxu0 %v2323
    %v2565 = vpop.f32.mrf.mxu0
    %v2566 = vadd.f32 %v2517, %v2565
    %v2567 = vpop.f32.mrf.mxu0
    %v2568 = vpop.f32.mrf.mxu0
    %v2569 = vadd.f32 %v2520, %v2568
    %v2570 = vpop.f32.mrf.mxu0
    %2571 = vdwg.mxu0
    %v2572 = vmax.f32 %v2558, 0.0
    %v2573 = vmax.f32 %v2561, 0.0
    %v2574 = vmax.f32 %v2566, 0.0
    %v2575 = vmax.f32 %v2569, 0.0
    %v2576 = vpack.c.bf16 %v2573, %v2572
    %v2577 = vpack.c.bf16 %v2575, %v2574
    %v2578 = vld [vmem:[#allocation12] sm:$0xf]
    %v2579 = vld [vmem:[#allocation12 + $0x4] sm:$0xf]
    %v2582 = vunpack.c.l.b16 %v2578
    %v2583 = vunpack.c.l.b16 %v2579
    %v2584 = vpack.c.b16 %v2583, %v2582
    %v2586 = vsel %vm1971, %v2584, 0
    %2588 = vmatprep.subr.bf16.mxu0 0
    %2589 = vmatpush1.bf16.msra.mxu0 0
    %2590 = vmatprep.subr.bf16.mxu0 0
    %2591 = vmatpush1.bf16.msra.mxu0 0
    %2592 = vmatprep.subr.bf16.mxu0 0
    %2593 = vmatpush1.bf16.msra.mxu0 0
    %2594 = vmatprep.subr.bf16.mxu0 0
    %2595 = vmatpush1.bf16.msra.mxu0 0
    %2596 = vmatprep.subr.bf16.mxu0 0
    %2597 = vmatpush1.bf16.msra.mxu0 0
    %2598 = vmatprep.subr.bf16.mxu0 0
    %2599 = vmatpush1.bf16.msra.mxu0 0
    %2600 = vmatprep.subr.bf16.mxu0 0
    %2601 = vmatpush1.bf16.msra.mxu0 %v2577
    %2602 = vmatprep.subr.bf16.mxu0 0
    %2603 = vmatpush1.bf16.msra.mxu0 %v2576
    %2604 = vmatprep.subr.bf16.mxu0 0
    %2605 = vmatpush2.bf16.msra.mxu0 0
    %2606 = vmatprep.subr.bf16.mxu0 0
    %2607 = vmatpush2.bf16.msra.mxu0 0
    %2608 = vmatprep.subr.bf16.mxu0 0
    %2609 = vmatpush2.bf16.msra.mxu0 0
    %2610 = vmatprep.subr.bf16.mxu0 0
    %2611 = vmatpush2.bf16.msra.mxu0 0
    %2612 = vmatprep.subr.bf16.mxu0 0
    %2613 = vmatpush2.bf16.msra.mxu0 0
    %2614 = vmatprep.subr.bf16.mxu0 0
    %2615 = vmatpush2.bf16.msra.mxu0 0
    %2616 = vmatprep.subr.bf16.mxu0 0
    %2617 = vmatpush2.bf16.msra.mxu0 0
    %2618 = vmatprep.subr.bf16.mxu0 0
    %2619 = vmatpush2.bf16.msra.mxu0 0
    %2620 = vmatprep.mubr.bf16.mxu0 0
    %2621 = vmatmul.mubr.bf16.gmra.mxu0 %v2586
    %v2622 = vpop.f32.mrf.mxu0
    %v2623 = vadd.f32 0.0, %v2622
    %v2624 = vpop.f32.mrf.mxu0
    %v2625 = vpop.f32.mrf.mxu0
    %v2626 = vadd.f32 0.0, %v2625
    %v2627 = vpop.f32.mrf.mxu0
    %2628 = vdwg.mxu0
    %v2629 = vld [vmem:[#allocation13] sm:$0xf]
    %v2630 = vld [vmem:[#allocation13 + $0x4] sm:$0xf]
    %v2633 = vunpack.c.l.b16 %v2629
    %v2634 = vunpack.c.l.b16 %v2630
    %v2635 = vpack.c.b16 %v2634, %v2633
    %v2637 = vsel %vm1971, %v2635, 0
    %2639 = vmatprep.subr.bf16.mxu0 0
    %2640 = vmatpush1.bf16.msra.mxu0 0
    %2641 = vmatprep.subr.bf16.mxu0 0
    %2642 = vmatpush1.bf16.msra.mxu0 0
    %2643 = vmatprep.subr.bf16.mxu0 0
    %2644 = vmatpush1.bf16.msra.mxu0 0
    %2645 = vmatprep.subr.bf16.mxu0 0
    %2646 = vmatpush1.bf16.msra.mxu0 0
    %2647 = vmatprep.subr.bf16.mxu0 0
    %2648 = vmatpush1.bf16.msra.mxu0 0
    %2649 = vmatprep.subr.bf16.mxu0 0
    %2650 = vmatpush1.bf16.msra.mxu0 0
    %2651 = vmatprep.subr.bf16.mxu0 0
    %2652 = vmatpush1.bf16.msra.mxu0 %v2577
    %2653 = vmatprep.subr.bf16.mxu0 0
    %2654 = vmatpush1.bf16.msra.mxu0 %v2576
    %2655 = vmatprep.subr.bf16.mxu0 0
    %2656 = vmatpush2.bf16.msra.mxu0 0
    %2657 = vmatprep.subr.bf16.mxu0 0
    %2658 = vmatpush2.bf16.msra.mxu0 0
    %2659 = vmatprep.subr.bf16.mxu0 0
    %2660 = vmatpush2.bf16.msra.mxu0 0
    %2661 = vmatprep.subr.bf16.mxu0 0
    %2662 = vmatpush2.bf16.msra.mxu0 0
    %2663 = vmatprep.subr.bf16.mxu0 0
    %2664 = vmatpush2.bf16.msra.mxu0 0
    %2665 = vmatprep.subr.bf16.mxu0 0
    %2666 = vmatpush2.bf16.msra.mxu0 0
    %2667 = vmatprep.subr.bf16.mxu0 0
    %2668 = vmatpush2.bf16.msra.mxu0 0
    %2669 = vmatprep.subr.bf16.mxu0 0
    %2670 = vmatpush2.bf16.msra.mxu0 0
    %2671 = vmatprep.mubr.bf16.mxu0 0
    %2672 = vmatmul.mubr.bf16.gmra.mxu0 %v2637
    %v2673 = vpop.f32.mrf.mxu0
    %v2674 = vadd.f32 0.0, %v2673
    %v2675 = vpop.f32.mrf.mxu0
    %v2676 = vpop.f32.mrf.mxu0
    %v2677 = vadd.f32 0.0, %v2676
    %v2678 = vpop.f32.mrf.mxu0
    %2679 = vdwg.mxu0
    %v2680 = vmax.f32 %v2623, %v2674
    %v2681 = vmax.f32 %v2626, %v2677
    %v2682 = vpack.c.bf16 %v2681, %v2680
    %v2683 = vld [vmem:[%s35] sm:$0xf]
    %v2684 = vld [vmem:[%s35 + $0x4] sm:$0xf]
    %v2685 = vld [vmem:[%s35 + $0x8] sm:$0xf]
    %v2686 = vld [vmem:[%s35 + $0xc] sm:$0xf]
    %v2687 = vld [vmem:[%s35 + $0x10] sm:$0xf]
    %v2688 = vld [vmem:[%s35 + $0x14] sm:$0xf]
    %v2689 = vld [vmem:[%s35 + $0x18] sm:$0xf]
    %v2690 = vld [vmem:[%s35 + $0x1c] sm:$0xf]
    %v2691 = vld [vmem:[%s35 + $0x20] sm:$0xf]
    %v2692 = vld [vmem:[%s35 + $0x24] sm:$0xf]
    %v2693 = vld [vmem:[%s35 + $0x28] sm:$0xf]
    %v2694 = vld [vmem:[%s35 + $0x2c] sm:$0xf]
    %v2695 = vld [vmem:[%s35 + $0x30] sm:$0xf]
    %v2696 = vld [vmem:[%s35 + $0x34] sm:$0xf]
    %v2697 = vld [vmem:[%s35 + $0x38] sm:$0xf]
    %v2698 = vld [vmem:[%s35 + $0x3c] sm:$0xf]
    %v2715 = vunpack.c.l.b16 %v2683
    %v2716 = vunpack.c.l.b16 %v2684
    %v2717 = vunpack.c.l.b16 %v2685
    %v2718 = vunpack.c.l.b16 %v2686
    %v2719 = vunpack.c.l.b16 %v2687
    %v2720 = vunpack.c.l.b16 %v2688
    %v2721 = vunpack.c.l.b16 %v2689
    %v2722 = vunpack.c.l.b16 %v2690
    %v2723 = vunpack.c.l.b16 %v2691
    %v2724 = vunpack.c.l.b16 %v2692
    %v2725 = vunpack.c.l.b16 %v2693
    %v2726 = vunpack.c.l.b16 %v2694
    %v2727 = vunpack.c.l.b16 %v2695
    %v2728 = vunpack.c.l.b16 %v2696
    %v2729 = vunpack.c.l.b16 %v2697
    %v2730 = vunpack.c.l.b16 %v2698
    %v2731 = vpack.c.b16 %v2716, %v2715
    %v2732 = vpack.c.b16 %v2718, %v2717
    %v2733 = vpack.c.b16 %v2720, %v2719
    %v2734 = vpack.c.b16 %v2722, %v2721
    %v2735 = vpack.c.b16 %v2724, %v2723
    %v2736 = vpack.c.b16 %v2726, %v2725
    %v2737 = vpack.c.b16 %v2728, %v2727
    %v2738 = vpack.c.b16 %v2730, %v2729
    %2747 = vmatprep.subr.bf16.mxu0 0
    %2748 = vmatpush1.bf16.msra.mxu0 %v2738
    %2749 = vmatprep.subr.bf16.mxu0 0
    %2750 = vmatpush1.bf16.msra.mxu0 %v2737
    %2751 = vmatprep.subr.bf16.mxu0 0
    %2752 = vmatpush1.bf16.msra.mxu0 %v2736
    %2753 = vmatprep.subr.bf16.mxu0 0
    %2754 = vmatpush1.bf16.msra.mxu0 %v2735
    %2755 = vmatprep.subr.bf16.mxu0 0
    %2756 = vmatpush1.bf16.msra.mxu0 %v2734
    %2757 = vmatprep.subr.bf16.mxu0 0
    %2758 = vmatpush1.bf16.msra.mxu0 %v2733
    %2759 = vmatprep.subr.bf16.mxu0 0
    %2760 = vmatpush1.bf16.msra.mxu0 %v2732
    %2761 = vmatprep.subr.bf16.mxu0 0
    %2762 = vmatpush1.bf16.msra.mxu0 %v2731
    %2763 = vmatprep.subr.bf16.mxu0 0
    %2764 = vmatpush2.bf16.msra.mxu0 0
    %2765 = vmatprep.subr.bf16.mxu0 0
    %2766 = vmatpush2.bf16.msra.mxu0 0
    %2767 = vmatprep.subr.bf16.mxu0 0
    %2768 = vmatpush2.bf16.msra.mxu0 0
    %2769 = vmatprep.subr.bf16.mxu0 0
    %2770 = vmatpush2.bf16.msra.mxu0 0
    %2771 = vmatprep.subr.bf16.mxu0 0
    %2772 = vmatpush2.bf16.msra.mxu0 0
    %2773 = vmatprep.subr.bf16.mxu0 0
    %2774 = vmatpush2.bf16.msra.mxu0 0
    %2775 = vmatprep.subr.bf16.mxu0 0
    %2776 = vmatpush2.bf16.msra.mxu0 0
    %2777 = vmatprep.subr.bf16.mxu0 0
    %2778 = vmatpush2.bf16.msra.mxu0 0
    %2779 = vmatprep.mubr.bf16.mxu0 0
    %2780 = vmatmul.mubr.bf16.gmra.mxu0 %v2682
    %v2781 = vpop.f32.mrf.mxu0
    %v2782 = vadd.f32 0.0, %v2781
    %v2783 = vpop.f32.mrf.mxu0
    %v2784 = vpop.f32.mrf.mxu0
    %v2785 = vadd.f32 0.0, %v2784
    %v2786 = vpop.f32.mrf.mxu0
    %2787 = vdwg.mxu0
    %v2788 = vld [vmem:[%s37] sm:$0xf]
    %v2789 = vld [vmem:[%s37 + $0x4] sm:$0xf]
    %v2790 = vld [vmem:[%s37 + $0x8] sm:$0xf]
    %v2791 = vld [vmem:[%s37 + $0xc] sm:$0xf]
    %v2792 = vld [vmem:[%s37 + $0x10] sm:$0xf]
    %v2793 = vld [vmem:[%s37 + $0x14] sm:$0xf]
    %v2794 = vld [vmem:[%s37 + $0x18] sm:$0xf]
    %v2795 = vld [vmem:[%s37 + $0x1c] sm:$0xf]
    %v2796 = vld [vmem:[%s37 + $0x20] sm:$0xf]
    %v2797 = vld [vmem:[%s37 + $0x24] sm:$0xf]
    %v2798 = vld [vmem:[%s37 + $0x28] sm:$0xf]
    %v2799 = vld [vmem:[%s37 + $0x2c] sm:$0xf]
    %v2800 = vld [vmem:[%s37 + $0x30] sm:$0xf]
    %v2801 = vld [vmem:[%s37 + $0x34] sm:$0xf]
    %v2802 = vld [vmem:[%s37 + $0x38] sm:$0xf]
    %v2803 = vld [vmem:[%s37 + $0x3c] sm:$0xf]
    %v2820 = vunpack.c.l.b16 %v2788
    %v2821 = vunpack.c.l.b16 %v2789
    %v2822 = vunpack.c.l.b16 %v2790
    %v2823 = vunpack.c.l.b16 %v2791
    %v2824 = vunpack.c.l.b16 %v2792
    %v2825 = vunpack.c.l.b16 %v2793
    %v2826 = vunpack.c.l.b16 %v2794
    %v2827 = vunpack.c.l.b16 %v2795
    %v2828 = vunpack.c.l.b16 %v2796
    %v2829 = vunpack.c.l.b16 %v2797
    %v2830 = vunpack.c.l.b16 %v2798
    %v2831 = vunpack.c.l.b16 %v2799
    %v2832 = vunpack.c.l.b16 %v2800
    %v2833 = vunpack.c.l.b16 %v2801
    %v2834 = vunpack.c.l.b16 %v2802
    %v2835 = vunpack.c.l.b16 %v2803
    %v2836 = vpack.c.b16 %v2821, %v2820
    %v2837 = vpack.c.b16 %v2823, %v2822
    %v2838 = vpack.c.b16 %v2825, %v2824
    %v2839 = vpack.c.b16 %v2827, %v2826
    %v2840 = vpack.c.b16 %v2829, %v2828
    %v2841 = vpack.c.b16 %v2831, %v2830
    %v2842 = vpack.c.b16 %v2833, %v2832
    %v2843 = vpack.c.b16 %v2835, %v2834
    %2852 = vmatprep.subr.bf16.mxu0 0
    %2853 = vmatpush1.bf16.msra.mxu0 %v2843
    %2854 = vmatprep.subr.bf16.mxu0 0
    %2855 = vmatpush1.bf16.msra.mxu0 %v2842
    %2856 = vmatprep.subr.bf16.mxu0 0
    %2857 = vmatpush1.bf16.msra.mxu0 %v2841
    %2858 = vmatprep.subr.bf16.mxu0 0
    %2859 = vmatpush1.bf16.msra.mxu0 %v2840
    %2860 = vmatprep.subr.bf16.mxu0 0
    %2861 = vmatpush1.bf16.msra.mxu0 %v2839
    %2862 = vmatprep.subr.bf16.mxu0 0
    %2863 = vmatpush1.bf16.msra.mxu0 %v2838
    %2864 = vmatprep.subr.bf16.mxu0 0
    %2865 = vmatpush1.bf16.msra.mxu0 %v2837
    %2866 = vmatprep.subr.bf16.mxu0 0
    %2867 = vmatpush1.bf16.msra.mxu0 %v2836
    %2868 = vmatprep.subr.bf16.mxu0 0
    %2869 = vmatpush2.bf16.msra.mxu0 0
    %2870 = vmatprep.subr.bf16.mxu0 0
    %2871 = vmatpush2.bf16.msra.mxu0 0
    %2872 = vmatprep.subr.bf16.mxu0 0
    %2873 = vmatpush2.bf16.msra.mxu0 0
    %2874 = vmatprep.subr.bf16.mxu0 0
    %2875 = vmatpush2.bf16.msra.mxu0 0
    %2876 = vmatprep.subr.bf16.mxu0 0
    %2877 = vmatpush2.bf16.msra.mxu0 0
    %2878 = vmatprep.subr.bf16.mxu0 0
    %2879 = vmatpush2.bf16.msra.mxu0 0
    %2880 = vmatprep.subr.bf16.mxu0 0
    %2881 = vmatpush2.bf16.msra.mxu0 0
    %2882 = vmatprep.subr.bf16.mxu0 0
    %2883 = vmatpush2.bf16.msra.mxu0 0
    %2884 = vmatprep.mubr.bf16.mxu0 0
    %2885 = vmatmul.mubr.bf16.gmra.mxu0 %v2682
    %v2886 = vpop.f32.mrf.mxu0
    %v2887 = vadd.f32 0.0, %v2886
    %v2888 = vpop.f32.mrf.mxu0
    %v2889 = vpop.f32.mrf.mxu0
    %v2890 = vadd.f32 0.0, %v2889
    %v2891 = vpop.f32.mrf.mxu0
    %2892 = vdwg.mxu0
    %v2893 = vmax.f32 %v2782, %v2887
    %v2894 = vmax.f32 %v2785, %v2890
    %v2895 = vpack.c.bf16 %v2894, %v2893
    %v2896 = vld [vmem:[%s47] sm:$0xf]
    %v2897 = vld [vmem:[%s47 + $0x4] sm:$0xf]
    %v2898 = vld [vmem:[%s47 + $0x8] sm:$0xf]
    %v2899 = vld [vmem:[%s47 + $0xc] sm:$0xf]
    %v2900 = vld [vmem:[#allocation15] sm:$0xf]
    %v2901 = vld [vmem:[#allocation15 + $0x4] sm:$0xf]
    %v2902 = vld [vmem:[#allocation15 + $0x8] sm:$0xf]
    %v2903 = vld [vmem:[#allocation15 + $0xc] sm:$0xf]
    %v2904 = vld [vmem:[#allocation15 + $0x10] sm:$0xf]
    %v2905 = vld [vmem:[#allocation15 + $0x14] sm:$0xf]
    %v2906 = vld [vmem:[#allocation15 + $0x18] sm:$0xf]
    %v2907 = vld [vmem:[#allocation15 + $0x1c] sm:$0xf]
    %v2908 = vld [vmem:[#allocation15 + $0x20] sm:$0xf]
    %v2909 = vld [vmem:[#allocation15 + $0x24] sm:$0xf]
    %v2910 = vld [vmem:[#allocation15 + $0x28] sm:$0xf]
    %v2911 = vld [vmem:[#allocation15 + $0x2c] sm:$0xf]
    %v2912 = vld [vmem:[#allocation15 + $0x30] sm:$0xf]
    %v2913 = vld [vmem:[#allocation15 + $0x34] sm:$0xf]
    %v2914 = vld [vmem:[#allocation15 + $0x38] sm:$0xf]
    %v2915 = vld [vmem:[#allocation15 + $0x3c] sm:$0xf]
    %v2916 = vld [vmem:[#allocation15 + $0x40] sm:$0xf]
    %v2917 = vld [vmem:[#allocation15 + $0x44] sm:$0xf]
    %v2918 = vld [vmem:[#allocation15 + $0x48] sm:$0xf]
    %v2919 = vld [vmem:[#allocation15 + $0x4c] sm:$0xf]
    %v2920 = vld [vmem:[#allocation15 + $0x50] sm:$0xf]
    %v2921 = vld [vmem:[#allocation15 + $0x54] sm:$0xf]
    %v2922 = vld [vmem:[#allocation15 + $0x58] sm:$0xf]
    %v2923 = vld [vmem:[#allocation15 + $0x5c] sm:$0xf]
    %v2924 = vld [vmem:[#allocation16] sm:$0x1]
    %v2929 = vunpack.c.l.b16 %v2896
    %v2930 = vunpack.c.l.b16 %v2897
    %v2931 = vunpack.c.l.b16 %v2898
    %v2932 = vunpack.c.l.b16 %v2899
    %v2933 = vpack.c.b16 %v2930, %v2929
    %v2934 = vpack.c.b16 %v2932, %v2931
    %vm2935 = vcmask 130048
    %v2937 = vsel %vm2935, %v2933, 0
    %v2940 = vsel %vm2935, %v2934, 0
    %2942 = vmatprep.subr.bf16.mxu0 0
    %2943 = vmatpush1.bf16.msra.mxu0 0
    %2944 = vmatprep.subr.bf16.mxu0 0
    %2945 = vmatpush1.bf16.msra.mxu0 0
    %2946 = vmatprep.subr.bf16.mxu0 0
    %2947 = vmatpush1.bf16.msra.mxu0 0
    %2948 = vmatprep.subr.bf16.mxu0 0
    %2949 = vmatpush1.bf16.msra.mxu0 0
    %2950 = vmatprep.subr.bf16.mxu0 0
    %2951 = vmatpush1.bf16.msra.mxu0 0
    %2952 = vmatprep.subr.bf16.mxu0 0
    %2953 = vmatpush1.bf16.msra.mxu0 0
    %2954 = vmatprep.subr.bf16.mxu0 0
    %2955 = vmatpush1.bf16.msra.mxu0 0
    %2956 = vmatprep.subr.bf16.mxu0 0
    %2957 = vmatpush1.bf16.msra.mxu0 %v2895
    %2958 = vmatprep.subr.bf16.mxu0 0
    %2959 = vmatpush2.bf16.msra.mxu0 0
    %2960 = vmatprep.subr.bf16.mxu0 0
    %2961 = vmatpush2.bf16.msra.mxu0 0
    %2962 = vmatprep.subr.bf16.mxu0 0
    %2963 = vmatpush2.bf16.msra.mxu0 0
    %2964 = vmatprep.subr.bf16.mxu0 0
    %2965 = vmatpush2.bf16.msra.mxu0 0
    %2966 = vmatprep.subr.bf16.mxu0 0
    %2967 = vmatpush2.bf16.msra.mxu0 0
    %2968 = vmatprep.subr.bf16.mxu0 0
    %2969 = vmatpush2.bf16.msra.mxu0 0
    %2970 = vmatprep.subr.bf16.mxu0 0
    %2971 = vmatpush2.bf16.msra.mxu0 0
    %2972 = vmatprep.subr.bf16.mxu0 0
    %2973 = vmatpush2.bf16.msra.mxu0 0
    %2974 = vmatprep.mubr.bf16.mxu0 0
    %2975 = vmatmul.mubr.bf16.gmra.mxu0 %v2937
    %v2976 = vpop.f32.mrf.mxu0
    %v2977 = vadd.f32 0.0, %v2976
    %v2978 = vpop.f32.mrf.mxu0
    %v2979 = vpop.f32.mrf.mxu0
    %v2980 = vadd.f32 0.0, %v2979
    %v2981 = vpop.f32.mrf.mxu0
    %2982 = vmatprep.mubr.bf16.mxu0 0
    %2983 = vmatmul.mubr.bf16.gmra.mxu0 %v2940
    %v2984 = vpop.f32.mrf.mxu0
    %v2985 = vadd.f32 0.0, %v2984
    %v2986 = vpop.f32.mrf.mxu0
    %v2987 = vpop.f32.mrf.mxu0
    %v2988 = vadd.f32 0.0, %v2987
    %v2989 = vpop.f32.mrf.mxu0
    %2990 = vdwg.mxu0
    %v2991 = vpack.c.bf16 %v2980, %v2977
    %v2992 = vpack.c.bf16 %v2988, %v2985
    %2994 = vrot.lane.b32.xlu0 %v2895, 64
    %v2995 = vpop.permute.xlu0 %2994
    %v2998 = vsel %vm775, %v2991, %v2995
    %v3001 = vlaneseq
    %v3002 = vshrl.u32 %v3001, 7
    %v3003 = vsub.s32 0, %v3002
    %v3004 = vrot.slane %v2924, %v3003
    %v3030 = vunpack.c.l.b16 %v2900
    %v3031 = vunpack.c.l.b16 %v2901
    %v3032 = vunpack.c.l.b16 %v2902
    %v3033 = vunpack.c.l.b16 %v2903
    %v3034 = vunpack.c.l.b16 %v2904
    %v3035 = vunpack.c.l.b16 %v2905
    %v3036 = vunpack.c.l.b16 %v2906
    %v3037 = vunpack.c.l.b16 %v2907
    %v3038 = vunpack.c.l.b16 %v2908
    %v3039 = vunpack.c.l.b16 %v2909
    %v3040 = vunpack.c.l.b16 %v2910
    %v3041 = vunpack.c.l.b16 %v2911
    %v3042 = vunpack.c.l.b16 %v2912
    %v3043 = vunpack.c.l.b16 %v2913
    %v3044 = vunpack.c.l.b16 %v2914
    %v3045 = vunpack.c.l.b16 %v2915
    %v3046 = vunpack.c.l.b16 %v2916
    %v3047 = vunpack.c.l.b16 %v2917
    %v3048 = vunpack.c.l.b16 %v2918
    %v3049 = vunpack.c.l.b16 %v2919
    %v3050 = vunpack.c.l.b16 %v2920
    %v3051 = vunpack.c.l.b16 %v2921
    %v3052 = vunpack.c.l.b16 %v2922
    %v3053 = vunpack.c.l.b16 %v2923
    %v3054 = vpack.c.b16 %v3031, %v3030
    %v3055 = vpack.c.b16 %v3033, %v3032
    %v3056 = vpack.c.b16 %v3035, %v3034
    %v3057 = vpack.c.b16 %v3037, %v3036
    %v3058 = vpack.c.b16 %v3039, %v3038
    %v3059 = vpack.c.b16 %v3041, %v3040
    %v3060 = vpack.c.b16 %v3043, %v3042
    %v3061 = vpack.c.b16 %v3045, %v3044
    %v3062 = vpack.c.b16 %v3047, %v3046
    %v3063 = vpack.c.b16 %v3049, %v3048
    %v3064 = vpack.c.b16 %v3051, %v3050
    %v3065 = vpack.c.b16 %v3053, %v3052
    %v3079 = vsel %vm775, %v2992, 0
    %3081 = vmatprep.subr.bf16.mxu0 0
    %3082 = vmatpush1.bf16.msra.mxu0 %v3061
    %3083 = vmatprep.subr.bf16.mxu0 0
    %3084 = vmatpush1.bf16.msra.mxu0 %v3060
    %3085 = vmatprep.subr.bf16.mxu0 0
    %3086 = vmatpush1.bf16.msra.mxu0 %v3059
    %3087 = vmatprep.subr.bf16.mxu0 0
    %3088 = vmatpush1.bf16.msra.mxu0 %v3058
    %3089 = vmatprep.subr.bf16.mxu0 0
    %3090 = vmatpush1.bf16.msra.mxu0 %v3057
    %3091 = vmatprep.subr.bf16.mxu0 0
    %3092 = vmatpush1.bf16.msra.mxu0 %v3056
    %3093 = vmatprep.subr.bf16.mxu0 0
    %3094 = vmatpush1.bf16.msra.mxu0 %v3055
    %3095 = vmatprep.subr.bf16.mxu0 0
    %3096 = vmatpush1.bf16.msra.mxu0 %v3054
    %3097 = vmatprep.subr.bf16.mxu0 0
    %3098 = vmatpush2.bf16.msra.mxu0 0
    %3099 = vmatprep.subr.bf16.mxu0 0
    %3100 = vmatpush2.bf16.msra.mxu0 0
    %3101 = vmatprep.subr.bf16.mxu0 0
    %3102 = vmatpush2.bf16.msra.mxu0 0
    %3103 = vmatprep.subr.bf16.mxu0 0
    %3104 = vmatpush2.bf16.msra.mxu0 0
    %3105 = vmatprep.subr.bf16.mxu0 0
    %3106 = vmatpush2.bf16.msra.mxu0 %v3065
    %3107 = vmatprep.subr.bf16.mxu0 0
    %3108 = vmatpush2.bf16.msra.mxu0 %v3064
    %3109 = vmatprep.subr.bf16.mxu0 0
    %3110 = vmatpush2.bf16.msra.mxu0 %v3063
    %3111 = vmatprep.subr.bf16.mxu0 0
    %3112 = vmatpush2.bf16.msra.mxu0 %v3062
    %3113 = vmatprep.mubr.bf16.mxu0 %v3079
    %3114 = vmatmul.mubr.bf16.gmra.mxu0 %v2998
    %v3115 = vpop.f32.mrf.mxu0
    %v3116 = vadd.f32 %v3004, %v3115
    %v3117 = vpop.f32.mrf.mxu0
    %v3118 = vpop.f32.mrf.mxu0
    %v3119 = vadd.f32 %v3004, %v3118
    %v3120 = vpop.f32.mrf.mxu0
    %3121 = vdwg.mxu0
    %v3122 = vmax.f32 %v3116, 0.0
    %v3123 = vmax.f32 %v3119, 0.0
    %v3124 = vpack.c.bf16 %v3123, %v3122
    %v3125 = vld [vmem:[%s43] sm:$0xf]
    %v3126 = vld [vmem:[%s43 + $0x4] sm:$0xf]
    %v3127 = vld [vmem:[%s43 + $0x8] sm:$0xf]
    %v3128 = vld [vmem:[%s43 + $0xc] sm:$0xf]
    %v3129 = vld [vmem:[%s43 + $0x10] sm:$0xf]
    %v3130 = vld [vmem:[%s43 + $0x14] sm:$0xf]
    %v3131 = vld [vmem:[%s43 + $0x18] sm:$0xf]
    %v3132 = vld [vmem:[%s43 + $0x1c] sm:$0xf]
    %v3133 = vld [vmem:[%s43 + $0x20] sm:$0xf]
    %v3134 = vld [vmem:[%s43 + $0x24] sm:$0xf]
    %v3135 = vld [vmem:[%s43 + $0x28] sm:$0xf]
    %v3136 = vld [vmem:[%s43 + $0x2c] sm:$0xf]
    %v3137 = vld [vmem:[%s43 + $0x30] sm:$0xf]
    %v3138 = vld [vmem:[%s43 + $0x34] sm:$0xf]
    %v3139 = vld [vmem:[%s43 + $0x38] sm:$0xf]
    %v3140 = vld [vmem:[%s43 + $0x3c] sm:$0xf]
    %v3141 = vld [vmem:[%s43 + $0x40] sm:$0xf]
    %v3142 = vld [vmem:[%s43 + $0x44] sm:$0xf]
    %v3143 = vld [vmem:[%s43 + $0x48] sm:$0xf]
    %v3144 = vld [vmem:[%s43 + $0x4c] sm:$0xf]
    %v3145 = vld [vmem:[%s43 + $0x50] sm:$0xf]
    %v3146 = vld [vmem:[%s43 + $0x54] sm:$0xf]
    %v3147 = vld [vmem:[%s43 + $0x58] sm:$0xf]
    %v3148 = vld [vmem:[%s43 + $0x5c] sm:$0xf]
    %v3149 = vld [vmem:[%s43 + $0x60] sm:$0xf]
    %v3150 = vld [vmem:[%s43 + $0x64] sm:$0xf]
    %v3151 = vld [vmem:[%s43 + $0x68] sm:$0xf]
    %v3152 = vld [vmem:[%s43 + $0x6c] sm:$0xf]
    %v3153 = vld [vmem:[%s43 + $0x70] sm:$0xf]
    %v3154 = vld [vmem:[%s43 + $0x74] sm:$0xf]
    %v3155 = vld [vmem:[%s43 + $0x78] sm:$0xf]
    %v3156 = vld [vmem:[%s43 + $0x7c] sm:$0xf]
    %v3157 = vld [vmem:[%s43 + $0x80] sm:$0xf]
    %v3158 = vld [vmem:[%s43 + $0x84] sm:$0xf]
    %v3159 = vld [vmem:[%s43 + $0x88] sm:$0xf]
    %v3160 = vld [vmem:[%s43 + $0x8c] sm:$0xf]
    %v3161 = vld [vmem:[%s43 + $0x90] sm:$0xf]
    %v3162 = vld [vmem:[%s43 + $0x94] sm:$0xf]
    %v3163 = vld [vmem:[%s43 + $0x98] sm:$0xf]
    %v3164 = vld [vmem:[%s43 + $0x9c] sm:$0xf]
    %v3165 = vld [vmem:[%s43 + $0xa0] sm:$0xf]
    %v3166 = vld [vmem:[%s43 + $0xa4] sm:$0xf]
    %v3167 = vld [vmem:[%s43 + $0xa8] sm:$0xf]
    %v3168 = vld [vmem:[%s43 + $0xac] sm:$0xf]
    %v3169 = vld [vmem:[%s43 + $0xb0] sm:$0xf]
    %v3170 = vld [vmem:[%s43 + $0xb4] sm:$0xf]
    %v3171 = vld [vmem:[%s43 + $0xb8] sm:$0xf]
    %v3172 = vld [vmem:[%s43 + $0xbc] sm:$0xf]
    %v3173 = vld [vmem:[#allocation18] sm:$0x1]
    %3174 = vmatprep.subr.bf16.mxu0 0
    %3175 = vmatpush1.bf16.msra.mxu0 0
    %3176 = vmatprep.subr.bf16.mxu0 0
    %3177 = vmatpush1.bf16.msra.mxu0 0
    %3178 = vmatprep.subr.bf16.mxu0 0
    %3179 = vmatpush1.bf16.msra.mxu0 0
    %3180 = vmatprep.subr.bf16.mxu0 0
    %3181 = vmatpush1.bf16.msra.mxu0 0
    %3182 = vmatprep.subr.bf16.mxu0 0
    %3183 = vmatpush1.bf16.msra.mxu0 0
    %3184 = vmatprep.subr.bf16.mxu0 0
    %3185 = vmatpush1.bf16.msra.mxu0 0
    %3186 = vmatprep.subr.bf16.mxu0 0
    %3187 = vmatpush1.bf16.msra.mxu0 0
    %3188 = vmatprep.subr.bf16.mxu0 0
    %3189 = vmatpush1.bf16.msra.mxu0 %v3124
    %3190 = vmatprep.subr.bf16.mxu0 0
    %3191 = vmatpush2.bf16.msra.mxu0 0
    %3192 = vmatprep.subr.bf16.mxu0 0
    %3193 = vmatpush2.bf16.msra.mxu0 0
    %3194 = vmatprep.subr.bf16.mxu0 0
    %3195 = vmatpush2.bf16.msra.mxu0 0
    %3196 = vmatprep.subr.bf16.mxu0 0
    %3197 = vmatpush2.bf16.msra.mxu0 0
    %3198 = vmatprep.subr.bf16.mxu0 0
    %3199 = vmatpush2.bf16.msra.mxu0 0
    %3200 = vmatprep.subr.bf16.mxu0 0
    %3201 = vmatpush2.bf16.msra.mxu0 0
    %3202 = vmatprep.subr.bf16.mxu0 0
    %3203 = vmatpush2.bf16.msra.mxu0 0
    %3204 = vmatprep.subr.bf16.mxu0 0
    %3205 = vmatpush2.bf16.msra.mxu0 0
    %3206 = vmatprep.mubr.bf16.mxu0 0
    %3207 = vmatmul.mubr.bf16.gmra.mxu0 %v2937
    %v3208 = vpop.f32.mrf.mxu0
    %v3209 = vadd.f32 0.0, %v3208
    %v3210 = vpop.f32.mrf.mxu0
    %v3211 = vpop.f32.mrf.mxu0
    %v3212 = vadd.f32 0.0, %v3211
    %v3213 = vpop.f32.mrf.mxu0
    %3214 = vmatprep.mubr.bf16.mxu0 0
    %3215 = vmatmul.mubr.bf16.gmra.mxu0 %v2940
    %v3216 = vpop.f32.mrf.mxu0
    %v3217 = vadd.f32 0.0, %v3216
    %v3218 = vpop.f32.mrf.mxu0
    %v3219 = vpop.f32.mrf.mxu0
    %v3220 = vadd.f32 0.0, %v3219
    %v3221 = vpop.f32.mrf.mxu0
    %3222 = vdwg.mxu0
    %v3223 = vpack.c.bf16 %v3212, %v3209
    %v3224 = vpack.c.bf16 %v3220, %v3217
    %v3226 = vlaneseq
    %v3227 = vshrl.u32 %v3226, 7
    %v3228 = vsub.s32 0, %v3227
    %v3229 = vrot.slane %v3173, %v3228
    %v3279 = vunpack.c.l.b16 %v3125
    %v3280 = vunpack.c.l.b16 %v3126
    %v3281 = vunpack.c.l.b16 %v3127
    %v3282 = vunpack.c.l.b16 %v3128
    %v3283 = vunpack.c.l.b16 %v3129
    %v3284 = vunpack.c.l.b16 %v3130
    %v3285 = vunpack.c.l.b16 %v3131
    %v3286 = vunpack.c.l.b16 %v3132
    %v3287 = vunpack.c.l.b16 %v3133
    %v3288 = vunpack.c.l.b16 %v3134
    %v3289 = vunpack.c.l.b16 %v3135
    %v3290 = vunpack.c.l.b16 %v3136
    %v3291 = vunpack.c.l.b16 %v3137
    %v3292 = vunpack.c.l.b16 %v3138
    %v3293 = vunpack.c.l.b16 %v3139
    %v3294 = vunpack.c.l.b16 %v3140
    %v3295 = vunpack.c.l.b16 %v3141
    %v3296 = vunpack.c.l.b16 %v3142
    %v3297 = vunpack.c.l.b16 %v3143
    %v3298 = vunpack.c.l.b16 %v3144
    %v3299 = vunpack.c.l.b16 %v3145
    %v3300 = vunpack.c.l.b16 %v3146
    %v3301 = vunpack.c.l.b16 %v3147
    %v3302 = vunpack.c.l.b16 %v3148
    %v3303 = vunpack.c.l.b16 %v3149
    %v3304 = vunpack.c.l.b16 %v3150
    %v3305 = vunpack.c.l.b16 %v3151
    %v3306 = vunpack.c.l.b16 %v3152
    %v3307 = vunpack.c.l.b16 %v3153
    %v3308 = vunpack.c.l.b16 %v3154
    %v3309 = vunpack.c.l.b16 %v3155
    %v3310 = vunpack.c.l.b16 %v3156
    %v3311 = vunpack.c.l.b16 %v3157
    %v3312 = vunpack.c.l.b16 %v3158
    %v3313 = vunpack.c.l.b16 %v3159
    %v3314 = vunpack.c.l.b16 %v3160
    %v3315 = vunpack.c.l.b16 %v3161
    %v3316 = vunpack.c.l.b16 %v3162
    %v3317 = vunpack.c.l.b16 %v3163
    %v3318 = vunpack.c.l.b16 %v3164
    %v3319 = vunpack.c.l.b16 %v3165
    %v3320 = vunpack.c.l.b16 %v3166
    %v3321 = vunpack.c.l.b16 %v3167
    %v3322 = vunpack.c.l.b16 %v3168
    %v3323 = vunpack.c.l.b16 %v3169
    %v3324 = vunpack.c.l.b16 %v3170
    %v3325 = vunpack.c.l.b16 %v3171
    %v3326 = vunpack.c.l.b16 %v3172
    %v3327 = vpack.c.b16 %v3280, %v3279
    %v3328 = vpack.c.b16 %v3282, %v3281
    %v3329 = vpack.c.b16 %v3284, %v3283
    %v3330 = vpack.c.b16 %v3286, %v3285
    %v3331 = vpack.c.b16 %v3288, %v3287
    %v3332 = vpack.c.b16 %v3290, %v3289
    %v3333 = vpack.c.b16 %v3292, %v3291
    %v3334 = vpack.c.b16 %v3294, %v3293
    %v3335 = vpack.c.b16 %v3296, %v3295
    %v3336 = vpack.c.b16 %v3298, %v3297
    %v3337 = vpack.c.b16 %v3300, %v3299
    %v3338 = vpack.c.b16 %v3302, %v3301
    %v3339 = vpack.c.b16 %v3304, %v3303
    %v3340 = vpack.c.b16 %v3306, %v3305
    %v3341 = vpack.c.b16 %v3308, %v3307
    %v3342 = vpack.c.b16 %v3310, %v3309
    %v3343 = vpack.c.b16 %v3312, %v3311
    %v3344 = vpack.c.b16 %v3314, %v3313
    %v3345 = vpack.c.b16 %v3316, %v3315
    %v3346 = vpack.c.b16 %v3318, %v3317
    %v3347 = vpack.c.b16 %v3320, %v3319
    %v3348 = vpack.c.b16 %v3322, %v3321
    %v3349 = vpack.c.b16 %v3324, %v3323
    %v3350 = vpack.c.b16 %v3326, %v3325
    %3375 = vmatprep.subr.bf16.mxu0 0
    %3376 = vmatpush1.bf16.msra.mxu0 %v3334
    %3377 = vmatprep.subr.bf16.mxu0 0
    %3378 = vmatpush1.bf16.msra.mxu0 %v3333
    %3379 = vmatprep.subr.bf16.mxu0 0
    %3380 = vmatpush1.bf16.msra.mxu0 %v3332
    %3381 = vmatprep.subr.bf16.mxu0 0
    %3382 = vmatpush1.bf16.msra.mxu0 %v3331
    %3383 = vmatprep.subr.bf16.mxu0 0
    %3384 = vmatpush1.bf16.msra.mxu0 %v3330
    %3385 = vmatprep.subr.bf16.mxu0 0
    %3386 = vmatpush1.bf16.msra.mxu0 %v3329
    %3387 = vmatprep.subr.bf16.mxu0 0
    %3388 = vmatpush1.bf16.msra.mxu0 %v3328
    %3389 = vmatprep.subr.bf16.mxu0 0
    %3390 = vmatpush1.bf16.msra.mxu0 %v3327
    %3391 = vmatprep.subr.bf16.mxu0 0
    %3392 = vmatpush2.bf16.msra.mxu0 %v3342
    %3393 = vmatprep.subr.bf16.mxu0 0
    %3394 = vmatpush2.bf16.msra.mxu0 %v3341
    %3395 = vmatprep.subr.bf16.mxu0 0
    %3396 = vmatpush2.bf16.msra.mxu0 %v3340
    %3397 = vmatprep.subr.bf16.mxu0 0
    %3398 = vmatpush2.bf16.msra.mxu0 %v3339
    %3399 = vmatprep.subr.bf16.mxu0 0
    %3400 = vmatpush2.bf16.msra.mxu0 %v3338
    %3401 = vmatprep.subr.bf16.mxu0 0
    %3402 = vmatpush2.bf16.msra.mxu0 %v3337
    %3403 = vmatprep.subr.bf16.mxu0 0
    %3404 = vmatpush2.bf16.msra.mxu0 %v3336
    %3405 = vmatprep.subr.bf16.mxu0 0
    %3406 = vmatpush2.bf16.msra.mxu0 %v3335
    %3407 = vmatprep.mubr.bf16.mxu0 %v3124
    %3408 = vmatmul.mubr.bf16.gmra.mxu0 %v3223
    %v3409 = vpop.f32.mrf.mxu0
    %v3410 = vadd.f32 %v3229, %v3409
    %v3411 = vpop.f32.mrf.mxu0
    %v3412 = vpop.f32.mrf.mxu0
    %v3413 = vadd.f32 %v3229, %v3412
    %v3414 = vpop.f32.mrf.mxu0
    %3415 = vdwg.mxu0
    %3416 = vmatprep.subr.bf16.mxu0 0
    %3417 = vmatpush1.bf16.msra.mxu0 %v3350
    %3418 = vmatprep.subr.bf16.mxu0 0
    %3419 = vmatpush1.bf16.msra.mxu0 %v3349
    %3420 = vmatprep.subr.bf16.mxu0 0
    %3421 = vmatpush1.bf16.msra.mxu0 %v3348
    %3422 = vmatprep.subr.bf16.mxu0 0
    %3423 = vmatpush1.bf16.msra.mxu0 %v3347
    %3424 = vmatprep.subr.bf16.mxu0 0
    %3425 = vmatpush1.bf16.msra.mxu0 %v3346
    %3426 = vmatprep.subr.bf16.mxu0 0
    %3427 = vmatpush1.bf16.msra.mxu0 %v3345
    %3428 = vmatprep.subr.bf16.mxu0 0
    %3429 = vmatpush1.bf16.msra.mxu0 %v3344
    %3430 = vmatprep.subr.bf16.mxu0 0
    %3431 = vmatpush1.bf16.msra.mxu0 %v3343
    %3432 = vmatprep.subr.bf16.mxu0 0
    %3433 = vmatpush2.bf16.msra.mxu0 0
    %3434 = vmatprep.subr.bf16.mxu0 0
    %3435 = vmatpush2.bf16.msra.mxu0 0
    %3436 = vmatprep.subr.bf16.mxu0 0
    %3437 = vmatpush2.bf16.msra.mxu0 0
    %3438 = vmatprep.subr.bf16.mxu0 0
    %3439 = vmatpush2.bf16.msra.mxu0 0
    %3440 = vmatprep.subr.bf16.mxu0 0
    %3441 = vmatpush2.bf16.msra.mxu0 0
    %3442 = vmatprep.subr.bf16.mxu0 0
    %3443 = vmatpush2.bf16.msra.mxu0 0
    %3444 = vmatprep.subr.bf16.mxu0 0
    %3445 = vmatpush2.bf16.msra.mxu0 0
    %3446 = vmatprep.subr.bf16.mxu0 0
    %3447 = vmatpush2.bf16.msra.mxu0 0
    %3448 = vmatprep.mubr.bf16.mxu0 0
    %3449 = vmatmul.mubr.bf16.gmra.mxu0 %v3224
    %v3450 = vpop.f32.mrf.mxu0
    %v3451 = vadd.f32 %v3410, %v3450
    %v3452 = vpop.f32.mrf.mxu0
    %v3453 = vpop.f32.mrf.mxu0
    %v3454 = vadd.f32 %v3413, %v3453
    %v3455 = vpop.f32.mrf.mxu0
    %3456 = vdwg.mxu0
    %v3457 = vmax.f32 %v3451, 0.0
    %v3458 = vmax.f32 %v3454, 0.0
    %v3459 = vpack.c.bf16 %v3458, %v3457
    %v3460 = vld [vmem:[#allocation19] sm:$0xf]
    %v3462 = vsel %vm2935, %v3460, 0
    %3464 = vmatprep.subr.bf16.mxu0 0
    %3465 = vmatpush1.bf16.msra.mxu0 0
    %3466 = vmatprep.subr.bf16.mxu0 0
    %3467 = vmatpush1.bf16.msra.mxu0 0
    %3468 = vmatprep.subr.bf16.mxu0 0
    %3469 = vmatpush1.bf16.msra.mxu0 0
    %3470 = vmatprep.subr.bf16.mxu0 0
    %3471 = vmatpush1.bf16.msra.mxu0 0
    %3472 = vmatprep.subr.bf16.mxu0 0
    %3473 = vmatpush1.bf16.msra.mxu0 0
    %3474 = vmatprep.subr.bf16.mxu0 0
    %3475 = vmatpush1.bf16.msra.mxu0 0
    %3476 = vmatprep.subr.bf16.mxu0 0
    %3477 = vmatpush1.bf16.msra.mxu0 0
    %3478 = vmatprep.subr.bf16.mxu0 0
    %3479 = vmatpush1.bf16.msra.mxu0 %v3459
    %3480 = vmatprep.subr.bf16.mxu0 0
    %3481 = vmatpush2.bf16.msra.mxu0 0
    %3482 = vmatprep.subr.bf16.mxu0 0
    %3483 = vmatpush2.bf16.msra.mxu0 0
    %3484 = vmatprep.subr.bf16.mxu0 0
    %3485 = vmatpush2.bf16.msra.mxu0 0
    %3486 = vmatprep.subr.bf16.mxu0 0
    %3487 = vmatpush2.bf16.msra.mxu0 0
    %3488 = vmatprep.subr.bf16.mxu0 0
    %3489 = vmatpush2.bf16.msra.mxu0 0
    %3490 = vmatprep.subr.bf16.mxu0 0
    %3491 = vmatpush2.bf16.msra.mxu0 0
    %3492 = vmatprep.subr.bf16.mxu0 0
    %3493 = vmatpush2.bf16.msra.mxu0 0
    %3494 = vmatprep.subr.bf16.mxu0 0
    %3495 = vmatpush2.bf16.msra.mxu0 0
    %3496 = vmatprep.mubr.bf16.mxu0 0
    %3497 = vmatmul.mubr.bf16.gmra.mxu0 %v3462
    %v3498 = vpop.f32.mrf.mxu0
    %v3499 = vadd.f32 0.0, %v3498
    %v3500 = vpop.f32.mrf.mxu0
    %v3501 = vpop.f32.mrf.mxu0
    %v3502 = vpop.f32.mrf.mxu0
    %3503 = vdwg.mxu0
    %v3504 = vld [vmem:[#allocation21] sm:$0xf]
    %v3506 = vsel %vm2935, %v3504, 0
    %3508 = vmatprep.subr.bf16.mxu0 0
    %3509 = vmatpush1.bf16.msra.mxu0 0
    %3510 = vmatprep.subr.bf16.mxu0 0
    %3511 = vmatpush1.bf16.msra.mxu0 0
    %3512 = vmatprep.subr.bf16.mxu0 0
    %3513 = vmatpush1.bf16.msra.mxu0 0
    %3514 = vmatprep.subr.bf16.mxu0 0
    %3515 = vmatpush1.bf16.msra.mxu0 0
    %3516 = vmatprep.subr.bf16.mxu0 0
    %3517 = vmatpush1.bf16.msra.mxu0 0
    %3518 = vmatprep.subr.bf16.mxu0 0
    %3519 = vmatpush1.bf16.msra.mxu0 0
    %3520 = vmatprep.subr.bf16.mxu0 0
    %3521 = vmatpush1.bf16.msra.mxu0 0
    %3522 = vmatprep.subr.bf16.mxu0 0
    %3523 = vmatpush1.bf16.msra.mxu0 %v3459
    %3524 = vmatprep.subr.bf16.mxu0 0
    %3525 = vmatpush2.bf16.msra.mxu0 0
    %3526 = vmatprep.subr.bf16.mxu0 0
    %3527 = vmatpush2.bf16.msra.mxu0 0
    %3528 = vmatprep.subr.bf16.mxu0 0
    %3529 = vmatpush2.bf16.msra.mxu0 0
    %3530 = vmatprep.subr.bf16.mxu0 0
    %3531 = vmatpush2.bf16.msra.mxu0 0
    %3532 = vmatprep.subr.bf16.mxu0 0
    %3533 = vmatpush2.bf16.msra.mxu0 0
    %3534 = vmatprep.subr.bf16.mxu0 0
    %3535 = vmatpush2.bf16.msra.mxu0 0
    %3536 = vmatprep.subr.bf16.mxu0 0
    %3537 = vmatpush2.bf16.msra.mxu0 0
    %3538 = vmatprep.subr.bf16.mxu0 0
    %3539 = vmatpush2.bf16.msra.mxu0 0
    %3540 = vmatprep.mubr.bf16.mxu0 0
    %3541 = vmatmul.mubr.bf16.gmra.mxu0 %v3506
    %v3542 = vpop.f32.mrf.mxu0
    %v3543 = vadd.f32 0.0, %v3542
    %v3544 = vpop.f32.mrf.mxu0
    %v3545 = vpop.f32.mrf.mxu0
    %v3546 = vpop.f32.mrf.mxu0
    %3547 = vdwg.mxu0
    %v3548 = vmax.f32 %v3499, %v3543
    %v3549 = vpack.c.bf16 %v3548, %v3548
    %v3550 = vld [vmem:[%s53] sm:$0xf]
    %v3551 = vld [vmem:[%s53 + $0x4] sm:$0xf]
    %v3552 = vld [vmem:[%s53 + $0x8] sm:$0xf]
    %v3553 = vld [vmem:[%s53 + $0xc] sm:$0xf]
    %v3554 = vld [vmem:[%s53 + $0x10] sm:$0xf]
    %v3555 = vld [vmem:[%s53 + $0x14] sm:$0xf]
    %v3556 = vld [vmem:[%s53 + $0x18] sm:$0xf]
    %v3557 = vld [vmem:[%s53 + $0x1c] sm:$0xf]
    %v3558 = vld [vmem:[%s53 + $0x20] sm:$0xf]
    %v3559 = vld [vmem:[%s53 + $0x24] sm:$0xf]
    %v3560 = vld [vmem:[%s53 + $0x28] sm:$0xf]
    %v3561 = vld [vmem:[%s53 + $0x2c] sm:$0xf]
    %v3562 = vld [vmem:[%s53 + $0x30] sm:$0xf]
    %v3563 = vld [vmem:[%s53 + $0x34] sm:$0xf]
    %v3564 = vld [vmem:[%s53 + $0x38] sm:$0xf]
    %v3565 = vld [vmem:[%s53 + $0x3c] sm:$0xf]
    %v3582 = vunpack.c.l.b16 %v3550
    %v3583 = vunpack.c.l.b16 %v3551
    %v3584 = vunpack.c.l.b16 %v3552
    %v3585 = vunpack.c.l.b16 %v3553
    %v3586 = vunpack.c.l.b16 %v3554
    %v3587 = vunpack.c.l.b16 %v3555
    %v3588 = vunpack.c.l.b16 %v3556
    %v3589 = vunpack.c.l.b16 %v3557
    %v3590 = vunpack.c.l.b16 %v3558
    %v3591 = vunpack.c.l.b16 %v3559
    %v3592 = vunpack.c.l.b16 %v3560
    %v3593 = vunpack.c.l.b16 %v3561
    %v3594 = vunpack.c.l.b16 %v3562
    %v3595 = vunpack.c.l.b16 %v3563
    %v3596 = vunpack.c.l.b16 %v3564
    %v3597 = vunpack.c.l.b16 %v3565
    %v3598 = vpack.c.b16 %v3583, %v3582
    %v3599 = vpack.c.b16 %v3585, %v3584
    %v3600 = vpack.c.b16 %v3587, %v3586
    %v3601 = vpack.c.b16 %v3589, %v3588
    %v3602 = vpack.c.b16 %v3591, %v3590
    %v3603 = vpack.c.b16 %v3593, %v3592
    %v3604 = vpack.c.b16 %v3595, %v3594
    %v3605 = vpack.c.b16 %v3597, %v3596
    %3614 = vmatprep.subr.bf16.mxu0 0
    %3615 = vmatpush1.bf16.msra.mxu0 %v3605
    %3616 = vmatprep.subr.bf16.mxu0 0
    %3617 = vmatpush1.bf16.msra.mxu0 %v3604
    %3618 = vmatprep.subr.bf16.mxu0 0
    %3619 = vmatpush1.bf16.msra.mxu0 %v3603
    %3620 = vmatprep.subr.bf16.mxu0 0
    %3621 = vmatpush1.bf16.msra.mxu0 %v3602
    %3622 = vmatprep.subr.bf16.mxu0 0
    %3623 = vmatpush1.bf16.msra.mxu0 %v3601
    %3624 = vmatprep.subr.bf16.mxu0 0
    %3625 = vmatpush1.bf16.msra.mxu0 %v3600
    %3626 = vmatprep.subr.bf16.mxu0 0
    %3627 = vmatpush1.bf16.msra.mxu0 %v3599
    %3628 = vmatprep.subr.bf16.mxu0 0
    %3629 = vmatpush1.bf16.msra.mxu0 %v3598
    %3630 = vmatprep.subr.bf16.mxu0 0
    %3631 = vmatpush2.bf16.msra.mxu0 0
    %3632 = vmatprep.subr.bf16.mxu0 0
    %3633 = vmatpush2.bf16.msra.mxu0 0
    %3634 = vmatprep.subr.bf16.mxu0 0
    %3635 = vmatpush2.bf16.msra.mxu0 0
    %3636 = vmatprep.subr.bf16.mxu0 0
    %3637 = vmatpush2.bf16.msra.mxu0 0
    %3638 = vmatprep.subr.bf16.mxu0 0
    %3639 = vmatpush2.bf16.msra.mxu0 0
    %3640 = vmatprep.subr.bf16.mxu0 0
    %3641 = vmatpush2.bf16.msra.mxu0 0
    %3642 = vmatprep.subr.bf16.mxu0 0
    %3643 = vmatpush2.bf16.msra.mxu0 0
    %3644 = vmatprep.subr.bf16.mxu0 0
    %3645 = vmatpush2.bf16.msra.mxu0 0
    %3646 = vmatprep.mubr.bf16.mxu0 0
    %3647 = vmatmul.mubr.bf16.gmra.mxu0 %v3549
    %v3648 = vpop.f32.mrf.mxu0
    %v3649 = vadd.f32 0.0, %v3648
    %v3650 = vpop.f32.mrf.mxu0
    %v3651 = vpop.f32.mrf.mxu0
    %v3652 = vpop.f32.mrf.mxu0
    %3653 = vdwg.mxu0
    %v3654 = vld [vmem:[%s55] sm:$0xf]
    %v3655 = vld [vmem:[%s55 + $0x4] sm:$0xf]
    %v3656 = vld [vmem:[%s55 + $0x8] sm:$0xf]
    %v3657 = vld [vmem:[%s55 + $0xc] sm:$0xf]
    %v3658 = vld [vmem:[%s55 + $0x10] sm:$0xf]
    %v3659 = vld [vmem:[%s55 + $0x14] sm:$0xf]
    %v3660 = vld [vmem:[%s55 + $0x18] sm:$0xf]
    %v3661 = vld [vmem:[%s55 + $0x1c] sm:$0xf]
    %v3662 = vld [vmem:[%s55 + $0x20] sm:$0xf]
    %v3663 = vld [vmem:[%s55 + $0x24] sm:$0xf]
    %v3664 = vld [vmem:[%s55 + $0x28] sm:$0xf]
    %v3665 = vld [vmem:[%s55 + $0x2c] sm:$0xf]
    %v3666 = vld [vmem:[%s55 + $0x30] sm:$0xf]
    %v3667 = vld [vmem:[%s55 + $0x34] sm:$0xf]
    %v3668 = vld [vmem:[%s55 + $0x38] sm:$0xf]
    %v3669 = vld [vmem:[%s55 + $0x3c] sm:$0xf]
    %v3686 = vunpack.c.l.b16 %v3654
    %v3687 = vunpack.c.l.b16 %v3655
    %v3688 = vunpack.c.l.b16 %v3656
    %v3689 = vunpack.c.l.b16 %v3657
    %v3690 = vunpack.c.l.b16 %v3658
    %v3691 = vunpack.c.l.b16 %v3659
    %v3692 = vunpack.c.l.b16 %v3660
    %v3693 = vunpack.c.l.b16 %v3661
    %v3694 = vunpack.c.l.b16 %v3662
    %v3695 = vunpack.c.l.b16 %v3663
    %v3696 = vunpack.c.l.b16 %v3664
    %v3697 = vunpack.c.l.b16 %v3665
    %v3698 = vunpack.c.l.b16 %v3666
    %v3699 = vunpack.c.l.b16 %v3667
    %v3700 = vunpack.c.l.b16 %v3668
    %v3701 = vunpack.c.l.b16 %v3669
    %v3702 = vpack.c.b16 %v3687, %v3686
    %v3703 = vpack.c.b16 %v3689, %v3688
    %v3704 = vpack.c.b16 %v3691, %v3690
    %v3705 = vpack.c.b16 %v3693, %v3692
    %v3706 = vpack.c.b16 %v3695, %v3694
    %v3707 = vpack.c.b16 %v3697, %v3696
    %v3708 = vpack.c.b16 %v3699, %v3698
    %v3709 = vpack.c.b16 %v3701, %v3700
    %3718 = vmatprep.subr.bf16.mxu0 0
    %3719 = vmatpush1.bf16.msra.mxu0 %v3709
    %3720 = vmatprep.subr.bf16.mxu0 0
    %3721 = vmatpush1.bf16.msra.mxu0 %v3708
    %3722 = vmatprep.subr.bf16.mxu0 0
    %3723 = vmatpush1.bf16.msra.mxu0 %v3707
    %3724 = vmatprep.subr.bf16.mxu0 0
    %3725 = vmatpush1.bf16.msra.mxu0 %v3706
    %3726 = vmatprep.subr.bf16.mxu0 0
    %3727 = vmatpush1.bf16.msra.mxu0 %v3705
    %3728 = vmatprep.subr.bf16.mxu0 0
    %3729 = vmatpush1.bf16.msra.mxu0 %v3704
    %3730 = vmatprep.subr.bf16.mxu0 0
    %3731 = vmatpush1.bf16.msra.mxu0 %v3703
    %3732 = vmatprep.subr.bf16.mxu0 0
    %3733 = vmatpush1.bf16.msra.mxu0 %v3702
    %3734 = vmatprep.subr.bf16.mxu0 0
    %3735 = vmatpush2.bf16.msra.mxu0 0
    %3736 = vmatprep.subr.bf16.mxu0 0
    %3737 = vmatpush2.bf16.msra.mxu0 0
    %3738 = vmatprep.subr.bf16.mxu0 0
    %3739 = vmatpush2.bf16.msra.mxu0 0
    %3740 = vmatprep.subr.bf16.mxu0 0
    %3741 = vmatpush2.bf16.msra.mxu0 0
    %3742 = vmatprep.subr.bf16.mxu0 0
    %3743 = vmatpush2.bf16.msra.mxu0 0
    %3744 = vmatprep.subr.bf16.mxu0 0
    %3745 = vmatpush2.bf16.msra.mxu0 0
    %3746 = vmatprep.subr.bf16.mxu0 0
    %3747 = vmatpush2.bf16.msra.mxu0 0
    %3748 = vmatprep.subr.bf16.mxu0 0
    %3749 = vmatpush2.bf16.msra.mxu0 0
    %3750 = vmatprep.mubr.bf16.mxu0 0
    %3751 = vmatmul.mubr.bf16.gmra.mxu0 %v3549
    %v3752 = vpop.f32.mrf.mxu0
    %v3753 = vadd.f32 0.0, %v3752
    %v3754 = vpop.f32.mrf.mxu0
    %v3755 = vpop.f32.mrf.mxu0
    %v3756 = vpop.f32.mrf.mxu0
    %3757 = vdwg.mxu0
    %v3758 = vmax.f32 %v3649, %v3753
    %v3759 = vpack.c.bf16 %v3758, %v3758
    %v3760 = vld [vmem:[%s65] sm:$0xf]
    %v3761 = vld [vmem:[%s65 + $0x4] sm:$0xf]
    %v3762 = vld [vmem:[#allocation22] sm:$0xf]
    %v3763 = vld [vmem:[#allocation22 + $0x4] sm:$0xf]
    %v3764 = vld [vmem:[#allocation22 + $0x8] sm:$0xf]
    %v3765 = vld [vmem:[#allocation22 + $0xc] sm:$0xf]
    %v3766 = vld [vmem:[#allocation22 + $0x10] sm:$0xf]
    %v3767 = vld [vmem:[#allocation22 + $0x14] sm:$0xf]
    %v3768 = vld [vmem:[#allocation22 + $0x18] sm:$0xf]
    %v3769 = vld [vmem:[#allocation22 + $0x1c] sm:$0xf]
    %v3770 = vld [vmem:[#allocation22 + $0x20] sm:$0xf]
    %v3771 = vld [vmem:[#allocation22 + $0x24] sm:$0xf]
    %v3772 = vld [vmem:[#allocation22 + $0x28] sm:$0xf]
    %v3773 = vld [vmem:[#allocation22 + $0x2c] sm:$0xf]
    %v3774 = vld [vmem:[#allocation22 + $0x30] sm:$0xf]
    %v3775 = vld [vmem:[#allocation22 + $0x34] sm:$0xf]
    %v3776 = vld [vmem:[#allocation22 + $0x38] sm:$0xf]
    %v3777 = vld [vmem:[#allocation22 + $0x3c] sm:$0xf]
    %v3778 = vld [vmem:[#allocation22 + $0x40] sm:$0xf]
    %v3779 = vld [vmem:[#allocation22 + $0x44] sm:$0xf]
    %v3780 = vld [vmem:[#allocation22 + $0x48] sm:$0xf]
    %v3781 = vld [vmem:[#allocation22 + $0x4c] sm:$0xf]
    %v3782 = vld [vmem:[#allocation22 + $0x50] sm:$0xf]
    %v3783 = vld [vmem:[#allocation22 + $0x54] sm:$0xf]
    %v3784 = vld [vmem:[#allocation22 + $0x58] sm:$0xf]
    %v3785 = vld [vmem:[#allocation22 + $0x5c] sm:$0xf]
    %v3786 = vld [vmem:[#allocation24] sm:$0x1]
    %v3789 = vunpack.c.l.b16 %v3760
    %v3790 = vunpack.c.l.b16 %v3761
    %v3791 = vpack.c.b16 %v3790, %v3789
    %vm3792 = vcmask 64512
    %v3794 = vsel %vm3792, %v3791, 0
    %vm3796 = vcmask 1043456
    %v3798 = vsel %vm3796, %v3759, 0
    %3800 = vmatprep.subr.bf16.mxu0 0
    %3801 = vmatpush1.bf16.msra.mxu0 0
    %3802 = vmatprep.subr.bf16.mxu0 0
    %3803 = vmatpush1.bf16.msra.mxu0 0
    %3804 = vmatprep.subr.bf16.mxu0 0
    %3805 = vmatpush1.bf16.msra.mxu0 0
    %3806 = vmatprep.subr.bf16.mxu0 0
    %3807 = vmatpush1.bf16.msra.mxu0 0
    %3808 = vmatprep.subr.bf16.mxu0 0
    %3809 = vmatpush1.bf16.msra.mxu0 0
    %3810 = vmatprep.subr.bf16.mxu0 0
    %3811 = vmatpush1.bf16.msra.mxu0 0
    %3812 = vmatprep.subr.bf16.mxu0 0
    %3813 = vmatpush1.bf16.msra.mxu0 0
    %3814 = vmatprep.subr.bf16.mxu0 0
    %3815 = vmatpush1.bf16.msra.mxu0 %v3798
    %3816 = vmatprep.subr.bf16.mxu0 0
    %3817 = vmatpush2.bf16.msra.mxu0 0
    %3818 = vmatprep.subr.bf16.mxu0 0
    %3819 = vmatpush2.bf16.msra.mxu0 0
    %3820 = vmatprep.subr.bf16.mxu0 0
    %3821 = vmatpush2.bf16.msra.mxu0 0
    %3822 = vmatprep.subr.bf16.mxu0 0
    %3823 = vmatpush2.bf16.msra.mxu0 0
    %3824 = vmatprep.subr.bf16.mxu0 0
    %3825 = vmatpush2.bf16.msra.mxu0 0
    %3826 = vmatprep.subr.bf16.mxu0 0
    %3827 = vmatpush2.bf16.msra.mxu0 0
    %3828 = vmatprep.subr.bf16.mxu0 0
    %3829 = vmatpush2.bf16.msra.mxu0 0
    %3830 = vmatprep.subr.bf16.mxu0 0
    %3831 = vmatpush2.bf16.msra.mxu0 0
    %3832 = vmatprep.mubr.bf16.mxu0 0
    %3833 = vmatmul.mubr.bf16.gmra.mxu0 %v3794
    %v3834 = vpop.f32.mrf.mxu0
    %v3835 = vadd.f32 0.0, %v3834
    %v3836 = vpop.f32.mrf.mxu0
    %v3837 = vpop.f32.mrf.mxu0
    %v3838 = vadd.f32 0.0, %v3837
    %v3839 = vpop.f32.mrf.mxu0
    %3840 = vdwg.mxu0
    %v3841 = vpack.c.bf16 %v3838, %v3835
    %3843 = vrot.lane.b32.xlu0 %v3759, 64
    %v3844 = vpop.permute.xlu0 %3843
    %v3846 = vrot.slane %v3841, 4
    %v3849 = vsel %vm775, %v3841, %v3844
    %v3852 = vlaneseq
    %v3853 = vshrl.u32 %v3852, 7
    %v3854 = vsub.s32 0, %v3853
    %v3855 = vrot.slane %v3786, %v3854
    %v3881 = vunpack.c.l.b16 %v3762
    %v3882 = vunpack.c.l.b16 %v3763
    %v3883 = vunpack.c.l.b16 %v3764
    %v3884 = vunpack.c.l.b16 %v3765
    %v3885 = vunpack.c.l.b16 %v3766
    %v3886 = vunpack.c.l.b16 %v3767
    %v3887 = vunpack.c.l.b16 %v3768
    %v3888 = vunpack.c.l.b16 %v3769
    %v3889 = vunpack.c.l.b16 %v3770
    %v3890 = vunpack.c.l.b16 %v3771
    %v3891 = vunpack.c.l.b16 %v3772
    %v3892 = vunpack.c.l.b16 %v3773
    %v3893 = vunpack.c.l.b16 %v3774
    %v3894 = vunpack.c.l.b16 %v3775
    %v3895 = vunpack.c.l.b16 %v3776
    %v3896 = vunpack.c.l.b16 %v3777
    %v3897 = vunpack.c.l.b16 %v3778
    %v3898 = vunpack.c.l.b16 %v3779
    %v3899 = vunpack.c.l.b16 %v3780
    %v3900 = vunpack.c.l.b16 %v3781
    %v3901 = vunpack.c.l.b16 %v3782
    %v3902 = vunpack.c.l.b16 %v3783
    %v3903 = vunpack.c.l.b16 %v3784
    %v3904 = vunpack.c.l.b16 %v3785
    %v3905 = vpack.c.b16 %v3882, %v3881
    %v3906 = vpack.c.b16 %v3884, %v3883
    %v3907 = vpack.c.b16 %v3886, %v3885
    %v3908 = vpack.c.b16 %v3888, %v3887
    %v3909 = vpack.c.b16 %v3890, %v3889
    %v3910 = vpack.c.b16 %v3892, %v3891
    %v3911 = vpack.c.b16 %v3894, %v3893
    %v3912 = vpack.c.b16 %v3896, %v3895
    %v3913 = vpack.c.b16 %v3898, %v3897
    %v3914 = vpack.c.b16 %v3900, %v3899
    %v3915 = vpack.c.b16 %v3902, %v3901
    %v3916 = vpack.c.b16 %v3904, %v3903
    %v3930 = vsel %vm775, %v3846, 0
    %3932 = vmatprep.subr.bf16.mxu0 0
    %3933 = vmatpush1.bf16.msra.mxu0 %v3912
    %3934 = vmatprep.subr.bf16.mxu0 0
    %3935 = vmatpush1.bf16.msra.mxu0 %v3911
    %3936 = vmatprep.subr.bf16.mxu0 0
    %3937 = vmatpush1.bf16.msra.mxu0 %v3910
    %3938 = vmatprep.subr.bf16.mxu0 0
    %3939 = vmatpush1.bf16.msra.mxu0 %v3909
    %3940 = vmatprep.subr.bf16.mxu0 0
    %3941 = vmatpush1.bf16.msra.mxu0 %v3908
    %3942 = vmatprep.subr.bf16.mxu0 0
    %3943 = vmatpush1.bf16.msra.mxu0 %v3907
    %3944 = vmatprep.subr.bf16.mxu0 0
    %3945 = vmatpush1.bf16.msra.mxu0 %v3906
    %3946 = vmatprep.subr.bf16.mxu0 0
    %3947 = vmatpush1.bf16.msra.mxu0 %v3905
    %3948 = vmatprep.subr.bf16.mxu0 0
    %3949 = vmatpush2.bf16.msra.mxu0 0
    %3950 = vmatprep.subr.bf16.mxu0 0
    %3951 = vmatpush2.bf16.msra.mxu0 0
    %3952 = vmatprep.subr.bf16.mxu0 0
    %3953 = vmatpush2.bf16.msra.mxu0 0
    %3954 = vmatprep.subr.bf16.mxu0 0
    %3955 = vmatpush2.bf16.msra.mxu0 0
    %3956 = vmatprep.subr.bf16.mxu0 0
    %3957 = vmatpush2.bf16.msra.mxu0 %v3916
    %3958 = vmatprep.subr.bf16.mxu0 0
    %3959 = vmatpush2.bf16.msra.mxu0 %v3915
    %3960 = vmatprep.subr.bf16.mxu0 0
    %3961 = vmatpush2.bf16.msra.mxu0 %v3914
    %3962 = vmatprep.subr.bf16.mxu0 0
    %3963 = vmatpush2.bf16.msra.mxu0 %v3913
    %3964 = vmatprep.mubr.bf16.mxu0 %v3930
    %3965 = vmatmul.mubr.bf16.gmra.mxu0 %v3849
    %v3966 = vpop.f32.mrf.mxu0
    %v3967 = vadd.f32 %v3855, %v3966
    %v3968 = vpop.f32.mrf.mxu0
    %v3969 = vpop.f32.mrf.mxu0
    %v3970 = vpop.f32.mrf.mxu0
    %3971 = vdwg.mxu0
    %v3972 = vmax.f32 %v3967, 0.0
    %v3973 = vpack.c.bf16 %v3972, %v3972
    %v3974 = vld [vmem:[%s61] sm:$0xf]
    %v3975 = vld [vmem:[%s61 + $0x4] sm:$0xf]
    %v3976 = vld [vmem:[%s61 + $0x8] sm:$0xf]
    %v3977 = vld [vmem:[%s61 + $0xc] sm:$0xf]
    %v3978 = vld [vmem:[%s61 + $0x10] sm:$0xf]
    %v3979 = vld [vmem:[%s61 + $0x14] sm:$0xf]
    %v3980 = vld [vmem:[%s61 + $0x18] sm:$0xf]
    %v3981 = vld [vmem:[%s61 + $0x1c] sm:$0xf]
    %v3982 = vld [vmem:[%s61 + $0x20] sm:$0xf]
    %v3983 = vld [vmem:[%s61 + $0x24] sm:$0xf]
    %v3984 = vld [vmem:[%s61 + $0x28] sm:$0xf]
    %v3985 = vld [vmem:[%s61 + $0x2c] sm:$0xf]
    %v3986 = vld [vmem:[%s61 + $0x30] sm:$0xf]
    %v3987 = vld [vmem:[%s61 + $0x34] sm:$0xf]
    %v3988 = vld [vmem:[%s61 + $0x38] sm:$0xf]
    %v3989 = vld [vmem:[%s61 + $0x3c] sm:$0xf]
    %v3990 = vld [vmem:[%s61 + $0x40] sm:$0xf]
    %v3991 = vld [vmem:[%s61 + $0x44] sm:$0xf]
    %v3992 = vld [vmem:[%s61 + $0x48] sm:$0xf]
    %v3993 = vld [vmem:[%s61 + $0x4c] sm:$0xf]
    %v3994 = vld [vmem:[%s61 + $0x50] sm:$0xf]
    %v3995 = vld [vmem:[%s61 + $0x54] sm:$0xf]
    %v3996 = vld [vmem:[%s61 + $0x58] sm:$0xf]
    %v3997 = vld [vmem:[%s61 + $0x5c] sm:$0xf]
    %v3998 = vld [vmem:[%s61 + $0x60] sm:$0xf]
    %v3999 = vld [vmem:[%s61 + $0x64] sm:$0xf]
    %v4000 = vld [vmem:[%s61 + $0x68] sm:$0xf]
    %v4001 = vld [vmem:[%s61 + $0x6c] sm:$0xf]
    %v4002 = vld [vmem:[%s61 + $0x70] sm:$0xf]
    %v4003 = vld [vmem:[%s61 + $0x74] sm:$0xf]
    %v4004 = vld [vmem:[%s61 + $0x78] sm:$0xf]
    %v4005 = vld [vmem:[%s61 + $0x7c] sm:$0xf]
    %v4006 = vld [vmem:[%s61 + $0x80] sm:$0xf]
    %v4007 = vld [vmem:[%s61 + $0x84] sm:$0xf]
    %v4008 = vld [vmem:[%s61 + $0x88] sm:$0xf]
    %v4009 = vld [vmem:[%s61 + $0x8c] sm:$0xf]
    %v4010 = vld [vmem:[%s61 + $0x90] sm:$0xf]
    %v4011 = vld [vmem:[%s61 + $0x94] sm:$0xf]
    %v4012 = vld [vmem:[%s61 + $0x98] sm:$0xf]
    %v4013 = vld [vmem:[%s61 + $0x9c] sm:$0xf]
    %v4014 = vld [vmem:[%s61 + $0xa0] sm:$0xf]
    %v4015 = vld [vmem:[%s61 + $0xa4] sm:$0xf]
    %v4016 = vld [vmem:[%s61 + $0xa8] sm:$0xf]
    %v4017 = vld [vmem:[%s61 + $0xac] sm:$0xf]
    %v4018 = vld [vmem:[%s61 + $0xb0] sm:$0xf]
    %v4019 = vld [vmem:[%s61 + $0xb4] sm:$0xf]
    %v4020 = vld [vmem:[%s61 + $0xb8] sm:$0xf]
    %v4021 = vld [vmem:[%s61 + $0xbc] sm:$0xf]
    %v4022 = vld [vmem:[#allocation25] sm:$0x1]
    %v4024 = vsel %vm3796, %v3973, 0
    %4026 = vmatprep.subr.bf16.mxu0 0
    %4027 = vmatpush1.bf16.msra.mxu0 0
    %4028 = vmatprep.subr.bf16.mxu0 0
    %4029 = vmatpush1.bf16.msra.mxu0 0
    %4030 = vmatprep.subr.bf16.mxu0 0
    %4031 = vmatpush1.bf16.msra.mxu0 0
    %4032 = vmatprep.subr.bf16.mxu0 0
    %4033 = vmatpush1.bf16.msra.mxu0 0
    %4034 = vmatprep.subr.bf16.mxu0 0
    %4035 = vmatpush1.bf16.msra.mxu0 0
    %4036 = vmatprep.subr.bf16.mxu0 0
    %4037 = vmatpush1.bf16.msra.mxu0 0
    %4038 = vmatprep.subr.bf16.mxu0 0
    %4039 = vmatpush1.bf16.msra.mxu0 0
    %4040 = vmatprep.subr.bf16.mxu0 0
    %4041 = vmatpush1.bf16.msra.mxu0 %v4024
    %4042 = vmatprep.subr.bf16.mxu0 0
    %4043 = vmatpush2.bf16.msra.mxu0 0
    %4044 = vmatprep.subr.bf16.mxu0 0
    %4045 = vmatpush2.bf16.msra.mxu0 0
    %4046 = vmatprep.subr.bf16.mxu0 0
    %4047 = vmatpush2.bf16.msra.mxu0 0
    %4048 = vmatprep.subr.bf16.mxu0 0
    %4049 = vmatpush2.bf16.msra.mxu0 0
    %4050 = vmatprep.subr.bf16.mxu0 0
    %4051 = vmatpush2.bf16.msra.mxu0 0
    %4052 = vmatprep.subr.bf16.mxu0 0
    %4053 = vmatpush2.bf16.msra.mxu0 0
    %4054 = vmatprep.subr.bf16.mxu0 0
    %4055 = vmatpush2.bf16.msra.mxu0 0
    %4056 = vmatprep.subr.bf16.mxu0 0
    %4057 = vmatpush2.bf16.msra.mxu0 0
    %4058 = vmatprep.mubr.bf16.mxu0 0
    %4059 = vmatmul.mubr.bf16.gmra.mxu0 %v3794
    %v4060 = vpop.f32.mrf.mxu0
    %v4061 = vadd.f32 0.0, %v4060
    %v4062 = vpop.f32.mrf.mxu0
    %v4063 = vpop.f32.mrf.mxu0
    %v4064 = vadd.f32 0.0, %v4063
    %v4065 = vpop.f32.mrf.mxu0
    %4066 = vdwg.mxu0
    %v4067 = vpack.c.bf16 %v4064, %v4061
    %v4069 = vrot.slane %v4067, 4
    %v4072 = vlaneseq
    %v4073 = vshrl.u32 %v4072, 7
    %v4074 = vsub.s32 0, %v4073
    %v4075 = vrot.slane %v4022, %v4074
    %v4125 = vunpack.c.l.b16 %v3974
    %v4126 = vunpack.c.l.b16 %v3975
    %v4127 = vunpack.c.l.b16 %v3976
    %v4128 = vunpack.c.l.b16 %v3977
    %v4129 = vunpack.c.l.b16 %v3978
    %v4130 = vunpack.c.l.b16 %v3979
    %v4131 = vunpack.c.l.b16 %v3980
    %v4132 = vunpack.c.l.b16 %v3981
    %v4133 = vunpack.c.l.b16 %v3982
    %v4134 = vunpack.c.l.b16 %v3983
    %v4135 = vunpack.c.l.b16 %v3984
    %v4136 = vunpack.c.l.b16 %v3985
    %v4137 = vunpack.c.l.b16 %v3986
    %v4138 = vunpack.c.l.b16 %v3987
    %v4139 = vunpack.c.l.b16 %v3988
    %v4140 = vunpack.c.l.b16 %v3989
    %v4141 = vunpack.c.l.b16 %v3990
    %v4142 = vunpack.c.l.b16 %v3991
    %v4143 = vunpack.c.l.b16 %v3992
    %v4144 = vunpack.c.l.b16 %v3993
    %v4145 = vunpack.c.l.b16 %v3994
    %v4146 = vunpack.c.l.b16 %v3995
    %v4147 = vunpack.c.l.b16 %v3996
    %v4148 = vunpack.c.l.b16 %v3997
    %v4149 = vunpack.c.l.b16 %v3998
    %v4150 = vunpack.c.l.b16 %v3999
    %v4151 = vunpack.c.l.b16 %v4000
    %v4152 = vunpack.c.l.b16 %v4001
    %v4153 = vunpack.c.l.b16 %v4002
    %v4154 = vunpack.c.l.b16 %v4003
    %v4155 = vunpack.c.l.b16 %v4004
    %v4156 = vunpack.c.l.b16 %v4005
    %v4157 = vunpack.c.l.b16 %v4006
    %v4158 = vunpack.c.l.b16 %v4007
    %v4159 = vunpack.c.l.b16 %v4008
    %v4160 = vunpack.c.l.b16 %v4009
    %v4161 = vunpack.c.l.b16 %v4010
    %v4162 = vunpack.c.l.b16 %v4011
    %v4163 = vunpack.c.l.b16 %v4012
    %v4164 = vunpack.c.l.b16 %v4013
    %v4165 = vunpack.c.l.b16 %v4014
    %v4166 = vunpack.c.l.b16 %v4015
    %v4167 = vunpack.c.l.b16 %v4016
    %v4168 = vunpack.c.l.b16 %v4017
    %v4169 = vunpack.c.l.b16 %v4018
    %v4170 = vunpack.c.l.b16 %v4019
    %v4171 = vunpack.c.l.b16 %v4020
    %v4172 = vunpack.c.l.b16 %v4021
    %v4173 = vpack.c.b16 %v4126, %v4125
    %v4174 = vpack.c.b16 %v4128, %v4127
    %v4175 = vpack.c.b16 %v4130, %v4129
    %v4176 = vpack.c.b16 %v4132, %v4131
    %v4177 = vpack.c.b16 %v4134, %v4133
    %v4178 = vpack.c.b16 %v4136, %v4135
    %v4179 = vpack.c.b16 %v4138, %v4137
    %v4180 = vpack.c.b16 %v4140, %v4139
    %v4181 = vpack.c.b16 %v4142, %v4141
    %v4182 = vpack.c.b16 %v4144, %v4143
    %v4183 = vpack.c.b16 %v4146, %v4145
    %v4184 = vpack.c.b16 %v4148, %v4147
    %v4185 = vpack.c.b16 %v4150, %v4149
    %v4186 = vpack.c.b16 %v4152, %v4151
    %v4187 = vpack.c.b16 %v4154, %v4153
    %v4188 = vpack.c.b16 %v4156, %v4155
    %v4189 = vpack.c.b16 %v4158, %v4157
    %v4190 = vpack.c.b16 %v4160, %v4159
    %v4191 = vpack.c.b16 %v4162, %v4161
    %v4192 = vpack.c.b16 %v4164, %v4163
    %v4193 = vpack.c.b16 %v4166, %v4165
    %v4194 = vpack.c.b16 %v4168, %v4167
    %v4195 = vpack.c.b16 %v4170, %v4169
    %v4196 = vpack.c.b16 %v4172, %v4171
    %4221 = vmatprep.subr.bf16.mxu0 0
    %4222 = vmatpush1.bf16.msra.mxu0 %v4180
    %4223 = vmatprep.subr.bf16.mxu0 0
    %4224 = vmatpush1.bf16.msra.mxu0 %v4179
    %4225 = vmatprep.subr.bf16.mxu0 0
    %4226 = vmatpush1.bf16.msra.mxu0 %v4178
    %4227 = vmatprep.subr.bf16.mxu0 0
    %4228 = vmatpush1.bf16.msra.mxu0 %v4177
    %4229 = vmatprep.subr.bf16.mxu0 0
    %4230 = vmatpush1.bf16.msra.mxu0 %v4176
    %4231 = vmatprep.subr.bf16.mxu0 0
    %4232 = vmatpush1.bf16.msra.mxu0 %v4175
    %4233 = vmatprep.subr.bf16.mxu0 0
    %4234 = vmatpush1.bf16.msra.mxu0 %v4174
    %4235 = vmatprep.subr.bf16.mxu0 0
    %4236 = vmatpush1.bf16.msra.mxu0 %v4173
    %4237 = vmatprep.subr.bf16.mxu0 0
    %4238 = vmatpush2.bf16.msra.mxu0 %v4188
    %4239 = vmatprep.subr.bf16.mxu0 0
    %4240 = vmatpush2.bf16.msra.mxu0 %v4187
    %4241 = vmatprep.subr.bf16.mxu0 0
    %4242 = vmatpush2.bf16.msra.mxu0 %v4186
    %4243 = vmatprep.subr.bf16.mxu0 0
    %4244 = vmatpush2.bf16.msra.mxu0 %v4185
    %4245 = vmatprep.subr.bf16.mxu0 0
    %4246 = vmatpush2.bf16.msra.mxu0 %v4184
    %4247 = vmatprep.subr.bf16.mxu0 0
    %4248 = vmatpush2.bf16.msra.mxu0 %v4183
    %4249 = vmatprep.subr.bf16.mxu0 0
    %4250 = vmatpush2.bf16.msra.mxu0 %v4182
    %4251 = vmatprep.subr.bf16.mxu0 0
    %4252 = vmatpush2.bf16.msra.mxu0 %v4181
    %4253 = vmatprep.mubr.bf16.mxu0 %v3973
    %4254 = vmatmul.mubr.bf16.gmra.mxu0 %v4067
    %v4255 = vpop.f32.mrf.mxu0
    %v4256 = vadd.f32 %v4075, %v4255
    %v4257 = vpop.f32.mrf.mxu0
    %v4258 = vpop.f32.mrf.mxu0
    %v4259 = vpop.f32.mrf.mxu0
    %4260 = vdwg.mxu0
    %4261 = vmatprep.subr.bf16.mxu0 0
    %4262 = vmatpush1.bf16.msra.mxu0 %v4196
    %4263 = vmatprep.subr.bf16.mxu0 0
    %4264 = vmatpush1.bf16.msra.mxu0 %v4195
    %4265 = vmatprep.subr.bf16.mxu0 0
    %4266 = vmatpush1.bf16.msra.mxu0 %v4194
    %4267 = vmatprep.subr.bf16.mxu0 0
    %4268 = vmatpush1.bf16.msra.mxu0 %v4193
    %4269 = vmatprep.subr.bf16.mxu0 0
    %4270 = vmatpush1.bf16.msra.mxu0 %v4192
    %4271 = vmatprep.subr.bf16.mxu0 0
    %4272 = vmatpush1.bf16.msra.mxu0 %v4191
    %4273 = vmatprep.subr.bf16.mxu0 0
    %4274 = vmatpush1.bf16.msra.mxu0 %v4190
    %4275 = vmatprep.subr.bf16.mxu0 0
    %4276 = vmatpush1.bf16.msra.mxu0 %v4189
    %4277 = vmatprep.subr.bf16.mxu0 0
    %4278 = vmatpush2.bf16.msra.mxu0 0
    %4279 = vmatprep.subr.bf16.mxu0 0
    %4280 = vmatpush2.bf16.msra.mxu0 0
    %4281 = vmatprep.subr.bf16.mxu0 0
    %4282 = vmatpush2.bf16.msra.mxu0 0
    %4283 = vmatprep.subr.bf16.mxu0 0
    %4284 = vmatpush2.bf16.msra.mxu0 0
    %4285 = vmatprep.subr.bf16.mxu0 0
    %4286 = vmatpush2.bf16.msra.mxu0 0
    %4287 = vmatprep.subr.bf16.mxu0 0
    %4288 = vmatpush2.bf16.msra.mxu0 0
    %4289 = vmatprep.subr.bf16.mxu0 0
    %4290 = vmatpush2.bf16.msra.mxu0 0
    %4291 = vmatprep.subr.bf16.mxu0 0
    %4292 = vmatpush2.bf16.msra.mxu0 0
    %4293 = vmatprep.mubr.bf16.mxu0 0
    %4294 = vmatmul.mubr.bf16.gmra.mxu0 %v4069
    %v4295 = vpop.f32.mrf.mxu0
    %v4296 = vadd.f32 %v4256, %v4295
    %v4297 = vpop.f32.mrf.mxu0
    %v4298 = vpop.f32.mrf.mxu0
    %v4299 = vpop.f32.mrf.mxu0
    %4300 = vdwg.mxu0
    %v4301 = vmax.f32 %v4296, 0.0
    %v4302 = vpack.c.bf16 %v4301, %v4301
    %v4303 = vunpack.c.l.bf16 %v4302
    %v4305 = vrot.slane %v4303, 4
    %v4307 = vsub.f32 %v4303, %v4305
    %v4308 = vand.u32 2147483647, %v4307
    %v4309 = vpack.c.bf16 %v4308, %v4308
    %v4310 = vld [vmem:[#allocation27] sm:$0xff]
    %v4311 = vld [vmem:[#allocation27 + $0x8] sm:$0xff]
    %v4312 = vld [vmem:[#allocation27 + $0x10] sm:$0xff]
    %v4313 = vld [vmem:[#allocation27 + $0x18] sm:$0xff]
    %v4314 = vld [vmem:[#allocation27 + $0x20] sm:$0xff]
    %v4315 = vld [vmem:[#allocation27 + $0x28] sm:$0xff]
    %v4316 = vld [vmem:[#allocation27 + $0x30] sm:$0xff]
    %v4317 = vld [vmem:[#allocation27 + $0x38] sm:$0xff]
    %v4318 = vld [vmem:[#allocation27 + $0x40] sm:$0xff]
    %v4319 = vld [vmem:[#allocation27 + $0x48] sm:$0xff]
    %v4320 = vld [vmem:[#allocation27 + $0x50] sm:$0xff]
    %v4321 = vld [vmem:[#allocation27 + $0x58] sm:$0xff]
    %v4322 = vld [vmem:[#allocation27 + $0x60] sm:$0xff]
    %v4323 = vld [vmem:[#allocation27 + $0x68] sm:$0xff]
    %v4324 = vld [vmem:[#allocation27 + $0x70] sm:$0xff]
    %v4325 = vld [vmem:[#allocation27 + $0x78] sm:$0xff]
    %v4342 = vunpack.c.l.b16 %v4310
    %v4343 = vunpack.c.h.b16 %v4310
    %v4344 = vunpack.c.l.b16 %v4311
    %v4345 = vunpack.c.h.b16 %v4311
    %v4346 = vunpack.c.l.b16 %v4312
    %v4347 = vunpack.c.h.b16 %v4312
    %v4348 = vunpack.c.l.b16 %v4313
    %v4349 = vunpack.c.h.b16 %v4313
    %v4350 = vunpack.c.l.b16 %v4314
    %v4351 = vunpack.c.h.b16 %v4314
    %v4352 = vunpack.c.l.b16 %v4315
    %v4353 = vunpack.c.h.b16 %v4315
    %v4354 = vunpack.c.l.b16 %v4316
    %v4355 = vunpack.c.h.b16 %v4316
    %v4356 = vunpack.c.l.b16 %v4317
    %v4357 = vunpack.c.h.b16 %v4317
    %v4358 = vunpack.c.l.b16 %v4318
    %v4359 = vunpack.c.h.b16 %v4318
    %v4360 = vunpack.c.l.b16 %v4319
    %v4361 = vunpack.c.h.b16 %v4319
    %v4362 = vunpack.c.l.b16 %v4320
    %v4363 = vunpack.c.h.b16 %v4320
    %v4364 = vunpack.c.l.b16 %v4321
    %v4365 = vunpack.c.h.b16 %v4321
    %v4366 = vunpack.c.l.b16 %v4322
    %v4367 = vunpack.c.h.b16 %v4322
    %v4368 = vunpack.c.l.b16 %v4323
    %v4369 = vunpack.c.h.b16 %v4323
    %v4370 = vunpack.c.l.b16 %v4324
    %v4371 = vunpack.c.h.b16 %v4324
    %v4372 = vunpack.c.l.b16 %v4325
    %v4373 = vunpack.c.h.b16 %v4325
    %v4374 = vpack.c.b16 %v4344, %v4342
    %v4375 = vpack.c.b16 %v4345, %v4343
    %v4376 = vpack.c.b16 %v4348, %v4346
    %v4377 = vpack.c.b16 %v4349, %v4347
    %v4378 = vpack.c.b16 %v4352, %v4350
    %v4379 = vpack.c.b16 %v4353, %v4351
    %v4380 = vpack.c.b16 %v4356, %v4354
    %v4381 = vpack.c.b16 %v4357, %v4355
    %v4382 = vpack.c.b16 %v4360, %v4358
    %v4383 = vpack.c.b16 %v4361, %v4359
    %v4384 = vpack.c.b16 %v4364, %v4362
    %v4385 = vpack.c.b16 %v4365, %v4363
    %v4386 = vpack.c.b16 %v4368, %v4366
    %v4387 = vpack.c.b16 %v4369, %v4367
    %v4388 = vpack.c.b16 %v4372, %v4370
    %v4389 = vpack.c.b16 %v4373, %v4371
    %4406 = vmatprep.subr.bf16.mxu0 %v4389
    %4407 = vmatpush1.bf16.msra.mxu0 %v4388
    %4408 = vmatprep.subr.bf16.mxu0 %v4387
    %4409 = vmatpush1.bf16.msra.mxu0 %v4386
    %4410 = vmatprep.subr.bf16.mxu0 %v4385
    %4411 = vmatpush1.bf16.msra.mxu0 %v4384
    %4412 = vmatprep.subr.bf16.mxu0 %v4383
    %4413 = vmatpush1.bf16.msra.mxu0 %v4382
    %4414 = vmatprep.subr.bf16.mxu0 %v4381
    %4415 = vmatpush1.bf16.msra.mxu0 %v4380
    %4416 = vmatprep.subr.bf16.mxu0 %v4379
    %4417 = vmatpush1.bf16.msra.mxu0 %v4378
    %4418 = vmatprep.subr.bf16.mxu0 %v4377
    %4419 = vmatpush1.bf16.msra.mxu0 %v4376
    %4420 = vmatprep.subr.bf16.mxu0 %v4375
    %4421 = vmatpush1.bf16.msra.mxu0 %v4374
    %4422 = vmatprep.subr.bf16.mxu0 0
    %4423 = vmatpush2.bf16.msra.mxu0 0
    %4424 = vmatprep.subr.bf16.mxu0 0
    %4425 = vmatpush2.bf16.msra.mxu0 0
    %4426 = vmatprep.subr.bf16.mxu0 0
    %4427 = vmatpush2.bf16.msra.mxu0 0
    %4428 = vmatprep.subr.bf16.mxu0 0
    %4429 = vmatpush2.bf16.msra.mxu0 0
    %4430 = vmatprep.subr.bf16.mxu0 0
    %4431 = vmatpush2.bf16.msra.mxu0 0
    %4432 = vmatprep.subr.bf16.mxu0 0
    %4433 = vmatpush2.bf16.msra.mxu0 0
    %4434 = vmatprep.subr.bf16.mxu0 0
    %4435 = vmatpush2.bf16.msra.mxu0 0
    %4436 = vmatprep.subr.bf16.mxu0 0
    %4437 = vmatpush2.bf16.msra.mxu0 0
    %4438 = vmatprep.mubr.bf16.mxu0 0
    %4439 = vmatmul.mubr.bf16.gmra.mxu0 %v4309
    %v4440 = vpop.f32.mrf.mxu0
    %v4441 = vadd.f32 0.0, %v4440
    %v4442 = vpop.f32.mrf.mxu0
    %v4443 = vadd.f32 0.0, %v4442
    %v4444 = vpop.f32.mrf.mxu0
    %v4445 = vpop.f32.mrf.mxu0
    %4446 = vdwg.mxu0
    %v4447 = vld [vmem:[%s71] sm:$0xff]
    %v4448 = vld [vmem:[%s73] sm:$0xff]
    %vm4449 = vcmask 31744
    %v4451 = vsel %vm4449, %v4448, 0
    %v4454 = vsel %vm3796, %v4443, 0
    %4456 = vmatprep.subr.mxu0 0.0
    %4457 = vmatpush1.msra.mxu0 0.0
    %4458 = vmatprep.subr.mxu0 0.0
    %4459 = vmatpush1.msra.mxu0 0.0
    %4460 = vmatprep.subr.mxu0 0.0
    %4461 = vmatpush1.msra.mxu0 0.0
    %4462 = vmatprep.subr.mxu0 0.0
    %4463 = vmatpush1.msra.mxu0 0.0
    %4464 = vmatprep.subr.mxu0 0.0
    %4465 = vmatpush1.msra.mxu0 0.0
    %4466 = vmatprep.subr.mxu0 0.0
    %4467 = vmatpush1.msra.mxu0 0.0
    %4468 = vmatprep.subr.mxu0 0.0
    %4469 = vmatpush1.msra.mxu0 0.0
    %4470 = vmatprep.subr.mxu0 0.0
    %4471 = vmatpush1.msra.mxu0 0.0
    %4472 = vmatprep.subr.mxu0 0.0
    %4473 = vmatpush1.msra.mxu0 0.0
    %4474 = vmatprep.subr.mxu0 0.0
    %4475 = vmatpush1.msra.mxu0 0.0
    %4476 = vmatprep.subr.mxu0 0.0
    %4477 = vmatpush1.msra.mxu0 0.0
    %4478 = vmatprep.subr.mxu0 0.0
    %4479 = vmatpush1.msra.mxu0 0.0
    %4480 = vmatprep.subr.mxu0 0.0
    %4481 = vmatpush1.msra.mxu0 0.0
    %4482 = vmatprep.subr.mxu0 0.0
    %4483 = vmatpush1.msra.mxu0 0.0
    %4484 = vmatprep.subr.mxu0 0.0
    %4485 = vmatpush1.msra.mxu0 0.0
    %4486 = vmatprep.subr.mxu0 0.0
    %4487 = vmatpush1.msra.mxu0 %v4454
    %4488 = vmatprep.subr.mxu0 0.0
    %4489 = vmatpush2.msra.mxu0 0.0
    %4490 = vmatprep.subr.mxu0 0.0
    %4491 = vmatpush2.msra.mxu0 0.0
    %4492 = vmatprep.subr.mxu0 0.0
    %4493 = vmatpush2.msra.mxu0 0.0
    %4494 = vmatprep.subr.mxu0 0.0
    %4495 = vmatpush2.msra.mxu0 0.0
    %4496 = vmatprep.subr.mxu0 0.0
    %4497 = vmatpush2.msra.mxu0 0.0
    %4498 = vmatprep.subr.mxu0 0.0
    %4499 = vmatpush2.msra.mxu0 0.0
    %4500 = vmatprep.subr.mxu0 0.0
    %4501 = vmatpush2.msra.mxu0 0.0
    %4502 = vmatprep.subr.mxu0 0.0
    %4503 = vmatpush2.msra.mxu0 0.0
    %4504 = vmatprep.subr.mxu0 0.0
    %4505 = vmatpush2.msra.mxu0 0.0
    %4506 = vmatprep.subr.mxu0 0.0
    %4507 = vmatpush2.msra.mxu0 0.0
    %4508 = vmatprep.subr.mxu0 0.0
    %4509 = vmatpush2.msra.mxu0 0.0
    %4510 = vmatprep.subr.mxu0 0.0
    %4511 = vmatpush2.msra.mxu0 0.0
    %4512 = vmatprep.subr.mxu0 0.0
    %4513 = vmatpush2.msra.mxu0 0.0
    %4514 = vmatprep.subr.mxu0 0.0
    %4515 = vmatpush2.msra.mxu0 0.0
    %4516 = vmatprep.subr.mxu0 0.0
    %4517 = vmatpush2.msra.mxu0 0.0
    %4518 = vmatprep.subr.mxu0 0.0
    %4519 = vmatpush2.msra.mxu0 0.0
    %4520 = vmatprep.mubr.f32.mxu0 0.0
    %4521 = vmatmul.mubr.f32.gmra.mxu0 %v4451
    %v4522 = vpop.f32.mrf.mxu0
    %v4523 = vadd.f32 0.0, %v4522
    %v4524 = vpop.f32.mrf.mxu0
    %4525 = vdwg.mxu0
    %v4527 = vsel %vm4449, %v4447, 0
    %v4530 = vsel %vm3796, %v4441, 0
    %4532 = vmatprep.subr.mxu0 0.0
    %4533 = vmatpush1.msra.mxu0 0.0
    %4534 = vmatprep.subr.mxu0 0.0
    %4535 = vmatpush1.msra.mxu0 0.0
    %4536 = vmatprep.subr.mxu0 0.0
    %4537 = vmatpush1.msra.mxu0 0.0
    %4538 = vmatprep.subr.mxu0 0.0
    %4539 = vmatpush1.msra.mxu0 0.0
    %4540 = vmatprep.subr.mxu0 0.0
    %4541 = vmatpush1.msra.mxu0 0.0
    %4542 = vmatprep.subr.mxu0 0.0
    %4543 = vmatpush1.msra.mxu0 0.0
    %4544 = vmatprep.subr.mxu0 0.0
    %4545 = vmatpush1.msra.mxu0 0.0
    %4546 = vmatprep.subr.mxu0 0.0
    %4547 = vmatpush1.msra.mxu0 0.0
    %4548 = vmatprep.subr.mxu0 0.0
    %4549 = vmatpush1.msra.mxu0 0.0
    %4550 = vmatprep.subr.mxu0 0.0
    %4551 = vmatpush1.msra.mxu0 0.0
    %4552 = vmatprep.subr.mxu0 0.0
    %4553 = vmatpush1.msra.mxu0 0.0
    %4554 = vmatprep.subr.mxu0 0.0
    %4555 = vmatpush1.msra.mxu0 0.0
    %4556 = vmatprep.subr.mxu0 0.0
    %4557 = vmatpush1.msra.mxu0 0.0
    %4558 = vmatprep.subr.mxu0 0.0
    %4559 = vmatpush1.msra.mxu0 0.0
    %4560 = vmatprep.subr.mxu0 0.0
    %4561 = vmatpush1.msra.mxu0 0.0
    %4562 = vmatprep.subr.mxu0 0.0
    %4563 = vmatpush1.msra.mxu0 %v4530
    %4564 = vmatprep.subr.mxu0 0.0
    %4565 = vmatpush2.msra.mxu0 0.0
    %4566 = vmatprep.subr.mxu0 0.0
    %4567 = vmatpush2.msra.mxu0 0.0
    %4568 = vmatprep.subr.mxu0 0.0
    %4569 = vmatpush2.msra.mxu0 0.0
    %4570 = vmatprep.subr.mxu0 0.0
    %4571 = vmatpush2.msra.mxu0 0.0
    %4572 = vmatprep.subr.mxu0 0.0
    %4573 = vmatpush2.msra.mxu0 0.0
    %4574 = vmatprep.subr.mxu0 0.0
    %4575 = vmatpush2.msra.mxu0 0.0
    %4576 = vmatprep.subr.mxu0 0.0
    %4577 = vmatpush2.msra.mxu0 0.0
    %4578 = vmatprep.subr.mxu0 0.0
    %4579 = vmatpush2.msra.mxu0 0.0
    %4580 = vmatprep.subr.mxu0 0.0
    %4581 = vmatpush2.msra.mxu0 0.0
    %4582 = vmatprep.subr.mxu0 0.0
    %4583 = vmatpush2.msra.mxu0 0.0
    %4584 = vmatprep.subr.mxu0 0.0
    %4585 = vmatpush2.msra.mxu0 0.0
    %4586 = vmatprep.subr.mxu0 0.0
    %4587 = vmatpush2.msra.mxu0 0.0
    %4588 = vmatprep.subr.mxu0 0.0
    %4589 = vmatpush2.msra.mxu0 0.0
    %4590 = vmatprep.subr.mxu0 0.0
    %4591 = vmatpush2.msra.mxu0 0.0
    %4592 = vmatprep.subr.mxu0 0.0
    %4593 = vmatpush2.msra.mxu0 0.0
    %4594 = vmatprep.subr.mxu0 0.0
    %4595 = vmatpush2.msra.mxu0 0.0
    %4596 = vmatprep.mubr.f32.mxu0 0.0
    %4597 = vmatmul.mubr.f32.gmra.mxu0 %v4527
    %v4598 = vpop.f32.mrf.mxu0
    %v4599 = vadd.f32 %v4523, %v4598
    %v4600 = vpop.f32.mrf.mxu0
    %4601 = vdwg.mxu0
    %v4602 = vld [vmem:[#allocation28] sm:$0x1]
    %v4604 = vlaneseq
    %v4605 = vshrl.u32 %v4604, 7
    %v4606 = vsub.s32 0, %v4605
    %v4607 = vrot.slane %v4602, %v4606
    %v4609 = vadd.f32 %v4599, %v4607
    %v4610 = vpack.c.bf16 %v4609, %v4609
    %v4611 = vunpack.c.l.bf16 %v3459
    %v4613 = vrot.slane %v3459, 4
    %v4615 = vunpack.c.l.bf16 %v4613
    %v4616 = vsub.f32 %v4611, %v4615
    %v4617 = vand.u32 2147483647, %v4616
    %v4618 = vpack.c.bf16 %v4617, %v4617
    %v4619 = vld [vmem:[%s85] sm:$0xf]
    %v4620 = vld [vmem:[%s85 + $0x4] sm:$0xf]
    %v4623 = vunpack.c.l.b16 %v4619
    %v4624 = vunpack.c.l.b16 %v4620
    %v4625 = vpack.c.b16 %v4624, %v4623
    %v4627 = vsel %vm3792, %v4625, 0
    %v4630 = vsel %vm3796, %v4618, 0
    %4632 = vmatprep.subr.bf16.mxu0 0
    %4633 = vmatpush1.bf16.msra.mxu0 0
    %4634 = vmatprep.subr.bf16.mxu0 0
    %4635 = vmatpush1.bf16.msra.mxu0 0
    %4636 = vmatprep.subr.bf16.mxu0 0
    %4637 = vmatpush1.bf16.msra.mxu0 0
    %4638 = vmatprep.subr.bf16.mxu0 0
    %4639 = vmatpush1.bf16.msra.mxu0 0
    %4640 = vmatprep.subr.bf16.mxu0 0
    %4641 = vmatpush1.bf16.msra.mxu0 0
    %4642 = vmatprep.subr.bf16.mxu0 0
    %4643 = vmatpush1.bf16.msra.mxu0 0
    %4644 = vmatprep.subr.bf16.mxu0 0
    %4645 = vmatpush1.bf16.msra.mxu0 0
    %4646 = vmatprep.subr.bf16.mxu0 0
    %4647 = vmatpush1.bf16.msra.mxu0 %v4630
    %4648 = vmatprep.subr.bf16.mxu0 0
    %4649 = vmatpush2.bf16.msra.mxu0 0
    %4650 = vmatprep.subr.bf16.mxu0 0
    %4651 = vmatpush2.bf16.msra.mxu0 0
    %4652 = vmatprep.subr.bf16.mxu0 0
    %4653 = vmatpush2.bf16.msra.mxu0 0
    %4654 = vmatprep.subr.bf16.mxu0 0
    %4655 = vmatpush2.bf16.msra.mxu0 0
    %4656 = vmatprep.subr.bf16.mxu0 0
    %4657 = vmatpush2.bf16.msra.mxu0 0
    %4658 = vmatprep.subr.bf16.mxu0 0
    %4659 = vmatpush2.bf16.msra.mxu0 0
    %4660 = vmatprep.subr.bf16.mxu0 0
    %4661 = vmatpush2.bf16.msra.mxu0 0
    %4662 = vmatprep.subr.bf16.mxu0 0
    %4663 = vmatpush2.bf16.msra.mxu0 0
    %4664 = vmatprep.mubr.bf16.mxu0 0
    %4665 = vmatmul.mubr.bf16.gmra.mxu0 %v4627
    %v4666 = vpop.f32.mrf.mxu0
    %v4667 = vadd.f32 0.0, %v4666
    %v4668 = vpop.f32.mrf.mxu0
    %v4669 = vpop.f32.mrf.mxu0
    %v4670 = vadd.f32 0.0, %v4669
    %v4671 = vpop.f32.mrf.mxu0
    %4672 = vdwg.mxu0
    %v4673 = vpack.c.bf16 %v4670, %v4667
    %v4675 = vrot.slane %v4673, 4
    %v4677 = vld [vmem:[%s75] sm:$0xf]
    %v4678 = vld [vmem:[%s75 + $0x4] sm:$0xf]
    %v4679 = vld [vmem:[%s75 + $0x8] sm:$0xf]
    %v4680 = vld [vmem:[%s75 + $0xc] sm:$0xf]
    %v4681 = vld [vmem:[%s75 + $0x10] sm:$0xf]
    %v4682 = vld [vmem:[%s75 + $0x14] sm:$0xf]
    %v4683 = vld [vmem:[%s75 + $0x18] sm:$0xf]
    %v4684 = vld [vmem:[%s75 + $0x1c] sm:$0xf]
    %v4685 = vld [vmem:[%s75 + $0x20] sm:$0xf]
    %v4686 = vld [vmem:[%s75 + $0x24] sm:$0xf]
    %v4687 = vld [vmem:[%s75 + $0x28] sm:$0xf]
    %v4688 = vld [vmem:[%s75 + $0x2c] sm:$0xf]
    %v4689 = vld [vmem:[%s75 + $0x30] sm:$0xf]
    %v4690 = vld [vmem:[%s75 + $0x34] sm:$0xf]
    %v4691 = vld [vmem:[%s75 + $0x38] sm:$0xf]
    %v4692 = vld [vmem:[%s75 + $0x3c] sm:$0xf]
    %v4693 = vld [vmem:[%s75 + $0x40] sm:$0xf]
    %v4694 = vld [vmem:[%s75 + $0x44] sm:$0xf]
    %v4695 = vld [vmem:[%s75 + $0x48] sm:$0xf]
    %v4696 = vld [vmem:[%s75 + $0x4c] sm:$0xf]
    %v4697 = vld [vmem:[%s75 + $0x50] sm:$0xf]
    %v4698 = vld [vmem:[%s75 + $0x54] sm:$0xf]
    %v4699 = vld [vmem:[%s75 + $0x58] sm:$0xf]
    %v4700 = vld [vmem:[%s75 + $0x5c] sm:$0xf]
    %v4701 = vld [vmem:[%s75 + $0x60] sm:$0xf]
    %v4702 = vld [vmem:[%s75 + $0x64] sm:$0xf]
    %v4703 = vld [vmem:[%s75 + $0x68] sm:$0xf]
    %v4704 = vld [vmem:[%s75 + $0x6c] sm:$0xf]
    %v4705 = vld [vmem:[%s75 + $0x70] sm:$0xf]
    %v4706 = vld [vmem:[%s75 + $0x74] sm:$0xf]
    %v4707 = vld [vmem:[%s75 + $0x78] sm:$0xf]
    %v4708 = vld [vmem:[%s75 + $0x7c] sm:$0xf]
    %v4709 = vld [vmem:[%s75 + $0x80] sm:$0xf]
    %v4710 = vld [vmem:[%s75 + $0x84] sm:$0xf]
    %v4711 = vld [vmem:[%s75 + $0x88] sm:$0xf]
    %v4712 = vld [vmem:[%s75 + $0x8c] sm:$0xf]
    %v4713 = vld [vmem:[%s75 + $0x90] sm:$0xf]
    %v4714 = vld [vmem:[%s75 + $0x94] sm:$0xf]
    %v4715 = vld [vmem:[%s75 + $0x98] sm:$0xf]
    %v4716 = vld [vmem:[%s75 + $0x9c] sm:$0xf]
    %v4717 = vld [vmem:[%s75 + $0xa0] sm:$0xf]
    %v4718 = vld [vmem:[%s75 + $0xa4] sm:$0xf]
    %v4719 = vld [vmem:[%s75 + $0xa8] sm:$0xf]
    %v4720 = vld [vmem:[%s75 + $0xac] sm:$0xf]
    %v4721 = vld [vmem:[%s75 + $0xb0] sm:$0xf]
    %v4722 = vld [vmem:[%s75 + $0xb4] sm:$0xf]
    %v4723 = vld [vmem:[%s75 + $0xb8] sm:$0xf]
    %v4724 = vld [vmem:[%s75 + $0xbc] sm:$0xf]
    %v4726 = vsel %vm3796, %v4610, 0
    %4728 = vmatprep.subr.bf16.mxu0 0
    %4729 = vmatpush1.bf16.msra.mxu0 0
    %4730 = vmatprep.subr.bf16.mxu0 0
    %4731 = vmatpush1.bf16.msra.mxu0 0
    %4732 = vmatprep.subr.bf16.mxu0 0
    %4733 = vmatpush1.bf16.msra.mxu0 0
    %4734 = vmatprep.subr.bf16.mxu0 0
    %4735 = vmatpush1.bf16.msra.mxu0 0
    %4736 = vmatprep.subr.bf16.mxu0 0
    %4737 = vmatpush1.bf16.msra.mxu0 0
    %4738 = vmatprep.subr.bf16.mxu0 0
    %4739 = vmatpush1.bf16.msra.mxu0 0
    %4740 = vmatprep.subr.bf16.mxu0 0
    %4741 = vmatpush1.bf16.msra.mxu0 0
    %4742 = vmatprep.subr.bf16.mxu0 0
    %4743 = vmatpush1.bf16.msra.mxu0 %v4726
    %4744 = vmatprep.subr.bf16.mxu0 0
    %4745 = vmatpush2.bf16.msra.mxu0 0
    %4746 = vmatprep.subr.bf16.mxu0 0
    %4747 = vmatpush2.bf16.msra.mxu0 0
    %4748 = vmatprep.subr.bf16.mxu0 0
    %4749 = vmatpush2.bf16.msra.mxu0 0
    %4750 = vmatprep.subr.bf16.mxu0 0
    %4751 = vmatpush2.bf16.msra.mxu0 0
    %4752 = vmatprep.subr.bf16.mxu0 0
    %4753 = vmatpush2.bf16.msra.mxu0 0
    %4754 = vmatprep.subr.bf16.mxu0 0
    %4755 = vmatpush2.bf16.msra.mxu0 0
    %4756 = vmatprep.subr.bf16.mxu0 0
    %4757 = vmatpush2.bf16.msra.mxu0 0
    %4758 = vmatprep.subr.bf16.mxu0 0
    %4759 = vmatpush2.bf16.msra.mxu0 0
    %4760 = vmatprep.mubr.bf16.mxu0 0
    %4761 = vmatmul.mubr.bf16.gmra.mxu0 %v4627
    %v4762 = vpop.f32.mrf.mxu0
    %v4763 = vadd.f32 0.0, %v4762
    %v4764 = vpop.f32.mrf.mxu0
    %v4765 = vpop.f32.mrf.mxu0
    %v4766 = vadd.f32 0.0, %v4765
    %v4767 = vpop.f32.mrf.mxu0
    %4768 = vdwg.mxu0
    %v4769 = vpack.c.bf16 %v4766, %v4763
    %v4771 = vrot.slane %v4769, 4
    %v4773 = vld [vmem:[%s77] sm:$0xf]
    %v4774 = vld [vmem:[%s77 + $0x4] sm:$0xf]
    %v4775 = vld [vmem:[%s77 + $0x8] sm:$0xf]
    %v4776 = vld [vmem:[%s77 + $0xc] sm:$0xf]
    %v4777 = vld [vmem:[%s77 + $0x10] sm:$0xf]
    %v4778 = vld [vmem:[%s77 + $0x14] sm:$0xf]
    %v4779 = vld [vmem:[%s77 + $0x18] sm:$0xf]
    %v4780 = vld [vmem:[%s77 + $0x1c] sm:$0xf]
    %v4781 = vld [vmem:[%s77 + $0x20] sm:$0xf]
    %v4782 = vld [vmem:[%s77 + $0x24] sm:$0xf]
    %v4783 = vld [vmem:[%s77 + $0x28] sm:$0xf]
    %v4784 = vld [vmem:[%s77 + $0x2c] sm:$0xf]
    %v4785 = vld [vmem:[%s77 + $0x30] sm:$0xf]
    %v4786 = vld [vmem:[%s77 + $0x34] sm:$0xf]
    %v4787 = vld [vmem:[%s77 + $0x38] sm:$0xf]
    %v4788 = vld [vmem:[%s77 + $0x3c] sm:$0xf]
    %v4789 = vld [vmem:[%s77 + $0x40] sm:$0xf]
    %v4790 = vld [vmem:[%s77 + $0x44] sm:$0xf]
    %v4791 = vld [vmem:[%s77 + $0x48] sm:$0xf]
    %v4792 = vld [vmem:[%s77 + $0x4c] sm:$0xf]
    %v4793 = vld [vmem:[%s77 + $0x50] sm:$0xf]
    %v4794 = vld [vmem:[%s77 + $0x54] sm:$0xf]
    %v4795 = vld [vmem:[%s77 + $0x58] sm:$0xf]
    %v4796 = vld [vmem:[%s77 + $0x5c] sm:$0xf]
    %v4797 = vld [vmem:[%s77 + $0x60] sm:$0xf]
    %v4798 = vld [vmem:[%s77 + $0x64] sm:$0xf]
    %v4799 = vld [vmem:[%s77 + $0x68] sm:$0xf]
    %v4800 = vld [vmem:[%s77 + $0x6c] sm:$0xf]
    %v4801 = vld [vmem:[%s77 + $0x70] sm:$0xf]
    %v4802 = vld [vmem:[%s77 + $0x74] sm:$0xf]
    %v4803 = vld [vmem:[%s77 + $0x78] sm:$0xf]
    %v4804 = vld [vmem:[%s77 + $0x7c] sm:$0xf]
    %v4805 = vld [vmem:[%s77 + $0x80] sm:$0xf]
    %v4806 = vld [vmem:[%s77 + $0x84] sm:$0xf]
    %v4807 = vld [vmem:[%s77 + $0x88] sm:$0xf]
    %v4808 = vld [vmem:[%s77 + $0x8c] sm:$0xf]
    %v4809 = vld [vmem:[%s77 + $0x90] sm:$0xf]
    %v4810 = vld [vmem:[%s77 + $0x94] sm:$0xf]
    %v4811 = vld [vmem:[%s77 + $0x98] sm:$0xf]
    %v4812 = vld [vmem:[%s77 + $0x9c] sm:$0xf]
    %v4813 = vld [vmem:[%s77 + $0xa0] sm:$0xf]
    %v4814 = vld [vmem:[%s77 + $0xa4] sm:$0xf]
    %v4815 = vld [vmem:[%s77 + $0xa8] sm:$0xf]
    %v4816 = vld [vmem:[%s77 + $0xac] sm:$0xf]
    %v4817 = vld [vmem:[%s77 + $0xb0] sm:$0xf]
    %v4818 = vld [vmem:[%s77 + $0xb4] sm:$0xf]
    %v4819 = vld [vmem:[%s77 + $0xb8] sm:$0xf]
    %v4820 = vld [vmem:[%s77 + $0xbc] sm:$0xf]
    %v4869 = vunpack.c.l.b16 %v4773
    %v4870 = vunpack.c.l.b16 %v4774
    %v4871 = vunpack.c.l.b16 %v4775
    %v4872 = vunpack.c.l.b16 %v4776
    %v4873 = vunpack.c.l.b16 %v4777
    %v4874 = vunpack.c.l.b16 %v4778
    %v4875 = vunpack.c.l.b16 %v4779
    %v4876 = vunpack.c.l.b16 %v4780
    %v4877 = vunpack.c.l.b16 %v4781
    %v4878 = vunpack.c.l.b16 %v4782
    %v4879 = vunpack.c.l.b16 %v4783
    %v4880 = vunpack.c.l.b16 %v4784
    %v4881 = vunpack.c.l.b16 %v4785
    %v4882 = vunpack.c.l.b16 %v4786
    %v4883 = vunpack.c.l.b16 %v4787
    %v4884 = vunpack.c.l.b16 %v4788
    %v4885 = vunpack.c.l.b16 %v4789
    %v4886 = vunpack.c.l.b16 %v4790
    %v4887 = vunpack.c.l.b16 %v4791
    %v4888 = vunpack.c.l.b16 %v4792
    %v4889 = vunpack.c.l.b16 %v4793
    %v4890 = vunpack.c.l.b16 %v4794
    %v4891 = vunpack.c.l.b16 %v4795
    %v4892 = vunpack.c.l.b16 %v4796
    %v4893 = vunpack.c.l.b16 %v4797
    %v4894 = vunpack.c.l.b16 %v4798
    %v4895 = vunpack.c.l.b16 %v4799
    %v4896 = vunpack.c.l.b16 %v4800
    %v4897 = vunpack.c.l.b16 %v4801
    %v4898 = vunpack.c.l.b16 %v4802
    %v4899 = vunpack.c.l.b16 %v4803
    %v4900 = vunpack.c.l.b16 %v4804
    %v4901 = vunpack.c.l.b16 %v4805
    %v4902 = vunpack.c.l.b16 %v4806
    %v4903 = vunpack.c.l.b16 %v4807
    %v4904 = vunpack.c.l.b16 %v4808
    %v4905 = vunpack.c.l.b16 %v4809
    %v4906 = vunpack.c.l.b16 %v4810
    %v4907 = vunpack.c.l.b16 %v4811
    %v4908 = vunpack.c.l.b16 %v4812
    %v4909 = vunpack.c.l.b16 %v4813
    %v4910 = vunpack.c.l.b16 %v4814
    %v4911 = vunpack.c.l.b16 %v4815
    %v4912 = vunpack.c.l.b16 %v4816
    %v4913 = vunpack.c.l.b16 %v4817
    %v4914 = vunpack.c.l.b16 %v4818
    %v4915 = vunpack.c.l.b16 %v4819
    %v4916 = vunpack.c.l.b16 %v4820
    %v4917 = vpack.c.b16 %v4870, %v4869
    %v4918 = vpack.c.b16 %v4872, %v4871
    %v4919 = vpack.c.b16 %v4874, %v4873
    %v4920 = vpack.c.b16 %v4876, %v4875
    %v4921 = vpack.c.b16 %v4878, %v4877
    %v4922 = vpack.c.b16 %v4880, %v4879
    %v4923 = vpack.c.b16 %v4882, %v4881
    %v4924 = vpack.c.b16 %v4884, %v4883
    %v4925 = vpack.c.b16 %v4886, %v4885
    %v4926 = vpack.c.b16 %v4888, %v4887
    %v4927 = vpack.c.b16 %v4890, %v4889
    %v4928 = vpack.c.b16 %v4892, %v4891
    %v4929 = vpack.c.b16 %v4894, %v4893
    %v4930 = vpack.c.b16 %v4896, %v4895
    %v4931 = vpack.c.b16 %v4898, %v4897
    %v4932 = vpack.c.b16 %v4900, %v4899
    %v4933 = vpack.c.b16 %v4902, %v4901
    %v4934 = vpack.c.b16 %v4904, %v4903
    %v4935 = vpack.c.b16 %v4906, %v4905
    %v4936 = vpack.c.b16 %v4908, %v4907
    %v4937 = vpack.c.b16 %v4910, %v4909
    %v4938 = vpack.c.b16 %v4912, %v4911
    %v4939 = vpack.c.b16 %v4914, %v4913
    %v4940 = vpack.c.b16 %v4916, %v4915
    %4965 = vmatprep.subr.bf16.mxu0 0
    %4966 = vmatpush1.bf16.msra.mxu0 %v4924
    %4967 = vmatprep.subr.bf16.mxu0 0
    %4968 = vmatpush1.bf16.msra.mxu0 %v4923
    %4969 = vmatprep.subr.bf16.mxu0 0
    %4970 = vmatpush1.bf16.msra.mxu0 %v4922
    %4971 = vmatprep.subr.bf16.mxu0 0
    %4972 = vmatpush1.bf16.msra.mxu0 %v4921
    %4973 = vmatprep.subr.bf16.mxu0 0
    %4974 = vmatpush1.bf16.msra.mxu0 %v4920
    %4975 = vmatprep.subr.bf16.mxu0 0
    %4976 = vmatpush1.bf16.msra.mxu0 %v4919
    %4977 = vmatprep.subr.bf16.mxu0 0
    %4978 = vmatpush1.bf16.msra.mxu0 %v4918
    %4979 = vmatprep.subr.bf16.mxu0 0
    %4980 = vmatpush1.bf16.msra.mxu0 %v4917
    %4981 = vmatprep.subr.bf16.mxu0 0
    %4982 = vmatpush2.bf16.msra.mxu0 %v4932
    %4983 = vmatprep.subr.bf16.mxu0 0
    %4984 = vmatpush2.bf16.msra.mxu0 %v4931
    %4985 = vmatprep.subr.bf16.mxu0 0
    %4986 = vmatpush2.bf16.msra.mxu0 %v4930
    %4987 = vmatprep.subr.bf16.mxu0 0
    %4988 = vmatpush2.bf16.msra.mxu0 %v4929
    %4989 = vmatprep.subr.bf16.mxu0 0
    %4990 = vmatpush2.bf16.msra.mxu0 %v4928
    %4991 = vmatprep.subr.bf16.mxu0 0
    %4992 = vmatpush2.bf16.msra.mxu0 %v4927
    %4993 = vmatprep.subr.bf16.mxu0 0
    %4994 = vmatpush2.bf16.msra.mxu0 %v4926
    %4995 = vmatprep.subr.bf16.mxu0 0
    %4996 = vmatpush2.bf16.msra.mxu0 %v4925
    %4997 = vmatprep.mubr.bf16.mxu0 %v4610
    %4998 = vmatmul.mubr.bf16.gmra.mxu0 %v4769
    %v4999 = vpop.f32.mrf.mxu0
    %v5000 = vadd.f32 0.0, %v4999
    %v5001 = vpop.f32.mrf.mxu0
    %v5002 = vpop.f32.mrf.mxu0
    %v5003 = vpop.f32.mrf.mxu0
    %5004 = vdwg.mxu0
    %5005 = vmatprep.subr.bf16.mxu0 0
    %5006 = vmatpush1.bf16.msra.mxu0 %v4940
    %5007 = vmatprep.subr.bf16.mxu0 0
    %5008 = vmatpush1.bf16.msra.mxu0 %v4939
    %5009 = vmatprep.subr.bf16.mxu0 0
    %5010 = vmatpush1.bf16.msra.mxu0 %v4938
    %5011 = vmatprep.subr.bf16.mxu0 0
    %5012 = vmatpush1.bf16.msra.mxu0 %v4937
    %5013 = vmatprep.subr.bf16.mxu0 0
    %5014 = vmatpush1.bf16.msra.mxu0 %v4936
    %5015 = vmatprep.subr.bf16.mxu0 0
    %5016 = vmatpush1.bf16.msra.mxu0 %v4935
    %5017 = vmatprep.subr.bf16.mxu0 0
    %5018 = vmatpush1.bf16.msra.mxu0 %v4934
    %5019 = vmatprep.subr.bf16.mxu0 0
    %5020 = vmatpush1.bf16.msra.mxu0 %v4933
    %5021 = vmatprep.subr.bf16.mxu0 0
    %5022 = vmatpush2.bf16.msra.mxu0 0
    %5023 = vmatprep.subr.bf16.mxu0 0
    %5024 = vmatpush2.bf16.msra.mxu0 0
    %5025 = vmatprep.subr.bf16.mxu0 0
    %5026 = vmatpush2.bf16.msra.mxu0 0
    %5027 = vmatprep.subr.bf16.mxu0 0
    %5028 = vmatpush2.bf16.msra.mxu0 0
    %5029 = vmatprep.subr.bf16.mxu0 0
    %5030 = vmatpush2.bf16.msra.mxu0 0
    %5031 = vmatprep.subr.bf16.mxu0 0
    %5032 = vmatpush2.bf16.msra.mxu0 0
    %5033 = vmatprep.subr.bf16.mxu0 0
    %5034 = vmatpush2.bf16.msra.mxu0 0
    %5035 = vmatprep.subr.bf16.mxu0 0
    %5036 = vmatpush2.bf16.msra.mxu0 0
    %5037 = vmatprep.mubr.bf16.mxu0 0
    %5038 = vmatmul.mubr.bf16.gmra.mxu0 %v4771
    %v5039 = vpop.f32.mrf.mxu0
    %v5040 = vadd.f32 %v5000, %v5039
    %v5041 = vpop.f32.mrf.mxu0
    %v5042 = vpop.f32.mrf.mxu0
    %v5043 = vpop.f32.mrf.mxu0
    %5044 = vdwg.mxu0
    %v5093 = vunpack.c.l.b16 %v4677
    %v5094 = vunpack.c.l.b16 %v4678
    %v5095 = vunpack.c.l.b16 %v4679
    %v5096 = vunpack.c.l.b16 %v4680
    %v5097 = vunpack.c.l.b16 %v4681
    %v5098 = vunpack.c.l.b16 %v4682
    %v5099 = vunpack.c.l.b16 %v4683
    %v5100 = vunpack.c.l.b16 %v4684
    %v5101 = vunpack.c.l.b16 %v4685
    %v5102 = vunpack.c.l.b16 %v4686
    %v5103 = vunpack.c.l.b16 %v4687
    %v5104 = vunpack.c.l.b16 %v4688
    %v5105 = vunpack.c.l.b16 %v4689
    %v5106 = vunpack.c.l.b16 %v4690
    %v5107 = vunpack.c.l.b16 %v4691
    %v5108 = vunpack.c.l.b16 %v4692
    %v5109 = vunpack.c.l.b16 %v4693
    %v5110 = vunpack.c.l.b16 %v4694
    %v5111 = vunpack.c.l.b16 %v4695
    %v5112 = vunpack.c.l.b16 %v4696
    %v5113 = vunpack.c.l.b16 %v4697
    %v5114 = vunpack.c.l.b16 %v4698
    %v5115 = vunpack.c.l.b16 %v4699
    %v5116 = vunpack.c.l.b16 %v4700
    %v5117 = vunpack.c.l.b16 %v4701
    %v5118 = vunpack.c.l.b16 %v4702
    %v5119 = vunpack.c.l.b16 %v4703
    %v5120 = vunpack.c.l.b16 %v4704
    %v5121 = vunpack.c.l.b16 %v4705
    %v5122 = vunpack.c.l.b16 %v4706
    %v5123 = vunpack.c.l.b16 %v4707
    %v5124 = vunpack.c.l.b16 %v4708
    %v5125 = vunpack.c.l.b16 %v4709
    %v5126 = vunpack.c.l.b16 %v4710
    %v5127 = vunpack.c.l.b16 %v4711
    %v5128 = vunpack.c.l.b16 %v4712
    %v5129 = vunpack.c.l.b16 %v4713
    %v5130 = vunpack.c.l.b16 %v4714
    %v5131 = vunpack.c.l.b16 %v4715
    %v5132 = vunpack.c.l.b16 %v4716
    %v5133 = vunpack.c.l.b16 %v4717
    %v5134 = vunpack.c.l.b16 %v4718
    %v5135 = vunpack.c.l.b16 %v4719
    %v5136 = vunpack.c.l.b16 %v4720
    %v5137 = vunpack.c.l.b16 %v4721
    %v5138 = vunpack.c.l.b16 %v4722
    %v5139 = vunpack.c.l.b16 %v4723
    %v5140 = vunpack.c.l.b16 %v4724
    %v5141 = vpack.c.b16 %v5094, %v5093
    %v5142 = vpack.c.b16 %v5096, %v5095
    %v5143 = vpack.c.b16 %v5098, %v5097
    %v5144 = vpack.c.b16 %v5100, %v5099
    %v5145 = vpack.c.b16 %v5102, %v5101
    %v5146 = vpack.c.b16 %v5104, %v5103
    %v5147 = vpack.c.b16 %v5106, %v5105
    %v5148 = vpack.c.b16 %v5108, %v5107
    %v5149 = vpack.c.b16 %v5110, %v5109
    %v5150 = vpack.c.b16 %v5112, %v5111
    %v5151 = vpack.c.b16 %v5114, %v5113
    %v5152 = vpack.c.b16 %v5116, %v5115
    %v5153 = vpack.c.b16 %v5118, %v5117
    %v5154 = vpack.c.b16 %v5120, %v5119
    %v5155 = vpack.c.b16 %v5122, %v5121
    %v5156 = vpack.c.b16 %v5124, %v5123
    %v5157 = vpack.c.b16 %v5126, %v5125
    %v5158 = vpack.c.b16 %v5128, %v5127
    %v5159 = vpack.c.b16 %v5130, %v5129
    %v5160 = vpack.c.b16 %v5132, %v5131
    %v5161 = vpack.c.b16 %v5134, %v5133
    %v5162 = vpack.c.b16 %v5136, %v5135
    %v5163 = vpack.c.b16 %v5138, %v5137
    %v5164 = vpack.c.b16 %v5140, %v5139
    %5189 = vmatprep.subr.bf16.mxu0 0
    %5190 = vmatpush1.bf16.msra.mxu0 %v5148
    %5191 = vmatprep.subr.bf16.mxu0 0
    %5192 = vmatpush1.bf16.msra.mxu0 %v5147
    %5193 = vmatprep.subr.bf16.mxu0 0
    %5194 = vmatpush1.bf16.msra.mxu0 %v5146
    %5195 = vmatprep.subr.bf16.mxu0 0
    %5196 = vmatpush1.bf16.msra.mxu0 %v5145
    %5197 = vmatprep.subr.bf16.mxu0 0
    %5198 = vmatpush1.bf16.msra.mxu0 %v5144
    %5199 = vmatprep.subr.bf16.mxu0 0
    %5200 = vmatpush1.bf16.msra.mxu0 %v5143
    %5201 = vmatprep.subr.bf16.mxu0 0
    %5202 = vmatpush1.bf16.msra.mxu0 %v5142
    %5203 = vmatprep.subr.bf16.mxu0 0
    %5204 = vmatpush1.bf16.msra.mxu0 %v5141
    %5205 = vmatprep.subr.bf16.mxu0 0
    %5206 = vmatpush2.bf16.msra.mxu0 %v5156
    %5207 = vmatprep.subr.bf16.mxu0 0
    %5208 = vmatpush2.bf16.msra.mxu0 %v5155
    %5209 = vmatprep.subr.bf16.mxu0 0
    %5210 = vmatpush2.bf16.msra.mxu0 %v5154
    %5211 = vmatprep.subr.bf16.mxu0 0
    %5212 = vmatpush2.bf16.msra.mxu0 %v5153
    %5213 = vmatprep.subr.bf16.mxu0 0
    %5214 = vmatpush2.bf16.msra.mxu0 %v5152
    %5215 = vmatprep.subr.bf16.mxu0 0
    %5216 = vmatpush2.bf16.msra.mxu0 %v5151
    %5217 = vmatprep.subr.bf16.mxu0 0
    %5218 = vmatpush2.bf16.msra.mxu0 %v5150
    %5219 = vmatprep.subr.bf16.mxu0 0
    %5220 = vmatpush2.bf16.msra.mxu0 %v5149
    %5221 = vmatprep.mubr.bf16.mxu0 %v4618
    %5222 = vmatmul.mubr.bf16.gmra.mxu0 %v4673
    %v5223 = vpop.f32.mrf.mxu0
    %v5224 = vadd.f32 %v5040, %v5223
    %v5225 = vpop.f32.mrf.mxu0
    %v5226 = vpop.f32.mrf.mxu0
    %v5227 = vpop.f32.mrf.mxu0
    %5228 = vdwg.mxu0
    %5229 = vmatprep.subr.bf16.mxu0 0
    %5230 = vmatpush1.bf16.msra.mxu0 %v5164
    %5231 = vmatprep.subr.bf16.mxu0 0
    %5232 = vmatpush1.bf16.msra.mxu0 %v5163
    %5233 = vmatprep.subr.bf16.mxu0 0
    %5234 = vmatpush1.bf16.msra.mxu0 %v5162
    %5235 = vmatprep.subr.bf16.mxu0 0
    %5236 = vmatpush1.bf16.msra.mxu0 %v5161
    %5237 = vmatprep.subr.bf16.mxu0 0
    %5238 = vmatpush1.bf16.msra.mxu0 %v5160
    %5239 = vmatprep.subr.bf16.mxu0 0
    %5240 = vmatpush1.bf16.msra.mxu0 %v5159
    %5241 = vmatprep.subr.bf16.mxu0 0
    %5242 = vmatpush1.bf16.msra.mxu0 %v5158
    %5243 = vmatprep.subr.bf16.mxu0 0
    %5244 = vmatpush1.bf16.msra.mxu0 %v5157
    %5245 = vmatprep.subr.bf16.mxu0 0
    %5246 = vmatpush2.bf16.msra.mxu0 0
    %5247 = vmatprep.subr.bf16.mxu0 0
    %5248 = vmatpush2.bf16.msra.mxu0 0
    %5249 = vmatprep.subr.bf16.mxu0 0
    %5250 = vmatpush2.bf16.msra.mxu0 0
    %5251 = vmatprep.subr.bf16.mxu0 0
    %5252 = vmatpush2.bf16.msra.mxu0 0
    %5253 = vmatprep.subr.bf16.mxu0 0
    %5254 = vmatpush2.bf16.msra.mxu0 0
    %5255 = vmatprep.subr.bf16.mxu0 0
    %5256 = vmatpush2.bf16.msra.mxu0 0
    %5257 = vmatprep.subr.bf16.mxu0 0
    %5258 = vmatpush2.bf16.msra.mxu0 0
    %5259 = vmatprep.subr.bf16.mxu0 0
    %5260 = vmatpush2.bf16.msra.mxu0 0
    %5261 = vmatprep.mubr.bf16.mxu0 0
    %5262 = vmatmul.mubr.bf16.gmra.mxu0 %v4675
    %v5263 = vpop.f32.mrf.mxu0
    %v5264 = vadd.f32 %v5224, %v5263
    %v5265 = vpop.f32.mrf.mxu0
    %v5266 = vpop.f32.mrf.mxu0
    %v5267 = vpop.f32.mrf.mxu0
    %5268 = vdwg.mxu0
    %v5269 = vld [vmem:[#allocation30] sm:$0x1]
    %v5271 = vlaneseq
    %v5272 = vshrl.u32 %v5271, 7
    %v5273 = vsub.s32 0, %v5272
    %v5274 = vrot.slane %v5269, %v5273
    %v5276 = vadd.f32 %v5264, %v5274
    %v5277 = vmax.f32 %v5276, 0.0
    %v5278 = vpack.c.bf16 %v5277, %v5277
    %v5279 = vld [vmem:[%s81] sm:$0xf]
    %v5280 = vld [vmem:[%s81 + $0x4] sm:$0xf]
    %v5281 = vld [vmem:[%s81 + $0x8] sm:$0xf]
    %v5282 = vld [vmem:[%s81 + $0xc] sm:$0xf]
    %v5283 = vld [vmem:[%s81 + $0x10] sm:$0xf]
    %v5284 = vld [vmem:[%s81 + $0x14] sm:$0xf]
    %v5285 = vld [vmem:[%s81 + $0x18] sm:$0xf]
    %v5286 = vld [vmem:[%s81 + $0x1c] sm:$0xf]
    %v5287 = vld [vmem:[%s81 + $0x20] sm:$0xf]
    %v5288 = vld [vmem:[%s81 + $0x24] sm:$0xf]
    %v5289 = vld [vmem:[%s81 + $0x28] sm:$0xf]
    %v5290 = vld [vmem:[%s81 + $0x2c] sm:$0xf]
    %v5291 = vld [vmem:[%s81 + $0x30] sm:$0xf]
    %v5292 = vld [vmem:[%s81 + $0x34] sm:$0xf]
    %v5293 = vld [vmem:[%s81 + $0x38] sm:$0xf]
    %v5294 = vld [vmem:[%s81 + $0x3c] sm:$0xf]
    %v5295 = vld [vmem:[%s81 + $0x40] sm:$0xf]
    %v5296 = vld [vmem:[%s81 + $0x44] sm:$0xf]
    %v5297 = vld [vmem:[%s81 + $0x48] sm:$0xf]
    %v5298 = vld [vmem:[%s81 + $0x4c] sm:$0xf]
    %v5299 = vld [vmem:[%s81 + $0x50] sm:$0xf]
    %v5300 = vld [vmem:[%s81 + $0x54] sm:$0xf]
    %v5301 = vld [vmem:[%s81 + $0x58] sm:$0xf]
    %v5302 = vld [vmem:[%s81 + $0x5c] sm:$0xf]
    %v5303 = vld [vmem:[%s81 + $0x60] sm:$0xf]
    %v5304 = vld [vmem:[%s81 + $0x64] sm:$0xf]
    %v5305 = vld [vmem:[%s81 + $0x68] sm:$0xf]
    %v5306 = vld [vmem:[%s81 + $0x6c] sm:$0xf]
    %v5307 = vld [vmem:[%s81 + $0x70] sm:$0xf]
    %v5308 = vld [vmem:[%s81 + $0x74] sm:$0xf]
    %v5309 = vld [vmem:[%s81 + $0x78] sm:$0xf]
    %v5310 = vld [vmem:[%s81 + $0x7c] sm:$0xf]
    %v5311 = vld [vmem:[%s81 + $0x80] sm:$0xf]
    %v5312 = vld [vmem:[%s81 + $0x84] sm:$0xf]
    %v5313 = vld [vmem:[%s81 + $0x88] sm:$0xf]
    %v5314 = vld [vmem:[%s81 + $0x8c] sm:$0xf]
    %v5315 = vld [vmem:[%s81 + $0x90] sm:$0xf]
    %v5316 = vld [vmem:[%s81 + $0x94] sm:$0xf]
    %v5317 = vld [vmem:[%s81 + $0x98] sm:$0xf]
    %v5318 = vld [vmem:[%s81 + $0x9c] sm:$0xf]
    %v5319 = vld [vmem:[%s81 + $0xa0] sm:$0xf]
    %v5320 = vld [vmem:[%s81 + $0xa4] sm:$0xf]
    %v5321 = vld [vmem:[%s81 + $0xa8] sm:$0xf]
    %v5322 = vld [vmem:[%s81 + $0xac] sm:$0xf]
    %v5323 = vld [vmem:[%s81 + $0xb0] sm:$0xf]
    %v5324 = vld [vmem:[%s81 + $0xb4] sm:$0xf]
    %v5325 = vld [vmem:[%s81 + $0xb8] sm:$0xf]
    %v5326 = vld [vmem:[%s81 + $0xbc] sm:$0xf]
    %v5327 = vld [vmem:[#allocation31] sm:$0x1]
    %v5329 = vsel %vm3796, %v5278, 0
    %5331 = vmatprep.subr.bf16.mxu0 0
    %5332 = vmatpush1.bf16.msra.mxu0 0
    %5333 = vmatprep.subr.bf16.mxu0 0
    %5334 = vmatpush1.bf16.msra.mxu0 0
    %5335 = vmatprep.subr.bf16.mxu0 0
    %5336 = vmatpush1.bf16.msra.mxu0 0
    %5337 = vmatprep.subr.bf16.mxu0 0
    %5338 = vmatpush1.bf16.msra.mxu0 0
    %5339 = vmatprep.subr.bf16.mxu0 0
    %5340 = vmatpush1.bf16.msra.mxu0 0
    %5341 = vmatprep.subr.bf16.mxu0 0
    %5342 = vmatpush1.bf16.msra.mxu0 0
    %5343 = vmatprep.subr.bf16.mxu0 0
    %5344 = vmatpush1.bf16.msra.mxu0 0
    %5345 = vmatprep.subr.bf16.mxu0 0
    %5346 = vmatpush1.bf16.msra.mxu0 %v5329
    %5347 = vmatprep.subr.bf16.mxu0 0
    %5348 = vmatpush2.bf16.msra.mxu0 0
    %5349 = vmatprep.subr.bf16.mxu0 0
    %5350 = vmatpush2.bf16.msra.mxu0 0
    %5351 = vmatprep.subr.bf16.mxu0 0
    %5352 = vmatpush2.bf16.msra.mxu0 0
    %5353 = vmatprep.subr.bf16.mxu0 0
    %5354 = vmatpush2.bf16.msra.mxu0 0
    %5355 = vmatprep.subr.bf16.mxu0 0
    %5356 = vmatpush2.bf16.msra.mxu0 0
    %5357 = vmatprep.subr.bf16.mxu0 0
    %5358 = vmatpush2.bf16.msra.mxu0 0
    %5359 = vmatprep.subr.bf16.mxu0 0
    %5360 = vmatpush2.bf16.msra.mxu0 0
    %5361 = vmatprep.subr.bf16.mxu0 0
    %5362 = vmatpush2.bf16.msra.mxu0 0
    %5363 = vmatprep.mubr.bf16.mxu0 0
    %5364 = vmatmul.mubr.bf16.gmra.mxu0 %v4627
    %v5365 = vpop.f32.mrf.mxu0
    %v5366 = vadd.f32 0.0, %v5365
    %v5367 = vpop.f32.mrf.mxu0
    %v5368 = vpop.f32.mrf.mxu0
    %v5369 = vadd.f32 0.0, %v5368
    %v5370 = vpop.f32.mrf.mxu0
    %5371 = vdwg.mxu0
    %v5372 = vpack.c.bf16 %v5369, %v5366
    %v5374 = vrot.slane %v5372, 4
    %v5377 = vlaneseq
    %v5378 = vshrl.u32 %v5377, 7
    %v5379 = vsub.s32 0, %v5378
    %v5380 = vrot.slane %v5327, %v5379
    %v5430 = vunpack.c.l.b16 %v5279
    %v5431 = vunpack.c.l.b16 %v5280
    %v5432 = vunpack.c.l.b16 %v5281
    %v5433 = vunpack.c.l.b16 %v5282
    %v5434 = vunpack.c.l.b16 %v5283
    %v5435 = vunpack.c.l.b16 %v5284
    %v5436 = vunpack.c.l.b16 %v5285
    %v5437 = vunpack.c.l.b16 %v5286
    %v5438 = vunpack.c.l.b16 %v5287
    %v5439 = vunpack.c.l.b16 %v5288
    %v5440 = vunpack.c.l.b16 %v5289
    %v5441 = vunpack.c.l.b16 %v5290
    %v5442 = vunpack.c.l.b16 %v5291
    %v5443 = vunpack.c.l.b16 %v5292
    %v5444 = vunpack.c.l.b16 %v5293
    %v5445 = vunpack.c.l.b16 %v5294
    %v5446 = vunpack.c.l.b16 %v5295
    %v5447 = vunpack.c.l.b16 %v5296
    %v5448 = vunpack.c.l.b16 %v5297
    %v5449 = vunpack.c.l.b16 %v5298
    %v5450 = vunpack.c.l.b16 %v5299
    %v5451 = vunpack.c.l.b16 %v5300
    %v5452 = vunpack.c.l.b16 %v5301
    %v5453 = vunpack.c.l.b16 %v5302
    %v5454 = vunpack.c.l.b16 %v5303
    %v5455 = vunpack.c.l.b16 %v5304
    %v5456 = vunpack.c.l.b16 %v5305
    %v5457 = vunpack.c.l.b16 %v5306
    %v5458 = vunpack.c.l.b16 %v5307
    %v5459 = vunpack.c.l.b16 %v5308
    %v5460 = vunpack.c.l.b16 %v5309
    %v5461 = vunpack.c.l.b16 %v5310
    %v5462 = vunpack.c.l.b16 %v5311
    %v5463 = vunpack.c.l.b16 %v5312
    %v5464 = vunpack.c.l.b16 %v5313
    %v5465 = vunpack.c.l.b16 %v5314
    %v5466 = vunpack.c.l.b16 %v5315
    %v5467 = vunpack.c.l.b16 %v5316
    %v5468 = vunpack.c.l.b16 %v5317
    %v5469 = vunpack.c.l.b16 %v5318
    %v5470 = vunpack.c.l.b16 %v5319
    %v5471 = vunpack.c.l.b16 %v5320
    %v5472 = vunpack.c.l.b16 %v5321
    %v5473 = vunpack.c.l.b16 %v5322
    %v5474 = vunpack.c.l.b16 %v5323
    %v5475 = vunpack.c.l.b16 %v5324
    %v5476 = vunpack.c.l.b16 %v5325
    %v5477 = vunpack.c.l.b16 %v5326
    %v5478 = vpack.c.b16 %v5431, %v5430
    %v5479 = vpack.c.b16 %v5433, %v5432
    %v5480 = vpack.c.b16 %v5435, %v5434
    %v5481 = vpack.c.b16 %v5437, %v5436
    %v5482 = vpack.c.b16 %v5439, %v5438
    %v5483 = vpack.c.b16 %v5441, %v5440
    %v5484 = vpack.c.b16 %v5443, %v5442
    %v5485 = vpack.c.b16 %v5445, %v5444
    %v5486 = vpack.c.b16 %v5447, %v5446
    %v5487 = vpack.c.b16 %v5449, %v5448
    %v5488 = vpack.c.b16 %v5451, %v5450
    %v5489 = vpack.c.b16 %v5453, %v5452
    %v5490 = vpack.c.b16 %v5455, %v5454
    %v5491 = vpack.c.b16 %v5457, %v5456
    %v5492 = vpack.c.b16 %v5459, %v5458
    %v5493 = vpack.c.b16 %v5461, %v5460
    %v5494 = vpack.c.b16 %v5463, %v5462
    %v5495 = vpack.c.b16 %v5465, %v5464
    %v5496 = vpack.c.b16 %v5467, %v5466
    %v5497 = vpack.c.b16 %v5469, %v5468
    %v5498 = vpack.c.b16 %v5471, %v5470
    %v5499 = vpack.c.b16 %v5473, %v5472
    %v5500 = vpack.c.b16 %v5475, %v5474
    %v5501 = vpack.c.b16 %v5477, %v5476
    %5526 = vmatprep.subr.bf16.mxu0 0
    %5527 = vmatpush1.bf16.msra.mxu0 %v5485
    %5528 = vmatprep.subr.bf16.mxu0 0
    %5529 = vmatpush1.bf16.msra.mxu0 %v5484
    %5530 = vmatprep.subr.bf16.mxu0 0
    %5531 = vmatpush1.bf16.msra.mxu0 %v5483
    %5532 = vmatprep.subr.bf16.mxu0 0
    %5533 = vmatpush1.bf16.msra.mxu0 %v5482
    %5534 = vmatprep.subr.bf16.mxu0 0
    %5535 = vmatpush1.bf16.msra.mxu0 %v5481
    %5536 = vmatprep.subr.bf16.mxu0 0
    %5537 = vmatpush1.bf16.msra.mxu0 %v5480
    %5538 = vmatprep.subr.bf16.mxu0 0
    %5539 = vmatpush1.bf16.msra.mxu0 %v5479
    %5540 = vmatprep.subr.bf16.mxu0 0
    %5541 = vmatpush1.bf16.msra.mxu0 %v5478
    %5542 = vmatprep.subr.bf16.mxu0 0
    %5543 = vmatpush2.bf16.msra.mxu0 %v5493
    %5544 = vmatprep.subr.bf16.mxu0 0
    %5545 = vmatpush2.bf16.msra.mxu0 %v5492
    %5546 = vmatprep.subr.bf16.mxu0 0
    %5547 = vmatpush2.bf16.msra.mxu0 %v5491
    %5548 = vmatprep.subr.bf16.mxu0 0
    %5549 = vmatpush2.bf16.msra.mxu0 %v5490
    %5550 = vmatprep.subr.bf16.mxu0 0
    %5551 = vmatpush2.bf16.msra.mxu0 %v5489
    %5552 = vmatprep.subr.bf16.mxu0 0
    %5553 = vmatpush2.bf16.msra.mxu0 %v5488
    %5554 = vmatprep.subr.bf16.mxu0 0
    %5555 = vmatpush2.bf16.msra.mxu0 %v5487
    %5556 = vmatprep.subr.bf16.mxu0 0
    %5557 = vmatpush2.bf16.msra.mxu0 %v5486
    %5558 = vmatprep.mubr.bf16.mxu0 %v5278
    %5559 = vmatmul.mubr.bf16.gmra.mxu0 %v5372
    %v5560 = vpop.f32.mrf.mxu0
    %v5561 = vadd.f32 %v5380, %v5560
    %v5562 = vpop.f32.mrf.mxu0
    %v5563 = vpop.f32.mrf.mxu0
    %v5564 = vpop.f32.mrf.mxu0
    %5565 = vdwg.mxu0
    %5566 = vmatprep.subr.bf16.mxu0 0
    %5567 = vmatpush1.bf16.msra.mxu0 %v5501
    %5568 = vmatprep.subr.bf16.mxu0 0
    %5569 = vmatpush1.bf16.msra.mxu0 %v5500
    %5570 = vmatprep.subr.bf16.mxu0 0
    %5571 = vmatpush1.bf16.msra.mxu0 %v5499
    %5572 = vmatprep.subr.bf16.mxu0 0
    %5573 = vmatpush1.bf16.msra.mxu0 %v5498
    %5574 = vmatprep.subr.bf16.mxu0 0
    %5575 = vmatpush1.bf16.msra.mxu0 %v5497
    %5576 = vmatprep.subr.bf16.mxu0 0
    %5577 = vmatpush1.bf16.msra.mxu0 %v5496
    %5578 = vmatprep.subr.bf16.mxu0 0
    %5579 = vmatpush1.bf16.msra.mxu0 %v5495
    %5580 = vmatprep.subr.bf16.mxu0 0
    %5581 = vmatpush1.bf16.msra.mxu0 %v5494
    %5582 = vmatprep.subr.bf16.mxu0 0
    %5583 = vmatpush2.bf16.msra.mxu0 0
    %5584 = vmatprep.subr.bf16.mxu0 0
    %5585 = vmatpush2.bf16.msra.mxu0 0
    %5586 = vmatprep.subr.bf16.mxu0 0
    %5587 = vmatpush2.bf16.msra.mxu0 0
    %5588 = vmatprep.subr.bf16.mxu0 0
    %5589 = vmatpush2.bf16.msra.mxu0 0
    %5590 = vmatprep.subr.bf16.mxu0 0
    %5591 = vmatpush2.bf16.msra.mxu0 0
    %5592 = vmatprep.subr.bf16.mxu0 0
    %5593 = vmatpush2.bf16.msra.mxu0 0
    %5594 = vmatprep.subr.bf16.mxu0 0
    %5595 = vmatpush2.bf16.msra.mxu0 0
    %5596 = vmatprep.subr.bf16.mxu0 0
    %5597 = vmatpush2.bf16.msra.mxu0 0
    %5598 = vmatprep.mubr.bf16.mxu0 0
    %5599 = vmatmul.mubr.bf16.gmra.mxu0 %v5374
    %v5600 = vpop.f32.mrf.mxu0
    %v5601 = vadd.f32 %v5561, %v5600
    %v5602 = vpop.f32.mrf.mxu0
    %v5603 = vpop.f32.mrf.mxu0
    %v5604 = vpop.f32.mrf.mxu0
    %5605 = vdwg.mxu0
    %v5606 = vmax.f32 %v5601, 0.0
    %v5607 = vpack.c.bf16 %v5606, %v5606
    %v5608 = vld [vmem:[#allocation33] sm:$0xff]
    %v5609 = vld [vmem:[#allocation33 + $0x8] sm:$0xff]
    %v5610 = vld [vmem:[#allocation33 + $0x10] sm:$0xff]
    %v5611 = vld [vmem:[#allocation33 + $0x18] sm:$0xff]
    %v5612 = vld [vmem:[#allocation33 + $0x20] sm:$0xff]
    %v5613 = vld [vmem:[#allocation33 + $0x28] sm:$0xff]
    %v5614 = vld [vmem:[#allocation33 + $0x30] sm:$0xff]
    %v5615 = vld [vmem:[#allocation33 + $0x38] sm:$0xff]
    %v5616 = vld [vmem:[#allocation33 + $0x40] sm:$0xff]
    %v5617 = vld [vmem:[#allocation33 + $0x48] sm:$0xff]
    %v5618 = vld [vmem:[#allocation33 + $0x50] sm:$0xff]
    %v5619 = vld [vmem:[#allocation33 + $0x58] sm:$0xff]
    %v5620 = vld [vmem:[#allocation33 + $0x60] sm:$0xff]
    %v5621 = vld [vmem:[#allocation33 + $0x68] sm:$0xff]
    %v5622 = vld [vmem:[#allocation33 + $0x70] sm:$0xff]
    %v5623 = vld [vmem:[#allocation33 + $0x78] sm:$0xff]
    %v5640 = vunpack.c.l.b16 %v5608
    %v5641 = vunpack.c.h.b16 %v5608
    %v5642 = vunpack.c.l.b16 %v5609
    %v5643 = vunpack.c.h.b16 %v5609
    %v5644 = vunpack.c.l.b16 %v5610
    %v5645 = vunpack.c.h.b16 %v5610
    %v5646 = vunpack.c.l.b16 %v5611
    %v5647 = vunpack.c.h.b16 %v5611
    %v5648 = vunpack.c.l.b16 %v5612
    %v5649 = vunpack.c.h.b16 %v5612
    %v5650 = vunpack.c.l.b16 %v5613
    %v5651 = vunpack.c.h.b16 %v5613
    %v5652 = vunpack.c.l.b16 %v5614
    %v5653 = vunpack.c.h.b16 %v5614
    %v5654 = vunpack.c.l.b16 %v5615
    %v5655 = vunpack.c.h.b16 %v5615
    %v5656 = vunpack.c.l.b16 %v5616
    %v5657 = vunpack.c.h.b16 %v5616
    %v5658 = vunpack.c.l.b16 %v5617
    %v5659 = vunpack.c.h.b16 %v5617
    %v5660 = vunpack.c.l.b16 %v5618
    %v5661 = vunpack.c.h.b16 %v5618
    %v5662 = vunpack.c.l.b16 %v5619
    %v5663 = vunpack.c.h.b16 %v5619
    %v5664 = vunpack.c.l.b16 %v5620
    %v5665 = vunpack.c.h.b16 %v5620
    %v5666 = vunpack.c.l.b16 %v5621
    %v5667 = vunpack.c.h.b16 %v5621
    %v5668 = vunpack.c.l.b16 %v5622
    %v5669 = vunpack.c.h.b16 %v5622
    %v5670 = vunpack.c.l.b16 %v5623
    %v5671 = vunpack.c.h.b16 %v5623
    %v5672 = vpack.c.b16 %v5642, %v5640
    %v5673 = vpack.c.b16 %v5643, %v5641
    %v5674 = vpack.c.b16 %v5646, %v5644
    %v5675 = vpack.c.b16 %v5647, %v5645
    %v5676 = vpack.c.b16 %v5650, %v5648
    %v5677 = vpack.c.b16 %v5651, %v5649
    %v5678 = vpack.c.b16 %v5654, %v5652
    %v5679 = vpack.c.b16 %v5655, %v5653
    %v5680 = vpack.c.b16 %v5658, %v5656
    %v5681 = vpack.c.b16 %v5659, %v5657
    %v5682 = vpack.c.b16 %v5662, %v5660
    %v5683 = vpack.c.b16 %v5663, %v5661
    %v5684 = vpack.c.b16 %v5666, %v5664
    %v5685 = vpack.c.b16 %v5667, %v5665
    %v5686 = vpack.c.b16 %v5670, %v5668
    %v5687 = vpack.c.b16 %v5671, %v5669
    %5704 = vmatprep.subr.bf16.mxu0 %v5687
    %5705 = vmatpush1.bf16.msra.mxu0 %v5686
    %5706 = vmatprep.subr.bf16.mxu0 %v5685
    %5707 = vmatpush1.bf16.msra.mxu0 %v5684
    %5708 = vmatprep.subr.bf16.mxu0 %v5683
    %5709 = vmatpush1.bf16.msra.mxu0 %v5682
    %5710 = vmatprep.subr.bf16.mxu0 %v5681
    %5711 = vmatpush1.bf16.msra.mxu0 %v5680
    %5712 = vmatprep.subr.bf16.mxu0 %v5679
    %5713 = vmatpush1.bf16.msra.mxu0 %v5678
    %5714 = vmatprep.subr.bf16.mxu0 %v5677
    %5715 = vmatpush1.bf16.msra.mxu0 %v5676
    %5716 = vmatprep.subr.bf16.mxu0 %v5675
    %5717 = vmatpush1.bf16.msra.mxu0 %v5674
    %5718 = vmatprep.subr.bf16.mxu0 %v5673
    %5719 = vmatpush1.bf16.msra.mxu0 %v5672
    %5720 = vmatprep.subr.bf16.mxu0 0
    %5721 = vmatpush2.bf16.msra.mxu0 0
    %5722 = vmatprep.subr.bf16.mxu0 0
    %5723 = vmatpush2.bf16.msra.mxu0 0
    %5724 = vmatprep.subr.bf16.mxu0 0
    %5725 = vmatpush2.bf16.msra.mxu0 0
    %5726 = vmatprep.subr.bf16.mxu0 0
    %5727 = vmatpush2.bf16.msra.mxu0 0
    %5728 = vmatprep.subr.bf16.mxu0 0
    %5729 = vmatpush2.bf16.msra.mxu0 0
    %5730 = vmatprep.subr.bf16.mxu0 0
    %5731 = vmatpush2.bf16.msra.mxu0 0
    %5732 = vmatprep.subr.bf16.mxu0 0
    %5733 = vmatpush2.bf16.msra.mxu0 0
    %5734 = vmatprep.subr.bf16.mxu0 0
    %5735 = vmatpush2.bf16.msra.mxu0 0
    %5736 = vmatprep.mubr.bf16.mxu0 0
    %5737 = vmatmul.mubr.bf16.gmra.mxu0 %v5607
    %v5738 = vpop.f32.mrf.mxu0
    %v5739 = vadd.f32 0.0, %v5738
    %v5740 = vpop.f32.mrf.mxu0
    %v5741 = vadd.f32 0.0, %v5740
    %v5742 = vpop.f32.mrf.mxu0
    %v5743 = vpop.f32.mrf.mxu0
    %5744 = vdwg.mxu0
    %v5745 = vld [vmem:[%s91] sm:$0xff]
    %v5746 = vld [vmem:[%s91 + $0x8] sm:$0xff]
    %v5747 = vld [vmem:[%s93] sm:$0xff]
    %v5748 = vld [vmem:[%s93 + $0x8] sm:$0xff]
    %v5750 = vsel %vm3792, %v5747, 0
    %v5753 = vsel %vm3792, %v5748, 0
    %5755 = vmatprep.subr.mxu0 0.0
    %5756 = vmatpush1.msra.mxu0 0.0
    %5757 = vmatprep.subr.mxu0 0.0
    %5758 = vmatpush1.msra.mxu0 0.0
    %5759 = vmatprep.subr.mxu0 0.0
    %5760 = vmatpush1.msra.mxu0 0.0
    %5761 = vmatprep.subr.mxu0 0.0
    %5762 = vmatpush1.msra.mxu0 0.0
    %5763 = vmatprep.subr.mxu0 0.0
    %5764 = vmatpush1.msra.mxu0 0.0
    %5765 = vmatprep.subr.mxu0 0.0
    %5766 = vmatpush1.msra.mxu0 0.0
    %5767 = vmatprep.subr.mxu0 0.0
    %5768 = vmatpush1.msra.mxu0 0.0
    %5769 = vmatprep.subr.mxu0 0.0
    %5770 = vmatpush1.msra.mxu0 0.0
    %5771 = vmatprep.subr.mxu0 0.0
    %5772 = vmatpush1.msra.mxu0 0.0
    %5773 = vmatprep.subr.mxu0 0.0
    %5774 = vmatpush1.msra.mxu0 0.0
    %5775 = vmatprep.subr.mxu0 0.0
    %5776 = vmatpush1.msra.mxu0 0.0
    %5777 = vmatprep.subr.mxu0 0.0
    %5778 = vmatpush1.msra.mxu0 0.0
    %5779 = vmatprep.subr.mxu0 0.0
    %5780 = vmatpush1.msra.mxu0 0.0
    %5781 = vmatprep.subr.mxu0 0.0
    %5782 = vmatpush1.msra.mxu0 0.0
    %5783 = vmatprep.subr.mxu0 0.0
    %5784 = vmatpush1.msra.mxu0 0.0
    %5785 = vmatprep.subr.mxu0 0.0
    %5786 = vmatpush1.msra.mxu0 %v5741
    %5787 = vmatprep.subr.mxu0 0.0
    %5788 = vmatpush2.msra.mxu0 0.0
    %5789 = vmatprep.subr.mxu0 0.0
    %5790 = vmatpush2.msra.mxu0 0.0
    %5791 = vmatprep.subr.mxu0 0.0
    %5792 = vmatpush2.msra.mxu0 0.0
    %5793 = vmatprep.subr.mxu0 0.0
    %5794 = vmatpush2.msra.mxu0 0.0
    %5795 = vmatprep.subr.mxu0 0.0
    %5796 = vmatpush2.msra.mxu0 0.0
    %5797 = vmatprep.subr.mxu0 0.0
    %5798 = vmatpush2.msra.mxu0 0.0
    %5799 = vmatprep.subr.mxu0 0.0
    %5800 = vmatpush2.msra.mxu0 0.0
    %5801 = vmatprep.subr.mxu0 0.0
    %5802 = vmatpush2.msra.mxu0 0.0
    %5803 = vmatprep.subr.mxu0 0.0
    %5804 = vmatpush2.msra.mxu0 0.0
    %5805 = vmatprep.subr.mxu0 0.0
    %5806 = vmatpush2.msra.mxu0 0.0
    %5807 = vmatprep.subr.mxu0 0.0
    %5808 = vmatpush2.msra.mxu0 0.0
    %5809 = vmatprep.subr.mxu0 0.0
    %5810 = vmatpush2.msra.mxu0 0.0
    %5811 = vmatprep.subr.mxu0 0.0
    %5812 = vmatpush2.msra.mxu0 0.0
    %5813 = vmatprep.subr.mxu0 0.0
    %5814 = vmatpush2.msra.mxu0 0.0
    %5815 = vmatprep.subr.mxu0 0.0
    %5816 = vmatpush2.msra.mxu0 0.0
    %5817 = vmatprep.subr.mxu0 0.0
    %5818 = vmatpush2.msra.mxu0 0.0
    %5819 = vmatprep.mubr.f32.mxu0 0.0
    %5820 = vmatmul.mubr.f32.gmra.mxu0 %v5750
    %v5821 = vpop.f32.mrf.mxu0
    %v5822 = vadd.f32 0.0, %v5821
    %v5823 = vpop.f32.mrf.mxu0
    %5824 = vmatprep.mubr.f32.mxu0 0.0
    %5825 = vmatmul.mubr.f32.gmra.mxu0 %v5753
    %v5826 = vpop.f32.mrf.mxu0
    %v5827 = vadd.f32 0.0, %v5826
    %v5828 = vpop.f32.mrf.mxu0
    %5829 = vdwg.mxu0
    %v5831 = vsel %vm3792, %v5745, 0
    %v5834 = vsel %vm3792, %v5746, 0
    %5836 = vmatprep.subr.mxu0 0.0
    %5837 = vmatpush1.msra.mxu0 0.0
    %5838 = vmatprep.subr.mxu0 0.0
    %5839 = vmatpush1.msra.mxu0 0.0
    %5840 = vmatprep.subr.mxu0 0.0
    %5841 = vmatpush1.msra.mxu0 0.0
    %5842 = vmatprep.subr.mxu0 0.0
    %5843 = vmatpush1.msra.mxu0 0.0
    %5844 = vmatprep.subr.mxu0 0.0
    %5845 = vmatpush1.msra.mxu0 0.0
    %5846 = vmatprep.subr.mxu0 0.0
    %5847 = vmatpush1.msra.mxu0 0.0
    %5848 = vmatprep.subr.mxu0 0.0
    %5849 = vmatpush1.msra.mxu0 0.0
    %5850 = vmatprep.subr.mxu0 0.0
    %5851 = vmatpush1.msra.mxu0 0.0
    %5852 = vmatprep.subr.mxu0 0.0
    %5853 = vmatpush1.msra.mxu0 0.0
    %5854 = vmatprep.subr.mxu0 0.0
    %5855 = vmatpush1.msra.mxu0 0.0
    %5856 = vmatprep.subr.mxu0 0.0
    %5857 = vmatpush1.msra.mxu0 0.0
    %5858 = vmatprep.subr.mxu0 0.0
    %5859 = vmatpush1.msra.mxu0 0.0
    %5860 = vmatprep.subr.mxu0 0.0
    %5861 = vmatpush1.msra.mxu0 0.0
    %5862 = vmatprep.subr.mxu0 0.0
    %5863 = vmatpush1.msra.mxu0 0.0
    %5864 = vmatprep.subr.mxu0 0.0
    %5865 = vmatpush1.msra.mxu0 0.0
    %5866 = vmatprep.subr.mxu0 0.0
    %5867 = vmatpush1.msra.mxu0 %v5739
    %5868 = vmatprep.subr.mxu0 0.0
    %5869 = vmatpush2.msra.mxu0 0.0
    %5870 = vmatprep.subr.mxu0 0.0
    %5871 = vmatpush2.msra.mxu0 0.0
    %5872 = vmatprep.subr.mxu0 0.0
    %5873 = vmatpush2.msra.mxu0 0.0
    %5874 = vmatprep.subr.mxu0 0.0
    %5875 = vmatpush2.msra.mxu0 0.0
    %5876 = vmatprep.subr.mxu0 0.0
    %5877 = vmatpush2.msra.mxu0 0.0
    %5878 = vmatprep.subr.mxu0 0.0
    %5879 = vmatpush2.msra.mxu0 0.0
    %5880 = vmatprep.subr.mxu0 0.0
    %5881 = vmatpush2.msra.mxu0 0.0
    %5882 = vmatprep.subr.mxu0 0.0
    %5883 = vmatpush2.msra.mxu0 0.0
    %5884 = vmatprep.subr.mxu0 0.0
    %5885 = vmatpush2.msra.mxu0 0.0
    %5886 = vmatprep.subr.mxu0 0.0
    %5887 = vmatpush2.msra.mxu0 0.0
    %5888 = vmatprep.subr.mxu0 0.0
    %5889 = vmatpush2.msra.mxu0 0.0
    %5890 = vmatprep.subr.mxu0 0.0
    %5891 = vmatpush2.msra.mxu0 0.0
    %5892 = vmatprep.subr.mxu0 0.0
    %5893 = vmatpush2.msra.mxu0 0.0
    %5894 = vmatprep.subr.mxu0 0.0
    %5895 = vmatpush2.msra.mxu0 0.0
    %5896 = vmatprep.subr.mxu0 0.0
    %5897 = vmatpush2.msra.mxu0 0.0
    %5898 = vmatprep.subr.mxu0 0.0
    %5899 = vmatpush2.msra.mxu0 0.0
    %5900 = vmatprep.mubr.f32.mxu0 0.0
    %5901 = vmatmul.mubr.f32.gmra.mxu0 %v5831
    %v5902 = vpop.f32.mrf.mxu0
    %v5903 = vadd.f32 %v5822, %v5902
    %v5904 = vpop.f32.mrf.mxu0
    %5905 = vmatprep.mubr.f32.mxu0 0.0
    %5906 = vmatmul.mubr.f32.gmra.mxu0 %v5834
    %v5907 = vpop.f32.mrf.mxu0
    %v5908 = vadd.f32 %v5827, %v5907
    %v5909 = vpop.f32.mrf.mxu0
    %5910 = vdwg.mxu0
    %v5911 = vld [vmem:[#allocation34] sm:$0x1]
    %v5913 = vlaneseq
    %v5914 = vshrl.u32 %v5913, 7
    %v5915 = vsub.s32 0, %v5914
    %v5916 = vrot.slane %v5911, %v5915
    %v5918 = vadd.f32 %v5903, %v5916
    %v5919 = vadd.f32 %v5908, %v5916
    %v5920 = vpack.c.bf16 %v5919, %v5918
    %v5921 = vunpack.c.l.bf16 %v2576
    %v5922 = vunpack.c.h.bf16 %v2576
    %v5923 = vunpack.c.l.bf16 %v2577
    %v5924 = vunpack.c.h.bf16 %v2577
    %v5925 = vsub.f32 %v5921, %v5923
    %v5926 = vsub.f32 %v5922, %v5924
    %v5927 = vand.u32 2147483647, %v5925
    %v5928 = vand.u32 2147483647, %v5926
    %v5929 = vpack.c.bf16 %v5928, %v5927
    %v5930 = vld [vmem:[%s105] sm:$0xf]
    %v5931 = vld [vmem:[%s105 + $0x4] sm:$0xf]
    %v5932 = vld [vmem:[%s105 + $0x8] sm:$0xf]
    %v5933 = vld [vmem:[%s105 + $0xc] sm:$0xf]
    %v5938 = vunpack.c.l.b16 %v5930
    %v5939 = vunpack.c.l.b16 %v5931
    %v5940 = vunpack.c.l.b16 %v5932
    %v5941 = vunpack.c.l.b16 %v5933
    %v5942 = vpack.c.b16 %v5939, %v5938
    %v5943 = vpack.c.b16 %v5941, %v5940
    %v5945 = vsel %vm2935, %v5942, 0
    %v5948 = vsel %vm2935, %v5943, 0
    %5950 = vmatprep.subr.bf16.mxu0 0
    %5951 = vmatpush1.bf16.msra.mxu0 0
    %5952 = vmatprep.subr.bf16.mxu0 0
    %5953 = vmatpush1.bf16.msra.mxu0 0
    %5954 = vmatprep.subr.bf16.mxu0 0
    %5955 = vmatpush1.bf16.msra.mxu0 0
    %5956 = vmatprep.subr.bf16.mxu0 0
    %5957 = vmatpush1.bf16.msra.mxu0 0
    %5958 = vmatprep.subr.bf16.mxu0 0
    %5959 = vmatpush1.bf16.msra.mxu0 0
    %5960 = vmatprep.subr.bf16.mxu0 0
    %5961 = vmatpush1.bf16.msra.mxu0 0
    %5962 = vmatprep.subr.bf16.mxu0 0
    %5963 = vmatpush1.bf16.msra.mxu0 0
    %5964 = vmatprep.subr.bf16.mxu0 0
    %5965 = vmatpush1.bf16.msra.mxu0 %v5929
    %5966 = vmatprep.subr.bf16.mxu0 0
    %5967 = vmatpush2.bf16.msra.mxu0 0
    %5968 = vmatprep.subr.bf16.mxu0 0
    %5969 = vmatpush2.bf16.msra.mxu0 0
    %5970 = vmatprep.subr.bf16.mxu0 0
    %5971 = vmatpush2.bf16.msra.mxu0 0
    %5972 = vmatprep.subr.bf16.mxu0 0
    %5973 = vmatpush2.bf16.msra.mxu0 0
    %5974 = vmatprep.subr.bf16.mxu0 0
    %5975 = vmatpush2.bf16.msra.mxu0 0
    %5976 = vmatprep.subr.bf16.mxu0 0
    %5977 = vmatpush2.bf16.msra.mxu0 0
    %5978 = vmatprep.subr.bf16.mxu0 0
    %5979 = vmatpush2.bf16.msra.mxu0 0
    %5980 = vmatprep.subr.bf16.mxu0 0
    %5981 = vmatpush2.bf16.msra.mxu0 0
    %5982 = vmatprep.mubr.bf16.mxu0 0
    %5983 = vmatmul.mubr.bf16.gmra.mxu0 %v5945
    %v5984 = vpop.f32.mrf.mxu0
    %v5985 = vadd.f32 0.0, %v5984
    %v5986 = vpop.f32.mrf.mxu0
    %v5987 = vpop.f32.mrf.mxu0
    %v5988 = vadd.f32 0.0, %v5987
    %v5989 = vpop.f32.mrf.mxu0
    %5990 = vmatprep.mubr.bf16.mxu0 0
    %5991 = vmatmul.mubr.bf16.gmra.mxu0 %v5948
    %v5992 = vpop.f32.mrf.mxu0
    %v5993 = vadd.f32 0.0, %v5992
    %v5994 = vpop.f32.mrf.mxu0
    %v5995 = vpop.f32.mrf.mxu0
    %v5996 = vadd.f32 0.0, %v5995
    %v5997 = vpop.f32.mrf.mxu0
    %5998 = vdwg.mxu0
    %v5999 = vpack.c.bf16 %v5988, %v5985
    %v6000 = vpack.c.bf16 %v5996, %v5993
    %v6001 = vld [vmem:[%s95] sm:$0xf]
    %v6002 = vld [vmem:[%s95 + $0x4] sm:$0xf]
    %v6003 = vld [vmem:[%s95 + $0x8] sm:$0xf]
    %v6004 = vld [vmem:[%s95 + $0xc] sm:$0xf]
    %v6005 = vld [vmem:[%s95 + $0x10] sm:$0xf]
    %v6006 = vld [vmem:[%s95 + $0x14] sm:$0xf]
    %v6007 = vld [vmem:[%s95 + $0x18] sm:$0xf]
    %v6008 = vld [vmem:[%s95 + $0x1c] sm:$0xf]
    %v6009 = vld [vmem:[%s95 + $0x20] sm:$0xf]
    %v6010 = vld [vmem:[%s95 + $0x24] sm:$0xf]
    %v6011 = vld [vmem:[%s95 + $0x28] sm:$0xf]
    %v6012 = vld [vmem:[%s95 + $0x2c] sm:$0xf]
    %v6013 = vld [vmem:[%s95 + $0x30] sm:$0xf]
    %v6014 = vld [vmem:[%s95 + $0x34] sm:$0xf]
    %v6015 = vld [vmem:[%s95 + $0x38] sm:$0xf]
    %v6016 = vld [vmem:[%s95 + $0x3c] sm:$0xf]
    %v6017 = vld [vmem:[%s95 + $0x40] sm:$0xf]
    %v6018 = vld [vmem:[%s95 + $0x44] sm:$0xf]
    %v6019 = vld [vmem:[%s95 + $0x48] sm:$0xf]
    %v6020 = vld [vmem:[%s95 + $0x4c] sm:$0xf]
    %v6021 = vld [vmem:[%s95 + $0x50] sm:$0xf]
    %v6022 = vld [vmem:[%s95 + $0x54] sm:$0xf]
    %v6023 = vld [vmem:[%s95 + $0x58] sm:$0xf]
    %v6024 = vld [vmem:[%s95 + $0x5c] sm:$0xf]
    %v6025 = vld [vmem:[%s95 + $0x60] sm:$0xf]
    %v6026 = vld [vmem:[%s95 + $0x64] sm:$0xf]
    %v6027 = vld [vmem:[%s95 + $0x68] sm:$0xf]
    %v6028 = vld [vmem:[%s95 + $0x6c] sm:$0xf]
    %v6029 = vld [vmem:[%s95 + $0x70] sm:$0xf]
    %v6030 = vld [vmem:[%s95 + $0x74] sm:$0xf]
    %v6031 = vld [vmem:[%s95 + $0x78] sm:$0xf]
    %v6032 = vld [vmem:[%s95 + $0x7c] sm:$0xf]
    %v6033 = vld [vmem:[%s95 + $0x80] sm:$0xf]
    %v6034 = vld [vmem:[%s95 + $0x84] sm:$0xf]
    %v6035 = vld [vmem:[%s95 + $0x88] sm:$0xf]
    %v6036 = vld [vmem:[%s95 + $0x8c] sm:$0xf]
    %v6037 = vld [vmem:[%s95 + $0x90] sm:$0xf]
    %v6038 = vld [vmem:[%s95 + $0x94] sm:$0xf]
    %v6039 = vld [vmem:[%s95 + $0x98] sm:$0xf]
    %v6040 = vld [vmem:[%s95 + $0x9c] sm:$0xf]
    %v6041 = vld [vmem:[%s95 + $0xa0] sm:$0xf]
    %v6042 = vld [vmem:[%s95 + $0xa4] sm:$0xf]
    %v6043 = vld [vmem:[%s95 + $0xa8] sm:$0xf]
    %v6044 = vld [vmem:[%s95 + $0xac] sm:$0xf]
    %v6045 = vld [vmem:[%s95 + $0xb0] sm:$0xf]
    %v6046 = vld [vmem:[%s95 + $0xb4] sm:$0xf]
    %v6047 = vld [vmem:[%s95 + $0xb8] sm:$0xf]
    %v6048 = vld [vmem:[%s95 + $0xbc] sm:$0xf]
    %6049 = vmatprep.subr.bf16.mxu0 0
    %6050 = vmatpush1.bf16.msra.mxu0 0
    %6051 = vmatprep.subr.bf16.mxu0 0
    %6052 = vmatpush1.bf16.msra.mxu0 0
    %6053 = vmatprep.subr.bf16.mxu0 0
    %6054 = vmatpush1.bf16.msra.mxu0 0
    %6055 = vmatprep.subr.bf16.mxu0 0
    %6056 = vmatpush1.bf16.msra.mxu0 0
    %6057 = vmatprep.subr.bf16.mxu0 0
    %6058 = vmatpush1.bf16.msra.mxu0 0
    %6059 = vmatprep.subr.bf16.mxu0 0
    %6060 = vmatpush1.bf16.msra.mxu0 0
    %6061 = vmatprep.subr.bf16.mxu0 0
    %6062 = vmatpush1.bf16.msra.mxu0 0
    %6063 = vmatprep.subr.bf16.mxu0 0
    %6064 = vmatpush1.bf16.msra.mxu0 %v5920
    %6065 = vmatprep.subr.bf16.mxu0 0
    %6066 = vmatpush2.bf16.msra.mxu0 0
    %6067 = vmatprep.subr.bf16.mxu0 0
    %6068 = vmatpush2.bf16.msra.mxu0 0
    %6069 = vmatprep.subr.bf16.mxu0 0
    %6070 = vmatpush2.bf16.msra.mxu0 0
    %6071 = vmatprep.subr.bf16.mxu0 0
    %6072 = vmatpush2.bf16.msra.mxu0 0
    %6073 = vmatprep.subr.bf16.mxu0 0
    %6074 = vmatpush2.bf16.msra.mxu0 0
    %6075 = vmatprep.subr.bf16.mxu0 0
    %6076 = vmatpush2.bf16.msra.mxu0 0
    %6077 = vmatprep.subr.bf16.mxu0 0
    %6078 = vmatpush2.bf16.msra.mxu0 0
    %6079 = vmatprep.subr.bf16.mxu0 0
    %6080 = vmatpush2.bf16.msra.mxu0 0
    %6081 = vmatprep.mubr.bf16.mxu0 0
    %6082 = vmatmul.mubr.bf16.gmra.mxu0 %v5945
    %v6083 = vpop.f32.mrf.mxu0
    %v6084 = vadd.f32 0.0, %v6083
    %v6085 = vpop.f32.mrf.mxu0
    %v6086 = vpop.f32.mrf.mxu0
    %v6087 = vadd.f32 0.0, %v6086
    %v6088 = vpop.f32.mrf.mxu0
    %6089 = vmatprep.mubr.bf16.mxu0 0
    %6090 = vmatmul.mubr.bf16.gmra.mxu0 %v5948
    %v6091 = vpop.f32.mrf.mxu0
    %v6092 = vadd.f32 0.0, %v6091
    %v6093 = vpop.f32.mrf.mxu0
    %v6094 = vpop.f32.mrf.mxu0
    %v6095 = vadd.f32 0.0, %v6094
    %v6096 = vpop.f32.mrf.mxu0
    %6097 = vdwg.mxu0
    %v6098 = vpack.c.bf16 %v6087, %v6084
    %v6099 = vpack.c.bf16 %v6095, %v6092
    %v6100 = vld [vmem:[%s97] sm:$0xf]
    %v6101 = vld [vmem:[%s97 + $0x4] sm:$0xf]
    %v6102 = vld [vmem:[%s97 + $0x8] sm:$0xf]
    %v6103 = vld [vmem:[%s97 + $0xc] sm:$0xf]
    %v6104 = vld [vmem:[%s97 + $0x10] sm:$0xf]
    %v6105 = vld [vmem:[%s97 + $0x14] sm:$0xf]
    %v6106 = vld [vmem:[%s97 + $0x18] sm:$0xf]
    %v6107 = vld [vmem:[%s97 + $0x1c] sm:$0xf]
    %v6108 = vld [vmem:[%s97 + $0x20] sm:$0xf]
    %v6109 = vld [vmem:[%s97 + $0x24] sm:$0xf]
    %v6110 = vld [vmem:[%s97 + $0x28] sm:$0xf]
    %v6111 = vld [vmem:[%s97 + $0x2c] sm:$0xf]
    %v6112 = vld [vmem:[%s97 + $0x30] sm:$0xf]
    %v6113 = vld [vmem:[%s97 + $0x34] sm:$0xf]
    %v6114 = vld [vmem:[%s97 + $0x38] sm:$0xf]
    %v6115 = vld [vmem:[%s97 + $0x3c] sm:$0xf]
    %v6116 = vld [vmem:[%s97 + $0x40] sm:$0xf]
    %v6117 = vld [vmem:[%s97 + $0x44] sm:$0xf]
    %v6118 = vld [vmem:[%s97 + $0x48] sm:$0xf]
    %v6119 = vld [vmem:[%s97 + $0x4c] sm:$0xf]
    %v6120 = vld [vmem:[%s97 + $0x50] sm:$0xf]
    %v6121 = vld [vmem:[%s97 + $0x54] sm:$0xf]
    %v6122 = vld [vmem:[%s97 + $0x58] sm:$0xf]
    %v6123 = vld [vmem:[%s97 + $0x5c] sm:$0xf]
    %v6124 = vld [vmem:[%s97 + $0x60] sm:$0xf]
    %v6125 = vld [vmem:[%s97 + $0x64] sm:$0xf]
    %v6126 = vld [vmem:[%s97 + $0x68] sm:$0xf]
    %v6127 = vld [vmem:[%s97 + $0x6c] sm:$0xf]
    %v6128 = vld [vmem:[%s97 + $0x70] sm:$0xf]
    %v6129 = vld [vmem:[%s97 + $0x74] sm:$0xf]
    %v6130 = vld [vmem:[%s97 + $0x78] sm:$0xf]
    %v6131 = vld [vmem:[%s97 + $0x7c] sm:$0xf]
    %v6132 = vld [vmem:[%s97 + $0x80] sm:$0xf]
    %v6133 = vld [vmem:[%s97 + $0x84] sm:$0xf]
    %v6134 = vld [vmem:[%s97 + $0x88] sm:$0xf]
    %v6135 = vld [vmem:[%s97 + $0x8c] sm:$0xf]
    %v6136 = vld [vmem:[%s97 + $0x90] sm:$0xf]
    %v6137 = vld [vmem:[%s97 + $0x94] sm:$0xf]
    %v6138 = vld [vmem:[%s97 + $0x98] sm:$0xf]
    %v6139 = vld [vmem:[%s97 + $0x9c] sm:$0xf]
    %v6140 = vld [vmem:[%s97 + $0xa0] sm:$0xf]
    %v6141 = vld [vmem:[%s97 + $0xa4] sm:$0xf]
    %v6142 = vld [vmem:[%s97 + $0xa8] sm:$0xf]
    %v6143 = vld [vmem:[%s97 + $0xac] sm:$0xf]
    %v6144 = vld [vmem:[%s97 + $0xb0] sm:$0xf]
    %v6145 = vld [vmem:[%s97 + $0xb4] sm:$0xf]
    %v6146 = vld [vmem:[%s97 + $0xb8] sm:$0xf]
    %v6147 = vld [vmem:[%s97 + $0xbc] sm:$0xf]
    %v6196 = vunpack.c.l.b16 %v6100
    %v6197 = vunpack.c.l.b16 %v6101
    %v6198 = vunpack.c.l.b16 %v6102
    %v6199 = vunpack.c.l.b16 %v6103
    %v6200 = vunpack.c.l.b16 %v6104
    %v6201 = vunpack.c.l.b16 %v6105
    %v6202 = vunpack.c.l.b16 %v6106
    %v6203 = vunpack.c.l.b16 %v6107
    %v6204 = vunpack.c.l.b16 %v6108
    %v6205 = vunpack.c.l.b16 %v6109
    %v6206 = vunpack.c.l.b16 %v6110
    %v6207 = vunpack.c.l.b16 %v6111
    %v6208 = vunpack.c.l.b16 %v6112
    %v6209 = vunpack.c.l.b16 %v6113
    %v6210 = vunpack.c.l.b16 %v6114
    %v6211 = vunpack.c.l.b16 %v6115
    %v6212 = vunpack.c.l.b16 %v6116
    %v6213 = vunpack.c.l.b16 %v6117
    %v6214 = vunpack.c.l.b16 %v6118
    %v6215 = vunpack.c.l.b16 %v6119
    %v6216 = vunpack.c.l.b16 %v6120
    %v6217 = vunpack.c.l.b16 %v6121
    %v6218 = vunpack.c.l.b16 %v6122
    %v6219 = vunpack.c.l.b16 %v6123
    %v6220 = vunpack.c.l.b16 %v6124
    %v6221 = vunpack.c.l.b16 %v6125
    %v6222 = vunpack.c.l.b16 %v6126
    %v6223 = vunpack.c.l.b16 %v6127
    %v6224 = vunpack.c.l.b16 %v6128
    %v6225 = vunpack.c.l.b16 %v6129
    %v6226 = vunpack.c.l.b16 %v6130
    %v6227 = vunpack.c.l.b16 %v6131
    %v6228 = vunpack.c.l.b16 %v6132
    %v6229 = vunpack.c.l.b16 %v6133
    %v6230 = vunpack.c.l.b16 %v6134
    %v6231 = vunpack.c.l.b16 %v6135
    %v6232 = vunpack.c.l.b16 %v6136
    %v6233 = vunpack.c.l.b16 %v6137
    %v6234 = vunpack.c.l.b16 %v6138
    %v6235 = vunpack.c.l.b16 %v6139
    %v6236 = vunpack.c.l.b16 %v6140
    %v6237 = vunpack.c.l.b16 %v6141
    %v6238 = vunpack.c.l.b16 %v6142
    %v6239 = vunpack.c.l.b16 %v6143
    %v6240 = vunpack.c.l.b16 %v6144
    %v6241 = vunpack.c.l.b16 %v6145
    %v6242 = vunpack.c.l.b16 %v6146
    %v6243 = vunpack.c.l.b16 %v6147
    %v6244 = vpack.c.b16 %v6197, %v6196
    %v6245 = vpack.c.b16 %v6199, %v6198
    %v6246 = vpack.c.b16 %v6201, %v6200
    %v6247 = vpack.c.b16 %v6203, %v6202
    %v6248 = vpack.c.b16 %v6205, %v6204
    %v6249 = vpack.c.b16 %v6207, %v6206
    %v6250 = vpack.c.b16 %v6209, %v6208
    %v6251 = vpack.c.b16 %v6211, %v6210
    %v6252 = vpack.c.b16 %v6213, %v6212
    %v6253 = vpack.c.b16 %v6215, %v6214
    %v6254 = vpack.c.b16 %v6217, %v6216
    %v6255 = vpack.c.b16 %v6219, %v6218
    %v6256 = vpack.c.b16 %v6221, %v6220
    %v6257 = vpack.c.b16 %v6223, %v6222
    %v6258 = vpack.c.b16 %v6225, %v6224
    %v6259 = vpack.c.b16 %v6227, %v6226
    %v6260 = vpack.c.b16 %v6229, %v6228
    %v6261 = vpack.c.b16 %v6231, %v6230
    %v6262 = vpack.c.b16 %v6233, %v6232
    %v6263 = vpack.c.b16 %v6235, %v6234
    %v6264 = vpack.c.b16 %v6237, %v6236
    %v6265 = vpack.c.b16 %v6239, %v6238
    %v6266 = vpack.c.b16 %v6241, %v6240
    %v6267 = vpack.c.b16 %v6243, %v6242
    %6292 = vmatprep.subr.bf16.mxu0 0
    %6293 = vmatpush1.bf16.msra.mxu0 %v6251
    %6294 = vmatprep.subr.bf16.mxu0 0
    %6295 = vmatpush1.bf16.msra.mxu0 %v6250
    %6296 = vmatprep.subr.bf16.mxu0 0
    %6297 = vmatpush1.bf16.msra.mxu0 %v6249
    %6298 = vmatprep.subr.bf16.mxu0 0
    %6299 = vmatpush1.bf16.msra.mxu0 %v6248
    %6300 = vmatprep.subr.bf16.mxu0 0
    %6301 = vmatpush1.bf16.msra.mxu0 %v6247
    %6302 = vmatprep.subr.bf16.mxu0 0
    %6303 = vmatpush1.bf16.msra.mxu0 %v6246
    %6304 = vmatprep.subr.bf16.mxu0 0
    %6305 = vmatpush1.bf16.msra.mxu0 %v6245
    %6306 = vmatprep.subr.bf16.mxu0 0
    %6307 = vmatpush1.bf16.msra.mxu0 %v6244
    %6308 = vmatprep.subr.bf16.mxu0 0
    %6309 = vmatpush2.bf16.msra.mxu0 %v6259
    %6310 = vmatprep.subr.bf16.mxu0 0
    %6311 = vmatpush2.bf16.msra.mxu0 %v6258
    %6312 = vmatprep.subr.bf16.mxu0 0
    %6313 = vmatpush2.bf16.msra.mxu0 %v6257
    %6314 = vmatprep.subr.bf16.mxu0 0
    %6315 = vmatpush2.bf16.msra.mxu0 %v6256
    %6316 = vmatprep.subr.bf16.mxu0 0
    %6317 = vmatpush2.bf16.msra.mxu0 %v6255
    %6318 = vmatprep.subr.bf16.mxu0 0
    %6319 = vmatpush2.bf16.msra.mxu0 %v6254
    %6320 = vmatprep.subr.bf16.mxu0 0
    %6321 = vmatpush2.bf16.msra.mxu0 %v6253
    %6322 = vmatprep.subr.bf16.mxu0 0
    %6323 = vmatpush2.bf16.msra.mxu0 %v6252
    %6324 = vmatprep.mubr.bf16.mxu0 %v5920
    %6325 = vmatmul.mubr.bf16.gmra.mxu0 %v6098
    %v6326 = vpop.f32.mrf.mxu0
    %v6327 = vadd.f32 0.0, %v6326
    %v6328 = vpop.f32.mrf.mxu0
    %v6329 = vpop.f32.mrf.mxu0
    %v6330 = vadd.f32 0.0, %v6329
    %v6331 = vpop.f32.mrf.mxu0
    %6332 = vdwg.mxu0
    %6333 = vmatprep.subr.bf16.mxu0 0
    %6334 = vmatpush1.bf16.msra.mxu0 %v6267
    %6335 = vmatprep.subr.bf16.mxu0 0
    %6336 = vmatpush1.bf16.msra.mxu0 %v6266
    %6337 = vmatprep.subr.bf16.mxu0 0
    %6338 = vmatpush1.bf16.msra.mxu0 %v6265
    %6339 = vmatprep.subr.bf16.mxu0 0
    %6340 = vmatpush1.bf16.msra.mxu0 %v6264
    %6341 = vmatprep.subr.bf16.mxu0 0
    %6342 = vmatpush1.bf16.msra.mxu0 %v6263
    %6343 = vmatprep.subr.bf16.mxu0 0
    %6344 = vmatpush1.bf16.msra.mxu0 %v6262
    %6345 = vmatprep.subr.bf16.mxu0 0
    %6346 = vmatpush1.bf16.msra.mxu0 %v6261
    %6347 = vmatprep.subr.bf16.mxu0 0
    %6348 = vmatpush1.bf16.msra.mxu0 %v6260
    %6349 = vmatprep.subr.bf16.mxu0 0
    %6350 = vmatpush2.bf16.msra.mxu0 0
    %6351 = vmatprep.subr.bf16.mxu0 0
    %6352 = vmatpush2.bf16.msra.mxu0 0
    %6353 = vmatprep.subr.bf16.mxu0 0
    %6354 = vmatpush2.bf16.msra.mxu0 0
    %6355 = vmatprep.subr.bf16.mxu0 0
    %6356 = vmatpush2.bf16.msra.mxu0 0
    %6357 = vmatprep.subr.bf16.mxu0 0
    %6358 = vmatpush2.bf16.msra.mxu0 0
    %6359 = vmatprep.subr.bf16.mxu0 0
    %6360 = vmatpush2.bf16.msra.mxu0 0
    %6361 = vmatprep.subr.bf16.mxu0 0
    %6362 = vmatpush2.bf16.msra.mxu0 0
    %6363 = vmatprep.subr.bf16.mxu0 0
    %6364 = vmatpush2.bf16.msra.mxu0 0
    %6365 = vmatprep.mubr.bf16.mxu0 0
    %6366 = vmatmul.mubr.bf16.gmra.mxu0 %v6099
    %v6367 = vpop.f32.mrf.mxu0
    %v6368 = vadd.f32 %v6327, %v6367
    %v6369 = vpop.f32.mrf.mxu0
    %v6370 = vpop.f32.mrf.mxu0
    %v6371 = vadd.f32 %v6330, %v6370
    %v6372 = vpop.f32.mrf.mxu0
    %6373 = vdwg.mxu0
    %v6422 = vunpack.c.l.b16 %v6001
    %v6423 = vunpack.c.l.b16 %v6002
    %v6424 = vunpack.c.l.b16 %v6003
    %v6425 = vunpack.c.l.b16 %v6004
    %v6426 = vunpack.c.l.b16 %v6005
    %v6427 = vunpack.c.l.b16 %v6006
    %v6428 = vunpack.c.l.b16 %v6007
    %v6429 = vunpack.c.l.b16 %v6008
    %v6430 = vunpack.c.l.b16 %v6009
    %v6431 = vunpack.c.l.b16 %v6010
    %v6432 = vunpack.c.l.b16 %v6011
    %v6433 = vunpack.c.l.b16 %v6012
    %v6434 = vunpack.c.l.b16 %v6013
    %v6435 = vunpack.c.l.b16 %v6014
    %v6436 = vunpack.c.l.b16 %v6015
    %v6437 = vunpack.c.l.b16 %v6016
    %v6438 = vunpack.c.l.b16 %v6017
    %v6439 = vunpack.c.l.b16 %v6018
    %v6440 = vunpack.c.l.b16 %v6019
    %v6441 = vunpack.c.l.b16 %v6020
    %v6442 = vunpack.c.l.b16 %v6021
    %v6443 = vunpack.c.l.b16 %v6022
    %v6444 = vunpack.c.l.b16 %v6023
    %v6445 = vunpack.c.l.b16 %v6024
    %v6446 = vunpack.c.l.b16 %v6025
    %v6447 = vunpack.c.l.b16 %v6026
    %v6448 = vunpack.c.l.b16 %v6027
    %v6449 = vunpack.c.l.b16 %v6028
    %v6450 = vunpack.c.l.b16 %v6029
    %v6451 = vunpack.c.l.b16 %v6030
    %v6452 = vunpack.c.l.b16 %v6031
    %v6453 = vunpack.c.l.b16 %v6032
    %v6454 = vunpack.c.l.b16 %v6033
    %v6455 = vunpack.c.l.b16 %v6034
    %v6456 = vunpack.c.l.b16 %v6035
    %v6457 = vunpack.c.l.b16 %v6036
    %v6458 = vunpack.c.l.b16 %v6037
    %v6459 = vunpack.c.l.b16 %v6038
    %v6460 = vunpack.c.l.b16 %v6039
    %v6461 = vunpack.c.l.b16 %v6040
    %v6462 = vunpack.c.l.b16 %v6041
    %v6463 = vunpack.c.l.b16 %v6042
    %v6464 = vunpack.c.l.b16 %v6043
    %v6465 = vunpack.c.l.b16 %v6044
    %v6466 = vunpack.c.l.b16 %v6045
    %v6467 = vunpack.c.l.b16 %v6046
    %v6468 = vunpack.c.l.b16 %v6047
    %v6469 = vunpack.c.l.b16 %v6048
    %v6470 = vpack.c.b16 %v6423, %v6422
    %v6471 = vpack.c.b16 %v6425, %v6424
    %v6472 = vpack.c.b16 %v6427, %v6426
    %v6473 = vpack.c.b16 %v6429, %v6428
    %v6474 = vpack.c.b16 %v6431, %v6430
    %v6475 = vpack.c.b16 %v6433, %v6432
    %v6476 = vpack.c.b16 %v6435, %v6434
    %v6477 = vpack.c.b16 %v6437, %v6436
    %v6478 = vpack.c.b16 %v6439, %v6438
    %v6479 = vpack.c.b16 %v6441, %v6440
    %v6480 = vpack.c.b16 %v6443, %v6442
    %v6481 = vpack.c.b16 %v6445, %v6444
    %v6482 = vpack.c.b16 %v6447, %v6446
    %v6483 = vpack.c.b16 %v6449, %v6448
    %v6484 = vpack.c.b16 %v6451, %v6450
    %v6485 = vpack.c.b16 %v6453, %v6452
    %v6486 = vpack.c.b16 %v6455, %v6454
    %v6487 = vpack.c.b16 %v6457, %v6456
    %v6488 = vpack.c.b16 %v6459, %v6458
    %v6489 = vpack.c.b16 %v6461, %v6460
    %v6490 = vpack.c.b16 %v6463, %v6462
    %v6491 = vpack.c.b16 %v6465, %v6464
    %v6492 = vpack.c.b16 %v6467, %v6466
    %v6493 = vpack.c.b16 %v6469, %v6468
    %6518 = vmatprep.subr.bf16.mxu0 0
    %6519 = vmatpush1.bf16.msra.mxu0 %v6477
    %6520 = vmatprep.subr.bf16.mxu0 0
    %6521 = vmatpush1.bf16.msra.mxu0 %v6476
    %6522 = vmatprep.subr.bf16.mxu0 0
    %6523 = vmatpush1.bf16.msra.mxu0 %v6475
    %6524 = vmatprep.subr.bf16.mxu0 0
    %6525 = vmatpush1.bf16.msra.mxu0 %v6474
    %6526 = vmatprep.subr.bf16.mxu0 0
    %6527 = vmatpush1.bf16.msra.mxu0 %v6473
    %6528 = vmatprep.subr.bf16.mxu0 0
    %6529 = vmatpush1.bf16.msra.mxu0 %v6472
    %6530 = vmatprep.subr.bf16.mxu0 0
    %6531 = vmatpush1.bf16.msra.mxu0 %v6471
    %6532 = vmatprep.subr.bf16.mxu0 0
    %6533 = vmatpush1.bf16.msra.mxu0 %v6470
    %6534 = vmatprep.subr.bf16.mxu0 0
    %6535 = vmatpush2.bf16.msra.mxu0 %v6485
    %6536 = vmatprep.subr.bf16.mxu0 0
    %6537 = vmatpush2.bf16.msra.mxu0 %v6484
    %6538 = vmatprep.subr.bf16.mxu0 0
    %6539 = vmatpush2.bf16.msra.mxu0 %v6483
    %6540 = vmatprep.subr.bf16.mxu0 0
    %6541 = vmatpush2.bf16.msra.mxu0 %v6482
    %6542 = vmatprep.subr.bf16.mxu0 0
    %6543 = vmatpush2.bf16.msra.mxu0 %v6481
    %6544 = vmatprep.subr.bf16.mxu0 0
    %6545 = vmatpush2.bf16.msra.mxu0 %v6480
    %6546 = vmatprep.subr.bf16.mxu0 0
    %6547 = vmatpush2.bf16.msra.mxu0 %v6479
    %6548 = vmatprep.subr.bf16.mxu0 0
    %6549 = vmatpush2.bf16.msra.mxu0 %v6478
    %6550 = vmatprep.mubr.bf16.mxu0 %v5929
    %6551 = vmatmul.mubr.bf16.gmra.mxu0 %v5999
    %v6552 = vpop.f32.mrf.mxu0
    %v6553 = vadd.f32 %v6368, %v6552
    %v6554 = vpop.f32.mrf.mxu0
    %v6555 = vpop.f32.mrf.mxu0
    %v6556 = vadd.f32 %v6371, %v6555
    %v6557 = vpop.f32.mrf.mxu0
    %6558 = vdwg.mxu0
    %6559 = vmatprep.subr.bf16.mxu0 0
    %6560 = vmatpush1.bf16.msra.mxu0 %v6493
    %6561 = vmatprep.subr.bf16.mxu0 0
    %6562 = vmatpush1.bf16.msra.mxu0 %v6492
    %6563 = vmatprep.subr.bf16.mxu0 0
    %6564 = vmatpush1.bf16.msra.mxu0 %v6491
    %6565 = vmatprep.subr.bf16.mxu0 0
    %6566 = vmatpush1.bf16.msra.mxu0 %v6490
    %6567 = vmatprep.subr.bf16.mxu0 0
    %6568 = vmatpush1.bf16.msra.mxu0 %v6489
    %6569 = vmatprep.subr.bf16.mxu0 0
    %6570 = vmatpush1.bf16.msra.mxu0 %v6488
    %6571 = vmatprep.subr.bf16.mxu0 0
    %6572 = vmatpush1.bf16.msra.mxu0 %v6487
    %6573 = vmatprep.subr.bf16.mxu0 0
    %6574 = vmatpush1.bf16.msra.mxu0 %v6486
    %6575 = vmatprep.subr.bf16.mxu0 0
    %6576 = vmatpush2.bf16.msra.mxu0 0
    %6577 = vmatprep.subr.bf16.mxu0 0
    %6578 = vmatpush2.bf16.msra.mxu0 0
    %6579 = vmatprep.subr.bf16.mxu0 0
    %6580 = vmatpush2.bf16.msra.mxu0 0
    %6581 = vmatprep.subr.bf16.mxu0 0
    %6582 = vmatpush2.bf16.msra.mxu0 0
    %6583 = vmatprep.subr.bf16.mxu0 0
    %6584 = vmatpush2.bf16.msra.mxu0 0
    %6585 = vmatprep.subr.bf16.mxu0 0
    %6586 = vmatpush2.bf16.msra.mxu0 0
    %6587 = vmatprep.subr.bf16.mxu0 0
    %6588 = vmatpush2.bf16.msra.mxu0 0
    %6589 = vmatprep.subr.bf16.mxu0 0
    %6590 = vmatpush2.bf16.msra.mxu0 0
    %6591 = vmatprep.mubr.bf16.mxu0 0
    %6592 = vmatmul.mubr.bf16.gmra.mxu0 %v6000
    %v6593 = vpop.f32.mrf.mxu0
    %v6594 = vadd.f32 %v6553, %v6593
    %v6595 = vpop.f32.mrf.mxu0
    %v6596 = vpop.f32.mrf.mxu0
    %v6597 = vadd.f32 %v6556, %v6596
    %v6598 = vpop.f32.mrf.mxu0
    %6599 = vdwg.mxu0
    %v6600 = vld [vmem:[#allocation36] sm:$0x1]
    %v6602 = vlaneseq
    %v6603 = vshrl.u32 %v6602, 7
    %v6604 = vsub.s32 0, %v6603
    %v6605 = vrot.slane %v6600, %v6604
    %v6607 = vadd.f32 %v6594, %v6605
    %v6608 = vadd.f32 %v6597, %v6605
    %v6609 = vmax.f32 %v6607, 0.0
    %v6610 = vmax.f32 %v6608, 0.0
    %v6611 = vpack.c.bf16 %v6610, %v6609
    %v6612 = vld [vmem:[%s101] sm:$0xf]
    %v6613 = vld [vmem:[%s101 + $0x4] sm:$0xf]
    %v6614 = vld [vmem:[%s101 + $0x8] sm:$0xf]
    %v6615 = vld [vmem:[%s101 + $0xc] sm:$0xf]
    %v6616 = vld [vmem:[%s101 + $0x10] sm:$0xf]
    %v6617 = vld [vmem:[%s101 + $0x14] sm:$0xf]
    %v6618 = vld [vmem:[%s101 + $0x18] sm:$0xf]
    %v6619 = vld [vmem:[%s101 + $0x1c] sm:$0xf]
    %v6620 = vld [vmem:[%s101 + $0x20] sm:$0xf]
    %v6621 = vld [vmem:[%s101 + $0x24] sm:$0xf]
    %v6622 = vld [vmem:[%s101 + $0x28] sm:$0xf]
    %v6623 = vld [vmem:[%s101 + $0x2c] sm:$0xf]
    %v6624 = vld [vmem:[%s101 + $0x30] sm:$0xf]
    %v6625 = vld [vmem:[%s101 + $0x34] sm:$0xf]
    %v6626 = vld [vmem:[%s101 + $0x38] sm:$0xf]
    %v6627 = vld [vmem:[%s101 + $0x3c] sm:$0xf]
    %v6628 = vld [vmem:[%s101 + $0x40] sm:$0xf]
    %v6629 = vld [vmem:[%s101 + $0x44] sm:$0xf]
    %v6630 = vld [vmem:[%s101 + $0x48] sm:$0xf]
    %v6631 = vld [vmem:[%s101 + $0x4c] sm:$0xf]
    %v6632 = vld [vmem:[%s101 + $0x50] sm:$0xf]
    %v6633 = vld [vmem:[%s101 + $0x54] sm:$0xf]
    %v6634 = vld [vmem:[%s101 + $0x58] sm:$0xf]
    %v6635 = vld [vmem:[%s101 + $0x5c] sm:$0xf]
    %v6636 = vld [vmem:[%s101 + $0x60] sm:$0xf]
    %v6637 = vld [vmem:[%s101 + $0x64] sm:$0xf]
    %v6638 = vld [vmem:[%s101 + $0x68] sm:$0xf]
    %v6639 = vld [vmem:[%s101 + $0x6c] sm:$0xf]
    %v6640 = vld [vmem:[%s101 + $0x70] sm:$0xf]
    %v6641 = vld [vmem:[%s101 + $0x74] sm:$0xf]
    %v6642 = vld [vmem:[%s101 + $0x78] sm:$0xf]
    %v6643 = vld [vmem:[%s101 + $0x7c] sm:$0xf]
    %v6644 = vld [vmem:[%s101 + $0x80] sm:$0xf]
    %v6645 = vld [vmem:[%s101 + $0x84] sm:$0xf]
    %v6646 = vld [vmem:[%s101 + $0x88] sm:$0xf]
    %v6647 = vld [vmem:[%s101 + $0x8c] sm:$0xf]
    %v6648 = vld [vmem:[%s101 + $0x90] sm:$0xf]
    %v6649 = vld [vmem:[%s101 + $0x94] sm:$0xf]
    %v6650 = vld [vmem:[%s101 + $0x98] sm:$0xf]
    %v6651 = vld [vmem:[%s101 + $0x9c] sm:$0xf]
    %v6652 = vld [vmem:[%s101 + $0xa0] sm:$0xf]
    %v6653 = vld [vmem:[%s101 + $0xa4] sm:$0xf]
    %v6654 = vld [vmem:[%s101 + $0xa8] sm:$0xf]
    %v6655 = vld [vmem:[%s101 + $0xac] sm:$0xf]
    %v6656 = vld [vmem:[%s101 + $0xb0] sm:$0xf]
    %v6657 = vld [vmem:[%s101 + $0xb4] sm:$0xf]
    %v6658 = vld [vmem:[%s101 + $0xb8] sm:$0xf]
    %v6659 = vld [vmem:[%s101 + $0xbc] sm:$0xf]
    %v6660 = vld [vmem:[#allocation37] sm:$0x1]
    %6661 = vmatprep.subr.bf16.mxu0 0
    %6662 = vmatpush1.bf16.msra.mxu0 0
    %6663 = vmatprep.subr.bf16.mxu0 0
    %6664 = vmatpush1.bf16.msra.mxu0 0
    %6665 = vmatprep.subr.bf16.mxu0 0
    %6666 = vmatpush1.bf16.msra.mxu0 0
    %6667 = vmatprep.subr.bf16.mxu0 0
    %6668 = vmatpush1.bf16.msra.mxu0 0
    %6669 = vmatprep.subr.bf16.mxu0 0
    %6670 = vmatpush1.bf16.msra.mxu0 0
    %6671 = vmatprep.subr.bf16.mxu0 0
    %6672 = vmatpush1.bf16.msra.mxu0 0
    %6673 = vmatprep.subr.bf16.mxu0 0
    %6674 = vmatpush1.bf16.msra.mxu0 0
    %6675 = vmatprep.subr.bf16.mxu0 0
    %6676 = vmatpush1.bf16.msra.mxu0 %v6611
    %6677 = vmatprep.subr.bf16.mxu0 0
    %6678 = vmatpush2.bf16.msra.mxu0 0
    %6679 = vmatprep.subr.bf16.mxu0 0
    %6680 = vmatpush2.bf16.msra.mxu0 0
    %6681 = vmatprep.subr.bf16.mxu0 0
    %6682 = vmatpush2.bf16.msra.mxu0 0
    %6683 = vmatprep.subr.bf16.mxu0 0
    %6684 = vmatpush2.bf16.msra.mxu0 0
    %6685 = vmatprep.subr.bf16.mxu0 0
    %6686 = vmatpush2.bf16.msra.mxu0 0
    %6687 = vmatprep.subr.bf16.mxu0 0
    %6688 = vmatpush2.bf16.msra.mxu0 0
    %6689 = vmatprep.subr.bf16.mxu0 0
    %6690 = vmatpush2.bf16.msra.mxu0 0
    %6691 = vmatprep.subr.bf16.mxu0 0
    %6692 = vmatpush2.bf16.msra.mxu0 0
    %6693 = vmatprep.mubr.bf16.mxu0 0
    %6694 = vmatmul.mubr.bf16.gmra.mxu0 %v5945
    %v6695 = vpop.f32.mrf.mxu0
    %v6696 = vadd.f32 0.0, %v6695
    %v6697 = vpop.f32.mrf.mxu0
    %v6698 = vpop.f32.mrf.mxu0
    %v6699 = vadd.f32 0.0, %v6698
    %v6700 = vpop.f32.mrf.mxu0
    %6701 = vmatprep.mubr.bf16.mxu0 0
    %6702 = vmatmul.mubr.bf16.gmra.mxu0 %v5948
    %v6703 = vpop.f32.mrf.mxu0
    %v6704 = vadd.f32 0.0, %v6703
    %v6705 = vpop.f32.mrf.mxu0
    %v6706 = vpop.f32.mrf.mxu0
    %v6707 = vadd.f32 0.0, %v6706
    %v6708 = vpop.f32.mrf.mxu0
    %6709 = vdwg.mxu0
    %v6710 = vpack.c.bf16 %v6699, %v6696
    %v6711 = vpack.c.bf16 %v6707, %v6704
    %v6713 = vlaneseq
    %v6714 = vshrl.u32 %v6713, 7
    %v6715 = vsub.s32 0, %v6714
    %v6716 = vrot.slane %v6660, %v6715
    %v6766 = vunpack.c.l.b16 %v6612
    %v6767 = vunpack.c.l.b16 %v6613
    %v6768 = vunpack.c.l.b16 %v6614
    %v6769 = vunpack.c.l.b16 %v6615
    %v6770 = vunpack.c.l.b16 %v6616
    %v6771 = vunpack.c.l.b16 %v6617
    %v6772 = vunpack.c.l.b16 %v6618
    %v6773 = vunpack.c.l.b16 %v6619
    %v6774 = vunpack.c.l.b16 %v6620
    %v6775 = vunpack.c.l.b16 %v6621
    %v6776 = vunpack.c.l.b16 %v6622
    %v6777 = vunpack.c.l.b16 %v6623
    %v6778 = vunpack.c.l.b16 %v6624
    %v6779 = vunpack.c.l.b16 %v6625
    %v6780 = vunpack.c.l.b16 %v6626
    %v6781 = vunpack.c.l.b16 %v6627
    %v6782 = vunpack.c.l.b16 %v6628
    %v6783 = vunpack.c.l.b16 %v6629
    %v6784 = vunpack.c.l.b16 %v6630
    %v6785 = vunpack.c.l.b16 %v6631
    %v6786 = vunpack.c.l.b16 %v6632
    %v6787 = vunpack.c.l.b16 %v6633
    %v6788 = vunpack.c.l.b16 %v6634
    %v6789 = vunpack.c.l.b16 %v6635
    %v6790 = vunpack.c.l.b16 %v6636
    %v6791 = vunpack.c.l.b16 %v6637
    %v6792 = vunpack.c.l.b16 %v6638
    %v6793 = vunpack.c.l.b16 %v6639
    %v6794 = vunpack.c.l.b16 %v6640
    %v6795 = vunpack.c.l.b16 %v6641
    %v6796 = vunpack.c.l.b16 %v6642
    %v6797 = vunpack.c.l.b16 %v6643
    %v6798 = vunpack.c.l.b16 %v6644
    %v6799 = vunpack.c.l.b16 %v6645
    %v6800 = vunpack.c.l.b16 %v6646
    %v6801 = vunpack.c.l.b16 %v6647
    %v6802 = vunpack.c.l.b16 %v6648
    %v6803 = vunpack.c.l.b16 %v6649
    %v6804 = vunpack.c.l.b16 %v6650
    %v6805 = vunpack.c.l.b16 %v6651
    %v6806 = vunpack.c.l.b16 %v6652
    %v6807 = vunpack.c.l.b16 %v6653
    %v6808 = vunpack.c.l.b16 %v6654
    %v6809 = vunpack.c.l.b16 %v6655
    %v6810 = vunpack.c.l.b16 %v6656
    %v6811 = vunpack.c.l.b16 %v6657
    %v6812 = vunpack.c.l.b16 %v6658
    %v6813 = vunpack.c.l.b16 %v6659
    %v6814 = vpack.c.b16 %v6767, %v6766
    %v6815 = vpack.c.b16 %v6769, %v6768
    %v6816 = vpack.c.b16 %v6771, %v6770
    %v6817 = vpack.c.b16 %v6773, %v6772
    %v6818 = vpack.c.b16 %v6775, %v6774
    %v6819 = vpack.c.b16 %v6777, %v6776
    %v6820 = vpack.c.b16 %v6779, %v6778
    %v6821 = vpack.c.b16 %v6781, %v6780
    %v6822 = vpack.c.b16 %v6783, %v6782
    %v6823 = vpack.c.b16 %v6785, %v6784
    %v6824 = vpack.c.b16 %v6787, %v6786
    %v6825 = vpack.c.b16 %v6789, %v6788
    %v6826 = vpack.c.b16 %v6791, %v6790
    %v6827 = vpack.c.b16 %v6793, %v6792
    %v6828 = vpack.c.b16 %v6795, %v6794
    %v6829 = vpack.c.b16 %v6797, %v6796
    %v6830 = vpack.c.b16 %v6799, %v6798
    %v6831 = vpack.c.b16 %v6801, %v6800
    %v6832 = vpack.c.b16 %v6803, %v6802
    %v6833 = vpack.c.b16 %v6805, %v6804
    %v6834 = vpack.c.b16 %v6807, %v6806
    %v6835 = vpack.c.b16 %v6809, %v6808
    %v6836 = vpack.c.b16 %v6811, %v6810
    %v6837 = vpack.c.b16 %v6813, %v6812
    %6862 = vmatprep.subr.bf16.mxu0 0
    %6863 = vmatpush1.bf16.msra.mxu0 %v6821
    %6864 = vmatprep.subr.bf16.mxu0 0
    %6865 = vmatpush1.bf16.msra.mxu0 %v6820
    %6866 = vmatprep.subr.bf16.mxu0 0
    %6867 = vmatpush1.bf16.msra.mxu0 %v6819
    %6868 = vmatprep.subr.bf16.mxu0 0
    %6869 = vmatpush1.bf16.msra.mxu0 %v6818
    %6870 = vmatprep.subr.bf16.mxu0 0
    %6871 = vmatpush1.bf16.msra.mxu0 %v6817
    %6872 = vmatprep.subr.bf16.mxu0 0
    %6873 = vmatpush1.bf16.msra.mxu0 %v6816
    %6874 = vmatprep.subr.bf16.mxu0 0
    %6875 = vmatpush1.bf16.msra.mxu0 %v6815
    %6876 = vmatprep.subr.bf16.mxu0 0
    %6877 = vmatpush1.bf16.msra.mxu0 %v6814
    %6878 = vmatprep.subr.bf16.mxu0 0
    %6879 = vmatpush2.bf16.msra.mxu0 %v6829
    %6880 = vmatprep.subr.bf16.mxu0 0
    %6881 = vmatpush2.bf16.msra.mxu0 %v6828
    %6882 = vmatprep.subr.bf16.mxu0 0
    %6883 = vmatpush2.bf16.msra.mxu0 %v6827
    %6884 = vmatprep.subr.bf16.mxu0 0
    %6885 = vmatpush2.bf16.msra.mxu0 %v6826
    %6886 = vmatprep.subr.bf16.mxu0 0
    %6887 = vmatpush2.bf16.msra.mxu0 %v6825
    %6888 = vmatprep.subr.bf16.mxu0 0
    %6889 = vmatpush2.bf16.msra.mxu0 %v6824
    %6890 = vmatprep.subr.bf16.mxu0 0
    %6891 = vmatpush2.bf16.msra.mxu0 %v6823
    %6892 = vmatprep.subr.bf16.mxu0 0
    %6893 = vmatpush2.bf16.msra.mxu0 %v6822
    %6894 = vmatprep.mubr.bf16.mxu0 %v6611
    %6895 = vmatmul.mubr.bf16.gmra.mxu0 %v6710
    %v6896 = vpop.f32.mrf.mxu0
    %v6897 = vadd.f32 %v6716, %v6896
    %v6898 = vpop.f32.mrf.mxu0
    %v6899 = vpop.f32.mrf.mxu0
    %v6900 = vadd.f32 %v6716, %v6899
    %v6901 = vpop.f32.mrf.mxu0
    %6902 = vdwg.mxu0
    %6903 = vmatprep.subr.bf16.mxu0 0
    %6904 = vmatpush1.bf16.msra.mxu0 %v6837
    %6905 = vmatprep.subr.bf16.mxu0 0
    %6906 = vmatpush1.bf16.msra.mxu0 %v6836
    %6907 = vmatprep.subr.bf16.mxu0 0
    %6908 = vmatpush1.bf16.msra.mxu0 %v6835
    %6909 = vmatprep.subr.bf16.mxu0 0
    %6910 = vmatpush1.bf16.msra.mxu0 %v6834
    %6911 = vmatprep.subr.bf16.mxu0 0
    %6912 = vmatpush1.bf16.msra.mxu0 %v6833
    %6913 = vmatprep.subr.bf16.mxu0 0
    %6914 = vmatpush1.bf16.msra.mxu0 %v6832
    %6915 = vmatprep.subr.bf16.mxu0 0
    %6916 = vmatpush1.bf16.msra.mxu0 %v6831
    %6917 = vmatprep.subr.bf16.mxu0 0
    %6918 = vmatpush1.bf16.msra.mxu0 %v6830
    %6919 = vmatprep.subr.bf16.mxu0 0
    %6920 = vmatpush2.bf16.msra.mxu0 0
    %6921 = vmatprep.subr.bf16.mxu0 0
    %6922 = vmatpush2.bf16.msra.mxu0 0
    %6923 = vmatprep.subr.bf16.mxu0 0
    %6924 = vmatpush2.bf16.msra.mxu0 0
    %6925 = vmatprep.subr.bf16.mxu0 0
    %6926 = vmatpush2.bf16.msra.mxu0 0
    %6927 = vmatprep.subr.bf16.mxu0 0
    %6928 = vmatpush2.bf16.msra.mxu0 0
    %6929 = vmatprep.subr.bf16.mxu0 0
    %6930 = vmatpush2.bf16.msra.mxu0 0
    %6931 = vmatprep.subr.bf16.mxu0 0
    %6932 = vmatpush2.bf16.msra.mxu0 0
    %6933 = vmatprep.subr.bf16.mxu0 0
    %6934 = vmatpush2.bf16.msra.mxu0 0
    %6935 = vmatprep.mubr.bf16.mxu0 0
    %6936 = vmatmul.mubr.bf16.gmra.mxu0 %v6711
    %v6937 = vpop.f32.mrf.mxu0
    %v6938 = vadd.f32 %v6897, %v6937
    %v6939 = vpop.f32.mrf.mxu0
    %v6940 = vpop.f32.mrf.mxu0
    %v6941 = vadd.f32 %v6900, %v6940
    %v6942 = vpop.f32.mrf.mxu0
    %6943 = vdwg.mxu0
    %v6944 = vmax.f32 %v6938, 0.0
    %v6945 = vmax.f32 %v6941, 0.0
    %v6946 = vpack.c.bf16 %v6945, %v6944
    %v6947 = vld [vmem:[#allocation39] sm:$0xff]
    %v6948 = vld [vmem:[#allocation39 + $0x8] sm:$0xff]
    %v6949 = vld [vmem:[#allocation39 + $0x10] sm:$0xff]
    %v6950 = vld [vmem:[#allocation39 + $0x18] sm:$0xff]
    %v6951 = vld [vmem:[#allocation39 + $0x20] sm:$0xff]
    %v6952 = vld [vmem:[#allocation39 + $0x28] sm:$0xff]
    %v6953 = vld [vmem:[#allocation39 + $0x30] sm:$0xff]
    %v6954 = vld [vmem:[#allocation39 + $0x38] sm:$0xff]
    %v6955 = vld [vmem:[#allocation39 + $0x40] sm:$0xff]
    %v6956 = vld [vmem:[#allocation39 + $0x48] sm:$0xff]
    %v6957 = vld [vmem:[#allocation39 + $0x50] sm:$0xff]
    %v6958 = vld [vmem:[#allocation39 + $0x58] sm:$0xff]
    %v6959 = vld [vmem:[#allocation39 + $0x60] sm:$0xff]
    %v6960 = vld [vmem:[#allocation39 + $0x68] sm:$0xff]
    %v6961 = vld [vmem:[#allocation39 + $0x70] sm:$0xff]
    %v6962 = vld [vmem:[#allocation39 + $0x78] sm:$0xff]
    %v6979 = vunpack.c.l.b16 %v6947
    %v6980 = vunpack.c.h.b16 %v6947
    %v6981 = vunpack.c.l.b16 %v6948
    %v6982 = vunpack.c.h.b16 %v6948
    %v6983 = vunpack.c.l.b16 %v6949
    %v6984 = vunpack.c.h.b16 %v6949
    %v6985 = vunpack.c.l.b16 %v6950
    %v6986 = vunpack.c.h.b16 %v6950
    %v6987 = vunpack.c.l.b16 %v6951
    %v6988 = vunpack.c.h.b16 %v6951
    %v6989 = vunpack.c.l.b16 %v6952
    %v6990 = vunpack.c.h.b16 %v6952
    %v6991 = vunpack.c.l.b16 %v6953
    %v6992 = vunpack.c.h.b16 %v6953
    %v6993 = vunpack.c.l.b16 %v6954
    %v6994 = vunpack.c.h.b16 %v6954
    %v6995 = vunpack.c.l.b16 %v6955
    %v6996 = vunpack.c.h.b16 %v6955
    %v6997 = vunpack.c.l.b16 %v6956
    %v6998 = vunpack.c.h.b16 %v6956
    %v6999 = vunpack.c.l.b16 %v6957
    %v7000 = vunpack.c.h.b16 %v6957
    %v7001 = vunpack.c.l.b16 %v6958
    %v7002 = vunpack.c.h.b16 %v6958
    %v7003 = vunpack.c.l.b16 %v6959
    %v7004 = vunpack.c.h.b16 %v6959
    %v7005 = vunpack.c.l.b16 %v6960
    %v7006 = vunpack.c.h.b16 %v6960
    %v7007 = vunpack.c.l.b16 %v6961
    %v7008 = vunpack.c.h.b16 %v6961
    %v7009 = vunpack.c.l.b16 %v6962
    %v7010 = vunpack.c.h.b16 %v6962
    %v7011 = vpack.c.b16 %v6981, %v6979
    %v7012 = vpack.c.b16 %v6982, %v6980
    %v7013 = vpack.c.b16 %v6985, %v6983
    %v7014 = vpack.c.b16 %v6986, %v6984
    %v7015 = vpack.c.b16 %v6989, %v6987
    %v7016 = vpack.c.b16 %v6990, %v6988
    %v7017 = vpack.c.b16 %v6993, %v6991
    %v7018 = vpack.c.b16 %v6994, %v6992
    %v7019 = vpack.c.b16 %v6997, %v6995
    %v7020 = vpack.c.b16 %v6998, %v6996
    %v7021 = vpack.c.b16 %v7001, %v6999
    %v7022 = vpack.c.b16 %v7002, %v7000
    %v7023 = vpack.c.b16 %v7005, %v7003
    %v7024 = vpack.c.b16 %v7006, %v7004
    %v7025 = vpack.c.b16 %v7009, %v7007
    %v7026 = vpack.c.b16 %v7010, %v7008
    %7043 = vmatprep.subr.bf16.mxu0 %v7026
    %7044 = vmatpush1.bf16.msra.mxu0 %v7025
    %7045 = vmatprep.subr.bf16.mxu0 %v7024
    %7046 = vmatpush1.bf16.msra.mxu0 %v7023
    %7047 = vmatprep.subr.bf16.mxu0 %v7022
    %7048 = vmatpush1.bf16.msra.mxu0 %v7021
    %7049 = vmatprep.subr.bf16.mxu0 %v7020
    %7050 = vmatpush1.bf16.msra.mxu0 %v7019
    %7051 = vmatprep.subr.bf16.mxu0 %v7018
    %7052 = vmatpush1.bf16.msra.mxu0 %v7017
    %7053 = vmatprep.subr.bf16.mxu0 %v7016
    %7054 = vmatpush1.bf16.msra.mxu0 %v7015
    %7055 = vmatprep.subr.bf16.mxu0 %v7014
    %7056 = vmatpush1.bf16.msra.mxu0 %v7013
    %7057 = vmatprep.subr.bf16.mxu0 %v7012
    %7058 = vmatpush1.bf16.msra.mxu0 %v7011
    %7059 = vmatprep.subr.bf16.mxu0 0
    %7060 = vmatpush2.bf16.msra.mxu0 0
    %7061 = vmatprep.subr.bf16.mxu0 0
    %7062 = vmatpush2.bf16.msra.mxu0 0
    %7063 = vmatprep.subr.bf16.mxu0 0
    %7064 = vmatpush2.bf16.msra.mxu0 0
    %7065 = vmatprep.subr.bf16.mxu0 0
    %7066 = vmatpush2.bf16.msra.mxu0 0
    %7067 = vmatprep.subr.bf16.mxu0 0
    %7068 = vmatpush2.bf16.msra.mxu0 0
    %7069 = vmatprep.subr.bf16.mxu0 0
    %7070 = vmatpush2.bf16.msra.mxu0 0
    %7071 = vmatprep.subr.bf16.mxu0 0
    %7072 = vmatpush2.bf16.msra.mxu0 0
    %7073 = vmatprep.subr.bf16.mxu0 0
    %7074 = vmatpush2.bf16.msra.mxu0 0
    %7075 = vmatprep.mubr.bf16.mxu0 0
    %7076 = vmatmul.mubr.bf16.gmra.mxu0 %v6946
    %v7077 = vpop.f32.mrf.mxu0
    %v7078 = vadd.f32 0.0, %v7077
    %v7079 = vpop.f32.mrf.mxu0
    %v7080 = vadd.f32 0.0, %v7079
    %v7081 = vpop.f32.mrf.mxu0
    %v7082 = vadd.f32 0.0, %v7081
    %v7083 = vpop.f32.mrf.mxu0
    %v7084 = vadd.f32 0.0, %v7083
    %7085 = vdwg.mxu0
    %v7086 = vld [vmem:[%s111] sm:$0xff]
    %v7087 = vld [vmem:[%s111 + $0x8] sm:$0xff]
    %v7088 = vld [vmem:[%s111 + $0x10] sm:$0xff]
    %v7089 = vld [vmem:[%s111 + $0x18] sm:$0xff]
    %v7090 = vld [vmem:[%s113] sm:$0xff]
    %v7091 = vld [vmem:[%s113 + $0x8] sm:$0xff]
    %v7092 = vld [vmem:[%s113 + $0x10] sm:$0xff]
    %v7093 = vld [vmem:[%s113 + $0x18] sm:$0xff]
    %v7095 = vsel %vm2935, %v7090, 0
    %v7098 = vsel %vm2935, %v7091, 0
    %v7101 = vsel %vm2935, %v7092, 0
    %v7104 = vsel %vm2935, %v7093, 0
    %7106 = vmatprep.subr.mxu0 0.0
    %7107 = vmatpush1.msra.mxu0 0.0
    %7108 = vmatprep.subr.mxu0 0.0
    %7109 = vmatpush1.msra.mxu0 0.0
    %7110 = vmatprep.subr.mxu0 0.0
    %7111 = vmatpush1.msra.mxu0 0.0
    %7112 = vmatprep.subr.mxu0 0.0
    %7113 = vmatpush1.msra.mxu0 0.0
    %7114 = vmatprep.subr.mxu0 0.0
    %7115 = vmatpush1.msra.mxu0 0.0
    %7116 = vmatprep.subr.mxu0 0.0
    %7117 = vmatpush1.msra.mxu0 0.0
    %7118 = vmatprep.subr.mxu0 0.0
    %7119 = vmatpush1.msra.mxu0 0.0
    %7120 = vmatprep.subr.mxu0 0.0
    %7121 = vmatpush1.msra.mxu0 0.0
    %7122 = vmatprep.subr.mxu0 0.0
    %7123 = vmatpush1.msra.mxu0 0.0
    %7124 = vmatprep.subr.mxu0 0.0
    %7125 = vmatpush1.msra.mxu0 0.0
    %7126 = vmatprep.subr.mxu0 0.0
    %7127 = vmatpush1.msra.mxu0 0.0
    %7128 = vmatprep.subr.mxu0 0.0
    %7129 = vmatpush1.msra.mxu0 0.0
    %7130 = vmatprep.subr.mxu0 0.0
    %7131 = vmatpush1.msra.mxu0 0.0
    %7132 = vmatprep.subr.mxu0 0.0
    %7133 = vmatpush1.msra.mxu0 0.0
    %7134 = vmatprep.subr.mxu0 0.0
    %7135 = vmatpush1.msra.mxu0 %v7084
    %7136 = vmatprep.subr.mxu0 0.0
    %7137 = vmatpush1.msra.mxu0 %v7080
    %7138 = vmatprep.subr.mxu0 0.0
    %7139 = vmatpush2.msra.mxu0 0.0
    %7140 = vmatprep.subr.mxu0 0.0
    %7141 = vmatpush2.msra.mxu0 0.0
    %7142 = vmatprep.subr.mxu0 0.0
    %7143 = vmatpush2.msra.mxu0 0.0
    %7144 = vmatprep.subr.mxu0 0.0
    %7145 = vmatpush2.msra.mxu0 0.0
    %7146 = vmatprep.subr.mxu0 0.0
    %7147 = vmatpush2.msra.mxu0 0.0
    %7148 = vmatprep.subr.mxu0 0.0
    %7149 = vmatpush2.msra.mxu0 0.0
    %7150 = vmatprep.subr.mxu0 0.0
    %7151 = vmatpush2.msra.mxu0 0.0
    %7152 = vmatprep.subr.mxu0 0.0
    %7153 = vmatpush2.msra.mxu0 0.0
    %7154 = vmatprep.subr.mxu0 0.0
    %7155 = vmatpush2.msra.mxu0 0.0
    %7156 = vmatprep.subr.mxu0 0.0
    %7157 = vmatpush2.msra.mxu0 0.0
    %7158 = vmatprep.subr.mxu0 0.0
    %7159 = vmatpush2.msra.mxu0 0.0
    %7160 = vmatprep.subr.mxu0 0.0
    %7161 = vmatpush2.msra.mxu0 0.0
    %7162 = vmatprep.subr.mxu0 0.0
    %7163 = vmatpush2.msra.mxu0 0.0
    %7164 = vmatprep.subr.mxu0 0.0
    %7165 = vmatpush2.msra.mxu0 0.0
    %7166 = vmatprep.subr.mxu0 0.0
    %7167 = vmatpush2.msra.mxu0 0.0
    %7168 = vmatprep.subr.mxu0 0.0
    %7169 = vmatpush2.msra.mxu0 0.0
    %7170 = vmatprep.mubr.f32.mxu0 0.0
    %7171 = vmatmul.mubr.f32.gmra.mxu0 %v7095
    %v7172 = vpop.f32.mrf.mxu0
    %v7173 = vadd.f32 0.0, %v7172
    %v7174 = vpop.f32.mrf.mxu0
    %7175 = vmatprep.mubr.f32.mxu0 0.0
    %7176 = vmatmul.mubr.f32.gmra.mxu0 %v7098
    %v7177 = vpop.f32.mrf.mxu0
    %v7178 = vadd.f32 0.0, %v7177
    %v7179 = vpop.f32.mrf.mxu0
    %7180 = vmatprep.mubr.f32.mxu0 0.0
    %7181 = vmatmul.mubr.f32.gmra.mxu0 %v7101
    %v7182 = vpop.f32.mrf.mxu0
    %v7183 = vadd.f32 0.0, %v7182
    %v7184 = vpop.f32.mrf.mxu0
    %7185 = vmatprep.mubr.f32.mxu0 0.0
    %7186 = vmatmul.mubr.f32.gmra.mxu0 %v7104
    %v7187 = vpop.f32.mrf.mxu0
    %v7188 = vadd.f32 0.0, %v7187
    %v7189 = vpop.f32.mrf.mxu0
    %7190 = vdwg.mxu0
    %v7192 = vsel %vm2935, %v7086, 0
    %v7195 = vsel %vm2935, %v7087, 0
    %v7198 = vsel %vm2935, %v7088, 0
    %v7201 = vsel %vm2935, %v7089, 0
    %7203 = vmatprep.subr.mxu0 0.0
    %7204 = vmatpush1.msra.mxu0 0.0
    %7205 = vmatprep.subr.mxu0 0.0
    %7206 = vmatpush1.msra.mxu0 0.0
    %7207 = vmatprep.subr.mxu0 0.0
    %7208 = vmatpush1.msra.mxu0 0.0
    %7209 = vmatprep.subr.mxu0 0.0
    %7210 = vmatpush1.msra.mxu0 0.0
    %7211 = vmatprep.subr.mxu0 0.0
    %7212 = vmatpush1.msra.mxu0 0.0
    %7213 = vmatprep.subr.mxu0 0.0
    %7214 = vmatpush1.msra.mxu0 0.0
    %7215 = vmatprep.subr.mxu0 0.0
    %7216 = vmatpush1.msra.mxu0 0.0
    %7217 = vmatprep.subr.mxu0 0.0
    %7218 = vmatpush1.msra.mxu0 0.0
    %7219 = vmatprep.subr.mxu0 0.0
    %7220 = vmatpush1.msra.mxu0 0.0
    %7221 = vmatprep.subr.mxu0 0.0
    %7222 = vmatpush1.msra.mxu0 0.0
    %7223 = vmatprep.subr.mxu0 0.0
    %7224 = vmatpush1.msra.mxu0 0.0
    %7225 = vmatprep.subr.mxu0 0.0
    %7226 = vmatpush1.msra.mxu0 0.0
    %7227 = vmatprep.subr.mxu0 0.0
    %7228 = vmatpush1.msra.mxu0 0.0
    %7229 = vmatprep.subr.mxu0 0.0
    %7230 = vmatpush1.msra.mxu0 0.0
    %7231 = vmatprep.subr.mxu0 0.0
    %7232 = vmatpush1.msra.mxu0 %v7082
    %7233 = vmatprep.subr.mxu0 0.0
    %7234 = vmatpush1.msra.mxu0 %v7078
    %7235 = vmatprep.subr.mxu0 0.0
    %7236 = vmatpush2.msra.mxu0 0.0
    %7237 = vmatprep.subr.mxu0 0.0
    %7238 = vmatpush2.msra.mxu0 0.0
    %7239 = vmatprep.subr.mxu0 0.0
    %7240 = vmatpush2.msra.mxu0 0.0
    %7241 = vmatprep.subr.mxu0 0.0
    %7242 = vmatpush2.msra.mxu0 0.0
    %7243 = vmatprep.subr.mxu0 0.0
    %7244 = vmatpush2.msra.mxu0 0.0
    %7245 = vmatprep.subr.mxu0 0.0
    %7246 = vmatpush2.msra.mxu0 0.0
    %7247 = vmatprep.subr.mxu0 0.0
    %7248 = vmatpush2.msra.mxu0 0.0
    %7249 = vmatprep.subr.mxu0 0.0
    %7250 = vmatpush2.msra.mxu0 0.0
    %7251 = vmatprep.subr.mxu0 0.0
    %7252 = vmatpush2.msra.mxu0 0.0
    %7253 = vmatprep.subr.mxu0 0.0
    %7254 = vmatpush2.msra.mxu0 0.0
    %7255 = vmatprep.subr.mxu0 0.0
    %7256 = vmatpush2.msra.mxu0 0.0
    %7257 = vmatprep.subr.mxu0 0.0
    %7258 = vmatpush2.msra.mxu0 0.0
    %7259 = vmatprep.subr.mxu0 0.0
    %7260 = vmatpush2.msra.mxu0 0.0
    %7261 = vmatprep.subr.mxu0 0.0
    %7262 = vmatpush2.msra.mxu0 0.0
    %7263 = vmatprep.subr.mxu0 0.0
    %7264 = vmatpush2.msra.mxu0 0.0
    %7265 = vmatprep.subr.mxu0 0.0
    %7266 = vmatpush2.msra.mxu0 0.0
    %7267 = vmatprep.mubr.f32.mxu0 0.0
    %7268 = vmatmul.mubr.f32.gmra.mxu0 %v7192
    %v7269 = vpop.f32.mrf.mxu0
    %v7270 = vadd.f32 %v7173, %v7269
    %v7271 = vpop.f32.mrf.mxu0
    %7272 = vmatprep.mubr.f32.mxu0 0.0
    %7273 = vmatmul.mubr.f32.gmra.mxu0 %v7195
    %v7274 = vpop.f32.mrf.mxu0
    %v7275 = vadd.f32 %v7178, %v7274
    %v7276 = vpop.f32.mrf.mxu0
    %7277 = vmatprep.mubr.f32.mxu0 0.0
    %7278 = vmatmul.mubr.f32.gmra.mxu0 %v7198
    %v7279 = vpop.f32.mrf.mxu0
    %v7280 = vadd.f32 %v7183, %v7279
    %v7281 = vpop.f32.mrf.mxu0
    %7282 = vmatprep.mubr.f32.mxu0 0.0
    %7283 = vmatmul.mubr.f32.gmra.mxu0 %v7201
    %v7284 = vpop.f32.mrf.mxu0
    %v7285 = vadd.f32 %v7188, %v7284
    %v7286 = vpop.f32.mrf.mxu0
    %7287 = vdwg.mxu0
    %v7288 = vld [vmem:[#allocation40] sm:$0x1]
    %v7290 = vlaneseq
    %v7291 = vshrl.u32 %v7290, 7
    %v7292 = vsub.s32 0, %v7291
    %v7293 = vrot.slane %v7288, %v7292
    %v7295 = vadd.f32 %v7270, %v7293
    %v7296 = vadd.f32 %v7275, %v7293
    %v7297 = vadd.f32 %v7280, %v7293
    %v7298 = vadd.f32 %v7285, %v7293
    %v7299 = vpack.c.bf16 %v7296, %v7295
    %v7300 = vpack.c.bf16 %v7298, %v7297
    %v7301 = vunpack.c.l.bf16 %v1538
    %v7302 = vunpack.c.h.bf16 %v1538
    %v7303 = vunpack.c.l.bf16 %v1539
    %v7304 = vunpack.c.h.bf16 %v1539
    %v7305 = vunpack.c.l.bf16 %v1540
    %v7306 = vunpack.c.h.bf16 %v1540
    %v7307 = vunpack.c.l.bf16 %v1541
    %v7308 = vunpack.c.h.bf16 %v1541
    %v7309 = vsub.f32 %v7301, %v7305
    %v7310 = vsub.f32 %v7302, %v7306
    %v7311 = vsub.f32 %v7303, %v7307
    %v7312 = vsub.f32 %v7304, %v7308
    %v7313 = vand.u32 2147483647, %v7309
    %v7314 = vand.u32 2147483647, %v7310
    %v7315 = vand.u32 2147483647, %v7311
    %v7316 = vand.u32 2147483647, %v7312
    %v7317 = vpack.c.bf16 %v7314, %v7313
    %v7318 = vpack.c.bf16 %v7316, %v7315
    %v7319 = vld [vmem:[%s125] sm:$0xf]
    %v7320 = vld [vmem:[%s125 + $0x4] sm:$0xf]
    %v7321 = vld [vmem:[%s125 + $0x8] sm:$0xf]
    %v7322 = vld [vmem:[%s125 + $0xc] sm:$0xf]
    %v7323 = vld [vmem:[%s125 + $0x10] sm:$0xf]
    %v7324 = vld [vmem:[%s125 + $0x14] sm:$0xf]
    %v7325 = vld [vmem:[%s125 + $0x18] sm:$0xf]
    %v7326 = vld [vmem:[%s125 + $0x1c] sm:$0xf]
    %v7335 = vunpack.c.l.b16 %v7319
    %v7336 = vunpack.c.l.b16 %v7320
    %v7337 = vunpack.c.l.b16 %v7321
    %v7338 = vunpack.c.l.b16 %v7322
    %v7339 = vunpack.c.l.b16 %v7323
    %v7340 = vunpack.c.l.b16 %v7324
    %v7341 = vunpack.c.l.b16 %v7325
    %v7342 = vunpack.c.l.b16 %v7326
    %v7343 = vpack.c.b16 %v7336, %v7335
    %v7344 = vpack.c.b16 %v7338, %v7337
    %v7345 = vpack.c.b16 %v7340, %v7339
    %v7346 = vpack.c.b16 %v7342, %v7341
    %v7348 = vsel %vm1971, %v7343, 0
    %v7351 = vsel %vm1971, %v7344, 0
    %v7354 = vsel %vm1971, %v7345, 0
    %v7357 = vsel %vm1971, %v7346, 0
    %7359 = vmatprep.subr.bf16.mxu0 0
    %7360 = vmatpush1.bf16.msra.mxu0 0
    %7361 = vmatprep.subr.bf16.mxu0 0
    %7362 = vmatpush1.bf16.msra.mxu0 0
    %7363 = vmatprep.subr.bf16.mxu0 0
    %7364 = vmatpush1.bf16.msra.mxu0 0
    %7365 = vmatprep.subr.bf16.mxu0 0
    %7366 = vmatpush1.bf16.msra.mxu0 0
    %7367 = vmatprep.subr.bf16.mxu0 0
    %7368 = vmatpush1.bf16.msra.mxu0 0
    %7369 = vmatprep.subr.bf16.mxu0 0
    %7370 = vmatpush1.bf16.msra.mxu0 0
    %7371 = vmatprep.subr.bf16.mxu0 0
    %7372 = vmatpush1.bf16.msra.mxu0 %v7318
    %7373 = vmatprep.subr.bf16.mxu0 0
    %7374 = vmatpush1.bf16.msra.mxu0 %v7317
    %7375 = vmatprep.subr.bf16.mxu0 0
    %7376 = vmatpush2.bf16.msra.mxu0 0
    %7377 = vmatprep.subr.bf16.mxu0 0
    %7378 = vmatpush2.bf16.msra.mxu0 0
    %7379 = vmatprep.subr.bf16.mxu0 0
    %7380 = vmatpush2.bf16.msra.mxu0 0
    %7381 = vmatprep.subr.bf16.mxu0 0
    %7382 = vmatpush2.bf16.msra.mxu0 0
    %7383 = vmatprep.subr.bf16.mxu0 0
    %7384 = vmatpush2.bf16.msra.mxu0 0
    %7385 = vmatprep.subr.bf16.mxu0 0
    %7386 = vmatpush2.bf16.msra.mxu0 0
    %7387 = vmatprep.subr.bf16.mxu0 0
    %7388 = vmatpush2.bf16.msra.mxu0 0
    %7389 = vmatprep.subr.bf16.mxu0 0
    %7390 = vmatpush2.bf16.msra.mxu0 0
    %7391 = vmatprep.mubr.bf16.mxu0 0
    %7392 = vmatmul.mubr.bf16.gmra.mxu0 %v7348
    %v7393 = vpop.f32.mrf.mxu0
    %v7394 = vadd.f32 0.0, %v7393
    %v7395 = vpop.f32.mrf.mxu0
    %v7396 = vpop.f32.mrf.mxu0
    %v7397 = vadd.f32 0.0, %v7396
    %v7398 = vpop.f32.mrf.mxu0
    %7399 = vmatprep.mubr.bf16.mxu0 0
    %7400 = vmatmul.mubr.bf16.gmra.mxu0 %v7351
    %v7401 = vpop.f32.mrf.mxu0
    %v7402 = vadd.f32 0.0, %v7401
    %v7403 = vpop.f32.mrf.mxu0
    %v7404 = vpop.f32.mrf.mxu0
    %v7405 = vadd.f32 0.0, %v7404
    %v7406 = vpop.f32.mrf.mxu0
    %7407 = vmatprep.mubr.bf16.mxu0 0
    %7408 = vmatmul.mubr.bf16.gmra.mxu0 %v7354
    %v7409 = vpop.f32.mrf.mxu0
    %v7410 = vadd.f32 0.0, %v7409
    %v7411 = vpop.f32.mrf.mxu0
    %v7412 = vpop.f32.mrf.mxu0
    %v7413 = vadd.f32 0.0, %v7412
    %v7414 = vpop.f32.mrf.mxu0
    %7415 = vmatprep.mubr.bf16.mxu0 0
    %7416 = vmatmul.mubr.bf16.gmra.mxu0 %v7357
    %v7417 = vpop.f32.mrf.mxu0
    %v7418 = vadd.f32 0.0, %v7417
    %v7419 = vpop.f32.mrf.mxu0
    %v7420 = vpop.f32.mrf.mxu0
    %v7421 = vadd.f32 0.0, %v7420
    %v7422 = vpop.f32.mrf.mxu0
    %7423 = vdwg.mxu0
    %v7424 = vpack.c.bf16 %v7397, %v7394
    %v7425 = vpack.c.bf16 %v7405, %v7402
    %v7426 = vpack.c.bf16 %v7413, %v7410
    %v7427 = vpack.c.bf16 %v7421, %v7418
    %v7428 = vld [vmem:[#allocation42] sm:$0xf]
    %v7429 = vld [vmem:[#allocation42 + $0x4] sm:$0xf]
    %v7430 = vld [vmem:[#allocation42 + $0x8] sm:$0xf]
    %v7431 = vld [vmem:[#allocation42 + $0xc] sm:$0xf]
    %v7432 = vld [vmem:[#allocation42 + $0x10] sm:$0xf]
    %v7433 = vld [vmem:[#allocation42 + $0x14] sm:$0xf]
    %v7434 = vld [vmem:[#allocation42 + $0x18] sm:$0xf]
    %v7435 = vld [vmem:[#allocation42 + $0x1c] sm:$0xf]
    %v7436 = vld [vmem:[#allocation42 + $0x20] sm:$0xf]
    %v7437 = vld [vmem:[#allocation42 + $0x24] sm:$0xf]
    %v7438 = vld [vmem:[#allocation42 + $0x28] sm:$0xf]
    %v7439 = vld [vmem:[#allocation42 + $0x2c] sm:$0xf]
    %v7440 = vld [vmem:[#allocation42 + $0x30] sm:$0xf]
    %v7441 = vld [vmem:[#allocation42 + $0x34] sm:$0xf]
    %v7442 = vld [vmem:[#allocation42 + $0x38] sm:$0xf]
    %v7443 = vld [vmem:[#allocation42 + $0x3c] sm:$0xf]
    %v7444 = vld [vmem:[#allocation42 + $0x40] sm:$0xf]
    %v7445 = vld [vmem:[#allocation42 + $0x44] sm:$0xf]
    %v7446 = vld [vmem:[#allocation42 + $0x48] sm:$0xf]
    %v7447 = vld [vmem:[#allocation42 + $0x4c] sm:$0xf]
    %v7448 = vld [vmem:[#allocation42 + $0x50] sm:$0xf]
    %v7449 = vld [vmem:[#allocation42 + $0x54] sm:$0xf]
    %v7450 = vld [vmem:[#allocation42 + $0x58] sm:$0xf]
    %v7451 = vld [vmem:[#allocation42 + $0x5c] sm:$0xf]
    %v7452 = vld [vmem:[#allocation42 + $0x60] sm:$0xf]
    %v7453 = vld [vmem:[#allocation42 + $0x64] sm:$0xf]
    %v7454 = vld [vmem:[#allocation42 + $0x68] sm:$0xf]
    %v7455 = vld [vmem:[#allocation42 + $0x6c] sm:$0xf]
    %v7456 = vld [vmem:[#allocation42 + $0x70] sm:$0xf]
    %v7457 = vld [vmem:[#allocation42 + $0x74] sm:$0xf]
    %v7458 = vld [vmem:[#allocation42 + $0x78] sm:$0xf]
    %v7459 = vld [vmem:[#allocation42 + $0x7c] sm:$0xf]
    %v7460 = vld [vmem:[#allocation42 + $0x80] sm:$0xf]
    %v7461 = vld [vmem:[#allocation42 + $0x84] sm:$0xf]
    %v7462 = vld [vmem:[#allocation42 + $0x88] sm:$0xf]
    %v7463 = vld [vmem:[#allocation42 + $0x8c] sm:$0xf]
    %v7464 = vld [vmem:[#allocation42 + $0x90] sm:$0xf]
    %v7465 = vld [vmem:[#allocation42 + $0x94] sm:$0xf]
    %v7466 = vld [vmem:[#allocation42 + $0x98] sm:$0xf]
    %v7467 = vld [vmem:[#allocation42 + $0x9c] sm:$0xf]
    %v7468 = vld [vmem:[#allocation42 + $0xa0] sm:$0xf]
    %v7469 = vld [vmem:[#allocation42 + $0xa4] sm:$0xf]
    %v7470 = vld [vmem:[#allocation42 + $0xa8] sm:$0xf]
    %v7471 = vld [vmem:[#allocation42 + $0xac] sm:$0xf]
    %v7472 = vld [vmem:[#allocation42 + $0xb0] sm:$0xf]
    %v7473 = vld [vmem:[#allocation42 + $0xb4] sm:$0xf]
    %v7474 = vld [vmem:[#allocation42 + $0xb8] sm:$0xf]
    %v7475 = vld [vmem:[#allocation42 + $0xbc] sm:$0xf]
    %7476 = vmatprep.subr.bf16.mxu0 0
    %7477 = vmatpush1.bf16.msra.mxu0 0
    %7478 = vmatprep.subr.bf16.mxu0 0
    %7479 = vmatpush1.bf16.msra.mxu0 0
    %7480 = vmatprep.subr.bf16.mxu0 0
    %7481 = vmatpush1.bf16.msra.mxu0 0
    %7482 = vmatprep.subr.bf16.mxu0 0
    %7483 = vmatpush1.bf16.msra.mxu0 0
    %7484 = vmatprep.subr.bf16.mxu0 0
    %7485 = vmatpush1.bf16.msra.mxu0 0
    %7486 = vmatprep.subr.bf16.mxu0 0
    %7487 = vmatpush1.bf16.msra.mxu0 0
    %7488 = vmatprep.subr.bf16.mxu0 0
    %7489 = vmatpush1.bf16.msra.mxu0 %v7300
    %7490 = vmatprep.subr.bf16.mxu0 0
    %7491 = vmatpush1.bf16.msra.mxu0 %v7299
    %7492 = vmatprep.subr.bf16.mxu0 0
    %7493 = vmatpush2.bf16.msra.mxu0 0
    %7494 = vmatprep.subr.bf16.mxu0 0
    %7495 = vmatpush2.bf16.msra.mxu0 0
    %7496 = vmatprep.subr.bf16.mxu0 0
    %7497 = vmatpush2.bf16.msra.mxu0 0
    %7498 = vmatprep.subr.bf16.mxu0 0
    %7499 = vmatpush2.bf16.msra.mxu0 0
    %7500 = vmatprep.subr.bf16.mxu0 0
    %7501 = vmatpush2.bf16.msra.mxu0 0
    %7502 = vmatprep.subr.bf16.mxu0 0
    %7503 = vmatpush2.bf16.msra.mxu0 0
    %7504 = vmatprep.subr.bf16.mxu0 0
    %7505 = vmatpush2.bf16.msra.mxu0 0
    %7506 = vmatprep.subr.bf16.mxu0 0
    %7507 = vmatpush2.bf16.msra.mxu0 0
    %7508 = vmatprep.mubr.bf16.mxu0 0
    %7509 = vmatmul.mubr.bf16.gmra.mxu0 %v7348
    %v7510 = vpop.f32.mrf.mxu0
    %v7511 = vadd.f32 0.0, %v7510
    %v7512 = vpop.f32.mrf.mxu0
    %v7513 = vpop.f32.mrf.mxu0
    %v7514 = vadd.f32 0.0, %v7513
    %v7515 = vpop.f32.mrf.mxu0
    %7516 = vmatprep.mubr.bf16.mxu0 0
    %7517 = vmatmul.mubr.bf16.gmra.mxu0 %v7351
    %v7518 = vpop.f32.mrf.mxu0
    %v7519 = vadd.f32 0.0, %v7518
    %v7520 = vpop.f32.mrf.mxu0
    %v7521 = vpop.f32.mrf.mxu0
    %v7522 = vadd.f32 0.0, %v7521
    %v7523 = vpop.f32.mrf.mxu0
    %7524 = vmatprep.mubr.bf16.mxu0 0
    %7525 = vmatmul.mubr.bf16.gmra.mxu0 %v7354
    %v7526 = vpop.f32.mrf.mxu0
    %v7527 = vadd.f32 0.0, %v7526
    %v7528 = vpop.f32.mrf.mxu0
    %v7529 = vpop.f32.mrf.mxu0
    %v7530 = vadd.f32 0.0, %v7529
    %v7531 = vpop.f32.mrf.mxu0
    %7532 = vmatprep.mubr.bf16.mxu0 0
    %7533 = vmatmul.mubr.bf16.gmra.mxu0 %v7357
    %v7534 = vpop.f32.mrf.mxu0
    %v7535 = vadd.f32 0.0, %v7534
    %v7536 = vpop.f32.mrf.mxu0
    %v7537 = vpop.f32.mrf.mxu0
    %v7538 = vadd.f32 0.0, %v7537
    %v7539 = vpop.f32.mrf.mxu0
    %7540 = vdwg.mxu0
    %v7541 = vpack.c.bf16 %v7514, %v7511
    %v7542 = vpack.c.bf16 %v7522, %v7519
    %v7543 = vpack.c.bf16 %v7530, %v7527
    %v7544 = vpack.c.bf16 %v7538, %v7535
    %v7545 = vld [vmem:[#allocation43] sm:$0xf]
    %v7546 = vld [vmem:[#allocation43 + $0x4] sm:$0xf]
    %v7547 = vld [vmem:[#allocation43 + $0x8] sm:$0xf]
    %v7548 = vld [vmem:[#allocation43 + $0xc] sm:$0xf]
    %v7549 = vld [vmem:[#allocation43 + $0x10] sm:$0xf]
    %v7550 = vld [vmem:[#allocation43 + $0x14] sm:$0xf]
    %v7551 = vld [vmem:[#allocation43 + $0x18] sm:$0xf]
    %v7552 = vld [vmem:[#allocation43 + $0x1c] sm:$0xf]
    %v7553 = vld [vmem:[#allocation43 + $0x20] sm:$0xf]
    %v7554 = vld [vmem:[#allocation43 + $0x24] sm:$0xf]
    %v7555 = vld [vmem:[#allocation43 + $0x28] sm:$0xf]
    %v7556 = vld [vmem:[#allocation43 + $0x2c] sm:$0xf]
    %v7557 = vld [vmem:[#allocation43 + $0x30] sm:$0xf]
    %v7558 = vld [vmem:[#allocation43 + $0x34] sm:$0xf]
    %v7559 = vld [vmem:[#allocation43 + $0x38] sm:$0xf]
    %v7560 = vld [vmem:[#allocation43 + $0x3c] sm:$0xf]
    %v7561 = vld [vmem:[#allocation43 + $0x40] sm:$0xf]
    %v7562 = vld [vmem:[#allocation43 + $0x44] sm:$0xf]
    %v7563 = vld [vmem:[#allocation43 + $0x48] sm:$0xf]
    %v7564 = vld [vmem:[#allocation43 + $0x4c] sm:$0xf]
    %v7565 = vld [vmem:[#allocation43 + $0x50] sm:$0xf]
    %v7566 = vld [vmem:[#allocation43 + $0x54] sm:$0xf]
    %v7567 = vld [vmem:[#allocation43 + $0x58] sm:$0xf]
    %v7568 = vld [vmem:[#allocation43 + $0x5c] sm:$0xf]
    %v7569 = vld [vmem:[#allocation43 + $0x60] sm:$0xf]
    %v7570 = vld [vmem:[#allocation43 + $0x64] sm:$0xf]
    %v7571 = vld [vmem:[#allocation43 + $0x68] sm:$0xf]
    %v7572 = vld [vmem:[#allocation43 + $0x6c] sm:$0xf]
    %v7573 = vld [vmem:[#allocation43 + $0x70] sm:$0xf]
    %v7574 = vld [vmem:[#allocation43 + $0x74] sm:$0xf]
    %v7575 = vld [vmem:[#allocation43 + $0x78] sm:$0xf]
    %v7576 = vld [vmem:[#allocation43 + $0x7c] sm:$0xf]
    %v7577 = vld [vmem:[#allocation43 + $0x80] sm:$0xf]
    %v7578 = vld [vmem:[#allocation43 + $0x84] sm:$0xf]
    %v7579 = vld [vmem:[#allocation43 + $0x88] sm:$0xf]
    %v7580 = vld [vmem:[#allocation43 + $0x8c] sm:$0xf]
    %v7581 = vld [vmem:[#allocation43 + $0x90] sm:$0xf]
    %v7582 = vld [vmem:[#allocation43 + $0x94] sm:$0xf]
    %v7583 = vld [vmem:[#allocation43 + $0x98] sm:$0xf]
    %v7584 = vld [vmem:[#allocation43 + $0x9c] sm:$0xf]
    %v7585 = vld [vmem:[#allocation43 + $0xa0] sm:$0xf]
    %v7586 = vld [vmem:[#allocation43 + $0xa4] sm:$0xf]
    %v7587 = vld [vmem:[#allocation43 + $0xa8] sm:$0xf]
    %v7588 = vld [vmem:[#allocation43 + $0xac] sm:$0xf]
    %v7589 = vld [vmem:[#allocation43 + $0xb0] sm:$0xf]
    %v7590 = vld [vmem:[#allocation43 + $0xb4] sm:$0xf]
    %v7591 = vld [vmem:[#allocation43 + $0xb8] sm:$0xf]
    %v7592 = vld [vmem:[#allocation43 + $0xbc] sm:$0xf]
    %v7641 = vunpack.c.l.b16 %v7545
    %v7642 = vunpack.c.l.b16 %v7546
    %v7643 = vunpack.c.l.b16 %v7547
    %v7644 = vunpack.c.l.b16 %v7548
    %v7645 = vunpack.c.l.b16 %v7549
    %v7646 = vunpack.c.l.b16 %v7550
    %v7647 = vunpack.c.l.b16 %v7551
    %v7648 = vunpack.c.l.b16 %v7552
    %v7649 = vunpack.c.l.b16 %v7553
    %v7650 = vunpack.c.l.b16 %v7554
    %v7651 = vunpack.c.l.b16 %v7555
    %v7652 = vunpack.c.l.b16 %v7556
    %v7653 = vunpack.c.l.b16 %v7557
    %v7654 = vunpack.c.l.b16 %v7558
    %v7655 = vunpack.c.l.b16 %v7559
    %v7656 = vunpack.c.l.b16 %v7560
    %v7657 = vunpack.c.l.b16 %v7561
    %v7658 = vunpack.c.l.b16 %v7562
    %v7659 = vunpack.c.l.b16 %v7563
    %v7660 = vunpack.c.l.b16 %v7564
    %v7661 = vunpack.c.l.b16 %v7565
    %v7662 = vunpack.c.l.b16 %v7566
    %v7663 = vunpack.c.l.b16 %v7567
    %v7664 = vunpack.c.l.b16 %v7568
    %v7665 = vunpack.c.l.b16 %v7569
    %v7666 = vunpack.c.l.b16 %v7570
    %v7667 = vunpack.c.l.b16 %v7571
    %v7668 = vunpack.c.l.b16 %v7572
    %v7669 = vunpack.c.l.b16 %v7573
    %v7670 = vunpack.c.l.b16 %v7574
    %v7671 = vunpack.c.l.b16 %v7575
    %v7672 = vunpack.c.l.b16 %v7576
    %v7673 = vunpack.c.l.b16 %v7577
    %v7674 = vunpack.c.l.b16 %v7578
    %v7675 = vunpack.c.l.b16 %v7579
    %v7676 = vunpack.c.l.b16 %v7580
    %v7677 = vunpack.c.l.b16 %v7581
    %v7678 = vunpack.c.l.b16 %v7582
    %v7679 = vunpack.c.l.b16 %v7583
    %v7680 = vunpack.c.l.b16 %v7584
    %v7681 = vunpack.c.l.b16 %v7585
    %v7682 = vunpack.c.l.b16 %v7586
    %v7683 = vunpack.c.l.b16 %v7587
    %v7684 = vunpack.c.l.b16 %v7588
    %v7685 = vunpack.c.l.b16 %v7589
    %v7686 = vunpack.c.l.b16 %v7590
    %v7687 = vunpack.c.l.b16 %v7591
    %v7688 = vunpack.c.l.b16 %v7592
    %v7689 = vpack.c.b16 %v7642, %v7641
    %v7690 = vpack.c.b16 %v7644, %v7643
    %v7691 = vpack.c.b16 %v7646, %v7645
    %v7692 = vpack.c.b16 %v7648, %v7647
    %v7693 = vpack.c.b16 %v7650, %v7649
    %v7694 = vpack.c.b16 %v7652, %v7651
    %v7695 = vpack.c.b16 %v7654, %v7653
    %v7696 = vpack.c.b16 %v7656, %v7655
    %v7697 = vpack.c.b16 %v7658, %v7657
    %v7698 = vpack.c.b16 %v7660, %v7659
    %v7699 = vpack.c.b16 %v7662, %v7661
    %v7700 = vpack.c.b16 %v7664, %v7663
    %v7701 = vpack.c.b16 %v7666, %v7665
    %v7702 = vpack.c.b16 %v7668, %v7667
    %v7703 = vpack.c.b16 %v7670, %v7669
    %v7704 = vpack.c.b16 %v7672, %v7671
    %v7705 = vpack.c.b16 %v7674, %v7673
    %v7706 = vpack.c.b16 %v7676, %v7675
    %v7707 = vpack.c.b16 %v7678, %v7677
    %v7708 = vpack.c.b16 %v7680, %v7679
    %v7709 = vpack.c.b16 %v7682, %v7681
    %v7710 = vpack.c.b16 %v7684, %v7683
    %v7711 = vpack.c.b16 %v7686, %v7685
    %v7712 = vpack.c.b16 %v7688, %v7687
    %7737 = vmatprep.subr.bf16.mxu0 0
    %7738 = vmatpush1.bf16.msra.mxu0 %v7696
    %7739 = vmatprep.subr.bf16.mxu0 0
    %7740 = vmatpush1.bf16.msra.mxu0 %v7695
    %7741 = vmatprep.subr.bf16.mxu0 0
    %7742 = vmatpush1.bf16.msra.mxu0 %v7694
    %7743 = vmatprep.subr.bf16.mxu0 0
    %7744 = vmatpush1.bf16.msra.mxu0 %v7693
    %7745 = vmatprep.subr.bf16.mxu0 0
    %7746 = vmatpush1.bf16.msra.mxu0 %v7692
    %7747 = vmatprep.subr.bf16.mxu0 0
    %7748 = vmatpush1.bf16.msra.mxu0 %v7691
    %7749 = vmatprep.subr.bf16.mxu0 0
    %7750 = vmatpush1.bf16.msra.mxu0 %v7690
    %7751 = vmatprep.subr.bf16.mxu0 0
    %7752 = vmatpush1.bf16.msra.mxu0 %v7689
    %7753 = vmatprep.subr.bf16.mxu0 0
    %7754 = vmatpush2.bf16.msra.mxu0 %v7704
    %7755 = vmatprep.subr.bf16.mxu0 0
    %7756 = vmatpush2.bf16.msra.mxu0 %v7703
    %7757 = vmatprep.subr.bf16.mxu0 0
    %7758 = vmatpush2.bf16.msra.mxu0 %v7702
    %7759 = vmatprep.subr.bf16.mxu0 0
    %7760 = vmatpush2.bf16.msra.mxu0 %v7701
    %7761 = vmatprep.subr.bf16.mxu0 0
    %7762 = vmatpush2.bf16.msra.mxu0 %v7700
    %7763 = vmatprep.subr.bf16.mxu0 0
    %7764 = vmatpush2.bf16.msra.mxu0 %v7699
    %7765 = vmatprep.subr.bf16.mxu0 0
    %7766 = vmatpush2.bf16.msra.mxu0 %v7698
    %7767 = vmatprep.subr.bf16.mxu0 0
    %7768 = vmatpush2.bf16.msra.mxu0 %v7697
    %7769 = vmatprep.mubr.bf16.mxu0 %v7299
    %7770 = vmatmul.mubr.bf16.gmra.mxu0 %v7541
    %v7771 = vpop.f32.mrf.mxu0
    %v7772 = vadd.f32 0.0, %v7771
    %v7773 = vpop.f32.mrf.mxu0
    %v7774 = vpop.f32.mrf.mxu0
    %v7775 = vadd.f32 0.0, %v7774
    %v7776 = vpop.f32.mrf.mxu0
    %7777 = vmatprep.mubr.bf16.mxu0 %v7300
    %7778 = vmatmul.mubr.bf16.gmra.mxu0 %v7542
    %v7779 = vpop.f32.mrf.mxu0
    %v7780 = vadd.f32 0.0, %v7779
    %v7781 = vpop.f32.mrf.mxu0
    %v7782 = vpop.f32.mrf.mxu0
    %v7783 = vadd.f32 0.0, %v7782
    %v7784 = vpop.f32.mrf.mxu0
    %7785 = vdwg.mxu0
    %7786 = vmatprep.subr.bf16.mxu0 0
    %7787 = vmatpush1.bf16.msra.mxu0 %v7712
    %7788 = vmatprep.subr.bf16.mxu0 0
    %7789 = vmatpush1.bf16.msra.mxu0 %v7711
    %7790 = vmatprep.subr.bf16.mxu0 0
    %7791 = vmatpush1.bf16.msra.mxu0 %v7710
    %7792 = vmatprep.subr.bf16.mxu0 0
    %7793 = vmatpush1.bf16.msra.mxu0 %v7709
    %7794 = vmatprep.subr.bf16.mxu0 0
    %7795 = vmatpush1.bf16.msra.mxu0 %v7708
    %7796 = vmatprep.subr.bf16.mxu0 0
    %7797 = vmatpush1.bf16.msra.mxu0 %v7707
    %7798 = vmatprep.subr.bf16.mxu0 0
    %7799 = vmatpush1.bf16.msra.mxu0 %v7706
    %7800 = vmatprep.subr.bf16.mxu0 0
    %7801 = vmatpush1.bf16.msra.mxu0 %v7705
    %7802 = vmatprep.subr.bf16.mxu0 0
    %7803 = vmatpush2.bf16.msra.mxu0 0
    %7804 = vmatprep.subr.bf16.mxu0 0
    %7805 = vmatpush2.bf16.msra.mxu0 0
    %7806 = vmatprep.subr.bf16.mxu0 0
    %7807 = vmatpush2.bf16.msra.mxu0 0
    %7808 = vmatprep.subr.bf16.mxu0 0
    %7809 = vmatpush2.bf16.msra.mxu0 0
    %7810 = vmatprep.subr.bf16.mxu0 0
    %7811 = vmatpush2.bf16.msra.mxu0 0
    %7812 = vmatprep.subr.bf16.mxu0 0
    %7813 = vmatpush2.bf16.msra.mxu0 0
    %7814 = vmatprep.subr.bf16.mxu0 0
    %7815 = vmatpush2.bf16.msra.mxu0 0
    %7816 = vmatprep.subr.bf16.mxu0 0
    %7817 = vmatpush2.bf16.msra.mxu0 0
    %7818 = vmatprep.mubr.bf16.mxu0 0
    %7819 = vmatmul.mubr.bf16.gmra.mxu0 %v7543
    %v7820 = vpop.f32.mrf.mxu0
    %v7821 = vadd.f32 %v7772, %v7820
    %v7822 = vpop.f32.mrf.mxu0
    %v7823 = vpop.f32.mrf.mxu0
    %v7824 = vadd.f32 %v7775, %v7823
    %v7825 = vpop.f32.mrf.mxu0
    %7826 = vmatprep.mubr.bf16.mxu0 0
    %7827 = vmatmul.mubr.bf16.gmra.mxu0 %v7544
    %v7828 = vpop.f32.mrf.mxu0
    %v7829 = vadd.f32 %v7780, %v7828
    %v7830 = vpop.f32.mrf.mxu0
    %v7831 = vpop.f32.mrf.mxu0
    %v7832 = vadd.f32 %v7783, %v7831
    %v7833 = vpop.f32.mrf.mxu0
    %7834 = vdwg.mxu0
    %v7883 = vunpack.c.l.b16 %v7428
    %v7884 = vunpack.c.l.b16 %v7429
    %v7885 = vunpack.c.l.b16 %v7430
    %v7886 = vunpack.c.l.b16 %v7431
    %v7887 = vunpack.c.l.b16 %v7432
    %v7888 = vunpack.c.l.b16 %v7433
    %v7889 = vunpack.c.l.b16 %v7434
    %v7890 = vunpack.c.l.b16 %v7435
    %v7891 = vunpack.c.l.b16 %v7436
    %v7892 = vunpack.c.l.b16 %v7437
    %v7893 = vunpack.c.l.b16 %v7438
    %v7894 = vunpack.c.l.b16 %v7439
    %v7895 = vunpack.c.l.b16 %v7440
    %v7896 = vunpack.c.l.b16 %v7441
    %v7897 = vunpack.c.l.b16 %v7442
    %v7898 = vunpack.c.l.b16 %v7443
    %v7899 = vunpack.c.l.b16 %v7444
    %v7900 = vunpack.c.l.b16 %v7445
    %v7901 = vunpack.c.l.b16 %v7446
    %v7902 = vunpack.c.l.b16 %v7447
    %v7903 = vunpack.c.l.b16 %v7448
    %v7904 = vunpack.c.l.b16 %v7449
    %v7905 = vunpack.c.l.b16 %v7450
    %v7906 = vunpack.c.l.b16 %v7451
    %v7907 = vunpack.c.l.b16 %v7452
    %v7908 = vunpack.c.l.b16 %v7453
    %v7909 = vunpack.c.l.b16 %v7454
    %v7910 = vunpack.c.l.b16 %v7455
    %v7911 = vunpack.c.l.b16 %v7456
    %v7912 = vunpack.c.l.b16 %v7457
    %v7913 = vunpack.c.l.b16 %v7458
    %v7914 = vunpack.c.l.b16 %v7459
    %v7915 = vunpack.c.l.b16 %v7460
    %v7916 = vunpack.c.l.b16 %v7461
    %v7917 = vunpack.c.l.b16 %v7462
    %v7918 = vunpack.c.l.b16 %v7463
    %v7919 = vunpack.c.l.b16 %v7464
    %v7920 = vunpack.c.l.b16 %v7465
    %v7921 = vunpack.c.l.b16 %v7466
    %v7922 = vunpack.c.l.b16 %v7467
    %v7923 = vunpack.c.l.b16 %v7468
    %v7924 = vunpack.c.l.b16 %v7469
    %v7925 = vunpack.c.l.b16 %v7470
    %v7926 = vunpack.c.l.b16 %v7471
    %v7927 = vunpack.c.l.b16 %v7472
    %v7928 = vunpack.c.l.b16 %v7473
    %v7929 = vunpack.c.l.b16 %v7474
    %v7930 = vunpack.c.l.b16 %v7475
    %v7931 = vpack.c.b16 %v7884, %v7883
    %v7932 = vpack.c.b16 %v7886, %v7885
    %v7933 = vpack.c.b16 %v7888, %v7887
    %v7934 = vpack.c.b16 %v7890, %v7889
    %v7935 = vpack.c.b16 %v7892, %v7891
    %v7936 = vpack.c.b16 %v7894, %v7893
    %v7937 = vpack.c.b16 %v7896, %v7895
    %v7938 = vpack.c.b16 %v7898, %v7897
    %v7939 = vpack.c.b16 %v7900, %v7899
    %v7940 = vpack.c.b16 %v7902, %v7901
    %v7941 = vpack.c.b16 %v7904, %v7903
    %v7942 = vpack.c.b16 %v7906, %v7905
    %v7943 = vpack.c.b16 %v7908, %v7907
    %v7944 = vpack.c.b16 %v7910, %v7909
    %v7945 = vpack.c.b16 %v7912, %v7911
    %v7946 = vpack.c.b16 %v7914, %v7913
    %v7947 = vpack.c.b16 %v7916, %v7915
    %v7948 = vpack.c.b16 %v7918, %v7917
    %v7949 = vpack.c.b16 %v7920, %v7919
    %v7950 = vpack.c.b16 %v7922, %v7921
    %v7951 = vpack.c.b16 %v7924, %v7923
    %v7952 = vpack.c.b16 %v7926, %v7925
    %v7953 = vpack.c.b16 %v7928, %v7927
    %v7954 = vpack.c.b16 %v7930, %v7929
    %7979 = vmatprep.subr.bf16.mxu0 0
    %7980 = vmatpush1.bf16.msra.mxu0 %v7938
    %7981 = vmatprep.subr.bf16.mxu0 0
    %7982 = vmatpush1.bf16.msra.mxu0 %v7937
    %7983 = vmatprep.subr.bf16.mxu0 0
    %7984 = vmatpush1.bf16.msra.mxu0 %v7936
    %7985 = vmatprep.subr.bf16.mxu0 0
    %7986 = vmatpush1.bf16.msra.mxu0 %v7935
    %7987 = vmatprep.subr.bf16.mxu0 0
    %7988 = vmatpush1.bf16.msra.mxu0 %v7934
    %7989 = vmatprep.subr.bf16.mxu0 0
    %7990 = vmatpush1.bf16.msra.mxu0 %v7933
    %7991 = vmatprep.subr.bf16.mxu0 0
    %7992 = vmatpush1.bf16.msra.mxu0 %v7932
    %7993 = vmatprep.subr.bf16.mxu0 0
    %7994 = vmatpush1.bf16.msra.mxu0 %v7931
    %7995 = vmatprep.subr.bf16.mxu0 0
    %7996 = vmatpush2.bf16.msra.mxu0 %v7946
    %7997 = vmatprep.subr.bf16.mxu0 0
    %7998 = vmatpush2.bf16.msra.mxu0 %v7945
    %7999 = vmatprep.subr.bf16.mxu0 0
    %8000 = vmatpush2.bf16.msra.mxu0 %v7944
    %8001 = vmatprep.subr.bf16.mxu0 0
    %8002 = vmatpush2.bf16.msra.mxu0 %v7943
    %8003 = vmatprep.subr.bf16.mxu0 0
    %8004 = vmatpush2.bf16.msra.mxu0 %v7942
    %8005 = vmatprep.subr.bf16.mxu0 0
    %8006 = vmatpush2.bf16.msra.mxu0 %v7941
    %8007 = vmatprep.subr.bf16.mxu0 0
    %8008 = vmatpush2.bf16.msra.mxu0 %v7940
    %8009 = vmatprep.subr.bf16.mxu0 0
    %8010 = vmatpush2.bf16.msra.mxu0 %v7939
    %8011 = vmatprep.mubr.bf16.mxu0 %v7317
    %8012 = vmatmul.mubr.bf16.gmra.mxu0 %v7424
    %v8013 = vpop.f32.mrf.mxu0
    %v8014 = vadd.f32 %v7821, %v8013
    %v8015 = vpop.f32.mrf.mxu0
    %v8016 = vpop.f32.mrf.mxu0
    %v8017 = vadd.f32 %v7824, %v8016
    %v8018 = vpop.f32.mrf.mxu0
    %8019 = vmatprep.mubr.bf16.mxu0 %v7318
    %8020 = vmatmul.mubr.bf16.gmra.mxu0 %v7425
    %v8021 = vpop.f32.mrf.mxu0
    %v8022 = vadd.f32 %v7829, %v8021
    %v8023 = vpop.f32.mrf.mxu0
    %v8024 = vpop.f32.mrf.mxu0
    %v8025 = vadd.f32 %v7832, %v8024
    %v8026 = vpop.f32.mrf.mxu0
    %8027 = vdwg.mxu0
    %8028 = vmatprep.subr.bf16.mxu0 0
    %8029 = vmatpush1.bf16.msra.mxu0 %v7954
    %8030 = vmatprep.subr.bf16.mxu0 0
    %8031 = vmatpush1.bf16.msra.mxu0 %v7953
    %8032 = vmatprep.subr.bf16.mxu0 0
    %8033 = vmatpush1.bf16.msra.mxu0 %v7952
    %8034 = vmatprep.subr.bf16.mxu0 0
    %8035 = vmatpush1.bf16.msra.mxu0 %v7951
    %8036 = vmatprep.subr.bf16.mxu0 0
    %8037 = vmatpush1.bf16.msra.mxu0 %v7950
    %8038 = vmatprep.subr.bf16.mxu0 0
    %8039 = vmatpush1.bf16.msra.mxu0 %v7949
    %8040 = vmatprep.subr.bf16.mxu0 0
    %8041 = vmatpush1.bf16.msra.mxu0 %v7948
    %8042 = vmatprep.subr.bf16.mxu0 0
    %8043 = vmatpush1.bf16.msra.mxu0 %v7947
    %8044 = vmatprep.subr.bf16.mxu0 0
    %8045 = vmatpush2.bf16.msra.mxu0 0
    %8046 = vmatprep.subr.bf16.mxu0 0
    %8047 = vmatpush2.bf16.msra.mxu0 0
    %8048 = vmatprep.subr.bf16.mxu0 0
    %8049 = vmatpush2.bf16.msra.mxu0 0
    %8050 = vmatprep.subr.bf16.mxu0 0
    %8051 = vmatpush2.bf16.msra.mxu0 0
    %8052 = vmatprep.subr.bf16.mxu0 0
    %8053 = vmatpush2.bf16.msra.mxu0 0
    %8054 = vmatprep.subr.bf16.mxu0 0
    %8055 = vmatpush2.bf16.msra.mxu0 0
    %8056 = vmatprep.subr.bf16.mxu0 0
    %8057 = vmatpush2.bf16.msra.mxu0 0
    %8058 = vmatprep.subr.bf16.mxu0 0
    %8059 = vmatpush2.bf16.msra.mxu0 0
    %8060 = vmatprep.mubr.bf16.mxu0 0
    %8061 = vmatmul.mubr.bf16.gmra.mxu0 %v7426
    %v8062 = vpop.f32.mrf.mxu0
    %v8063 = vadd.f32 %v8014, %v8062
    %v8064 = vpop.f32.mrf.mxu0
    %v8065 = vpop.f32.mrf.mxu0
    %v8066 = vadd.f32 %v8017, %v8065
    %v8067 = vpop.f32.mrf.mxu0
    %8068 = vmatprep.mubr.bf16.mxu0 0
    %8069 = vmatmul.mubr.bf16.gmra.mxu0 %v7427
    %v8070 = vpop.f32.mrf.mxu0
    %v8071 = vadd.f32 %v8022, %v8070
    %v8072 = vpop.f32.mrf.mxu0
    %v8073 = vpop.f32.mrf.mxu0
    %v8074 = vadd.f32 %v8025, %v8073
    %v8075 = vpop.f32.mrf.mxu0
    %8076 = vdwg.mxu0
    %v8077 = vld [vmem:[#allocation45] sm:$0x1]
    %v8079 = vlaneseq
    %v8080 = vshrl.u32 %v8079, 7
    %v8081 = vsub.s32 0, %v8080
    %v8082 = vrot.slane %v8077, %v8081
    %v8084 = vadd.f32 %v8063, %v8082
    %v8085 = vadd.f32 %v8066, %v8082
    %v8086 = vadd.f32 %v8071, %v8082
    %v8087 = vadd.f32 %v8074, %v8082
    %v8088 = vmax.f32 %v8084, 0.0
    %v8089 = vmax.f32 %v8085, 0.0
    %v8090 = vmax.f32 %v8086, 0.0
    %v8091 = vmax.f32 %v8087, 0.0
    %v8092 = vpack.c.bf16 %v8089, %v8088
    %v8093 = vpack.c.bf16 %v8091, %v8090
    %v8094 = vld [vmem:[#allocation46] sm:$0xf]
    %v8095 = vld [vmem:[#allocation46 + $0x4] sm:$0xf]
    %v8096 = vld [vmem:[#allocation46 + $0x8] sm:$0xf]
    %v8097 = vld [vmem:[#allocation46 + $0xc] sm:$0xf]
    %v8098 = vld [vmem:[#allocation46 + $0x10] sm:$0xf]
    %v8099 = vld [vmem:[#allocation46 + $0x14] sm:$0xf]
    %v8100 = vld [vmem:[#allocation46 + $0x18] sm:$0xf]
    %v8101 = vld [vmem:[#allocation46 + $0x1c] sm:$0xf]
    %v8102 = vld [vmem:[#allocation46 + $0x20] sm:$0xf]
    %v8103 = vld [vmem:[#allocation46 + $0x24] sm:$0xf]
    %v8104 = vld [vmem:[#allocation46 + $0x28] sm:$0xf]
    %v8105 = vld [vmem:[#allocation46 + $0x2c] sm:$0xf]
    %v8106 = vld [vmem:[#allocation46 + $0x30] sm:$0xf]
    %v8107 = vld [vmem:[#allocation46 + $0x34] sm:$0xf]
    %v8108 = vld [vmem:[#allocation46 + $0x38] sm:$0xf]
    %v8109 = vld [vmem:[#allocation46 + $0x3c] sm:$0xf]
    %v8110 = vld [vmem:[#allocation46 + $0x40] sm:$0xf]
    %v8111 = vld [vmem:[#allocation46 + $0x44] sm:$0xf]
    %v8112 = vld [vmem:[#allocation46 + $0x48] sm:$0xf]
    %v8113 = vld [vmem:[#allocation46 + $0x4c] sm:$0xf]
    %v8114 = vld [vmem:[#allocation46 + $0x50] sm:$0xf]
    %v8115 = vld [vmem:[#allocation46 + $0x54] sm:$0xf]
    %v8116 = vld [vmem:[#allocation46 + $0x58] sm:$0xf]
    %v8117 = vld [vmem:[#allocation46 + $0x5c] sm:$0xf]
    %v8118 = vld [vmem:[#allocation46 + $0x60] sm:$0xf]
    %v8119 = vld [vmem:[#allocation46 + $0x64] sm:$0xf]
    %v8120 = vld [vmem:[#allocation46 + $0x68] sm:$0xf]
    %v8121 = vld [vmem:[#allocation46 + $0x6c] sm:$0xf]
    %v8122 = vld [vmem:[#allocation46 + $0x70] sm:$0xf]
    %v8123 = vld [vmem:[#allocation46 + $0x74] sm:$0xf]
    %v8124 = vld [vmem:[#allocation46 + $0x78] sm:$0xf]
    %v8125 = vld [vmem:[#allocation46 + $0x7c] sm:$0xf]
    %v8126 = vld [vmem:[#allocation46 + $0x80] sm:$0xf]
    %v8127 = vld [vmem:[#allocation46 + $0x84] sm:$0xf]
    %v8128 = vld [vmem:[#allocation46 + $0x88] sm:$0xf]
    %v8129 = vld [vmem:[#allocation46 + $0x8c] sm:$0xf]
    %v8130 = vld [vmem:[#allocation46 + $0x90] sm:$0xf]
    %v8131 = vld [vmem:[#allocation46 + $0x94] sm:$0xf]
    %v8132 = vld [vmem:[#allocation46 + $0x98] sm:$0xf]
    %v8133 = vld [vmem:[#allocation46 + $0x9c] sm:$0xf]
    %v8134 = vld [vmem:[#allocation46 + $0xa0] sm:$0xf]
    %v8135 = vld [vmem:[#allocation46 + $0xa4] sm:$0xf]
    %v8136 = vld [vmem:[#allocation46 + $0xa8] sm:$0xf]
    %v8137 = vld [vmem:[#allocation46 + $0xac] sm:$0xf]
    %v8138 = vld [vmem:[#allocation46 + $0xb0] sm:$0xf]
    %v8139 = vld [vmem:[#allocation46 + $0xb4] sm:$0xf]
    %v8140 = vld [vmem:[#allocation46 + $0xb8] sm:$0xf]
    %v8141 = vld [vmem:[#allocation46 + $0xbc] sm:$0xf]
    %v8142 = vld [vmem:[#allocation48] sm:$0x1]
    %8143 = vmatprep.subr.bf16.mxu0 0
    %8144 = vmatpush1.bf16.msra.mxu0 0
    %8145 = vmatprep.subr.bf16.mxu0 0
    %8146 = vmatpush1.bf16.msra.mxu0 0
    %8147 = vmatprep.subr.bf16.mxu0 0
    %8148 = vmatpush1.bf16.msra.mxu0 0
    %8149 = vmatprep.subr.bf16.mxu0 0
    %8150 = vmatpush1.bf16.msra.mxu0 0
    %8151 = vmatprep.subr.bf16.mxu0 0
    %8152 = vmatpush1.bf16.msra.mxu0 0
    %8153 = vmatprep.subr.bf16.mxu0 0
    %8154 = vmatpush1.bf16.msra.mxu0 0
    %8155 = vmatprep.subr.bf16.mxu0 0
    %8156 = vmatpush1.bf16.msra.mxu0 %v8093
    %8157 = vmatprep.subr.bf16.mxu0 0
    %8158 = vmatpush1.bf16.msra.mxu0 %v8092
    %8159 = vmatprep.subr.bf16.mxu0 0
    %8160 = vmatpush2.bf16.msra.mxu0 0
    %8161 = vmatprep.subr.bf16.mxu0 0
    %8162 = vmatpush2.bf16.msra.mxu0 0
    %8163 = vmatprep.subr.bf16.mxu0 0
    %8164 = vmatpush2.bf16.msra.mxu0 0
    %8165 = vmatprep.subr.bf16.mxu0 0
    %8166 = vmatpush2.bf16.msra.mxu0 0
    %8167 = vmatprep.subr.bf16.mxu0 0
    %8168 = vmatpush2.bf16.msra.mxu0 0
    %8169 = vmatprep.subr.bf16.mxu0 0
    %8170 = vmatpush2.bf16.msra.mxu0 0
    %8171 = vmatprep.subr.bf16.mxu0 0
    %8172 = vmatpush2.bf16.msra.mxu0 0
    %8173 = vmatprep.subr.bf16.mxu0 0
    %8174 = vmatpush2.bf16.msra.mxu0 0
    %8175 = vmatprep.mubr.bf16.mxu0 0
    %8176 = vmatmul.mubr.bf16.gmra.mxu0 %v7348
    %v8177 = vpop.f32.mrf.mxu0
    %v8178 = vadd.f32 0.0, %v8177
    %v8179 = vpop.f32.mrf.mxu0
    %v8180 = vpop.f32.mrf.mxu0
    %v8181 = vadd.f32 0.0, %v8180
    %v8182 = vpop.f32.mrf.mxu0
    %8183 = vmatprep.mubr.bf16.mxu0 0
    %8184 = vmatmul.mubr.bf16.gmra.mxu0 %v7351
    %v8185 = vpop.f32.mrf.mxu0
    %v8186 = vadd.f32 0.0, %v8185
    %v8187 = vpop.f32.mrf.mxu0
    %v8188 = vpop.f32.mrf.mxu0
    %v8189 = vadd.f32 0.0, %v8188
    %v8190 = vpop.f32.mrf.mxu0
    %8191 = vmatprep.mubr.bf16.mxu0 0
    %8192 = vmatmul.mubr.bf16.gmra.mxu0 %v7354
    %v8193 = vpop.f32.mrf.mxu0
    %v8194 = vadd.f32 0.0, %v8193
    %v8195 = vpop.f32.mrf.mxu0
    %v8196 = vpop.f32.mrf.mxu0
    %v8197 = vadd.f32 0.0, %v8196
    %v8198 = vpop.f32.mrf.mxu0
    %8199 = vmatprep.mubr.bf16.mxu0 0
    %8200 = vmatmul.mubr.bf16.gmra.mxu0 %v7357
    %v8201 = vpop.f32.mrf.mxu0
    %v8202 = vadd.f32 0.0, %v8201
    %v8203 = vpop.f32.mrf.mxu0
    %v8204 = vpop.f32.mrf.mxu0
    %v8205 = vadd.f32 0.0, %v8204
    %v8206 = vpop.f32.mrf.mxu0
    %8207 = vdwg.mxu0
    %v8208 = vpack.c.bf16 %v8181, %v8178
    %v8209 = vpack.c.bf16 %v8189, %v8186
    %v8210 = vpack.c.bf16 %v8197, %v8194
    %v8211 = vpack.c.bf16 %v8205, %v8202
    %v8213 = vlaneseq
    %v8214 = vshrl.u32 %v8213, 7
    %v8215 = vsub.s32 0, %v8214
    %v8216 = vrot.slane %v8142, %v8215
    %v8266 = vunpack.c.l.b16 %v8094
    %v8267 = vunpack.c.l.b16 %v8095
    %v8268 = vunpack.c.l.b16 %v8096
    %v8269 = vunpack.c.l.b16 %v8097
    %v8270 = vunpack.c.l.b16 %v8098
    %v8271 = vunpack.c.l.b16 %v8099
    %v8272 = vunpack.c.l.b16 %v8100
    %v8273 = vunpack.c.l.b16 %v8101
    %v8274 = vunpack.c.l.b16 %v8102
    %v8275 = vunpack.c.l.b16 %v8103
    %v8276 = vunpack.c.l.b16 %v8104
    %v8277 = vunpack.c.l.b16 %v8105
    %v8278 = vunpack.c.l.b16 %v8106
    %v8279 = vunpack.c.l.b16 %v8107
    %v8280 = vunpack.c.l.b16 %v8108
    %v8281 = vunpack.c.l.b16 %v8109
    %v8282 = vunpack.c.l.b16 %v8110
    %v8283 = vunpack.c.l.b16 %v8111
    %v8284 = vunpack.c.l.b16 %v8112
    %v8285 = vunpack.c.l.b16 %v8113
    %v8286 = vunpack.c.l.b16 %v8114
    %v8287 = vunpack.c.l.b16 %v8115
    %v8288 = vunpack.c.l.b16 %v8116
    %v8289 = vunpack.c.l.b16 %v8117
    %v8290 = vunpack.c.l.b16 %v8118
    %v8291 = vunpack.c.l.b16 %v8119
    %v8292 = vunpack.c.l.b16 %v8120
    %v8293 = vunpack.c.l.b16 %v8121
    %v8294 = vunpack.c.l.b16 %v8122
    %v8295 = vunpack.c.l.b16 %v8123
    %v8296 = vunpack.c.l.b16 %v8124
    %v8297 = vunpack.c.l.b16 %v8125
    %v8298 = vunpack.c.l.b16 %v8126
    %v8299 = vunpack.c.l.b16 %v8127
    %v8300 = vunpack.c.l.b16 %v8128
    %v8301 = vunpack.c.l.b16 %v8129
    %v8302 = vunpack.c.l.b16 %v8130
    %v8303 = vunpack.c.l.b16 %v8131
    %v8304 = vunpack.c.l.b16 %v8132
    %v8305 = vunpack.c.l.b16 %v8133
    %v8306 = vunpack.c.l.b16 %v8134
    %v8307 = vunpack.c.l.b16 %v8135
    %v8308 = vunpack.c.l.b16 %v8136
    %v8309 = vunpack.c.l.b16 %v8137
    %v8310 = vunpack.c.l.b16 %v8138
    %v8311 = vunpack.c.l.b16 %v8139
    %v8312 = vunpack.c.l.b16 %v8140
    %v8313 = vunpack.c.l.b16 %v8141
    %v8314 = vpack.c.b16 %v8267, %v8266
    %v8315 = vpack.c.b16 %v8269, %v8268
    %v8316 = vpack.c.b16 %v8271, %v8270
    %v8317 = vpack.c.b16 %v8273, %v8272
    %v8318 = vpack.c.b16 %v8275, %v8274
    %v8319 = vpack.c.b16 %v8277, %v8276
    %v8320 = vpack.c.b16 %v8279, %v8278
    %v8321 = vpack.c.b16 %v8281, %v8280
    %v8322 = vpack.c.b16 %v8283, %v8282
    %v8323 = vpack.c.b16 %v8285, %v8284
    %v8324 = vpack.c.b16 %v8287, %v8286
    %v8325 = vpack.c.b16 %v8289, %v8288
    %v8326 = vpack.c.b16 %v8291, %v8290
    %v8327 = vpack.c.b16 %v8293, %v8292
    %v8328 = vpack.c.b16 %v8295, %v8294
    %v8329 = vpack.c.b16 %v8297, %v8296
    %v8330 = vpack.c.b16 %v8299, %v8298
    %v8331 = vpack.c.b16 %v8301, %v8300
    %v8332 = vpack.c.b16 %v8303, %v8302
    %v8333 = vpack.c.b16 %v8305, %v8304
    %v8334 = vpack.c.b16 %v8307, %v8306
    %v8335 = vpack.c.b16 %v8309, %v8308
    %v8336 = vpack.c.b16 %v8311, %v8310
    %v8337 = vpack.c.b16 %v8313, %v8312
    %8362 = vmatprep.subr.bf16.mxu0 0
    %8363 = vmatpush1.bf16.msra.mxu0 %v8321
    %8364 = vmatprep.subr.bf16.mxu0 0
    %8365 = vmatpush1.bf16.msra.mxu0 %v8320
    %8366 = vmatprep.subr.bf16.mxu0 0
    %8367 = vmatpush1.bf16.msra.mxu0 %v8319
    %8368 = vmatprep.subr.bf16.mxu0 0
    %8369 = vmatpush1.bf16.msra.mxu0 %v8318
    %8370 = vmatprep.subr.bf16.mxu0 0
    %8371 = vmatpush1.bf16.msra.mxu0 %v8317
    %8372 = vmatprep.subr.bf16.mxu0 0
    %8373 = vmatpush1.bf16.msra.mxu0 %v8316
    %8374 = vmatprep.subr.bf16.mxu0 0
    %8375 = vmatpush1.bf16.msra.mxu0 %v8315
    %8376 = vmatprep.subr.bf16.mxu0 0
    %8377 = vmatpush1.bf16.msra.mxu0 %v8314
    %8378 = vmatprep.subr.bf16.mxu0 0
    %8379 = vmatpush2.bf16.msra.mxu0 %v8329
    %8380 = vmatprep.subr.bf16.mxu0 0
    %8381 = vmatpush2.bf16.msra.mxu0 %v8328
    %8382 = vmatprep.subr.bf16.mxu0 0
    %8383 = vmatpush2.bf16.msra.mxu0 %v8327
    %8384 = vmatprep.subr.bf16.mxu0 0
    %8385 = vmatpush2.bf16.msra.mxu0 %v8326
    %8386 = vmatprep.subr.bf16.mxu0 0
    %8387 = vmatpush2.bf16.msra.mxu0 %v8325
    %8388 = vmatprep.subr.bf16.mxu0 0
    %8389 = vmatpush2.bf16.msra.mxu0 %v8324
    %8390 = vmatprep.subr.bf16.mxu0 0
    %8391 = vmatpush2.bf16.msra.mxu0 %v8323
    %8392 = vmatprep.subr.bf16.mxu0 0
    %8393 = vmatpush2.bf16.msra.mxu0 %v8322
    %8394 = vmatprep.mubr.bf16.mxu0 %v8092
    %8395 = vmatmul.mubr.bf16.gmra.mxu0 %v8208
    %v8396 = vpop.f32.mrf.mxu0
    %v8397 = vadd.f32 %v8216, %v8396
    %v8398 = vpop.f32.mrf.mxu0
    %v8399 = vpop.f32.mrf.mxu0
    %v8400 = vadd.f32 %v8216, %v8399
    %v8401 = vpop.f32.mrf.mxu0
    %8402 = vmatprep.mubr.bf16.mxu0 %v8093
    %8403 = vmatmul.mubr.bf16.gmra.mxu0 %v8209
    %v8404 = vpop.f32.mrf.mxu0
    %v8405 = vadd.f32 %v8216, %v8404
    %v8406 = vpop.f32.mrf.mxu0
    %v8407 = vpop.f32.mrf.mxu0
    %v8408 = vadd.f32 %v8216, %v8407
    %v8409 = vpop.f32.mrf.mxu0
    %8410 = vdwg.mxu0
    %8411 = vmatprep.subr.bf16.mxu0 0
    %8412 = vmatpush1.bf16.msra.mxu0 %v8337
    %8413 = vmatprep.subr.bf16.mxu0 0
    %8414 = vmatpush1.bf16.msra.mxu0 %v8336
    %8415 = vmatprep.subr.bf16.mxu0 0
    %8416 = vmatpush1.bf16.msra.mxu0 %v8335
    %8417 = vmatprep.subr.bf16.mxu0 0
    %8418 = vmatpush1.bf16.msra.mxu0 %v8334
    %8419 = vmatprep.subr.bf16.mxu0 0
    %8420 = vmatpush1.bf16.msra.mxu0 %v8333
    %8421 = vmatprep.subr.bf16.mxu0 0
    %8422 = vmatpush1.bf16.msra.mxu0 %v8332
    %8423 = vmatprep.subr.bf16.mxu0 0
    %8424 = vmatpush1.bf16.msra.mxu0 %v8331
    %8425 = vmatprep.subr.bf16.mxu0 0
    %8426 = vmatpush1.bf16.msra.mxu0 %v8330
    %8427 = vmatprep.subr.bf16.mxu0 0
    %8428 = vmatpush2.bf16.msra.mxu0 0
    %8429 = vmatprep.subr.bf16.mxu0 0
    %8430 = vmatpush2.bf16.msra.mxu0 0
    %8431 = vmatprep.subr.bf16.mxu0 0
    %8432 = vmatpush2.bf16.msra.mxu0 0
    %8433 = vmatprep.subr.bf16.mxu0 0
    %8434 = vmatpush2.bf16.msra.mxu0 0
    %8435 = vmatprep.subr.bf16.mxu0 0
    %8436 = vmatpush2.bf16.msra.mxu0 0
    %8437 = vmatprep.subr.bf16.mxu0 0
    %8438 = vmatpush2.bf16.msra.mxu0 0
    %8439 = vmatprep.subr.bf16.mxu0 0
    %8440 = vmatpush2.bf16.msra.mxu0 0
    %8441 = vmatprep.subr.bf16.mxu0 0
    %8442 = vmatpush2.bf16.msra.mxu0 0
    %8443 = vmatprep.mubr.bf16.mxu0 0
    %8444 = vmatmul.mubr.bf16.gmra.mxu0 %v8210
    %v8445 = vpop.f32.mrf.mxu0
    %v8446 = vadd.f32 %v8397, %v8445
    %v8447 = vpop.f32.mrf.mxu0
    %v8448 = vpop.f32.mrf.mxu0
    %v8449 = vadd.f32 %v8400, %v8448
    %v8450 = vpop.f32.mrf.mxu0
    %8451 = vmatprep.mubr.bf16.mxu0 0
    %8452 = vmatmul.mubr.bf16.gmra.mxu0 %v8211
    %v8453 = vpop.f32.mrf.mxu0
    %v8454 = vadd.f32 %v8405, %v8453
    %v8455 = vpop.f32.mrf.mxu0
    %v8456 = vpop.f32.mrf.mxu0
    %v8457 = vadd.f32 %v8408, %v8456
    %v8458 = vpop.f32.mrf.mxu0
    %8459 = vdwg.mxu0
    %v8460 = vmax.f32 %v8446, 0.0
    %v8461 = vmax.f32 %v8449, 0.0
    %v8462 = vmax.f32 %v8454, 0.0
    %v8463 = vmax.f32 %v8457, 0.0
    %v8464 = vpack.c.bf16 %v8461, %v8460
    %v8465 = vpack.c.bf16 %v8463, %v8462
    %v8466 = vld [vmem:[%s127] sm:$0xf]
    %v8467 = vld [vmem:[%s127 + $0x4] sm:$0xf]
    %v8468 = vld [vmem:[%s127 + $0x8] sm:$0xf]
    %v8469 = vld [vmem:[%s127 + $0xc] sm:$0xf]
    %v8470 = vld [vmem:[%s127 + $0x10] sm:$0xf]
    %v8471 = vld [vmem:[%s127 + $0x14] sm:$0xf]
    %v8472 = vld [vmem:[%s127 + $0x18] sm:$0xf]
    %v8473 = vld [vmem:[%s127 + $0x1c] sm:$0xf]
    %v8474 = vld [vmem:[%s127 + $0x20] sm:$0xf]
    %v8475 = vld [vmem:[%s127 + $0x24] sm:$0xf]
    %v8476 = vld [vmem:[%s127 + $0x28] sm:$0xf]
    %v8477 = vld [vmem:[%s127 + $0x2c] sm:$0xf]
    %v8478 = vld [vmem:[%s127 + $0x30] sm:$0xf]
    %v8479 = vld [vmem:[%s127 + $0x34] sm:$0xf]
    %v8480 = vld [vmem:[%s127 + $0x38] sm:$0xf]
    %v8481 = vld [vmem:[%s127 + $0x3c] sm:$0xf]
    %v8482 = vld [vmem:[#allocation49] sm:$0x1]
    %v8484 = vlaneseq
    %v8485 = vshrl.u32 %v8484, 7
    %v8486 = vsub.s32 0, %v8485
    %v8487 = vrot.slane %v8482, %v8486
    %v8505 = vunpack.c.l.b16 %v8466
    %v8506 = vunpack.c.l.b16 %v8467
    %v8507 = vunpack.c.l.b16 %v8468
    %v8508 = vunpack.c.l.b16 %v8469
    %v8509 = vunpack.c.l.b16 %v8470
    %v8510 = vunpack.c.l.b16 %v8471
    %v8511 = vunpack.c.l.b16 %v8472
    %v8512 = vunpack.c.l.b16 %v8473
    %v8513 = vunpack.c.l.b16 %v8474
    %v8514 = vunpack.c.l.b16 %v8475
    %v8515 = vunpack.c.l.b16 %v8476
    %v8516 = vunpack.c.l.b16 %v8477
    %v8517 = vunpack.c.l.b16 %v8478
    %v8518 = vunpack.c.l.b16 %v8479
    %v8519 = vunpack.c.l.b16 %v8480
    %v8520 = vunpack.c.l.b16 %v8481
    %v8521 = vpack.c.b16 %v8506, %v8505
    %v8522 = vpack.c.b16 %v8508, %v8507
    %v8523 = vpack.c.b16 %v8510, %v8509
    %v8524 = vpack.c.b16 %v8512, %v8511
    %v8525 = vpack.c.b16 %v8514, %v8513
    %v8526 = vpack.c.b16 %v8516, %v8515
    %v8527 = vpack.c.b16 %v8518, %v8517
    %v8528 = vpack.c.b16 %v8520, %v8519
    %8537 = vmatprep.subr.bf16.mxu0 0
    %8538 = vmatpush1.bf16.msra.mxu0 %v8528
    %8539 = vmatprep.subr.bf16.mxu0 0
    %8540 = vmatpush1.bf16.msra.mxu0 %v8527
    %8541 = vmatprep.subr.bf16.mxu0 0
    %8542 = vmatpush1.bf16.msra.mxu0 %v8526
    %8543 = vmatprep.subr.bf16.mxu0 0
    %8544 = vmatpush1.bf16.msra.mxu0 %v8525
    %8545 = vmatprep.subr.bf16.mxu0 0
    %8546 = vmatpush1.bf16.msra.mxu0 %v8524
    %8547 = vmatprep.subr.bf16.mxu0 0
    %8548 = vmatpush1.bf16.msra.mxu0 %v8523
    %8549 = vmatprep.subr.bf16.mxu0 0
    %8550 = vmatpush1.bf16.msra.mxu0 %v8522
    %8551 = vmatprep.subr.bf16.mxu0 0
    %8552 = vmatpush1.bf16.msra.mxu0 %v8521
    %8553 = vmatprep.subr.bf16.mxu0 0
    %8554 = vmatpush2.bf16.msra.mxu0 0
    %8555 = vmatprep.subr.bf16.mxu0 0
    %8556 = vmatpush2.bf16.msra.mxu0 0
    %8557 = vmatprep.subr.bf16.mxu0 0
    %8558 = vmatpush2.bf16.msra.mxu0 0
    %8559 = vmatprep.subr.bf16.mxu0 0
    %8560 = vmatpush2.bf16.msra.mxu0 0
    %8561 = vmatprep.subr.bf16.mxu0 0
    %8562 = vmatpush2.bf16.msra.mxu0 0
    %8563 = vmatprep.subr.bf16.mxu0 0
    %8564 = vmatpush2.bf16.msra.mxu0 0
    %8565 = vmatprep.subr.bf16.mxu0 0
    %8566 = vmatpush2.bf16.msra.mxu0 0
    %8567 = vmatprep.subr.bf16.mxu0 0
    %8568 = vmatpush2.bf16.msra.mxu0 0
    %8569 = vmatprep.mubr.bf16.mxu0 0
    %8570 = vmatmul.mubr.bf16.gmra.mxu0 %v8464
    %v8571 = vpop.f32.mrf.mxu0
    %v8572 = vadd.f32 %v8487, %v8571
    %v8573 = vpop.f32.mrf.mxu0
    %v8574 = vpop.f32.mrf.mxu0
    %v8575 = vadd.f32 %v8487, %v8574
    %v8576 = vpop.f32.mrf.mxu0
    %8577 = vmatprep.mubr.bf16.mxu0 0
    %8578 = vmatmul.mubr.bf16.gmra.mxu0 %v8465
    %v8579 = vpop.f32.mrf.mxu0
    %v8580 = vadd.f32 %v8487, %v8579
    %v8581 = vpop.f32.mrf.mxu0
    %v8582 = vpop.f32.mrf.mxu0
    %v8583 = vadd.f32 %v8487, %v8582
    %v8584 = vpop.f32.mrf.mxu0
    %8585 = vdwg.mxu0
    %8586 = vst.msk [vmem:[%s131] sm:$0xff] %vm1971, %v8572
    %8587 = vst.msk [vmem:[%s131 + $0x8] sm:$0xff] %vm1971, %v8575
    %8588 = vst.msk [vmem:[%s131 + $0x10] sm:$0xff] %vm1971, %v8580
    %8589 = vst.msk [vmem:[%s131 + $0x18] sm:$0xff] %vm1971, %v8583
    // Predicated region
    $region390: #{_lambda_.1} parent=1 // pred_check
      _
    $region391: #{_lambda_.1} parent=1 // pred_check_branch
      %8591 = sbr.rel (0) target = $region393
    $region392: #{_lambda_.1} parent=1 // pred_region
      _
    $region393: #{_lambda_.1} parent=1 // pred_fallthru
      _
    // Predicated region
    $region394: #{_lambda_.1} parent=1 // pred_check
      _
    $region395: #{_lambda_.1} parent=1 // pred_check_branch
      %8593 = sbr.rel (0) target = $region397
    $region396: #{_lambda_.1} parent=1 // pred_region
      _
    $region397: #{_lambda_.1} parent=1 // pred_fallthru
      _
    %8594 = vsyncpa [#allocation3], 1
    %8595 = vsyncpa [#allocation5], 1
    %8596 = vsyncpa [#allocation8], 1
    %8597 = vsyncpa [#allocation11], 1
    %8598 = vsyncpa [#allocation14], 1
    %8599 = vsyncpa [#allocation17], 1
    %8600 = vsyncpa [#allocation20], 1
    %8601 = vsyncpa [#allocation23], 1
    %8602 = vsyncpa [#allocation26], 1
    %8603 = vsyncpa [#allocation29], 1
    %8604 = vsyncpa [#allocation32], 1
    %8605 = vsyncpa [#allocation35], 1
    %8606 = vsyncpa [#allocation38], 1
    %8607 = vsyncpa [#allocation41], 1
    %8608 = vsyncpa [#allocation44], 1
    %8609 = vsyncpa [#allocation47], 1
    %8610 = vsyncpa [#allocation50], 1

</llo_original>
